<compile_context>
chip_gen: v7x
topology: tpu7x:2x2x1
jax: 0.10.0
libtpu: 0.0.40
codegen_flags: <defaults>
</compile_context>

<pallas_src>
import functools
import inspect

import jax
import jax.numpy as jnp
import numpy as np
from jax.experimental import pallas as pl
from jax.experimental.pallas import tpu as pltpu

# order of the host-prepared (kernel-ready) parameters
PREP_ORDER = (
    "ln1_g", "ln1_b", "wqkv", "bqkv", "wout", "bout",
    "ln2_g", "ln2_b", "wfc", "bfc", "wproj", "bproj",
)

_HAS_PIPELINE_MODE = (
    hasattr(pl, "Buffered")
    and "pipeline_mode" in inspect.signature(pl.BlockSpec).parameters
)


def _layernorm(x, g, b, eps=1e-5):
    # LayerNorm subclass always computes in float32.
    xf = x.astype(jnp.float32)
    mu = jnp.mean(xf, axis=-1, keepdims=True)
    var = jnp.mean(jnp.square(xf - mu), axis=-1, keepdims=True)
    return (xf - mu) * jax.lax.rsqrt(var + eps) * g + b


def _attention_mlp(xt, q, kv, mask,
                   wout_ref, bout_ref, ln2g_ref, ln2b_ref,
                   wfc_ref, bfc_ref, wproj_ref, bproj_ref,
                   o_ref, num_heads):
    """Shared tail: multi-head attention (given q / kv rows) + residual + MLP."""
    tq, D = xt.shape
    T = kv.shape[0]
    H = num_heads
    hd = D // H

    def to_heads(z, n):                      # (n, D) -> (H, n, hd), bf16
        return z.astype(jnp.bfloat16).reshape(n, H, hd).transpose(1, 0, 2)

    qh = to_heads(q, tq)                     # (H, tq, hd)
    kh = to_heads(kv[:, :D], T)              # (H, T,  hd)
    vh = to_heads(kv[:, D:], T)              # (H, T,  hd)

    # batched-over-heads attention on the MXU (leading batch dim -> clean lowering)
    s = jnp.einsum("hqd,hkd->hqk", qh, kh,
                   preferred_element_type=jnp.float32)          # (H, tq, T) f32
    s = s + mask[None, :, :].astype(jnp.float32)
    s = s - jnp.max(s, axis=-1, keepdims=True)
    p = jnp.exp(s)
    p = p * pl.reciprocal(jnp.sum(p, axis=-1, keepdims=True), approx=True)

    ctx = jnp.einsum("hqk,hkd->hqd", p.astype(jnp.bfloat16), vh,
                     preferred_element_type=jnp.float32)        # (H, tq, hd)
    attn = ctx.transpose(1, 0, 2).reshape(tq, D)                # (tq, D)
    attn = jnp.dot(attn.astype(jnp.bfloat16), wout_ref[...],
                   preferred_element_type=jnp.float32) + bout_ref[0]

    x1 = xt + attn

    # ---------------- MLP branch ----------------
    xn2 = _layernorm(x1, ln2g_ref[0], ln2b_ref[0])
    h = jnp.dot(xn2.astype(jnp.bfloat16), wfc_ref[...],
                preferred_element_type=jnp.float32) + bfc_ref[0]        # (tq, 4D)
    h = (h * jax.nn.sigmoid(1.702 * h)).astype(jnp.bfloat16)            # QuickGELU, early bf16
    y = jnp.dot(h, wproj_ref[...],
                preferred_element_type=jnp.float32) + bproj_ref[0]

    o_ref[0] = (x1 + y).astype(o_ref.dtype)


def resblock_kernel_fused(x_ref, mask_ref,
                          ln1g_ref, ln1b_ref, wqkv_ref, bqkv_ref, wout_ref, bout_ref,
                          ln2g_ref, ln2b_ref, wfc_ref, bfc_ref, wproj_ref, bproj_ref,
                          o_ref, *, num_heads):
    """Single-tile path: one fused QKV matmul over the whole sequence."""
    xt = x_ref[0].astype(jnp.float32)                  # (T, D) residual stream, f32
    D = xt.shape[1]
    xn = _layernorm(xt, ln1g_ref[0], ln1b_ref[0])
    # LoRA and 1/sqrt(hd) Q-scaling are pre-folded into wqkv / bqkv on the host.
    qkv = jnp.dot(xn.astype(jnp.bfloat16), wqkv_ref[...],
                  preferred_element_type=jnp.float32) + bqkv_ref[0]      # (T, 3D)
    _attention_mlp(xt, qkv[:, :D], qkv[:, D:], mask_ref[0],
                   wout_ref, bout_ref, ln2g_ref, ln2b_ref,
                   wfc_ref, bfc_ref, wproj_ref, bproj_ref, o_ref, num_heads)


def resblock_kernel_tiled(x_ref, xf_ref, mask_ref,
                          ln1g_ref, ln1b_ref, wqkv_ref, bqkv_ref, wout_ref, bout_ref,
                          ln2g_ref, ln2b_ref, wfc_ref, bfc_ref, wproj_ref, bproj_ref,
                          o_ref, *, num_heads):
    """Sequence-tiled path: Q / residual / MLP per query tile, K/V from full T."""
    xt = x_ref[0].astype(jnp.float32)                  # (tq, D) query tile
    xf = xf_ref[0].astype(jnp.float32)                 # (T,  D) full sequence
    D = xt.shape[1]
    g1, b1 = ln1g_ref[0], ln1b_ref[0]
    xn_t = _layernorm(xt, g1, b1)
    xn_f = _layernorm(xf, g1, b1)
    q = jnp.dot(xn_t.astype(jnp.bfloat16), wqkv_ref[:, :D],
                preferred_element_type=jnp.float32) + bqkv_ref[0, :D]    # (tq, D)
    kv = jnp.dot(xn_f.astype(jnp.bfloat16), wqkv_ref[:, D:],
                 preferred_element_type=jnp.float32) + bqkv_ref[0, D:]   # (T, 2D)
    _attention_mlp(xt, q, kv, mask_ref[0],
                   wout_ref, bout_ref, ln2g_ref, ln2b_ref,
                   wfc_ref, bfc_ref, wproj_ref, bproj_ref, o_ref, num_heads)


def prepare_layer(p, num_heads):
    """Host-side parameter prep (call ONCE at model load, outside the forward jit):
    LoRA fold, Q-scale fold, transpose to (in, out), bf16 cast."""
    D = p["ln1_g"].shape[-1]
    hd = D // num_heads
    scaling = float(hd) ** -0.5

    # x @ A.T @ B.T == x @ (B @ A).T  ->  fold LoRA into the fused QKV weight.
    w_eff = p["in_w"] + p["lora_b"] @ p["lora_a"]                        # (3D, D)
    b_eff = p["in_b"]                                                    # (1, 3D)
    # Fold the 1/sqrt(head_dim) scaling into the Q rows of weight and bias.
    row_scale = jnp.concatenate(
        [jnp.full((D,), scaling, jnp.float32), jnp.ones((2 * D,), jnp.float32)])
    w_eff = w_eff * row_scale[:, None]
    b_eff = b_eff * row_scale[None, :]

    f32, bf16 = jnp.float32, jnp.bfloat16
    # TODO(synk): store these as int8 (v5e/v6e) or fp8 (v7x) with per-channel
    # scales to halve weight HBM traffic in the mem-bound regime.
    return {
        "ln1_g": p["ln1_g"].astype(f32), "ln1_b": p["ln1_b"].astype(f32),
        "wqkv": w_eff.T.astype(bf16),      "bqkv": b_eff.astype(f32),      # (D, 3D), (1, 3D)
        "wout": p["out_w"].T.astype(bf16), "bout": p["out_b"].astype(f32), # (D, D),  (1, D)
        "ln2_g": p["ln2_g"].astype(f32), "ln2_b": p["ln2_b"].astype(f32),
        "wfc": p["fc_w"].T.astype(bf16),   "bfc": p["fc_b"].astype(f32),   # (D, 4D), (1, 4D)
        "wproj": p["proj_w"].T.astype(bf16), "bproj": p["proj_b"].astype(f32),  # (4D, D), (1, D)
    }


def _pick_tq(T, tq_max):
    """Largest clean query-tile size."""
    if T <= tq_max:
        return T
    for cand in range(tq_max, 0, -128):
        if cand >= 128 and T % cand == 0:
            return cand
    # TODO(synk): for awkward T (e.g. ViT's 257) pad the sequence to a multiple
    # of 128 outside the kernel instead of falling back to full-T blocks.
    return T


def _spec(shape, index_map, *, single_buffer=False):
    if single_buffer and _HAS_PIPELINE_MODE:
        # Constant-index blocks are never re-fetched -> a single VMEM buffer is
        # enough; this halves resident weight VMEM vs. default double buffering.
        return pl.BlockSpec(shape, index_map, pipeline_mode=pl.Buffered(1))
    return pl.BlockSpec(shape, index_map)


def run_resblock(x, mask, p, num_heads, *, tq_max=256, use_buffered=True):
    B, T, D = x.shape
    tq = _pick_tq(T, tq_max)
    nT = T // tq
    tiled = nT > 1

    x_tile_spec = pl.BlockSpec((1, tq, D), lambda b, t: (b, t, 0))
    out_spec = pl.BlockSpec((1, tq, D), lambda b, t: (b, t, 0))

    # Mask (bf16) is usually shared across the batch.
    if mask.shape[0] == 1:
        mask_spec = _spec((1, tq, T), lambda b, t: (0, t, 0),
                          single_buffer=use_buffered and not tiled)
    else:
        mask_spec = pl.BlockSpec((1, tq, T), lambda b, t: (b, t, 0))

    weight_specs = [
        _spec(p[k].shape, lambda b, t, _nd=p[k].ndim: (0,) * _nd,
              single_buffer=use_buffered)
        for k in PREP_ORDER
    ]

    if tiled:
        kernel = functools.partial(resblock_kernel_tiled, num_heads=num_heads)
        x_full_spec = pl.BlockSpec((1, T, D), lambda b, t: (b, 0, 0))
        in_specs = [x_tile_spec, x_full_spec, mask_spec] + weight_specs
        args = (x, x, mask)            # x passed twice: query tile + full-T K/V view
    else:
        kernel = functools.partial(resblock_kernel_fused, num_heads=num_heads)
        in_specs = [x_tile_spec, mask_spec] + weight_specs
        args = (x, mask)

    return pl.pallas_call(
        kernel,
        out_shape=jax.ShapeDtypeStruct((B, T, D), x.dtype),
        grid_spec=pltpu.PrefetchScalarGridSpec(
            num_scalar_prefetch=0,
            grid=(B, nT),
            in_specs=in_specs,
            out_specs=out_spec,
        ),
        compiler_params=pltpu.CompilerParams(
            dimension_semantics=("parallel", "parallel"),
            # 48 MiB: above the 32 MiB default on v5e/v6e but leaves headroom
            # for Mosaic scratch within v7x's 64 MiB physical per-TC VMEM.
            vmem_limit_bytes=48 * 1024 * 1024,
        ),
    )(*args, *[p[k] for k in PREP_ORDER])


def transformer_forward(x, mask, prepped_layers, *, num_heads, tq_max=256,
                        use_buffered=True):
    # Transformer.forward: sequential stack of ResidualAttentionBlocks, returns x.
    # TODO(synk): cross-layer weight prefetch (P10) / 2-layer fusion would hide
    # the per-layer weight DMA at this boundary.
    for p in prepped_layers:
        x = run_resblock(x, mask, p, num_heads, tq_max=tq_max,
                         use_buffered=use_buffered)
    return x


def run_forward(x, mask_bf16, prepped, num_heads, tq_max):
    """jit + run; falls back to default double buffering if pipeline_mode /
    Buffered(1) is not supported by this jax/Mosaic build."""
    for use_buffered in (True, False):
        fwd = jax.jit(functools.partial(
            transformer_forward, num_heads=num_heads, tq_max=tq_max,
            use_buffered=use_buffered))
        try:
            return jax.block_until_ready(fwd(x, mask_bf16, prepped))
        except Exception:
            if not use_buffered:
                raise


# ---------------- pure-JAX reference (mirrors the PyTorch math, f32) ----------------
def _ref_block(x, mask, p, H):
    B, T, D = x.shape
    hd = D // H

    def ln(z, g, b):
        mu = z.mean(-1, keepdims=True)
        var = ((z - mu) ** 2).mean(-1, keepdims=True)
        return (z - mu) / jnp.sqrt(var + 1e-5) * g[0] + b[0]

    xn = ln(x, p["ln1_g"], p["ln1_b"])
    qkv = xn @ p["in_w"].T + p["in_b"][0]
    qkv = qkv + (xn @ p["lora_a"].T) @ p["lora_b"].T
    qkv = qkv.reshape(B, T, 3, H, hd).transpose(2, 0, 3, 1, 4)
    q, k, v = qkv[0], qkv[1], qkv[2]
    q = q * (hd ** -0.5)
    attn = jnp.einsum("bhqd,bhkd->bhqk", q, k) + mask[:, None, :, :]
    attn = jax.nn.softmax(attn, axis=-1)
    ao = jnp.einsum("bhqk,bhkd->bhqd", attn, v).transpose(0, 2, 1, 3).reshape(B, T, D)
    ao = ao @ p["out_w"].T + p["out_b"][0]
    x = x + ao
    xn2 = ln(x, p["ln2_g"], p["ln2_b"])
    h = xn2 @ p["fc_w"].T + p["fc_b"][0]
    h = h * jax.nn.sigmoid(1.702 * h)
    return x + (h @ p["proj_w"].T + p["proj_b"][0])


def ref_transformer(x, mask, layer_params, H):
    for p in layer_params:
        x = _ref_block(x, mask, p, H)
    return x


# ---------------- deterministic parameter init (PyTorch layout) ----------------
def init_layer(key, D, H, r):
    ks = jax.random.split(key, 8)
    s = D ** -0.5
    return {
        "ln1_g": jnp.ones((1, D), jnp.float32),
        "ln1_b": jnp.zeros((1, D), jnp.float32),
        "in_w": jax.random.normal(ks[0], (3 * D, D), jnp.float32) * s,
        "in_b": jax.random.normal(ks[1], (1, 3 * D), jnp.float32) * 0.02,
        "lora_a": jax.random.normal(ks[2], (r, D), jnp.float32) * s,
        # module inits LoRA_b to zeros; use randoms so the LoRA path is exercised.
        "lora_b": jax.random.normal(ks[3], (3 * D, r), jnp.float32) * 0.1,
        "out_w": jax.random.normal(ks[4], (D, D), jnp.float32) * s,
        "out_b": jnp.zeros((1, D), jnp.float32),
        "ln2_g": jnp.ones((1, D), jnp.float32),
        "ln2_b": jnp.zeros((1, D), jnp.float32),
        "fc_w": jax.random.normal(ks[5], (4 * D, D), jnp.float32) * s,
        "fc_b": jnp.zeros((1, 4 * D), jnp.float32),
        "proj_w": jax.random.normal(ks[6], (D, 4 * D), jnp.float32) * ((4 * D) ** -0.5),
        "proj_b": jnp.zeros((1, D), jnp.float32),
    }


if __name__ == "__main__":
    # ---- test 1: small shapes, single-tile (fused QKV) path ----
    B, T, D, H, R, L = 2, 8, 32, 4, 4, 2   # batch, seq, width, heads, lora_dim, layers
    key = jax.random.PRNGKey(0)
    kx, kp = jax.random.split(key)
    x = jax.random.normal(kx, (B, T, D), jnp.float32)
    causal = jnp.where(jnp.tril(jnp.ones((T, T), jnp.float32)) > 0, 0.0, -1e4)
    attn_mask = causal[None, :, :]                          # shared (1, T, T)
    params = [init_layer(k, D, H, R) for k in jax.random.split(kp, L)]

    # Parameter / mask prep happens once, OUTSIDE the per-forward jitted path.
    prepped = [prepare_layer(p, H) for p in params]
    mask_bf16 = attn_mask.astype(jnp.bfloat16)

    out = run_forward(x, mask_bf16, prepped, H, 256)
    ref = ref_transformer(x, attn_mask, params, H)
    # bf16 MXU operands -> loosen tolerance vs. the f32 reference.
    np.testing.assert_allclose(np.asarray(out), np.asarray(ref), rtol=3e-2, atol=3e-2)

    # ---- test 2: longer sequence, exercises the sequence-tiled path + per-batch mask ----
    B2, T2, D2, H2, R2 = 2, 256, 64, 4, 4
    k2x, k2p = jax.random.split(jax.random.PRNGKey(1))
    x2 = jax.random.normal(k2x, (B2, T2, D2), jnp.float32)
    causal2 = jnp.where(jnp.tril(jnp.ones((T2, T2), jnp.float32)) > 0, 0.0, -1e4)
    mask2 = jnp.stack([causal2, jnp.zeros((T2, T2), jnp.float32)])   # (B2, T2, T2)
    params2 = [init_layer(k2p, D2, H2, R2)]
    prepped2 = [prepare_layer(p, H2) for p in params2]

    out2 = run_forward(x2, mask2.astype(jnp.bfloat16), prepped2, H2, 128)  # tq=128, 2 tiles
    ref2 = ref_transformer(x2, mask2, params2, H2)
    np.testing.assert_allclose(np.asarray(out2), np.asarray(ref2), rtol=3e-2, atol=3e-2)

    print("KERNEL_OK")
</pallas_src>

<mosaic_0001>
module attributes {stable_mosaic.version = 11 : i64} {
  func.func @resblock_kernel_fused(%arg0: i32, %arg1: i32, %arg2: memref<1x8x32xf32, #tpu.memory_space<vmem>>, %arg3: memref<1x8x8xbf16, #tpu.memory_space<vmem>>, %arg4: memref<1x32xf32, #tpu.memory_space<vmem>>, %arg5: memref<1x32xf32, #tpu.memory_space<vmem>>, %arg6: memref<32x96xbf16, #tpu.memory_space<vmem>>, %arg7: memref<1x96xf32, #tpu.memory_space<vmem>>, %arg8: memref<32x32xbf16, #tpu.memory_space<vmem>>, %arg9: memref<1x32xf32, #tpu.memory_space<vmem>>, %arg10: memref<1x32xf32, #tpu.memory_space<vmem>>, %arg11: memref<1x32xf32, #tpu.memory_space<vmem>>, %arg12: memref<32x128xbf16, #tpu.memory_space<vmem>>, %arg13: memref<1x128xf32, #tpu.memory_space<vmem>>, %arg14: memref<128x32xbf16, #tpu.memory_space<vmem>>, %arg15: memref<1x32xf32, #tpu.memory_space<vmem>>, %arg16: memref<1x8x32xf32, #tpu.memory_space<vmem>>) attributes {dimension_semantics = [#tpu.dimension_semantics<parallel>, #tpu.dimension_semantics<parallel>], iteration_bounds = array<i64: 2, 1>, scalar_prefetch = 0 : i64, scratch_operands = 0 : i64, tpu.core_type = #tpu.core_type<tc>, window_params = [{transform_indices = @transform_0, window_bounds = array<i64: 1, 8, 32>}, {pipeline_mode = #tpu.pipeline_mode<synchronous>, transform_indices = @transform_1, window_bounds = array<i64: 1, 8, 8>}, {pipeline_mode = #tpu.pipeline_mode<synchronous>, transform_indices = @transform_2, window_bounds = array<i64: 1, 32>}, {pipeline_mode = #tpu.pipeline_mode<synchronous>, transform_indices = @transform_3, window_bounds = array<i64: 1, 32>}, {pipeline_mode = #tpu.pipeline_mode<synchronous>, transform_indices = @transform_4, window_bounds = array<i64: 32, 96>}, {pipeline_mode = #tpu.pipeline_mode<synchronous>, transform_indices = @transform_5, window_bounds = array<i64: 1, 96>}, {pipeline_mode = #tpu.pipeline_mode<synchronous>, transform_indices = @transform_6, window_bounds = array<i64: 32, 32>}, {pipeline_mode = #tpu.pipeline_mode<synchronous>, transform_indices = @transform_7, window_bounds = array<i64: 1, 32>}, {pipeline_mode = #tpu.pipeline_mode<synchronous>, transform_indices = @transform_8, window_bounds = array<i64: 1, 32>}, {pipeline_mode = #tpu.pipeline_mode<synchronous>, transform_indices = @transform_9, window_bounds = array<i64: 1, 32>}, {pipeline_mode = #tpu.pipeline_mode<synchronous>, transform_indices = @transform_10, window_bounds = array<i64: 32, 128>}, {pipeline_mode = #tpu.pipeline_mode<synchronous>, transform_indices = @transform_11, window_bounds = array<i64: 1, 128>}, {pipeline_mode = #tpu.pipeline_mode<synchronous>, transform_indices = @transform_12, window_bounds = array<i64: 128, 32>}, {pipeline_mode = #tpu.pipeline_mode<synchronous>, transform_indices = @transform_13, window_bounds = array<i64: 1, 32>}, {transform_indices = @transform_14, window_bounds = array<i64: 1, 8, 32>}]} {
    %c0 = arith.constant 0 : index
    %c0_0 = arith.constant 0 : index
    %c0_1 = arith.constant 0 : index
    %0 = vector.load %arg2[%c0, %c0_0, %c0_1] : memref<1x8x32xf32, #tpu.memory_space<vmem>>, vector<1x8x32xf32>
    %1 = vector.shape_cast %0 : vector<1x8x32xf32> to vector<8x32xf32>
    %c0_2 = arith.constant 0 : index
    %c0_3 = arith.constant 0 : index
    %2 = vector.load %arg4[%c0_2, %c0_3] : memref<1x32xf32, #tpu.memory_space<vmem>>, vector<1x32xf32>
    %3 = vector.shape_cast %2 : vector<1x32xf32> to vector<32xf32>
    %c0_4 = arith.constant 0 : index
    %c0_5 = arith.constant 0 : index
    %4 = vector.load %arg5[%c0_4, %c0_5] : memref<1x32xf32, #tpu.memory_space<vmem>>, vector<1x32xf32>
    %5 = vector.shape_cast %4 : vector<1x32xf32> to vector<32xf32>
    %cst = arith.constant dense<0.000000e+00> : vector<8xf32>
    %6 = vector.multi_reduction <add>, %1, %cst [1] : vector<8x32xf32> to vector<8xf32>
    %7 = vector.shape_cast %6 : vector<8xf32> to vector<8x1xf32>
    %cst_6 = arith.constant 3.200000e+01 : f32
    %8 = vector.broadcast %cst_6 : f32 to vector<8x1xf32>
    %9 = arith.divf %7, %8 : vector<8x1xf32>
    %10 = vector.broadcast %9 : vector<8x1xf32> to vector<8x32xf32>
    %11 = arith.subf %1, %10 : vector<8x32xf32>
    %12 = arith.mulf %11, %11 : vector<8x32xf32>
    %cst_7 = arith.constant dense<0.000000e+00> : vector<8xf32>
    %13 = vector.multi_reduction <add>, %12, %cst_7 [1] : vector<8x32xf32> to vector<8xf32>
    %14 = vector.shape_cast %13 : vector<8xf32> to vector<8x1xf32>
    %cst_8 = arith.constant 3.200000e+01 : f32
    %15 = vector.broadcast %cst_8 : f32 to vector<8x1xf32>
    %16 = arith.divf %14, %15 : vector<8x1xf32>
    %17 = vector.broadcast %9 : vector<8x1xf32> to vector<8x32xf32>
    %18 = arith.subf %1, %17 : vector<8x32xf32>
    %cst_9 = arith.constant 9.99999974E-6 : f32
    %19 = vector.broadcast %cst_9 : f32 to vector<8x1xf32>
    %20 = arith.addf %16, %19 : vector<8x1xf32>
    %21 = math.rsqrt %20 : vector<8x1xf32>
    %22 = vector.broadcast %21 : vector<8x1xf32> to vector<8x32xf32>
    %23 = arith.mulf %18, %22 : vector<8x32xf32>
    %24 = vector.shape_cast %3 : vector<32xf32> to vector<1x32xf32>
    %25 = vector.broadcast %24 : vector<1x32xf32> to vector<8x32xf32>
    %26 = arith.mulf %23, %25 : vector<8x32xf32>
    %27 = vector.shape_cast %5 : vector<32xf32> to vector<1x32xf32>
    %28 = vector.broadcast %27 : vector<1x32xf32> to vector<8x32xf32>
    %29 = arith.addf %26, %28 : vector<8x32xf32>
    %30 = arith.truncf %29 : vector<8x32xf32> to vector<8x32xbf16>
    %c0_10 = arith.constant 0 : index
    %c0_11 = arith.constant 0 : index
    %31 = vector.load %arg6[%c0_10, %c0_11] : memref<32x96xbf16, #tpu.memory_space<vmem>>, vector<32x96xbf16>
    %cst_12 = arith.constant dense<0.000000e+00> : vector<8x96xf32>
    %32 = tpu.matmul %30, %31, %cst_12 {dimension_numbers = #tpu.dot_dimension_numbers<[1], [0], [0], [1], [0, 0, 1, 1], [], []>} : vector<8x32xbf16>, vector<32x96xbf16>, vector<8x96xf32> -> vector<8x96xf32>
    %c0_13 = arith.constant 0 : index
    %c0_14 = arith.constant 0 : index
    %33 = vector.load %arg7[%c0_13, %c0_14] : memref<1x96xf32, #tpu.memory_space<vmem>>, vector<1x96xf32>
    %34 = vector.shape_cast %33 : vector<1x96xf32> to vector<96xf32>
    %35 = vector.shape_cast %34 : vector<96xf32> to vector<1x96xf32>
    %36 = vector.broadcast %35 : vector<1x96xf32> to vector<8x96xf32>
    %37 = arith.addf %32, %36 : vector<8x96xf32>
    %38 = vector.extract_strided_slice %37 {offsets = [0, 0], sizes = [8, 32], strides = [1, 1]} : vector<8x96xf32> to vector<8x32xf32>
    %39 = vector.extract_strided_slice %37 {offsets = [0, 32], sizes = [8, 64], strides = [1, 1]} : vector<8x96xf32> to vector<8x64xf32>
    %c0_15 = arith.constant 0 : index
    %c0_16 = arith.constant 0 : index
    %c0_17 = arith.constant 0 : index
    %40 = vector.load %arg3[%c0_15, %c0_16, %c0_17] : memref<1x8x8xbf16, #tpu.memory_space<vmem>>, vector<1x8x8xbf16>
    %41 = vector.shape_cast %40 : vector<1x8x8xbf16> to vector<8x8xbf16>
    %42 = arith.truncf %38 : vector<8x32xf32> to vector<8x32xbf16>
    %43 = vector.shape_cast %42 : vector<8x32xbf16> to vector<8x4x8xbf16>
    %44 = tpu.transpose %43, [1, 0, 2] : vector<8x4x8xbf16> -> vector<4x8x8xbf16>
    %45 = vector.extract_strided_slice %39 {offsets = [0, 0], sizes = [8, 32], strides = [1, 1]} : vector<8x64xf32> to vector<8x32xf32>
    %46 = arith.truncf %45 : vector<8x32xf32> to vector<8x32xbf16>
    %47 = vector.shape_cast %46 : vector<8x32xbf16> to vector<8x4x8xbf16>
    %48 = tpu.transpose %47, [1, 0, 2] : vector<8x4x8xbf16> -> vector<4x8x8xbf16>
    %49 = vector.extract_strided_slice %39 {offsets = [0, 32], sizes = [8, 32], strides = [1, 1]} : vector<8x64xf32> to vector<8x32xf32>
    %50 = arith.truncf %49 : vector<8x32xf32> to vector<8x32xbf16>
    %51 = vector.shape_cast %50 : vector<8x32xbf16> to vector<8x4x8xbf16>
    %52 = tpu.transpose %51, [1, 0, 2] : vector<8x4x8xbf16> -> vector<4x8x8xbf16>
    "tpu.trace_start"() <{level = 10 : i32, message = "hqd,hkd->hqk"}> : () -> ()
    %cst_18 = arith.constant dense<0.000000e+00> : vector<4x8x8xf32>
    %53 = tpu.matmul %44, %48, %cst_18 {dimension_numbers = #tpu.dot_dimension_numbers<[2], [2], [1], [1], [0, 0, 0, 1, 1, 1], [0], [0]>} : vector<4x8x8xbf16>, vector<4x8x8xbf16>, vector<4x8x8xf32> -> vector<4x8x8xf32>
    "tpu.trace_stop"() : () -> ()
    %54 = vector.shape_cast %41 : vector<8x8xbf16> to vector<1x8x8xbf16>
    %55 = arith.extf %54 : vector<1x8x8xbf16> to vector<1x8x8xf32>
    %56 = vector.broadcast %55 : vector<1x8x8xf32> to vector<4x8x8xf32>
    %57 = arith.addf %53, %56 : vector<4x8x8xf32>
    %cst_19 = arith.constant dense<0xFF800000> : vector<4x8xf32>
    %58 = vector.multi_reduction <maximumf>, %57, %cst_19 [2] : vector<4x8x8xf32> to vector<4x8xf32>
    %59 = vector.shape_cast %58 : vector<4x8xf32> to vector<4x8x1xf32>
    %60 = vector.broadcast %59 : vector<4x8x1xf32> to vector<4x8x8xf32>
    %61 = arith.subf %57, %60 : vector<4x8x8xf32>
    %62 = math.exp %61 : vector<4x8x8xf32>
    %cst_20 = arith.constant dense<0.000000e+00> : vector<4x8xf32>
    %63 = vector.multi_reduction <add>, %62, %cst_20 [2] : vector<4x8x8xf32> to vector<4x8xf32>
    %64 = vector.shape_cast %63 : vector<4x8xf32> to vector<4x8x1xf32>
    %65 = tpu.reciprocal %64 {approx = true} : vector<4x8x1xf32> -> vector<4x8x1xf32>
    %66 = vector.broadcast %65 : vector<4x8x1xf32> to vector<4x8x8xf32>
    %67 = arith.mulf %62, %66 : vector<4x8x8xf32>
    %68 = arith.truncf %67 : vector<4x8x8xf32> to vector<4x8x8xbf16>
    "tpu.trace_start"() <{level = 10 : i32, message = "hqk,hkd->hqd"}> : () -> ()
    %cst_21 = arith.constant dense<0.000000e+00> : vector<4x8x8xf32>
    %69 = tpu.matmul %68, %52, %cst_21 {dimension_numbers = #tpu.dot_dimension_numbers<[2], [1], [1], [2], [0, 0, 0, 1, 1, 2], [0], [0]>} : vector<4x8x8xbf16>, vector<4x8x8xbf16>, vector<4x8x8xf32> -> vector<4x8x8xf32>
    "tpu.trace_stop"() : () -> ()
    %70 = tpu.transpose %69, [1, 0, 2] : vector<4x8x8xf32> -> vector<8x4x8xf32>
    %71 = vector.shape_cast %70 : vector<8x4x8xf32> to vector<8x32xf32>
    %72 = arith.truncf %71 : vector<8x32xf32> to vector<8x32xbf16>
    %c0_22 = arith.constant 0 : index
    %c0_23 = arith.constant 0 : index
    %73 = vector.load %arg8[%c0_22, %c0_23] : memref<32x32xbf16, #tpu.memory_space<vmem>>, vector<32x32xbf16>
    %cst_24 = arith.constant dense<0.000000e+00> : vector<8x32xf32>
    %74 = tpu.matmul %72, %73, %cst_24 {dimension_numbers = #tpu.dot_dimension_numbers<[1], [0], [0], [1], [0, 0, 1, 1], [], []>} : vector<8x32xbf16>, vector<32x32xbf16>, vector<8x32xf32> -> vector<8x32xf32>
    %c0_25 = arith.constant 0 : index
    %c0_26 = arith.constant 0 : index
    %75 = vector.load %arg9[%c0_25, %c0_26] : memref<1x32xf32, #tpu.memory_space<vmem>>, vector<1x32xf32>
    %76 = vector.shape_cast %75 : vector<1x32xf32> to vector<32xf32>
    %77 = vector.shape_cast %76 : vector<32xf32> to vector<1x32xf32>
    %78 = vector.broadcast %77 : vector<1x32xf32> to vector<8x32xf32>
    %79 = arith.addf %74, %78 : vector<8x32xf32>
    %80 = arith.addf %1, %79 : vector<8x32xf32>
    %c0_27 = arith.constant 0 : index
    %c0_28 = arith.constant 0 : index
    %81 = vector.load %arg10[%c0_27, %c0_28] : memref<1x32xf32, #tpu.memory_space<vmem>>, vector<1x32xf32>
    %82 = vector.shape_cast %81 : vector<1x32xf32> to vector<32xf32>
    %c0_29 = arith.constant 0 : index
    %c0_30 = arith.constant 0 : index
    %83 = vector.load %arg11[%c0_29, %c0_30] : memref<1x32xf32, #tpu.memory_space<vmem>>, vector<1x32xf32>
    %84 = vector.shape_cast %83 : vector<1x32xf32> to vector<32xf32>
    %cst_31 = arith.constant dense<0.000000e+00> : vector<8xf32>
    %85 = vector.multi_reduction <add>, %80, %cst_31 [1] : vector<8x32xf32> to vector<8xf32>
    %86 = vector.shape_cast %85 : vector<8xf32> to vector<8x1xf32>
    %cst_32 = arith.constant 3.200000e+01 : f32
    %87 = vector.broadcast %cst_32 : f32 to vector<8x1xf32>
    %88 = arith.divf %86, %87 : vector<8x1xf32>
    %89 = vector.broadcast %88 : vector<8x1xf32> to vector<8x32xf32>
    %90 = arith.subf %80, %89 : vector<8x32xf32>
    %91 = arith.mulf %90, %90 : vector<8x32xf32>
    %cst_33 = arith.constant dense<0.000000e+00> : vector<8xf32>
    %92 = vector.multi_reduction <add>, %91, %cst_33 [1] : vector<8x32xf32> to vector<8xf32>
    %93 = vector.shape_cast %92 : vector<8xf32> to vector<8x1xf32>
    %cst_34 = arith.constant 3.200000e+01 : f32
    %94 = vector.broadcast %cst_34 : f32 to vector<8x1xf32>
    %95 = arith.divf %93, %94 : vector<8x1xf32>
    %96 = vector.broadcast %88 : vector<8x1xf32> to vector<8x32xf32>
    %97 = arith.subf %80, %96 : vector<8x32xf32>
    %cst_35 = arith.constant 9.99999974E-6 : f32
    %98 = vector.broadcast %cst_35 : f32 to vector<8x1xf32>
    %99 = arith.addf %95, %98 : vector<8x1xf32>
    %100 = math.rsqrt %99 : vector<8x1xf32>
    %101 = vector.broadcast %100 : vector<8x1xf32> to vector<8x32xf32>
    %102 = arith.mulf %97, %101 : vector<8x32xf32>
    %103 = vector.shape_cast %82 : vector<32xf32> to vector<1x32xf32>
    %104 = vector.broadcast %103 : vector<1x32xf32> to vector<8x32xf32>
    %105 = arith.mulf %102, %104 : vector<8x32xf32>
    %106 = vector.shape_cast %84 : vector<32xf32> to vector<1x32xf32>
    %107 = vector.broadcast %106 : vector<1x32xf32> to vector<8x32xf32>
    %108 = arith.addf %105, %107 : vector<8x32xf32>
    %109 = arith.truncf %108 : vector<8x32xf32> to vector<8x32xbf16>
    %c0_36 = arith.constant 0 : index
    %c0_37 = arith.constant 0 : index
    %110 = vector.load %arg12[%c0_36, %c0_37] : memref<32x128xbf16, #tpu.memory_space<vmem>>, vector<32x128xbf16>
    %cst_38 = arith.constant dense<0.000000e+00> : vector<8x128xf32>
    %111 = tpu.matmul %109, %110, %cst_38 {dimension_numbers = #tpu.dot_dimension_numbers<[1], [0], [0], [1], [0, 0, 1, 1], [], []>} : vector<8x32xbf16>, vector<32x128xbf16>, vector<8x128xf32> -> vector<8x128xf32>
    %c0_39 = arith.constant 0 : index
    %c0_40 = arith.constant 0 : index
    %112 = vector.load %arg13[%c0_39, %c0_40] : memref<1x128xf32, #tpu.memory_space<vmem>>, vector<1x128xf32>
    %113 = vector.shape_cast %112 : vector<1x128xf32> to vector<128xf32>
    %114 = vector.shape_cast %113 : vector<128xf32> to vector<1x128xf32>
    %115 = vector.broadcast %114 : vector<1x128xf32> to vector<8x128xf32>
    %116 = arith.addf %111, %115 : vector<8x128xf32>
    %cst_41 = arith.constant 1.702000e+00 : f32
    %117 = vector.broadcast %cst_41 : f32 to vector<8x128xf32>
    %118 = arith.mulf %117, %116 : vector<8x128xf32>
    %119 = arith.negf %118 : vector<8x128xf32>
    %120 = math.exp %119 : vector<8x128xf32>
    %cst_42 = arith.constant 1.000000e+00 : f32
    %121 = vector.broadcast %cst_42 : f32 to vector<8x128xf32>
    %122 = arith.addf %121, %120 : vector<8x128xf32>
    %123 = arith.divf %121, %122 : vector<8x128xf32>
    %124 = arith.mulf %116, %123 : vector<8x128xf32>
    %125 = arith.truncf %124 : vector<8x128xf32> to vector<8x128xbf16>
    %c0_43 = arith.constant 0 : index
    %c0_44 = arith.constant 0 : index
    %126 = vector.load %arg14[%c0_43, %c0_44] : memref<128x32xbf16, #tpu.memory_space<vmem>>, vector<128x32xbf16>
    %cst_45 = arith.constant dense<0.000000e+00> : vector<8x32xf32>
    %127 = tpu.matmul %125, %126, %cst_45 {dimension_numbers = #tpu.dot_dimension_numbers<[1], [0], [0], [1], [0, 0, 1, 1], [], []>} : vector<8x128xbf16>, vector<128x32xbf16>, vector<8x32xf32> -> vector<8x32xf32>
    %c0_46 = arith.constant 0 : index
    %c0_47 = arith.constant 0 : index
    %128 = vector.load %arg15[%c0_46, %c0_47] : memref<1x32xf32, #tpu.memory_space<vmem>>, vector<1x32xf32>
    %129 = vector.shape_cast %128 : vector<1x32xf32> to vector<32xf32>
    %130 = vector.shape_cast %129 : vector<32xf32> to vector<1x32xf32>
    %131 = vector.broadcast %130 : vector<1x32xf32> to vector<8x32xf32>
    %132 = arith.addf %127, %131 : vector<8x32xf32>
    %133 = arith.addf %80, %132 : vector<8x32xf32>
    %c0_48 = arith.constant 0 : index
    %c0_49 = arith.constant 0 : index
    %c0_50 = arith.constant 0 : index
    %134 = vector.load %arg16[%c0_48, %c0_49, %c0_50] : memref<1x8x32xf32, #tpu.memory_space<vmem>>, vector<1x8x32xf32>
    %135 = vector.shape_cast %134 : vector<1x8x32xf32> to vector<8x32xf32>
    %136 = vector.shape_cast %133 : vector<8x32xf32> to vector<1x8x32xf32>
    tpu.vector_store %arg16[%c0_48, %c0_49, %c0_50], %136 {strides = array<i32>} : memref<1x8x32xf32, #tpu.memory_space<vmem>>, vector<1x8x32xf32>,
    return
  }
  func.func @transform_0(%arg0: i32, %arg1: i32) -> (i32, i32, i32) {
    %c0_i32 = arith.constant 0 : i32
    %c0_i32_0 = arith.constant 0 : i32
    return %arg0, %arg1, %c0_i32 : i32, i32, i32
  }
  func.func @transform_1(%arg0: i32, %arg1: i32) -> (i32, i32, i32) {
    %c0_i32 = arith.constant 0 : i32
    %c0_i32_0 = arith.constant 0 : i32
    %c0_i32_1 = arith.constant 0 : i32
    return %c0_i32, %arg1, %c0_i32_0 : i32, i32, i32
  }
  func.func @transform_2(%arg0: i32, %arg1: i32) -> (i32, i32) {
    %c0_i32 = arith.constant 0 : i32
    %c0_i32_0 = arith.constant 0 : i32
    %c0_i32_1 = arith.constant 0 : i32
    return %c0_i32, %c0_i32_0 : i32, i32
  }
  func.func @transform_3(%arg0: i32, %arg1: i32) -> (i32, i32) {
    %c0_i32 = arith.constant 0 : i32
    %c0_i32_0 = arith.constant 0 : i32
    %c0_i32_1 = arith.constant 0 : i32
    return %c0_i32, %c0_i32_0 : i32, i32
  }
  func.func @transform_4(%arg0: i32, %arg1: i32) -> (i32, i32) {
    %c0_i32 = arith.constant 0 : i32
    %c0_i32_0 = arith.constant 0 : i32
    %c0_i32_1 = arith.constant 0 : i32
    return %c0_i32, %c0_i32_0 : i32, i32
  }
  func.func @transform_5(%arg0: i32, %arg1: i32) -> (i32, i32) {
    %c0_i32 = arith.constant 0 : i32
    %c0_i32_0 = arith.constant 0 : i32
    %c0_i32_1 = arith.constant 0 : i32
    return %c0_i32, %c0_i32_0 : i32, i32
  }
  func.func @transform_6(%arg0: i32, %arg1: i32) -> (i32, i32) {
    %c0_i32 = arith.constant 0 : i32
    %c0_i32_0 = arith.constant 0 : i32
    %c0_i32_1 = arith.constant 0 : i32
    return %c0_i32, %c0_i32_0 : i32, i32
  }
  func.func @transform_7(%arg0: i32, %arg1: i32) -> (i32, i32) {
    %c0_i32 = arith.constant 0 : i32
    %c0_i32_0 = arith.constant 0 : i32
    %c0_i32_1 = arith.constant 0 : i32
    return %c0_i32, %c0_i32_0 : i32, i32
  }
  func.func @transform_8(%arg0: i32, %arg1: i32) -> (i32, i32) {
    %c0_i32 = arith.constant 0 : i32
    %c0_i32_0 = arith.constant 0 : i32
    %c0_i32_1 = arith.constant 0 : i32
    return %c0_i32, %c0_i32_0 : i32, i32
  }
  func.func @transform_9(%arg0: i32, %arg1: i32) -> (i32, i32) {
    %c0_i32 = arith.constant 0 : i32
    %c0_i32_0 = arith.constant 0 : i32
    %c0_i32_1 = arith.constant 0 : i32
    return %c0_i32, %c0_i32_0 : i32, i32
  }
  func.func @transform_10(%arg0: i32, %arg1: i32) -> (i32, i32) {
    %c0_i32 = arith.constant 0 : i32
    %c0_i32_0 = arith.constant 0 : i32
    %c0_i32_1 = arith.constant 0 : i32
    return %c0_i32, %c0_i32_0 : i32, i32
  }
  func.func @transform_11(%arg0: i32, %arg1: i32) -> (i32, i32) {
    %c0_i32 = arith.constant 0 : i32
    %c0_i32_0 = arith.constant 0 : i32
    %c0_i32_1 = arith.constant 0 : i32
    return %c0_i32, %c0_i32_0 : i32, i32
  }
  func.func @transform_12(%arg0: i32, %arg1: i32) -> (i32, i32) {
    %c0_i32 = arith.constant 0 : i32
    %c0_i32_0 = arith.constant 0 : i32
    %c0_i32_1 = arith.constant 0 : i32
    return %c0_i32, %c0_i32_0 : i32, i32
  }
  func.func @transform_13(%arg0: i32, %arg1: i32) -> (i32, i32) {
    %c0_i32 = arith.constant 0 : i32
    %c0_i32_0 = arith.constant 0 : i32
    %c0_i32_1 = arith.constant 0 : i32
    return %c0_i32, %c0_i32_0 : i32, i32
  }
  func.func @transform_14(%arg0: i32, %arg1: i32) -> (i32, i32, i32) {
    %c0_i32 = arith.constant 0 : i32
    %c0_i32_0 = arith.constant 0 : i32
    return %arg0, %arg1, %c0_i32 : i32, i32, i32
  }
}

module attributes {stable_mosaic.version = 11 : i64} {
  func.func @resblock_kernel_fused(%arg0: i32, %arg1: i32, %arg2: memref<1x8x32xf32, #tpu.memory_space<vmem>>, %arg3: memref<1x8x8xbf16, #tpu.memory_space<vmem>>, %arg4: memref<1x32xf32, #tpu.memory_space<vmem>>, %arg5: memref<1x32xf32, #tpu.memory_space<vmem>>, %arg6: memref<32x96xbf16, #tpu.memory_space<vmem>>, %arg7: memref<1x96xf32, #tpu.memory_space<vmem>>, %arg8: memref<32x32xbf16, #tpu.memory_space<vmem>>, %arg9: memref<1x32xf32, #tpu.memory_space<vmem>>, %arg10: memref<1x32xf32, #tpu.memory_space<vmem>>, %arg11: memref<1x32xf32, #tpu.memory_space<vmem>>, %arg12: memref<32x128xbf16, #tpu.memory_space<vmem>>, %arg13: memref<1x128xf32, #tpu.memory_space<vmem>>, %arg14: memref<128x32xbf16, #tpu.memory_space<vmem>>, %arg15: memref<1x32xf32, #tpu.memory_space<vmem>>, %arg16: memref<1x8x32xf32, #tpu.memory_space<vmem>>) attributes {dimension_semantics = [#tpu.dimension_semantics<parallel>, #tpu.dimension_semantics<parallel>], iteration_bounds = array<i64: 2, 1>, scalar_prefetch = 0 : i64, scratch_operands = 0 : i64, tpu.core_type = #tpu.core_type<tc>, window_params = [{transform_indices = @transform_0, window_bounds = array<i64: 1, 8, 32>}, {pipeline_mode = #tpu.pipeline_mode<synchronous>, transform_indices = @transform_1, window_bounds = array<i64: 1, 8, 8>}, {pipeline_mode = #tpu.pipeline_mode<synchronous>, transform_indices = @transform_2, window_bounds = array<i64: 1, 32>}, {pipeline_mode = #tpu.pipeline_mode<synchronous>, transform_indices = @transform_3, window_bounds = array<i64: 1, 32>}, {pipeline_mode = #tpu.pipeline_mode<synchronous>, transform_indices = @transform_4, window_bounds = array<i64: 32, 96>}, {pipeline_mode = #tpu.pipeline_mode<synchronous>, transform_indices = @transform_5, window_bounds = array<i64: 1, 96>}, {pipeline_mode = #tpu.pipeline_mode<synchronous>, transform_indices = @transform_6, window_bounds = array<i64: 32, 32>}, {pipeline_mode = #tpu.pipeline_mode<synchronous>, transform_indices = @transform_7, window_bounds = array<i64: 1, 32>}, {pipeline_mode = #tpu.pipeline_mode<synchronous>, transform_indices = @transform_8, window_bounds = array<i64: 1, 32>}, {pipeline_mode = #tpu.pipeline_mode<synchronous>, transform_indices = @transform_9, window_bounds = array<i64: 1, 32>}, {pipeline_mode = #tpu.pipeline_mode<synchronous>, transform_indices = @transform_10, window_bounds = array<i64: 32, 128>}, {pipeline_mode = #tpu.pipeline_mode<synchronous>, transform_indices = @transform_11, window_bounds = array<i64: 1, 128>}, {pipeline_mode = #tpu.pipeline_mode<synchronous>, transform_indices = @transform_12, window_bounds = array<i64: 128, 32>}, {pipeline_mode = #tpu.pipeline_mode<synchronous>, transform_indices = @transform_13, window_bounds = array<i64: 1, 32>}, {transform_indices = @transform_14, window_bounds = array<i64: 1, 8, 32>}]} {
    %c0 = arith.constant 0 : index
    %c0_0 = arith.constant 0 : index
    %c0_1 = arith.constant 0 : index
    %0 = vector.load %arg2[%c0, %c0_0, %c0_1] : memref<1x8x32xf32, #tpu.memory_space<vmem>>, vector<1x8x32xf32>
    %1 = vector.shape_cast %0 : vector<1x8x32xf32> to vector<8x32xf32>
    %c0_2 = arith.constant 0 : index
    %c0_3 = arith.constant 0 : index
    %2 = vector.load %arg4[%c0_2, %c0_3] : memref<1x32xf32, #tpu.memory_space<vmem>>, vector<1x32xf32>
    %3 = vector.shape_cast %2 : vector<1x32xf32> to vector<32xf32>
    %c0_4 = arith.constant 0 : index
    %c0_5 = arith.constant 0 : index
    %4 = vector.load %arg5[%c0_4, %c0_5] : memref<1x32xf32, #tpu.memory_space<vmem>>, vector<1x32xf32>
    %5 = vector.shape_cast %4 : vector<1x32xf32> to vector<32xf32>
    %cst = arith.constant dense<0.000000e+00> : vector<8xf32>
    %6 = vector.multi_reduction <add>, %1, %cst [1] : vector<8x32xf32> to vector<8xf32>
    %7 = vector.shape_cast %6 : vector<8xf32> to vector<8x1xf32>
    %cst_6 = arith.constant 3.200000e+01 : f32
    %8 = vector.broadcast %cst_6 : f32 to vector<8x1xf32>
    %9 = arith.divf %7, %8 : vector<8x1xf32>
    %10 = vector.broadcast %9 : vector<8x1xf32> to vector<8x32xf32>
    %11 = arith.subf %1, %10 : vector<8x32xf32>
    %12 = arith.mulf %11, %11 : vector<8x32xf32>
    %cst_7 = arith.constant dense<0.000000e+00> : vector<8xf32>
    %13 = vector.multi_reduction <add>, %12, %cst_7 [1] : vector<8x32xf32> to vector<8xf32>
    %14 = vector.shape_cast %13 : vector<8xf32> to vector<8x1xf32>
    %cst_8 = arith.constant 3.200000e+01 : f32
    %15 = vector.broadcast %cst_8 : f32 to vector<8x1xf32>
    %16 = arith.divf %14, %15 : vector<8x1xf32>
    %17 = vector.broadcast %9 : vector<8x1xf32> to vector<8x32xf32>
    %18 = arith.subf %1, %17 : vector<8x32xf32>
    %cst_9 = arith.constant 9.99999974E-6 : f32
    %19 = vector.broadcast %cst_9 : f32 to vector<8x1xf32>
    %20 = arith.addf %16, %19 : vector<8x1xf32>
    %21 = math.rsqrt %20 : vector<8x1xf32>
    %22 = vector.broadcast %21 : vector<8x1xf32> to vector<8x32xf32>
    %23 = arith.mulf %18, %22 : vector<8x32xf32>
    %24 = vector.shape_cast %3 : vector<32xf32> to vector<1x32xf32>
    %25 = vector.broadcast %24 : vector<1x32xf32> to vector<8x32xf32>
    %26 = arith.mulf %23, %25 : vector<8x32xf32>
    %27 = vector.shape_cast %5 : vector<32xf32> to vector<1x32xf32>
    %28 = vector.broadcast %27 : vector<1x32xf32> to vector<8x32xf32>
    %29 = arith.addf %26, %28 : vector<8x32xf32>
    %30 = arith.truncf %29 : vector<8x32xf32> to vector<8x32xbf16>
    %c0_10 = arith.constant 0 : index
    %c0_11 = arith.constant 0 : index
    %31 = vector.load %arg6[%c0_10, %c0_11] : memref<32x96xbf16, #tpu.memory_space<vmem>>, vector<32x96xbf16>
    %cst_12 = arith.constant dense<0.000000e+00> : vector<8x96xf32>
    %32 = tpu.matmul %30, %31, %cst_12 {dimension_numbers = #tpu.dot_dimension_numbers<[1], [0], [0], [1], [0, 0, 1, 1], [], []>} : vector<8x32xbf16>, vector<32x96xbf16>, vector<8x96xf32> -> vector<8x96xf32>
    %c0_13 = arith.constant 0 : index
    %c0_14 = arith.constant 0 : index
    %33 = vector.load %arg7[%c0_13, %c0_14] : memref<1x96xf32, #tpu.memory_space<vmem>>, vector<1x96xf32>
    %34 = vector.shape_cast %33 : vector<1x96xf32> to vector<96xf32>
    %35 = vector.shape_cast %34 : vector<96xf32> to vector<1x96xf32>
    %36 = vector.broadcast %35 : vector<1x96xf32> to vector<8x96xf32>
    %37 = arith.addf %32, %36 : vector<8x96xf32>
    %38 = vector.extract_strided_slice %37 {offsets = [0, 0], sizes = [8, 32], strides = [1, 1]} : vector<8x96xf32> to vector<8x32xf32>
    %39 = vector.extract_strided_slice %37 {offsets = [0, 32], sizes = [8, 64], strides = [1, 1]} : vector<8x96xf32> to vector<8x64xf32>
    %c0_15 = arith.constant 0 : index
    %c0_16 = arith.constant 0 : index
    %c0_17 = arith.constant 0 : index
    %40 = vector.load %arg3[%c0_15, %c0_16, %c0_17] : memref<1x8x8xbf16, #tpu.memory_space<vmem>>, vector<1x8x8xbf16>
    %41 = vector.shape_cast %40 : vector<1x8x8xbf16> to vector<8x8xbf16>
    %42 = arith.truncf %38 : vector<8x32xf32> to vector<8x32xbf16>
    %43 = vector.shape_cast %42 : vector<8x32xbf16> to vector<8x4x8xbf16>
    %44 = tpu.transpose %43, [1, 0, 2] : vector<8x4x8xbf16> -> vector<4x8x8xbf16>
    %45 = vector.extract_strided_slice %39 {offsets = [0, 0], sizes = [8, 32], strides = [1, 1]} : vector<8x64xf32> to vector<8x32xf32>
    %46 = arith.truncf %45 : vector<8x32xf32> to vector<8x32xbf16>
    %47 = vector.shape_cast %46 : vector<8x32xbf16> to vector<8x4x8xbf16>
    %48 = tpu.transpose %47, [1, 0, 2] : vector<8x4x8xbf16> -> vector<4x8x8xbf16>
    %49 = vector.extract_strided_slice %39 {offsets = [0, 32], sizes = [8, 32], strides = [1, 1]} : vector<8x64xf32> to vector<8x32xf32>
    %50 = arith.truncf %49 : vector<8x32xf32> to vector<8x32xbf16>
    %51 = vector.shape_cast %50 : vector<8x32xbf16> to vector<8x4x8xbf16>
    %52 = tpu.transpose %51, [1, 0, 2] : vector<8x4x8xbf16> -> vector<4x8x8xbf16>
    "tpu.trace_start"() <{level = 10 : i32, message = "hqd,hkd->hqk"}> : () -> ()
    %cst_18 = arith.constant dense<0.000000e+00> : vector<4x8x8xf32>
    %53 = tpu.matmul %44, %48, %cst_18 {dimension_numbers = #tpu.dot_dimension_numbers<[2], [2], [1], [1], [0, 0, 0, 1, 1, 1], [0], [0]>} : vector<4x8x8xbf16>, vector<4x8x8xbf16>, vector<4x8x8xf32> -> vector<4x8x8xf32>
    "tpu.trace_stop"() : () -> ()
    %54 = vector.shape_cast %41 : vector<8x8xbf16> to vector<1x8x8xbf16>
    %55 = arith.extf %54 : vector<1x8x8xbf16> to vector<1x8x8xf32>
    %56 = vector.broadcast %55 : vector<1x8x8xf32> to vector<4x8x8xf32>
    %57 = arith.addf %53, %56 : vector<4x8x8xf32>
    %cst_19 = arith.constant dense<0xFF800000> : vector<4x8xf32>
    %58 = vector.multi_reduction <maximumf>, %57, %cst_19 [2] : vector<4x8x8xf32> to vector<4x8xf32>
    %59 = vector.shape_cast %58 : vector<4x8xf32> to vector<4x8x1xf32>
    %60 = vector.broadcast %59 : vector<4x8x1xf32> to vector<4x8x8xf32>
    %61 = arith.subf %57, %60 : vector<4x8x8xf32>
    %62 = math.exp %61 : vector<4x8x8xf32>
    %cst_20 = arith.constant dense<0.000000e+00> : vector<4x8xf32>
    %63 = vector.multi_reduction <add>, %62, %cst_20 [2] : vector<4x8x8xf32> to vector<4x8xf32>
    %64 = vector.shape_cast %63 : vector<4x8xf32> to vector<4x8x1xf32>
    %65 = tpu.reciprocal %64 {approx = true} : vector<4x8x1xf32> -> vector<4x8x1xf32>
    %66 = vector.broadcast %65 : vector<4x8x1xf32> to vector<4x8x8xf32>
    %67 = arith.mulf %62, %66 : vector<4x8x8xf32>
    %68 = arith.truncf %67 : vector<4x8x8xf32> to vector<4x8x8xbf16>
    "tpu.trace_start"() <{level = 10 : i32, message = "hqk,hkd->hqd"}> : () -> ()
    %cst_21 = arith.constant dense<0.000000e+00> : vector<4x8x8xf32>
    %69 = tpu.matmul %68, %52, %cst_21 {dimension_numbers = #tpu.dot_dimension_numbers<[2], [1], [1], [2], [0, 0, 0, 1, 1, 2], [0], [0]>} : vector<4x8x8xbf16>, vector<4x8x8xbf16>, vector<4x8x8xf32> -> vector<4x8x8xf32>
    "tpu.trace_stop"() : () -> ()
    %70 = tpu.transpose %69, [1, 0, 2] : vector<4x8x8xf32> -> vector<8x4x8xf32>
    %71 = vector.shape_cast %70 : vector<8x4x8xf32> to vector<8x32xf32>
    %72 = arith.truncf %71 : vector<8x32xf32> to vector<8x32xbf16>
    %c0_22 = arith.constant 0 : index
    %c0_23 = arith.constant 0 : index
    %73 = vector.load %arg8[%c0_22, %c0_23] : memref<32x32xbf16, #tpu.memory_space<vmem>>, vector<32x32xbf16>
    %cst_24 = arith.constant dense<0.000000e+00> : vector<8x32xf32>
    %74 = tpu.matmul %72, %73, %cst_24 {dimension_numbers = #tpu.dot_dimension_numbers<[1], [0], [0], [1], [0, 0, 1, 1], [], []>} : vector<8x32xbf16>, vector<32x32xbf16>, vector<8x32xf32> -> vector<8x32xf32>
    %c0_25 = arith.constant 0 : index
    %c0_26 = arith.constant 0 : index
    %75 = vector.load %arg9[%c0_25, %c0_26] : memref<1x32xf32, #tpu.memory_space<vmem>>, vector<1x32xf32>
    %76 = vector.shape_cast %75 : vector<1x32xf32> to vector<32xf32>
    %77 = vector.shape_cast %76 : vector<32xf32> to vector<1x32xf32>
    %78 = vector.broadcast %77 : vector<1x32xf32> to vector<8x32xf32>
    %79 = arith.addf %74, %78 : vector<8x32xf32>
    %80 = arith.addf %1, %79 : vector<8x32xf32>
    %c0_27 = arith.constant 0 : index
    %c0_28 = arith.constant 0 : index
    %81 = vector.load %arg10[%c0_27, %c0_28] : memref<1x32xf32, #tpu.memory_space<vmem>>, vector<1x32xf32>
    %82 = vector.shape_cast %81 : vector<1x32xf32> to vector<32xf32>
    %c0_29 = arith.constant 0 : index
    %c0_30 = arith.constant 0 : index
    %83 = vector.load %arg11[%c0_29, %c0_30] : memref<1x32xf32, #tpu.memory_space<vmem>>, vector<1x32xf32>
    %84 = vector.shape_cast %83 : vector<1x32xf32> to vector<32xf32>
    %cst_31 = arith.constant dense<0.000000e+00> : vector<8xf32>
    %85 = vector.multi_reduction <add>, %80, %cst_31 [1] : vector<8x32xf32> to vector<8xf32>
    %86 = vector.shape_cast %85 : vector<8xf32> to vector<8x1xf32>
    %cst_32 = arith.constant 3.200000e+01 : f32
    %87 = vector.broadcast %cst_32 : f32 to vector<8x1xf32>
    %88 = arith.divf %86, %87 : vector<8x1xf32>
    %89 = vector.broadcast %88 : vector<8x1xf32> to vector<8x32xf32>
    %90 = arith.subf %80, %89 : vector<8x32xf32>
    %91 = arith.mulf %90, %90 : vector<8x32xf32>
    %cst_33 = arith.constant dense<0.000000e+00> : vector<8xf32>
    %92 = vector.multi_reduction <add>, %91, %cst_33 [1] : vector<8x32xf32> to vector<8xf32>
    %93 = vector.shape_cast %92 : vector<8xf32> to vector<8x1xf32>
    %cst_34 = arith.constant 3.200000e+01 : f32
    %94 = vector.broadcast %cst_34 : f32 to vector<8x1xf32>
    %95 = arith.divf %93, %94 : vector<8x1xf32>
    %96 = vector.broadcast %88 : vector<8x1xf32> to vector<8x32xf32>
    %97 = arith.subf %80, %96 : vector<8x32xf32>
    %cst_35 = arith.constant 9.99999974E-6 : f32
    %98 = vector.broadcast %cst_35 : f32 to vector<8x1xf32>
    %99 = arith.addf %95, %98 : vector<8x1xf32>
    %100 = math.rsqrt %99 : vector<8x1xf32>
    %101 = vector.broadcast %100 : vector<8x1xf32> to vector<8x32xf32>
    %102 = arith.mulf %97, %101 : vector<8x32xf32>
    %103 = vector.shape_cast %82 : vector<32xf32> to vector<1x32xf32>
    %104 = vector.broadcast %103 : vector<1x32xf32> to vector<8x32xf32>
    %105 = arith.mulf %102, %104 : vector<8x32xf32>
    %106 = vector.shape_cast %84 : vector<32xf32> to vector<1x32xf32>
    %107 = vector.broadcast %106 : vector<1x32xf32> to vector<8x32xf32>
    %108 = arith.addf %105, %107 : vector<8x32xf32>
    %109 = arith.truncf %108 : vector<8x32xf32> to vector<8x32xbf16>
    %c0_36 = arith.constant 0 : index
    %c0_37 = arith.constant 0 : index
    %110 = vector.load %arg12[%c0_36, %c0_37] : memref<32x128xbf16, #tpu.memory_space<vmem>>, vector<32x128xbf16>
    %cst_38 = arith.constant dense<0.000000e+00> : vector<8x128xf32>
    %111 = tpu.matmul %109, %110, %cst_38 {dimension_numbers = #tpu.dot_dimension_numbers<[1], [0], [0], [1], [0, 0, 1, 1], [], []>} : vector<8x32xbf16>, vector<32x128xbf16>, vector<8x128xf32> -> vector<8x128xf32>
    %c0_39 = arith.constant 0 : index
    %c0_40 = arith.constant 0 : index
    %112 = vector.load %arg13[%c0_39, %c0_40] : memref<1x128xf32, #tpu.memory_space<vmem>>, vector<1x128xf32>
    %113 = vector.shape_cast %112 : vector<1x128xf32> to vector<128xf32>
    %114 = vector.shape_cast %113 : vector<128xf32> to vector<1x128xf32>
    %115 = vector.broadcast %114 : vector<1x128xf32> to vector<8x128xf32>
    %116 = arith.addf %111, %115 : vector<8x128xf32>
    %cst_41 = arith.constant 1.702000e+00 : f32
    %117 = vector.broadcast %cst_41 : f32 to vector<8x128xf32>
    %118 = arith.mulf %117, %116 : vector<8x128xf32>
    %119 = arith.negf %118 : vector<8x128xf32>
    %120 = math.exp %119 : vector<8x128xf32>
    %cst_42 = arith.constant 1.000000e+00 : f32
    %121 = vector.broadcast %cst_42 : f32 to vector<8x128xf32>
    %122 = arith.addf %121, %120 : vector<8x128xf32>
    %123 = arith.divf %121, %122 : vector<8x128xf32>
    %124 = arith.mulf %116, %123 : vector<8x128xf32>
    %125 = arith.truncf %124 : vector<8x128xf32> to vector<8x128xbf16>
    %c0_43 = arith.constant 0 : index
    %c0_44 = arith.constant 0 : index
    %126 = vector.load %arg14[%c0_43, %c0_44] : memref<128x32xbf16, #tpu.memory_space<vmem>>, vector<128x32xbf16>
    %cst_45 = arith.constant dense<0.000000e+00> : vector<8x32xf32>
    %127 = tpu.matmul %125, %126, %cst_45 {dimension_numbers = #tpu.dot_dimension_numbers<[1], [0], [0], [1], [0, 0, 1, 1], [], []>} : vector<8x128xbf16>, vector<128x32xbf16>, vector<8x32xf32> -> vector<8x32xf32>
    %c0_46 = arith.constant 0 : index
    %c0_47 = arith.constant 0 : index
    %128 = vector.load %arg15[%c0_46, %c0_47] : memref<1x32xf32, #tpu.memory_space<vmem>>, vector<1x32xf32>
    %129 = vector.shape_cast %128 : vector<1x32xf32> to vector<32xf32>
    %130 = vector.shape_cast %129 : vector<32xf32> to vector<1x32xf32>
    %131 = vector.broadcast %130 : vector<1x32xf32> to vector<8x32xf32>
    %132 = arith.addf %127, %131 : vector<8x32xf32>
    %133 = arith.addf %80, %132 : vector<8x32xf32>
    %c0_48 = arith.constant 0 : index
    %c0_49 = arith.constant 0 : index
    %c0_50 = arith.constant 0 : index
    %134 = vector.load %arg16[%c0_48, %c0_49, %c0_50] : memref<1x8x32xf32, #tpu.memory_space<vmem>>, vector<1x8x32xf32>
    %135 = vector.shape_cast %134 : vector<1x8x32xf32> to vector<8x32xf32>
    %136 = vector.shape_cast %133 : vector<8x32xf32> to vector<1x8x32xf32>
    tpu.vector_store %arg16[%c0_48, %c0_49, %c0_50], %136 {strides = array<i32>} : memref<1x8x32xf32, #tpu.memory_space<vmem>>, vector<1x8x32xf32>,
    return
  }
  func.func @transform_0(%arg0: i32, %arg1: i32) -> (i32, i32, i32) {
    %c0_i32 = arith.constant 0 : i32
    %c0_i32_0 = arith.constant 0 : i32
    return %arg0, %arg1, %c0_i32 : i32, i32, i32
  }
  func.func @transform_1(%arg0: i32, %arg1: i32) -> (i32, i32, i32) {
    %c0_i32 = arith.constant 0 : i32
    %c0_i32_0 = arith.constant 0 : i32
    %c0_i32_1 = arith.constant 0 : i32
    return %c0_i32, %arg1, %c0_i32_0 : i32, i32, i32
  }
  func.func @transform_2(%arg0: i32, %arg1: i32) -> (i32, i32) {
    %c0_i32 = arith.constant 0 : i32
    %c0_i32_0 = arith.constant 0 : i32
    %c0_i32_1 = arith.constant 0 : i32
    return %c0_i32, %c0_i32_0 : i32, i32
  }
  func.func @transform_3(%arg0: i32, %arg1: i32) -> (i32, i32) {
    %c0_i32 = arith.constant 0 : i32
    %c0_i32_0 = arith.constant 0 : i32
    %c0_i32_1 = arith.constant 0 : i32
    return %c0_i32, %c0_i32_0 : i32, i32
  }
  func.func @transform_4(%arg0: i32, %arg1: i32) -> (i32, i32) {
    %c0_i32 = arith.constant 0 : i32
    %c0_i32_0 = arith.constant 0 : i32
    %c0_i32_1 = arith.constant 0 : i32
    return %c0_i32, %c0_i32_0 : i32, i32
  }
  func.func @transform_5(%arg0: i32, %arg1: i32) -> (i32, i32) {
    %c0_i32 = arith.constant 0 : i32
    %c0_i32_0 = arith.constant 0 : i32
    %c0_i32_1 = arith.constant 0 : i32
    return %c0_i32, %c0_i32_0 : i32, i32
  }
  func.func @transform_6(%arg0: i32, %arg1: i32) -> (i32, i32) {
    %c0_i32 = arith.constant 0 : i32
    %c0_i32_0 = arith.constant 0 : i32
    %c0_i32_1 = arith.constant 0 : i32
    return %c0_i32, %c0_i32_0 : i32, i32
  }
  func.func @transform_7(%arg0: i32, %arg1: i32) -> (i32, i32) {
    %c0_i32 = arith.constant 0 : i32
    %c0_i32_0 = arith.constant 0 : i32
    %c0_i32_1 = arith.constant 0 : i32
    return %c0_i32, %c0_i32_0 : i32, i32
  }
  func.func @transform_8(%arg0: i32, %arg1: i32) -> (i32, i32) {
    %c0_i32 = arith.constant 0 : i32
    %c0_i32_0 = arith.constant 0 : i32
    %c0_i32_1 = arith.constant 0 : i32
    return %c0_i32, %c0_i32_0 : i32, i32
  }
  func.func @transform_9(%arg0: i32, %arg1: i32) -> (i32, i32) {
    %c0_i32 = arith.constant 0 : i32
    %c0_i32_0 = arith.constant 0 : i32
    %c0_i32_1 = arith.constant 0 : i32
    return %c0_i32, %c0_i32_0 : i32, i32
  }
  func.func @transform_10(%arg0: i32, %arg1: i32) -> (i32, i32) {
    %c0_i32 = arith.constant 0 : i32
    %c0_i32_0 = arith.constant 0 : i32
    %c0_i32_1 = arith.constant 0 : i32
    return %c0_i32, %c0_i32_0 : i32, i32
  }
  func.func @transform_11(%arg0: i32, %arg1: i32) -> (i32, i32) {
    %c0_i32 = arith.constant 0 : i32
    %c0_i32_0 = arith.constant 0 : i32
    %c0_i32_1 = arith.constant 0 : i32
    return %c0_i32, %c0_i32_0 : i32, i32
  }
  func.func @transform_12(%arg0: i32, %arg1: i32) -> (i32, i32) {
    %c0_i32 = arith.constant 0 : i32
    %c0_i32_0 = arith.constant 0 : i32
    %c0_i32_1 = arith.constant 0 : i32
    return %c0_i32, %c0_i32_0 : i32, i32
  }
  func.func @transform_13(%arg0: i32, %arg1: i32) -> (i32, i32) {
    %c0_i32 = arith.constant 0 : i32
    %c0_i32_0 = arith.constant 0 : i32
    %c0_i32_1 = arith.constant 0 : i32
    return %c0_i32, %c0_i32_0 : i32, i32
  }
  func.func @transform_14(%arg0: i32, %arg1: i32) -> (i32, i32, i32) {
    %c0_i32 = arith.constant 0 : i32
    %c0_i32_0 = arith.constant 0 : i32
    return %arg0, %arg1, %c0_i32 : i32, i32, i32
  }
}

module attributes {stable_mosaic.version = 11 : i64} {
  func.func @resblock_kernel_fused(%arg0: i32, %arg1: i32, %arg2: memref<1x8x32xf32, #tpu.memory_space<vmem>>, %arg3: memref<1x8x8xbf16, #tpu.memory_space<vmem>>, %arg4: memref<1x32xf32, #tpu.memory_space<vmem>>, %arg5: memref<1x32xf32, #tpu.memory_space<vmem>>, %arg6: memref<32x96xbf16, #tpu.memory_space<vmem>>, %arg7: memref<1x96xf32, #tpu.memory_space<vmem>>, %arg8: memref<32x32xbf16, #tpu.memory_space<vmem>>, %arg9: memref<1x32xf32, #tpu.memory_space<vmem>>, %arg10: memref<1x32xf32, #tpu.memory_space<vmem>>, %arg11: memref<1x32xf32, #tpu.memory_space<vmem>>, %arg12: memref<32x128xbf16, #tpu.memory_space<vmem>>, %arg13: memref<1x128xf32, #tpu.memory_space<vmem>>, %arg14: memref<128x32xbf16, #tpu.memory_space<vmem>>, %arg15: memref<1x32xf32, #tpu.memory_space<vmem>>, %arg16: memref<1x8x32xf32, #tpu.memory_space<vmem>>) attributes {dimension_semantics = [#tpu.dimension_semantics<parallel>, #tpu.dimension_semantics<parallel>], iteration_bounds = array<i64: 2, 1>, scalar_prefetch = 0 : i64, scratch_operands = 0 : i64, tpu.core_type = #tpu.core_type<tc>, window_params = [{transform_indices = @transform_0, window_bounds = array<i64: 1, 8, 32>}, {transform_indices = @transform_1, window_bounds = array<i64: 1, 8, 8>}, {pipeline_mode = #tpu.pipeline_mode<synchronous>, transform_indices = @transform_2, window_bounds = array<i64: 1, 32>}, {pipeline_mode = #tpu.pipeline_mode<synchronous>, transform_indices = @transform_3, window_bounds = array<i64: 1, 32>}, {pipeline_mode = #tpu.pipeline_mode<synchronous>, transform_indices = @transform_4, window_bounds = array<i64: 32, 96>}, {pipeline_mode = #tpu.pipeline_mode<synchronous>, transform_indices = @transform_5, window_bounds = array<i64: 1, 96>}, {pipeline_mode = #tpu.pipeline_mode<synchronous>, transform_indices = @transform_6, window_bounds = array<i64: 32, 32>}, {pipeline_mode = #tpu.pipeline_mode<synchronous>, transform_indices = @transform_7, window_bounds = array<i64: 1, 32>}, {pipeline_mode = #tpu.pipeline_mode<synchronous>, transform_indices = @transform_8, window_bounds = array<i64: 1, 32>}, {pipeline_mode = #tpu.pipeline_mode<synchronous>, transform_indices = @transform_9, window_bounds = array<i64: 1, 32>}, {pipeline_mode = #tpu.pipeline_mode<synchronous>, transform_indices = @transform_10, window_bounds = array<i64: 32, 128>}, {pipeline_mode = #tpu.pipeline_mode<synchronous>, transform_indices = @transform_11, window_bounds = array<i64: 1, 128>}, {pipeline_mode = #tpu.pipeline_mode<synchronous>, transform_indices = @transform_12, window_bounds = array<i64: 128, 32>}, {pipeline_mode = #tpu.pipeline_mode<synchronous>, transform_indices = @transform_13, window_bounds = array<i64: 1, 32>}, {transform_indices = @transform_14, window_bounds = array<i64: 1, 8, 32>}]} {
    %c0 = arith.constant 0 : index
    %c0_0 = arith.constant 0 : index
    %c0_1 = arith.constant 0 : index
    %0 = vector.load %arg2[%c0, %c0_0, %c0_1] : memref<1x8x32xf32, #tpu.memory_space<vmem>>, vector<1x8x32xf32>
    %1 = vector.shape_cast %0 : vector<1x8x32xf32> to vector<8x32xf32>
    %c0_2 = arith.constant 0 : index
    %c0_3 = arith.constant 0 : index
    %2 = vector.load %arg4[%c0_2, %c0_3] : memref<1x32xf32, #tpu.memory_space<vmem>>, vector<1x32xf32>
    %3 = vector.shape_cast %2 : vector<1x32xf32> to vector<32xf32>
    %c0_4 = arith.constant 0 : index
    %c0_5 = arith.constant 0 : index
    %4 = vector.load %arg5[%c0_4, %c0_5] : memref<1x32xf32, #tpu.memory_space<vmem>>, vector<1x32xf32>
    %5 = vector.shape_cast %4 : vector<1x32xf32> to vector<32xf32>
    %cst = arith.constant dense<0.000000e+00> : vector<8xf32>
    %6 = vector.multi_reduction <add>, %1, %cst [1] : vector<8x32xf32> to vector<8xf32>
    %7 = vector.shape_cast %6 : vector<8xf32> to vector<8x1xf32>
    %cst_6 = arith.constant 3.200000e+01 : f32
    %8 = vector.broadcast %cst_6 : f32 to vector<8x1xf32>
    %9 = arith.divf %7, %8 : vector<8x1xf32>
    %10 = vector.broadcast %9 : vector<8x1xf32> to vector<8x32xf32>
    %11 = arith.subf %1, %10 : vector<8x32xf32>
    %12 = arith.mulf %11, %11 : vector<8x32xf32>
    %cst_7 = arith.constant dense<0.000000e+00> : vector<8xf32>
    %13 = vector.multi_reduction <add>, %12, %cst_7 [1] : vector<8x32xf32> to vector<8xf32>
    %14 = vector.shape_cast %13 : vector<8xf32> to vector<8x1xf32>
    %cst_8 = arith.constant 3.200000e+01 : f32
    %15 = vector.broadcast %cst_8 : f32 to vector<8x1xf32>
    %16 = arith.divf %14, %15 : vector<8x1xf32>
    %17 = vector.broadcast %9 : vector<8x1xf32> to vector<8x32xf32>
    %18 = arith.subf %1, %17 : vector<8x32xf32>
    %cst_9 = arith.constant 9.99999974E-6 : f32
    %19 = vector.broadcast %cst_9 : f32 to vector<8x1xf32>
    %20 = arith.addf %16, %19 : vector<8x1xf32>
    %21 = math.rsqrt %20 : vector<8x1xf32>
    %22 = vector.broadcast %21 : vector<8x1xf32> to vector<8x32xf32>
    %23 = arith.mulf %18, %22 : vector<8x32xf32>
    %24 = vector.shape_cast %3 : vector<32xf32> to vector<1x32xf32>
    %25 = vector.broadcast %24 : vector<1x32xf32> to vector<8x32xf32>
    %26 = arith.mulf %23, %25 : vector<8x32xf32>
    %27 = vector.shape_cast %5 : vector<32xf32> to vector<1x32xf32>
    %28 = vector.broadcast %27 : vector<1x32xf32> to vector<8x32xf32>
    %29 = arith.addf %26, %28 : vector<8x32xf32>
    %30 = arith.truncf %29 : vector<8x32xf32> to vector<8x32xbf16>
    %c0_10 = arith.constant 0 : index
    %c0_11 = arith.constant 0 : index
    %31 = vector.load %arg6[%c0_10, %c0_11] : memref<32x96xbf16, #tpu.memory_space<vmem>>, vector<32x96xbf16>
    %cst_12 = arith.constant dense<0.000000e+00> : vector<8x96xf32>
    %32 = tpu.matmul %30, %31, %cst_12 {dimension_numbers = #tpu.dot_dimension_numbers<[1], [0], [0], [1], [0, 0, 1, 1], [], []>} : vector<8x32xbf16>, vector<32x96xbf16>, vector<8x96xf32> -> vector<8x96xf32>
    %c0_13 = arith.constant 0 : index
    %c0_14 = arith.constant 0 : index
    %33 = vector.load %arg7[%c0_13, %c0_14] : memref<1x96xf32, #tpu.memory_space<vmem>>, vector<1x96xf32>
    %34 = vector.shape_cast %33 : vector<1x96xf32> to vector<96xf32>
    %35 = vector.shape_cast %34 : vector<96xf32> to vector<1x96xf32>
    %36 = vector.broadcast %35 : vector<1x96xf32> to vector<8x96xf32>
    %37 = arith.addf %32, %36 : vector<8x96xf32>
    %38 = vector.extract_strided_slice %37 {offsets = [0, 0], sizes = [8, 32], strides = [1, 1]} : vector<8x96xf32> to vector<8x32xf32>
    %39 = vector.extract_strided_slice %37 {offsets = [0, 32], sizes = [8, 64], strides = [1, 1]} : vector<8x96xf32> to vector<8x64xf32>
    %c0_15 = arith.constant 0 : index
    %c0_16 = arith.constant 0 : index
    %c0_17 = arith.constant 0 : index
    %40 = vector.load %arg3[%c0_15, %c0_16, %c0_17] : memref<1x8x8xbf16, #tpu.memory_space<vmem>>, vector<1x8x8xbf16>
    %41 = vector.shape_cast %40 : vector<1x8x8xbf16> to vector<8x8xbf16>
    %42 = arith.truncf %38 : vector<8x32xf32> to vector<8x32xbf16>
    %43 = vector.shape_cast %42 : vector<8x32xbf16> to vector<8x4x8xbf16>
    %44 = tpu.transpose %43, [1, 0, 2] : vector<8x4x8xbf16> -> vector<4x8x8xbf16>
    %45 = vector.extract_strided_slice %39 {offsets = [0, 0], sizes = [8, 32], strides = [1, 1]} : vector<8x64xf32> to vector<8x32xf32>
    %46 = arith.truncf %45 : vector<8x32xf32> to vector<8x32xbf16>
    %47 = vector.shape_cast %46 : vector<8x32xbf16> to vector<8x4x8xbf16>
    %48 = tpu.transpose %47, [1, 0, 2] : vector<8x4x8xbf16> -> vector<4x8x8xbf16>
    %49 = vector.extract_strided_slice %39 {offsets = [0, 32], sizes = [8, 32], strides = [1, 1]} : vector<8x64xf32> to vector<8x32xf32>
    %50 = arith.truncf %49 : vector<8x32xf32> to vector<8x32xbf16>
    %51 = vector.shape_cast %50 : vector<8x32xbf16> to vector<8x4x8xbf16>
    %52 = tpu.transpose %51, [1, 0, 2] : vector<8x4x8xbf16> -> vector<4x8x8xbf16>
    "tpu.trace_start"() <{level = 10 : i32, message = "hqd,hkd->hqk"}> : () -> ()
    %cst_18 = arith.constant dense<0.000000e+00> : vector<4x8x8xf32>
    %53 = tpu.matmul %44, %48, %cst_18 {dimension_numbers = #tpu.dot_dimension_numbers<[2], [2], [1], [1], [0, 0, 0, 1, 1, 1], [0], [0]>} : vector<4x8x8xbf16>, vector<4x8x8xbf16>, vector<4x8x8xf32> -> vector<4x8x8xf32>
    "tpu.trace_stop"() : () -> ()
    %54 = vector.shape_cast %41 : vector<8x8xbf16> to vector<1x8x8xbf16>
    %55 = arith.extf %54 : vector<1x8x8xbf16> to vector<1x8x8xf32>
    %56 = vector.broadcast %55 : vector<1x8x8xf32> to vector<4x8x8xf32>
    %57 = arith.addf %53, %56 : vector<4x8x8xf32>
    %cst_19 = arith.constant dense<0xFF800000> : vector<4x8xf32>
    %58 = vector.multi_reduction <maximumf>, %57, %cst_19 [2] : vector<4x8x8xf32> to vector<4x8xf32>
    %59 = vector.shape_cast %58 : vector<4x8xf32> to vector<4x8x1xf32>
    %60 = vector.broadcast %59 : vector<4x8x1xf32> to vector<4x8x8xf32>
    %61 = arith.subf %57, %60 : vector<4x8x8xf32>
    %62 = math.exp %61 : vector<4x8x8xf32>
    %cst_20 = arith.constant dense<0.000000e+00> : vector<4x8xf32>
    %63 = vector.multi_reduction <add>, %62, %cst_20 [2] : vector<4x8x8xf32> to vector<4x8xf32>
    %64 = vector.shape_cast %63 : vector<4x8xf32> to vector<4x8x1xf32>
    %65 = tpu.reciprocal %64 {approx = true} : vector<4x8x1xf32> -> vector<4x8x1xf32>
    %66 = vector.broadcast %65 : vector<4x8x1xf32> to vector<4x8x8xf32>
    %67 = arith.mulf %62, %66 : vector<4x8x8xf32>
    %68 = arith.truncf %67 : vector<4x8x8xf32> to vector<4x8x8xbf16>
    "tpu.trace_start"() <{level = 10 : i32, message = "hqk,hkd->hqd"}> : () -> ()
    %cst_21 = arith.constant dense<0.000000e+00> : vector<4x8x8xf32>
    %69 = tpu.matmul %68, %52, %cst_21 {dimension_numbers = #tpu.dot_dimension_numbers<[2], [1], [1], [2], [0, 0, 0, 1, 1, 2], [0], [0]>} : vector<4x8x8xbf16>, vector<4x8x8xbf16>, vector<4x8x8xf32> -> vector<4x8x8xf32>
    "tpu.trace_stop"() : () -> ()
    %70 = tpu.transpose %69, [1, 0, 2] : vector<4x8x8xf32> -> vector<8x4x8xf32>
    %71 = vector.shape_cast %70 : vector<8x4x8xf32> to vector<8x32xf32>
    %72 = arith.truncf %71 : vector<8x32xf32> to vector<8x32xbf16>
    %c0_22 = arith.constant 0 : index
    %c0_23 = arith.constant 0 : index
    %73 = vector.load %arg8[%c0_22, %c0_23] : memref<32x32xbf16, #tpu.memory_space<vmem>>, vector<32x32xbf16>
    %cst_24 = arith.constant dense<0.000000e+00> : vector<8x32xf32>
    %74 = tpu.matmul %72, %73, %cst_24 {dimension_numbers = #tpu.dot_dimension_numbers<[1], [0], [0], [1], [0, 0, 1, 1], [], []>} : vector<8x32xbf16>, vector<32x32xbf16>, vector<8x32xf32> -> vector<8x32xf32>
    %c0_25 = arith.constant 0 : index
    %c0_26 = arith.constant 0 : index
    %75 = vector.load %arg9[%c0_25, %c0_26] : memref<1x32xf32, #tpu.memory_space<vmem>>, vector<1x32xf32>
    %76 = vector.shape_cast %75 : vector<1x32xf32> to vector<32xf32>
    %77 = vector.shape_cast %76 : vector<32xf32> to vector<1x32xf32>
    %78 = vector.broadcast %77 : vector<1x32xf32> to vector<8x32xf32>
    %79 = arith.addf %74, %78 : vector<8x32xf32>
    %80 = arith.addf %1, %79 : vector<8x32xf32>
    %c0_27 = arith.constant 0 : index
    %c0_28 = arith.constant 0 : index
    %81 = vector.load %arg10[%c0_27, %c0_28] : memref<1x32xf32, #tpu.memory_space<vmem>>, vector<1x32xf32>
    %82 = vector.shape_cast %81 : vector<1x32xf32> to vector<32xf32>
    %c0_29 = arith.constant 0 : index
    %c0_30 = arith.constant 0 : index
    %83 = vector.load %arg11[%c0_29, %c0_30] : memref<1x32xf32, #tpu.memory_space<vmem>>, vector<1x32xf32>
    %84 = vector.shape_cast %83 : vector<1x32xf32> to vector<32xf32>
    %cst_31 = arith.constant dense<0.000000e+00> : vector<8xf32>
    %85 = vector.multi_reduction <add>, %80, %cst_31 [1] : vector<8x32xf32> to vector<8xf32>
    %86 = vector.shape_cast %85 : vector<8xf32> to vector<8x1xf32>
    %cst_32 = arith.constant 3.200000e+01 : f32
    %87 = vector.broadcast %cst_32 : f32 to vector<8x1xf32>
    %88 = arith.divf %86, %87 : vector<8x1xf32>
    %89 = vector.broadcast %88 : vector<8x1xf32> to vector<8x32xf32>
    %90 = arith.subf %80, %89 : vector<8x32xf32>
    %91 = arith.mulf %90, %90 : vector<8x32xf32>
    %cst_33 = arith.constant dense<0.000000e+00> : vector<8xf32>
    %92 = vector.multi_reduction <add>, %91, %cst_33 [1] : vector<8x32xf32> to vector<8xf32>
    %93 = vector.shape_cast %92 : vector<8xf32> to vector<8x1xf32>
    %cst_34 = arith.constant 3.200000e+01 : f32
    %94 = vector.broadcast %cst_34 : f32 to vector<8x1xf32>
    %95 = arith.divf %93, %94 : vector<8x1xf32>
    %96 = vector.broadcast %88 : vector<8x1xf32> to vector<8x32xf32>
    %97 = arith.subf %80, %96 : vector<8x32xf32>
    %cst_35 = arith.constant 9.99999974E-6 : f32
    %98 = vector.broadcast %cst_35 : f32 to vector<8x1xf32>
    %99 = arith.addf %95, %98 : vector<8x1xf32>
    %100 = math.rsqrt %99 : vector<8x1xf32>
    %101 = vector.broadcast %100 : vector<8x1xf32> to vector<8x32xf32>
    %102 = arith.mulf %97, %101 : vector<8x32xf32>
    %103 = vector.shape_cast %82 : vector<32xf32> to vector<1x32xf32>
    %104 = vector.broadcast %103 : vector<1x32xf32> to vector<8x32xf32>
    %105 = arith.mulf %102, %104 : vector<8x32xf32>
    %106 = vector.shape_cast %84 : vector<32xf32> to vector<1x32xf32>
    %107 = vector.broadcast %106 : vector<1x32xf32> to vector<8x32xf32>
    %108 = arith.addf %105, %107 : vector<8x32xf32>
    %109 = arith.truncf %108 : vector<8x32xf32> to vector<8x32xbf16>
    %c0_36 = arith.constant 0 : index
    %c0_37 = arith.constant 0 : index
    %110 = vector.load %arg12[%c0_36, %c0_37] : memref<32x128xbf16, #tpu.memory_space<vmem>>, vector<32x128xbf16>
    %cst_38 = arith.constant dense<0.000000e+00> : vector<8x128xf32>
    %111 = tpu.matmul %109, %110, %cst_38 {dimension_numbers = #tpu.dot_dimension_numbers<[1], [0], [0], [1], [0, 0, 1, 1], [], []>} : vector<8x32xbf16>, vector<32x128xbf16>, vector<8x128xf32> -> vector<8x128xf32>
    %c0_39 = arith.constant 0 : index
    %c0_40 = arith.constant 0 : index
    %112 = vector.load %arg13[%c0_39, %c0_40] : memref<1x128xf32, #tpu.memory_space<vmem>>, vector<1x128xf32>
    %113 = vector.shape_cast %112 : vector<1x128xf32> to vector<128xf32>
    %114 = vector.shape_cast %113 : vector<128xf32> to vector<1x128xf32>
    %115 = vector.broadcast %114 : vector<1x128xf32> to vector<8x128xf32>
    %116 = arith.addf %111, %115 : vector<8x128xf32>
    %cst_41 = arith.constant 1.702000e+00 : f32
    %117 = vector.broadcast %cst_41 : f32 to vector<8x128xf32>
    %118 = arith.mulf %117, %116 : vector<8x128xf32>
    %119 = arith.negf %118 : vector<8x128xf32>
    %120 = math.exp %119 : vector<8x128xf32>
    %cst_42 = arith.constant 1.000000e+00 : f32
    %121 = vector.broadcast %cst_42 : f32 to vector<8x128xf32>
    %122 = arith.addf %121, %120 : vector<8x128xf32>
    %123 = arith.divf %121, %122 : vector<8x128xf32>
    %124 = arith.mulf %116, %123 : vector<8x128xf32>
    %125 = arith.truncf %124 : vector<8x128xf32> to vector<8x128xbf16>
    %c0_43 = arith.constant 0 : index
    %c0_44 = arith.constant 0 : index
    %126 = vector.load %arg14[%c0_43, %c0_44] : memref<128x32xbf16, #tpu.memory_space<vmem>>, vector<128x32xbf16>
    %cst_45 = arith.constant dense<0.000000e+00> : vector<8x32xf32>
    %127 = tpu.matmul %125, %126, %cst_45 {dimension_numbers = #tpu.dot_dimension_numbers<[1], [0], [0], [1], [0, 0, 1, 1], [], []>} : vector<8x128xbf16>, vector<128x32xbf16>, vector<8x32xf32> -> vector<8x32xf32>
    %c0_46 = arith.constant 0 : index
    %c0_47 = arith.constant 0 : index
    %128 = vector.load %arg15[%c0_46, %c0_47] : memref<1x32xf32, #tpu.memory_space<vmem>>, vector<1x32xf32>
    %129 = vector.shape_cast %128 : vector<1x32xf32> to vector<32xf32>
    %130 = vector.shape_cast %129 : vector<32xf32> to vector<1x32xf32>
    %131 = vector.broadcast %130 : vector<1x32xf32> to vector<8x32xf32>
    %132 = arith.addf %127, %131 : vector<8x32xf32>
    %133 = arith.addf %80, %132 : vector<8x32xf32>
    %c0_48 = arith.constant 0 : index
    %c0_49 = arith.constant 0 : index
    %c0_50 = arith.constant 0 : index
    %134 = vector.load %arg16[%c0_48, %c0_49, %c0_50] : memref<1x8x32xf32, #tpu.memory_space<vmem>>, vector<1x8x32xf32>
    %135 = vector.shape_cast %134 : vector<1x8x32xf32> to vector<8x32xf32>
    %136 = vector.shape_cast %133 : vector<8x32xf32> to vector<1x8x32xf32>
    tpu.vector_store %arg16[%c0_48, %c0_49, %c0_50], %136 {strides = array<i32>} : memref<1x8x32xf32, #tpu.memory_space<vmem>>, vector<1x8x32xf32>,
    return
  }
  func.func @transform_0(%arg0: i32, %arg1: i32) -> (i32, i32, i32) {
    %c0_i32 = arith.constant 0 : i32
    %c0_i32_0 = arith.constant 0 : i32
    return %arg0, %arg1, %c0_i32 : i32, i32, i32
  }
  func.func @transform_1(%arg0: i32, %arg1: i32) -> (i32, i32, i32) {
    %c0_i32 = arith.constant 0 : i32
    %c0_i32_0 = arith.constant 0 : i32
    %c0_i32_1 = arith.constant 0 : i32
    return %c0_i32, %arg1, %c0_i32_0 : i32, i32, i32
  }
  func.func @transform_2(%arg0: i32, %arg1: i32) -> (i32, i32) {
    %c0_i32 = arith.constant 0 : i32
    %c0_i32_0 = arith.constant 0 : i32
    %c0_i32_1 = arith.constant 0 : i32
    return %c0_i32, %c0_i32_0 : i32, i32
  }
  func.func @transform_3(%arg0: i32, %arg1: i32) -> (i32, i32) {
    %c0_i32 = arith.constant 0 : i32
    %c0_i32_0 = arith.constant 0 : i32
    %c0_i32_1 = arith.constant 0 : i32
    return %c0_i32, %c0_i32_0 : i32, i32
  }
  func.func @transform_4(%arg0: i32, %arg1: i32) -> (i32, i32) {
    %c0_i32 = arith.constant 0 : i32
    %c0_i32_0 = arith.constant 0 : i32
    %c0_i32_1 = arith.constant 0 : i32
    return %c0_i32, %c0_i32_0 : i32, i32
  }
  func.func @transform_5(%arg0: i32, %arg1: i32) -> (i32, i32) {
    %c0_i32 = arith.constant 0 : i32
    %c0_i32_0 = arith.constant 0 : i32
    %c0_i32_1 = arith.constant 0 : i32
    return %c0_i32, %c0_i32_0 : i32, i32
  }
  func.func @transform_6(%arg0: i32, %arg1: i32) -> (i32, i32) {
    %c0_i32 = arith.constant 0 : i32
    %c0_i32_0 = arith.constant 0 : i32
    %c0_i32_1 = arith.constant 0 : i32
    return %c0_i32, %c0_i32_0 : i32, i32
  }
  func.func @transform_7(%arg0: i32, %arg1: i32) -> (i32, i32) {
    %c0_i32 = arith.constant 0 : i32
    %c0_i32_0 = arith.constant 0 : i32
    %c0_i32_1 = arith.constant 0 : i32
    return %c0_i32, %c0_i32_0 : i32, i32
  }
  func.func @transform_8(%arg0: i32, %arg1: i32) -> (i32, i32) {
    %c0_i32 = arith.constant 0 : i32
    %c0_i32_0 = arith.constant 0 : i32
    %c0_i32_1 = arith.constant 0 : i32
    return %c0_i32, %c0_i32_0 : i32, i32
  }
  func.func @transform_9(%arg0: i32, %arg1: i32) -> (i32, i32) {
    %c0_i32 = arith.constant 0 : i32
    %c0_i32_0 = arith.constant 0 : i32
    %c0_i32_1 = arith.constant 0 : i32
    return %c0_i32, %c0_i32_0 : i32, i32
  }
  func.func @transform_10(%arg0: i32, %arg1: i32) -> (i32, i32) {
    %c0_i32 = arith.constant 0 : i32
    %c0_i32_0 = arith.constant 0 : i32
    %c0_i32_1 = arith.constant 0 : i32
    return %c0_i32, %c0_i32_0 : i32, i32
  }
  func.func @transform_11(%arg0: i32, %arg1: i32) -> (i32, i32) {
    %c0_i32 = arith.constant 0 : i32
    %c0_i32_0 = arith.constant 0 : i32
    %c0_i32_1 = arith.constant 0 : i32
    return %c0_i32, %c0_i32_0 : i32, i32
  }
  func.func @transform_12(%arg0: i32, %arg1: i32) -> (i32, i32) {
    %c0_i32 = arith.constant 0 : i32
    %c0_i32_0 = arith.constant 0 : i32
    %c0_i32_1 = arith.constant 0 : i32
    return %c0_i32, %c0_i32_0 : i32, i32
  }
  func.func @transform_13(%arg0: i32, %arg1: i32) -> (i32, i32) {
    %c0_i32 = arith.constant 0 : i32
    %c0_i32_0 = arith.constant 0 : i32
    %c0_i32_1 = arith.constant 0 : i32
    return %c0_i32, %c0_i32_0 : i32, i32
  }
  func.func @transform_14(%arg0: i32, %arg1: i32) -> (i32, i32, i32) {
    %c0_i32 = arith.constant 0 : i32
    %c0_i32_0 = arith.constant 0 : i32
    return %arg0, %arg1, %c0_i32 : i32, i32, i32
  }
}

module attributes {stable_mosaic.version = 11 : i64} {
  func.func @resblock_kernel_fused(%arg0: i32, %arg1: i32, %arg2: memref<1x8x32xf32, #tpu.memory_space<vmem>>, %arg3: memref<1x8x8xbf16, #tpu.memory_space<vmem>>, %arg4: memref<1x32xf32, #tpu.memory_space<vmem>>, %arg5: memref<1x32xf32, #tpu.memory_space<vmem>>, %arg6: memref<32x96xbf16, #tpu.memory_space<vmem>>, %arg7: memref<1x96xf32, #tpu.memory_space<vmem>>, %arg8: memref<32x32xbf16, #tpu.memory_space<vmem>>, %arg9: memref<1x32xf32, #tpu.memory_space<vmem>>, %arg10: memref<1x32xf32, #tpu.memory_space<vmem>>, %arg11: memref<1x32xf32, #tpu.memory_space<vmem>>, %arg12: memref<32x128xbf16, #tpu.memory_space<vmem>>, %arg13: memref<1x128xf32, #tpu.memory_space<vmem>>, %arg14: memref<128x32xbf16, #tpu.memory_space<vmem>>, %arg15: memref<1x32xf32, #tpu.memory_space<vmem>>, %arg16: memref<1x8x32xf32, #tpu.memory_space<vmem>>) attributes {dimension_semantics = [#tpu.dimension_semantics<parallel>, #tpu.dimension_semantics<parallel>], iteration_bounds = array<i64: 2, 1>, scalar_prefetch = 0 : i64, scratch_operands = 0 : i64, tpu.core_type = #tpu.core_type<tc>, window_params = [{transform_indices = @transform_0, window_bounds = array<i64: 1, 8, 32>}, {transform_indices = @transform_1, window_bounds = array<i64: 1, 8, 8>}, {pipeline_mode = #tpu.pipeline_mode<synchronous>, transform_indices = @transform_2, window_bounds = array<i64: 1, 32>}, {pipeline_mode = #tpu.pipeline_mode<synchronous>, transform_indices = @transform_3, window_bounds = array<i64: 1, 32>}, {pipeline_mode = #tpu.pipeline_mode<synchronous>, transform_indices = @transform_4, window_bounds = array<i64: 32, 96>}, {pipeline_mode = #tpu.pipeline_mode<synchronous>, transform_indices = @transform_5, window_bounds = array<i64: 1, 96>}, {pipeline_mode = #tpu.pipeline_mode<synchronous>, transform_indices = @transform_6, window_bounds = array<i64: 32, 32>}, {pipeline_mode = #tpu.pipeline_mode<synchronous>, transform_indices = @transform_7, window_bounds = array<i64: 1, 32>}, {pipeline_mode = #tpu.pipeline_mode<synchronous>, transform_indices = @transform_8, window_bounds = array<i64: 1, 32>}, {pipeline_mode = #tpu.pipeline_mode<synchronous>, transform_indices = @transform_9, window_bounds = array<i64: 1, 32>}, {pipeline_mode = #tpu.pipeline_mode<synchronous>, transform_indices = @transform_10, window_bounds = array<i64: 32, 128>}, {pipeline_mode = #tpu.pipeline_mode<synchronous>, transform_indices = @transform_11, window_bounds = array<i64: 1, 128>}, {pipeline_mode = #tpu.pipeline_mode<synchronous>, transform_indices = @transform_12, window_bounds = array<i64: 128, 32>}, {pipeline_mode = #tpu.pipeline_mode<synchronous>, transform_indices = @transform_13, window_bounds = array<i64: 1, 32>}, {transform_indices = @transform_14, window_bounds = array<i64: 1, 8, 32>}]} {
    %c0 = arith.constant 0 : index
    %c0_0 = arith.constant 0 : index
    %c0_1 = arith.constant 0 : index
    %0 = vector.load %arg2[%c0, %c0_0, %c0_1] : memref<1x8x32xf32, #tpu.memory_space<vmem>>, vector<1x8x32xf32>
    %1 = vector.shape_cast %0 : vector<1x8x32xf32> to vector<8x32xf32>
    %c0_2 = arith.constant 0 : index
    %c0_3 = arith.constant 0 : index
    %2 = vector.load %arg4[%c0_2, %c0_3] : memref<1x32xf32, #tpu.memory_space<vmem>>, vector<1x32xf32>
    %3 = vector.shape_cast %2 : vector<1x32xf32> to vector<32xf32>
    %c0_4 = arith.constant 0 : index
    %c0_5 = arith.constant 0 : index
    %4 = vector.load %arg5[%c0_4, %c0_5] : memref<1x32xf32, #tpu.memory_space<vmem>>, vector<1x32xf32>
    %5 = vector.shape_cast %4 : vector<1x32xf32> to vector<32xf32>
    %cst = arith.constant dense<0.000000e+00> : vector<8xf32>
    %6 = vector.multi_reduction <add>, %1, %cst [1] : vector<8x32xf32> to vector<8xf32>
    %7 = vector.shape_cast %6 : vector<8xf32> to vector<8x1xf32>
    %cst_6 = arith.constant 3.200000e+01 : f32
    %8 = vector.broadcast %cst_6 : f32 to vector<8x1xf32>
    %9 = arith.divf %7, %8 : vector<8x1xf32>
    %10 = vector.broadcast %9 : vector<8x1xf32> to vector<8x32xf32>
    %11 = arith.subf %1, %10 : vector<8x32xf32>
    %12 = arith.mulf %11, %11 : vector<8x32xf32>
    %cst_7 = arith.constant dense<0.000000e+00> : vector<8xf32>
    %13 = vector.multi_reduction <add>, %12, %cst_7 [1] : vector<8x32xf32> to vector<8xf32>
    %14 = vector.shape_cast %13 : vector<8xf32> to vector<8x1xf32>
    %cst_8 = arith.constant 3.200000e+01 : f32
    %15 = vector.broadcast %cst_8 : f32 to vector<8x1xf32>
    %16 = arith.divf %14, %15 : vector<8x1xf32>
    %17 = vector.broadcast %9 : vector<8x1xf32> to vector<8x32xf32>
    %18 = arith.subf %1, %17 : vector<8x32xf32>
    %cst_9 = arith.constant 9.99999974E-6 : f32
    %19 = vector.broadcast %cst_9 : f32 to vector<8x1xf32>
    %20 = arith.addf %16, %19 : vector<8x1xf32>
    %21 = math.rsqrt %20 : vector<8x1xf32>
    %22 = vector.broadcast %21 : vector<8x1xf32> to vector<8x32xf32>
    %23 = arith.mulf %18, %22 : vector<8x32xf32>
    %24 = vector.shape_cast %3 : vector<32xf32> to vector<1x32xf32>
    %25 = vector.broadcast %24 : vector<1x32xf32> to vector<8x32xf32>
    %26 = arith.mulf %23, %25 : vector<8x32xf32>
    %27 = vector.shape_cast %5 : vector<32xf32> to vector<1x32xf32>
    %28 = vector.broadcast %27 : vector<1x32xf32> to vector<8x32xf32>
    %29 = arith.addf %26, %28 : vector<8x32xf32>
    %30 = arith.truncf %29 : vector<8x32xf32> to vector<8x32xbf16>
    %c0_10 = arith.constant 0 : index
    %c0_11 = arith.constant 0 : index
    %31 = vector.load %arg6[%c0_10, %c0_11] : memref<32x96xbf16, #tpu.memory_space<vmem>>, vector<32x96xbf16>
    %cst_12 = arith.constant dense<0.000000e+00> : vector<8x96xf32>
    %32 = tpu.matmul %30, %31, %cst_12 {dimension_numbers = #tpu.dot_dimension_numbers<[1], [0], [0], [1], [0, 0, 1, 1], [], []>} : vector<8x32xbf16>, vector<32x96xbf16>, vector<8x96xf32> -> vector<8x96xf32>
    %c0_13 = arith.constant 0 : index
    %c0_14 = arith.constant 0 : index
    %33 = vector.load %arg7[%c0_13, %c0_14] : memref<1x96xf32, #tpu.memory_space<vmem>>, vector<1x96xf32>
    %34 = vector.shape_cast %33 : vector<1x96xf32> to vector<96xf32>
    %35 = vector.shape_cast %34 : vector<96xf32> to vector<1x96xf32>
    %36 = vector.broadcast %35 : vector<1x96xf32> to vector<8x96xf32>
    %37 = arith.addf %32, %36 : vector<8x96xf32>
    %38 = vector.extract_strided_slice %37 {offsets = [0, 0], sizes = [8, 32], strides = [1, 1]} : vector<8x96xf32> to vector<8x32xf32>
    %39 = vector.extract_strided_slice %37 {offsets = [0, 32], sizes = [8, 64], strides = [1, 1]} : vector<8x96xf32> to vector<8x64xf32>
    %c0_15 = arith.constant 0 : index
    %c0_16 = arith.constant 0 : index
    %c0_17 = arith.constant 0 : index
    %40 = vector.load %arg3[%c0_15, %c0_16, %c0_17] : memref<1x8x8xbf16, #tpu.memory_space<vmem>>, vector<1x8x8xbf16>
    %41 = vector.shape_cast %40 : vector<1x8x8xbf16> to vector<8x8xbf16>
    %42 = arith.truncf %38 : vector<8x32xf32> to vector<8x32xbf16>
    %43 = vector.shape_cast %42 : vector<8x32xbf16> to vector<8x4x8xbf16>
    %44 = tpu.transpose %43, [1, 0, 2] : vector<8x4x8xbf16> -> vector<4x8x8xbf16>
    %45 = vector.extract_strided_slice %39 {offsets = [0, 0], sizes = [8, 32], strides = [1, 1]} : vector<8x64xf32> to vector<8x32xf32>
    %46 = arith.truncf %45 : vector<8x32xf32> to vector<8x32xbf16>
    %47 = vector.shape_cast %46 : vector<8x32xbf16> to vector<8x4x8xbf16>
    %48 = tpu.transpose %47, [1, 0, 2] : vector<8x4x8xbf16> -> vector<4x8x8xbf16>
    %49 = vector.extract_strided_slice %39 {offsets = [0, 32], sizes = [8, 32], strides = [1, 1]} : vector<8x64xf32> to vector<8x32xf32>
    %50 = arith.truncf %49 : vector<8x32xf32> to vector<8x32xbf16>
    %51 = vector.shape_cast %50 : vector<8x32xbf16> to vector<8x4x8xbf16>
    %52 = tpu.transpose %51, [1, 0, 2] : vector<8x4x8xbf16> -> vector<4x8x8xbf16>
    "tpu.trace_start"() <{level = 10 : i32, message = "hqd,hkd->hqk"}> : () -> ()
    %cst_18 = arith.constant dense<0.000000e+00> : vector<4x8x8xf32>
    %53 = tpu.matmul %44, %48, %cst_18 {dimension_numbers = #tpu.dot_dimension_numbers<[2], [2], [1], [1], [0, 0, 0, 1, 1, 1], [0], [0]>} : vector<4x8x8xbf16>, vector<4x8x8xbf16>, vector<4x8x8xf32> -> vector<4x8x8xf32>
    "tpu.trace_stop"() : () -> ()
    %54 = vector.shape_cast %41 : vector<8x8xbf16> to vector<1x8x8xbf16>
    %55 = arith.extf %54 : vector<1x8x8xbf16> to vector<1x8x8xf32>
    %56 = vector.broadcast %55 : vector<1x8x8xf32> to vector<4x8x8xf32>
    %57 = arith.addf %53, %56 : vector<4x8x8xf32>
    %cst_19 = arith.constant dense<0xFF800000> : vector<4x8xf32>
    %58 = vector.multi_reduction <maximumf>, %57, %cst_19 [2] : vector<4x8x8xf32> to vector<4x8xf32>
    %59 = vector.shape_cast %58 : vector<4x8xf32> to vector<4x8x1xf32>
    %60 = vector.broadcast %59 : vector<4x8x1xf32> to vector<4x8x8xf32>
    %61 = arith.subf %57, %60 : vector<4x8x8xf32>
    %62 = math.exp %61 : vector<4x8x8xf32>
    %cst_20 = arith.constant dense<0.000000e+00> : vector<4x8xf32>
    %63 = vector.multi_reduction <add>, %62, %cst_20 [2] : vector<4x8x8xf32> to vector<4x8xf32>
    %64 = vector.shape_cast %63 : vector<4x8xf32> to vector<4x8x1xf32>
    %65 = tpu.reciprocal %64 {approx = true} : vector<4x8x1xf32> -> vector<4x8x1xf32>
    %66 = vector.broadcast %65 : vector<4x8x1xf32> to vector<4x8x8xf32>
    %67 = arith.mulf %62, %66 : vector<4x8x8xf32>
    %68 = arith.truncf %67 : vector<4x8x8xf32> to vector<4x8x8xbf16>
    "tpu.trace_start"() <{level = 10 : i32, message = "hqk,hkd->hqd"}> : () -> ()
    %cst_21 = arith.constant dense<0.000000e+00> : vector<4x8x8xf32>
    %69 = tpu.matmul %68, %52, %cst_21 {dimension_numbers = #tpu.dot_dimension_numbers<[2], [1], [1], [2], [0, 0, 0, 1, 1, 2], [0], [0]>} : vector<4x8x8xbf16>, vector<4x8x8xbf16>, vector<4x8x8xf32> -> vector<4x8x8xf32>
    "tpu.trace_stop"() : () -> ()
    %70 = tpu.transpose %69, [1, 0, 2] : vector<4x8x8xf32> -> vector<8x4x8xf32>
    %71 = vector.shape_cast %70 : vector<8x4x8xf32> to vector<8x32xf32>
    %72 = arith.truncf %71 : vector<8x32xf32> to vector<8x32xbf16>
    %c0_22 = arith.constant 0 : index
    %c0_23 = arith.constant 0 : index
    %73 = vector.load %arg8[%c0_22, %c0_23] : memref<32x32xbf16, #tpu.memory_space<vmem>>, vector<32x32xbf16>
    %cst_24 = arith.constant dense<0.000000e+00> : vector<8x32xf32>
    %74 = tpu.matmul %72, %73, %cst_24 {dimension_numbers = #tpu.dot_dimension_numbers<[1], [0], [0], [1], [0, 0, 1, 1], [], []>} : vector<8x32xbf16>, vector<32x32xbf16>, vector<8x32xf32> -> vector<8x32xf32>
    %c0_25 = arith.constant 0 : index
    %c0_26 = arith.constant 0 : index
    %75 = vector.load %arg9[%c0_25, %c0_26] : memref<1x32xf32, #tpu.memory_space<vmem>>, vector<1x32xf32>
    %76 = vector.shape_cast %75 : vector<1x32xf32> to vector<32xf32>
    %77 = vector.shape_cast %76 : vector<32xf32> to vector<1x32xf32>
    %78 = vector.broadcast %77 : vector<1x32xf32> to vector<8x32xf32>
    %79 = arith.addf %74, %78 : vector<8x32xf32>
    %80 = arith.addf %1, %79 : vector<8x32xf32>
    %c0_27 = arith.constant 0 : index
    %c0_28 = arith.constant 0 : index
    %81 = vector.load %arg10[%c0_27, %c0_28] : memref<1x32xf32, #tpu.memory_space<vmem>>, vector<1x32xf32>
    %82 = vector.shape_cast %81 : vector<1x32xf32> to vector<32xf32>
    %c0_29 = arith.constant 0 : index
    %c0_30 = arith.constant 0 : index
    %83 = vector.load %arg11[%c0_29, %c0_30] : memref<1x32xf32, #tpu.memory_space<vmem>>, vector<1x32xf32>
    %84 = vector.shape_cast %83 : vector<1x32xf32> to vector<32xf32>
    %cst_31 = arith.constant dense<0.000000e+00> : vector<8xf32>
    %85 = vector.multi_reduction <add>, %80, %cst_31 [1] : vector<8x32xf32> to vector<8xf32>
    %86 = vector.shape_cast %85 : vector<8xf32> to vector<8x1xf32>
    %cst_32 = arith.constant 3.200000e+01 : f32
    %87 = vector.broadcast %cst_32 : f32 to vector<8x1xf32>
    %88 = arith.divf %86, %87 : vector<8x1xf32>
    %89 = vector.broadcast %88 : vector<8x1xf32> to vector<8x32xf32>
    %90 = arith.subf %80, %89 : vector<8x32xf32>
    %91 = arith.mulf %90, %90 : vector<8x32xf32>
    %cst_33 = arith.constant dense<0.000000e+00> : vector<8xf32>
    %92 = vector.multi_reduction <add>, %91, %cst_33 [1] : vector<8x32xf32> to vector<8xf32>
    %93 = vector.shape_cast %92 : vector<8xf32> to vector<8x1xf32>
    %cst_34 = arith.constant 3.200000e+01 : f32
    %94 = vector.broadcast %cst_34 : f32 to vector<8x1xf32>
    %95 = arith.divf %93, %94 : vector<8x1xf32>
    %96 = vector.broadcast %88 : vector<8x1xf32> to vector<8x32xf32>
    %97 = arith.subf %80, %96 : vector<8x32xf32>
    %cst_35 = arith.constant 9.99999974E-6 : f32
    %98 = vector.broadcast %cst_35 : f32 to vector<8x1xf32>
    %99 = arith.addf %95, %98 : vector<8x1xf32>
    %100 = math.rsqrt %99 : vector<8x1xf32>
    %101 = vector.broadcast %100 : vector<8x1xf32> to vector<8x32xf32>
    %102 = arith.mulf %97, %101 : vector<8x32xf32>
    %103 = vector.shape_cast %82 : vector<32xf32> to vector<1x32xf32>
    %104 = vector.broadcast %103 : vector<1x32xf32> to vector<8x32xf32>
    %105 = arith.mulf %102, %104 : vector<8x32xf32>
    %106 = vector.shape_cast %84 : vector<32xf32> to vector<1x32xf32>
    %107 = vector.broadcast %106 : vector<1x32xf32> to vector<8x32xf32>
    %108 = arith.addf %105, %107 : vector<8x32xf32>
    %109 = arith.truncf %108 : vector<8x32xf32> to vector<8x32xbf16>
    %c0_36 = arith.constant 0 : index
    %c0_37 = arith.constant 0 : index
    %110 = vector.load %arg12[%c0_36, %c0_37] : memref<32x128xbf16, #tpu.memory_space<vmem>>, vector<32x128xbf16>
    %cst_38 = arith.constant dense<0.000000e+00> : vector<8x128xf32>
    %111 = tpu.matmul %109, %110, %cst_38 {dimension_numbers = #tpu.dot_dimension_numbers<[1], [0], [0], [1], [0, 0, 1, 1], [], []>} : vector<8x32xbf16>, vector<32x128xbf16>, vector<8x128xf32> -> vector<8x128xf32>
    %c0_39 = arith.constant 0 : index
    %c0_40 = arith.constant 0 : index
    %112 = vector.load %arg13[%c0_39, %c0_40] : memref<1x128xf32, #tpu.memory_space<vmem>>, vector<1x128xf32>
    %113 = vector.shape_cast %112 : vector<1x128xf32> to vector<128xf32>
    %114 = vector.shape_cast %113 : vector<128xf32> to vector<1x128xf32>
    %115 = vector.broadcast %114 : vector<1x128xf32> to vector<8x128xf32>
    %116 = arith.addf %111, %115 : vector<8x128xf32>
    %cst_41 = arith.constant 1.702000e+00 : f32
    %117 = vector.broadcast %cst_41 : f32 to vector<8x128xf32>
    %118 = arith.mulf %117, %116 : vector<8x128xf32>
    %119 = arith.negf %118 : vector<8x128xf32>
    %120 = math.exp %119 : vector<8x128xf32>
    %cst_42 = arith.constant 1.000000e+00 : f32
    %121 = vector.broadcast %cst_42 : f32 to vector<8x128xf32>
    %122 = arith.addf %121, %120 : vector<8x128xf32>
    %123 = arith.divf %121, %122 : vector<8x128xf32>
    %124 = arith.mulf %116, %123 : vector<8x128xf32>
    %125 = arith.truncf %124 : vector<8x128xf32> to vector<8x128xbf16>
    %c0_43 = arith.constant 0 : index
    %c0_44 = arith.constant 0 : index
    %126 = vector.load %arg14[%c0_43, %c0_44] : memref<128x32xbf16, #tpu.memory_space<vmem>>, vector<128x32xbf16>
    %cst_45 = arith.constant dense<0.000000e+00> : vector<8x32xf32>
    %127 = tpu.matmul %125, %126, %cst_45 {dimension_numbers = #tpu.dot_dimension_numbers<[1], [0], [0], [1], [0, 0, 1, 1], [], []>} : vector<8x128xbf16>, vector<128x32xbf16>, vector<8x32xf32> -> vector<8x32xf32>
    %c0_46 = arith.constant 0 : index
    %c0_47 = arith.constant 0 : index
    %128 = vector.load %arg15[%c0_46, %c0_47] : memref<1x32xf32, #tpu.memory_space<vmem>>, vector<1x32xf32>
    %129 = vector.shape_cast %128 : vector<1x32xf32> to vector<32xf32>
    %130 = vector.shape_cast %129 : vector<32xf32> to vector<1x32xf32>
    %131 = vector.broadcast %130 : vector<1x32xf32> to vector<8x32xf32>
    %132 = arith.addf %127, %131 : vector<8x32xf32>
    %133 = arith.addf %80, %132 : vector<8x32xf32>
    %c0_48 = arith.constant 0 : index
    %c0_49 = arith.constant 0 : index
    %c0_50 = arith.constant 0 : index
    %134 = vector.load %arg16[%c0_48, %c0_49, %c0_50] : memref<1x8x32xf32, #tpu.memory_space<vmem>>, vector<1x8x32xf32>
    %135 = vector.shape_cast %134 : vector<1x8x32xf32> to vector<8x32xf32>
    %136 = vector.shape_cast %133 : vector<8x32xf32> to vector<1x8x32xf32>
    tpu.vector_store %arg16[%c0_48, %c0_49, %c0_50], %136 {strides = array<i32>} : memref<1x8x32xf32, #tpu.memory_space<vmem>>, vector<1x8x32xf32>,
    return
  }
  func.func @transform_0(%arg0: i32, %arg1: i32) -> (i32, i32, i32) {
    %c0_i32 = arith.constant 0 : i32
    %c0_i32_0 = arith.constant 0 : i32
    return %arg0, %arg1, %c0_i32 : i32, i32, i32
  }
  func.func @transform_1(%arg0: i32, %arg1: i32) -> (i32, i32, i32) {
    %c0_i32 = arith.constant 0 : i32
    %c0_i32_0 = arith.constant 0 : i32
    %c0_i32_1 = arith.constant 0 : i32
    return %c0_i32, %arg1, %c0_i32_0 : i32, i32, i32
  }
  func.func @transform_2(%arg0: i32, %arg1: i32) -> (i32, i32) {
    %c0_i32 = arith.constant 0 : i32
    %c0_i32_0 = arith.constant 0 : i32
    %c0_i32_1 = arith.constant 0 : i32
    return %c0_i32, %c0_i32_0 : i32, i32
  }
  func.func @transform_3(%arg0: i32, %arg1: i32) -> (i32, i32) {
    %c0_i32 = arith.constant 0 : i32
    %c0_i32_0 = arith.constant 0 : i32
    %c0_i32_1 = arith.constant 0 : i32
    return %c0_i32, %c0_i32_0 : i32, i32
  }
  func.func @transform_4(%arg0: i32, %arg1: i32) -> (i32, i32) {
    %c0_i32 = arith.constant 0 : i32
    %c0_i32_0 = arith.constant 0 : i32
    %c0_i32_1 = arith.constant 0 : i32
    return %c0_i32, %c0_i32_0 : i32, i32
  }
  func.func @transform_5(%arg0: i32, %arg1: i32) -> (i32, i32) {
    %c0_i32 = arith.constant 0 : i32
    %c0_i32_0 = arith.constant 0 : i32
    %c0_i32_1 = arith.constant 0 : i32
    return %c0_i32, %c0_i32_0 : i32, i32
  }
  func.func @transform_6(%arg0: i32, %arg1: i32) -> (i32, i32) {
    %c0_i32 = arith.constant 0 : i32
    %c0_i32_0 = arith.constant 0 : i32
    %c0_i32_1 = arith.constant 0 : i32
    return %c0_i32, %c0_i32_0 : i32, i32
  }
  func.func @transform_7(%arg0: i32, %arg1: i32) -> (i32, i32) {
    %c0_i32 = arith.constant 0 : i32
    %c0_i32_0 = arith.constant 0 : i32
    %c0_i32_1 = arith.constant 0 : i32
    return %c0_i32, %c0_i32_0 : i32, i32
  }
  func.func @transform_8(%arg0: i32, %arg1: i32) -> (i32, i32) {
    %c0_i32 = arith.constant 0 : i32
    %c0_i32_0 = arith.constant 0 : i32
    %c0_i32_1 = arith.constant 0 : i32
    return %c0_i32, %c0_i32_0 : i32, i32
  }
  func.func @transform_9(%arg0: i32, %arg1: i32) -> (i32, i32) {
    %c0_i32 = arith.constant 0 : i32
    %c0_i32_0 = arith.constant 0 : i32
    %c0_i32_1 = arith.constant 0 : i32
    return %c0_i32, %c0_i32_0 : i32, i32
  }
  func.func @transform_10(%arg0: i32, %arg1: i32) -> (i32, i32) {
    %c0_i32 = arith.constant 0 : i32
    %c0_i32_0 = arith.constant 0 : i32
    %c0_i32_1 = arith.constant 0 : i32
    return %c0_i32, %c0_i32_0 : i32, i32
  }
  func.func @transform_11(%arg0: i32, %arg1: i32) -> (i32, i32) {
    %c0_i32 = arith.constant 0 : i32
    %c0_i32_0 = arith.constant 0 : i32
    %c0_i32_1 = arith.constant 0 : i32
    return %c0_i32, %c0_i32_0 : i32, i32
  }
  func.func @transform_12(%arg0: i32, %arg1: i32) -> (i32, i32) {
    %c0_i32 = arith.constant 0 : i32
    %c0_i32_0 = arith.constant 0 : i32
    %c0_i32_1 = arith.constant 0 : i32
    return %c0_i32, %c0_i32_0 : i32, i32
  }
  func.func @transform_13(%arg0: i32, %arg1: i32) -> (i32, i32) {
    %c0_i32 = arith.constant 0 : i32
    %c0_i32_0 = arith.constant 0 : i32
    %c0_i32_1 = arith.constant 0 : i32
    return %c0_i32, %c0_i32_0 : i32, i32
  }
  func.func @transform_14(%arg0: i32, %arg1: i32) -> (i32, i32, i32) {
    %c0_i32 = arith.constant 0 : i32
    %c0_i32_0 = arith.constant 0 : i32
    return %arg0, %arg1, %c0_i32 : i32, i32, i32
  }
}

</mosaic_0001>

<llo_original>
// kernel: transformer_forward.3
$region0: #{transformer_forward.3}
  #allocation0 [shape = 'u32[]', space=smem, size = 0x4, offset = 0x4, fixed_abs, tag = 'smem constant byte address 0x4 - core index']
  #allocation1 [shape = 'u32[144,128]{1,0:T(1,128)}', space=vmem, size = 0x12000, scoped, tag = 'internal scratch']
  %s0 = inlined_call_operand.vmem [shape: f32[2,8,32], index: 0, kind: input, shape index: {}]
  %s1 = inlined_call_operand.vmem [shape: bf16[1,8,8], index: 1, kind: input, shape index: {}]
  %s2 = inlined_call_operand.vmem [shape: f32[1,32], index: 2, kind: input, shape index: {}]
  %s3 = inlined_call_operand.vmem [shape: f32[1,32], index: 3, kind: input, shape index: {}]
  %s4 = inlined_call_operand.vmem [shape: bf16[32,96], index: 4, kind: input, shape index: {}]
  %s5 = inlined_call_operand.vmem [shape: f32[1,96], index: 5, kind: input, shape index: {}]
  %s6 = inlined_call_operand.vmem [shape: bf16[32,32], index: 6, kind: input, shape index: {}]
  %s7 = inlined_call_operand.vmem [shape: f32[1,32], index: 7, kind: input, shape index: {}]
  %s8 = inlined_call_operand.vmem [shape: f32[1,32], index: 8, kind: input, shape index: {}]
  %s9 = inlined_call_operand.vmem [shape: f32[1,32], index: 9, kind: input, shape index: {}]
  %s10 = inlined_call_operand.vmem [shape: bf16[32,128], index: 10, kind: input, shape index: {}]
  %s11 = inlined_call_operand.vmem [shape: f32[1,128], index: 11, kind: input, shape index: {}]
  %s12 = inlined_call_operand.vmem [shape: bf16[128,32], index: 12, kind: input, shape index: {}]
  %s13 = inlined_call_operand.vmem [shape: f32[1,32], index: 13, kind: input, shape index: {}]
  %s14 = inlined_call_operand.hbm [shape: f32[2,8,32], index: 14, kind: output, shape index: {}]
  %s15 = sld [smem:[#allocation0]]
  $region89: #{transformer_forward.3} parent=0
    _
  %s17 = ssub.s32 1, %s15
  %s18 = scalar_select 0, %s17, %s15
  $region1: #{transformer_forward.3} parent=0
    #allocation2 [shape = 'u8[8192]{0}', space=vmem, size = 0x2000, scoped, tag = 'output window, operand 0']
    #allocation3 [shape = 's32[2]{0}', space=sflag, size = 0x8, scoped, tag = 'scoped memory for transformer_forward.3']
    %19 = vsyncpa [#allocation3], 0
    %s20 = scalar_lea.sflag [#allocation3], 1
    %21 = vsyncpa %s20, 0
    loop: start=0, step=1, limit=4
    $region2: #{transformer_forward.3} parent=1 // loop_pre_header
      _
    $region3: #{transformer_forward.3} parent=1 // loop_header
      %s23 = sphi 0, %s27
      %p24 = scmp.ge.s32.totalorder %s23, 4
      %s30 = sphi 0, %s42
      %s31 = sphi 0, %s38
      %s32 = sphi 0, %s30
      %s33 = sphi 0, %s31
      %s34 = sphi 0, %s32
      %s35 = sphi 0, %s33
      %s47 = sphi 0, %s49
      %s50 = sphi 0, %s47
      %s51 = sphi 0, %s50
      %s67 = sphi 0, %s51
      %s73 = sphi 0, %s75
      %s76 = sphi 0, %s73
      %s77 = sphi 0, %s76
      %s93 = sphi 0, %s77
      %s97 = sphi 0, %s97
      %s99 = sphi 0, %s97
      %s100 = sphi 0, %s99
      %s114 = sphi 0, %s100
      %s118 = sphi 0, %s118
      %s120 = sphi 0, %s118
      %s121 = sphi 0, %s120
      %s135 = sphi 0, %s121
      %s139 = sphi 0, %s139
      %s141 = sphi 0, %s139
      %s142 = sphi 0, %s141
      %s156 = sphi 0, %s142
      %s160 = sphi 0, %s160
      %s162 = sphi 0, %s160
      %s163 = sphi 0, %s162
      %s177 = sphi 0, %s163
      %s181 = sphi 0, %s181
      %s183 = sphi 0, %s181
      %s184 = sphi 0, %s183
      %s198 = sphi 0, %s184
      %s202 = sphi 0, %s202
      %s204 = sphi 0, %s202
      %s205 = sphi 0, %s204
      %s219 = sphi 0, %s205
      %s223 = sphi 0, %s223
      %s225 = sphi 0, %s223
      %s226 = sphi 0, %s225
      %s240 = sphi 0, %s226
      %s244 = sphi 0, %s244
      %s246 = sphi 0, %s244
      %s247 = sphi 0, %s246
      %s261 = sphi 0, %s247
      %s265 = sphi 0, %s265
      %s267 = sphi 0, %s265
      %s268 = sphi 0, %s267
      %s282 = sphi 0, %s268
      %s286 = sphi 0, %s286
      %s288 = sphi 0, %s286
      %s289 = sphi 0, %s288
      %s303 = sphi 0, %s289
      %s307 = sphi 0, %s307
      %s309 = sphi 0, %s307
      %s310 = sphi 0, %s309
      %s324 = sphi 0, %s310
      %s328 = sphi 0, %s328
      %s330 = sphi 0, %s328
      %s331 = sphi 0, %s330
      %s345 = sphi 0, %s331
      %s353 = sphi 0, %s355
      %s356 = sphi 0, %s353
      %s357 = sphi 0, %s356
      %s373 = sphi 0, %s357
    $region4: #{transformer_forward.3} parent=1 // loop_header_branch
      %26 = sbr.rel (%p24) target = $region8
    $region5: #{transformer_forward.3} parent=1 // loop_body
      %s28 = ssub.s32 %s23, 1
      %s29 = ssub.s32 %s23, 2
      %s36 = sadd.s32 1, %s31
      %p37 = scmp.ge.s32.totalorder %s36, 1
      %s38 = scalar_select %p37, 0, %s36
      %s39 = sadd.s32 1, %s30
      %s40 = scalar_select %p37, %s39, %s30
      %p41 = scmp.ge.s32.totalorder %s40, 2
      %s42 = scalar_select %p41, 0, %s40
      %s43 = ssub.s32 %s30, %s42
      %s44 = ssub.s32 %s31, %s38
      %s45 = sor.u32 %s43, %s44
      %p46 = scmp.eq.s32.totalorder %s45, 0
      %s48 = sadd.s32 %s47, 1
      %s49 = scalar_select %p46, %s47, %s48
      %p52 = pneg %p46
      %p53 = scmp.eq.s32.totalorder %s23, 1
      %p54 = por %p52, %p53
      %p55 = scmp.ne.s32.totalorder %s47, %s50
      %p56 = scmp.eq.s32.totalorder %s23, 0
      %p57 = por %p55, %p56
      %p58 = scmp.ne.s32.totalorder %s47, %s50
      %p59 = scmp.eq.s32.totalorder %s28, 1
      %p60 = por %p58, %p59
      %p61 = scmp.ne.s32.totalorder %s50, %s51
      %p62 = scmp.eq.s32.totalorder %s28, 0
      %p63 = por %p61, %p62
      %p64 = scmp.ne.s32.totalorder %s50, %s51
      %p65 = scmp.eq.s32.totalorder %s29, 1
      %p66 = por %p64, %p65
      %p68 = scmp.ne.s32.totalorder %s51, %s67
      %p69 = scmp.eq.s32.totalorder %s29, 0
      %p70 = por %p68, %p69
      %s71 = ssub.s32 %s31, %s38
      %p72 = scmp.eq.s32.totalorder %s71, 0
      %s74 = sadd.s32 %s73, 1
      %s75 = scalar_select %p72, %s73, %s74
      %p78 = pneg %p72
      %p79 = scmp.eq.s32.totalorder %s23, 1
      %p80 = por %p78, %p79
      %p81 = scmp.ne.s32.totalorder %s73, %s76
      %p82 = scmp.eq.s32.totalorder %s23, 0
      %p83 = por %p81, %p82
      %p84 = scmp.ne.s32.totalorder %s73, %s76
      %p85 = scmp.eq.s32.totalorder %s28, 1
      %p86 = por %p84, %p85
      %p87 = scmp.ne.s32.totalorder %s76, %s77
      %p88 = scmp.eq.s32.totalorder %s28, 0
      %p89 = por %p87, %p88
      %p90 = scmp.ne.s32.totalorder %s76, %s77
      %p91 = scmp.eq.s32.totalorder %s29, 1
      %p92 = por %p90, %p91
      %p94 = scmp.ne.s32.totalorder %s77, %s93
      %p95 = scmp.eq.s32.totalorder %s29, 0
      %p96 = por %p94, %p95
      %s98 = sadd.s32 %s97, 1
      %p101 = scmp.eq.s32.totalorder %s23, 1
      %p102 = scmp.ne.s32.totalorder %s97, %s99
      %p103 = scmp.eq.s32.totalorder %s23, 0
      %p104 = por %p102, %p103
      %p105 = scmp.ne.s32.totalorder %s97, %s99
      %p106 = scmp.eq.s32.totalorder %s28, 1
      %p107 = por %p105, %p106
      %p108 = scmp.ne.s32.totalorder %s99, %s100
      %p109 = scmp.eq.s32.totalorder %s28, 0
      %p110 = por %p108, %p109
      %p111 = scmp.ne.s32.totalorder %s99, %s100
      %p112 = scmp.eq.s32.totalorder %s29, 1
      %p113 = por %p111, %p112
      %p115 = scmp.ne.s32.totalorder %s100, %s114
      %p116 = scmp.eq.s32.totalorder %s29, 0
      %p117 = por %p115, %p116
      %s119 = sadd.s32 %s118, 1
      %p122 = scmp.eq.s32.totalorder %s23, 1
      %p123 = scmp.ne.s32.totalorder %s118, %s120
      %p124 = scmp.eq.s32.totalorder %s23, 0
      %p125 = por %p123, %p124
      %p126 = scmp.ne.s32.totalorder %s118, %s120
      %p127 = scmp.eq.s32.totalorder %s28, 1
      %p128 = por %p126, %p127
      %p129 = scmp.ne.s32.totalorder %s120, %s121
      %p130 = scmp.eq.s32.totalorder %s28, 0
      %p131 = por %p129, %p130
      %p132 = scmp.ne.s32.totalorder %s120, %s121
      %p133 = scmp.eq.s32.totalorder %s29, 1
      %p134 = por %p132, %p133
      %p136 = scmp.ne.s32.totalorder %s121, %s135
      %p137 = scmp.eq.s32.totalorder %s29, 0
      %p138 = por %p136, %p137
      %s140 = sadd.s32 %s139, 1
      %p143 = scmp.eq.s32.totalorder %s23, 1
      %p144 = scmp.ne.s32.totalorder %s139, %s141
      %p145 = scmp.eq.s32.totalorder %s23, 0
      %p146 = por %p144, %p145
      %p147 = scmp.ne.s32.totalorder %s139, %s141
      %p148 = scmp.eq.s32.totalorder %s28, 1
      %p149 = por %p147, %p148
      %p150 = scmp.ne.s32.totalorder %s141, %s142
      %p151 = scmp.eq.s32.totalorder %s28, 0
      %p152 = por %p150, %p151
      %p153 = scmp.ne.s32.totalorder %s141, %s142
      %p154 = scmp.eq.s32.totalorder %s29, 1
      %p155 = por %p153, %p154
      %p157 = scmp.ne.s32.totalorder %s142, %s156
      %p158 = scmp.eq.s32.totalorder %s29, 0
      %p159 = por %p157, %p158
      %s161 = sadd.s32 %s160, 1
      %p164 = scmp.eq.s32.totalorder %s23, 1
      %p165 = scmp.ne.s32.totalorder %s160, %s162
      %p166 = scmp.eq.s32.totalorder %s23, 0
      %p167 = por %p165, %p166
      %p168 = scmp.ne.s32.totalorder %s160, %s162
      %p169 = scmp.eq.s32.totalorder %s28, 1
      %p170 = por %p168, %p169
      %p171 = scmp.ne.s32.totalorder %s162, %s163
      %p172 = scmp.eq.s32.totalorder %s28, 0
      %p173 = por %p171, %p172
      %p174 = scmp.ne.s32.totalorder %s162, %s163
      %p175 = scmp.eq.s32.totalorder %s29, 1
      %p176 = por %p174, %p175
      %p178 = scmp.ne.s32.totalorder %s163, %s177
      %p179 = scmp.eq.s32.totalorder %s29, 0
      %p180 = por %p178, %p179
      %s182 = sadd.s32 %s181, 1
      %p185 = scmp.eq.s32.totalorder %s23, 1
      %p186 = scmp.ne.s32.totalorder %s181, %s183
      %p187 = scmp.eq.s32.totalorder %s23, 0
      %p188 = por %p186, %p187
      %p189 = scmp.ne.s32.totalorder %s181, %s183
      %p190 = scmp.eq.s32.totalorder %s28, 1
      %p191 = por %p189, %p190
      %p192 = scmp.ne.s32.totalorder %s183, %s184
      %p193 = scmp.eq.s32.totalorder %s28, 0
      %p194 = por %p192, %p193
      %p195 = scmp.ne.s32.totalorder %s183, %s184
      %p196 = scmp.eq.s32.totalorder %s29, 1
      %p197 = por %p195, %p196
      %p199 = scmp.ne.s32.totalorder %s184, %s198
      %p200 = scmp.eq.s32.totalorder %s29, 0
      %p201 = por %p199, %p200
      %s203 = sadd.s32 %s202, 1
      %p206 = scmp.eq.s32.totalorder %s23, 1
      %p207 = scmp.ne.s32.totalorder %s202, %s204
      %p208 = scmp.eq.s32.totalorder %s23, 0
      %p209 = por %p207, %p208
      %p210 = scmp.ne.s32.totalorder %s202, %s204
      %p211 = scmp.eq.s32.totalorder %s28, 1
      %p212 = por %p210, %p211
      %p213 = scmp.ne.s32.totalorder %s204, %s205
      %p214 = scmp.eq.s32.totalorder %s28, 0
      %p215 = por %p213, %p214
      %p216 = scmp.ne.s32.totalorder %s204, %s205
      %p217 = scmp.eq.s32.totalorder %s29, 1
      %p218 = por %p216, %p217
      %p220 = scmp.ne.s32.totalorder %s205, %s219
      %p221 = scmp.eq.s32.totalorder %s29, 0
      %p222 = por %p220, %p221
      %s224 = sadd.s32 %s223, 1
      %p227 = scmp.eq.s32.totalorder %s23, 1
      %p228 = scmp.ne.s32.totalorder %s223, %s225
      %p229 = scmp.eq.s32.totalorder %s23, 0
      %p230 = por %p228, %p229
      %p231 = scmp.ne.s32.totalorder %s223, %s225
      %p232 = scmp.eq.s32.totalorder %s28, 1
      %p233 = por %p231, %p232
      %p234 = scmp.ne.s32.totalorder %s225, %s226
      %p235 = scmp.eq.s32.totalorder %s28, 0
      %p236 = por %p234, %p235
      %p237 = scmp.ne.s32.totalorder %s225, %s226
      %p238 = scmp.eq.s32.totalorder %s29, 1
      %p239 = por %p237, %p238
      %p241 = scmp.ne.s32.totalorder %s226, %s240
      %p242 = scmp.eq.s32.totalorder %s29, 0
      %p243 = por %p241, %p242
      %s245 = sadd.s32 %s244, 1
      %p248 = scmp.eq.s32.totalorder %s23, 1
      %p249 = scmp.ne.s32.totalorder %s244, %s246
      %p250 = scmp.eq.s32.totalorder %s23, 0
      %p251 = por %p249, %p250
      %p252 = scmp.ne.s32.totalorder %s244, %s246
      %p253 = scmp.eq.s32.totalorder %s28, 1
      %p254 = por %p252, %p253
      %p255 = scmp.ne.s32.totalorder %s246, %s247
      %p256 = scmp.eq.s32.totalorder %s28, 0
      %p257 = por %p255, %p256
      %p258 = scmp.ne.s32.totalorder %s246, %s247
      %p259 = scmp.eq.s32.totalorder %s29, 1
      %p260 = por %p258, %p259
      %p262 = scmp.ne.s32.totalorder %s247, %s261
      %p263 = scmp.eq.s32.totalorder %s29, 0
      %p264 = por %p262, %p263
      %s266 = sadd.s32 %s265, 1
      %p269 = scmp.eq.s32.totalorder %s23, 1
      %p270 = scmp.ne.s32.totalorder %s265, %s267
      %p271 = scmp.eq.s32.totalorder %s23, 0
      %p272 = por %p270, %p271
      %p273 = scmp.ne.s32.totalorder %s265, %s267
      %p274 = scmp.eq.s32.totalorder %s28, 1
      %p275 = por %p273, %p274
      %p276 = scmp.ne.s32.totalorder %s267, %s268
      %p277 = scmp.eq.s32.totalorder %s28, 0
      %p278 = por %p276, %p277
      %p279 = scmp.ne.s32.totalorder %s267, %s268
      %p280 = scmp.eq.s32.totalorder %s29, 1
      %p281 = por %p279, %p280
      %p283 = scmp.ne.s32.totalorder %s268, %s282
      %p284 = scmp.eq.s32.totalorder %s29, 0
      %p285 = por %p283, %p284
      %s287 = sadd.s32 %s286, 1
      %p290 = scmp.eq.s32.totalorder %s23, 1
      %p291 = scmp.ne.s32.totalorder %s286, %s288
      %p292 = scmp.eq.s32.totalorder %s23, 0
      %p293 = por %p291, %p292
      %p294 = scmp.ne.s32.totalorder %s286, %s288
      %p295 = scmp.eq.s32.totalorder %s28, 1
      %p296 = por %p294, %p295
      %p297 = scmp.ne.s32.totalorder %s288, %s289
      %p298 = scmp.eq.s32.totalorder %s28, 0
      %p299 = por %p297, %p298
      %p300 = scmp.ne.s32.totalorder %s288, %s289
      %p301 = scmp.eq.s32.totalorder %s29, 1
      %p302 = por %p300, %p301
      %p304 = scmp.ne.s32.totalorder %s289, %s303
      %p305 = scmp.eq.s32.totalorder %s29, 0
      %p306 = por %p304, %p305
      %s308 = sadd.s32 %s307, 1
      %p311 = scmp.eq.s32.totalorder %s23, 1
      %p312 = scmp.ne.s32.totalorder %s307, %s309
      %p313 = scmp.eq.s32.totalorder %s23, 0
      %p314 = por %p312, %p313
      %p315 = scmp.ne.s32.totalorder %s307, %s309
      %p316 = scmp.eq.s32.totalorder %s28, 1
      %p317 = por %p315, %p316
      %p318 = scmp.ne.s32.totalorder %s309, %s310
      %p319 = scmp.eq.s32.totalorder %s28, 0
      %p320 = por %p318, %p319
      %p321 = scmp.ne.s32.totalorder %s309, %s310
      %p322 = scmp.eq.s32.totalorder %s29, 1
      %p323 = por %p321, %p322
      %p325 = scmp.ne.s32.totalorder %s310, %s324
      %p326 = scmp.eq.s32.totalorder %s29, 0
      %p327 = por %p325, %p326
      %s329 = sadd.s32 %s328, 1
      %p332 = scmp.eq.s32.totalorder %s23, 1
      %p333 = scmp.ne.s32.totalorder %s328, %s330
      %p334 = scmp.eq.s32.totalorder %s23, 0
      %p335 = por %p333, %p334
      %p336 = scmp.ne.s32.totalorder %s328, %s330
      %p337 = scmp.eq.s32.totalorder %s28, 1
      %p338 = por %p336, %p337
      %p339 = scmp.ne.s32.totalorder %s330, %s331
      %p340 = scmp.eq.s32.totalorder %s28, 0
      %p341 = por %p339, %p340
      %p342 = scmp.ne.s32.totalorder %s330, %s331
      %p343 = scmp.eq.s32.totalorder %s29, 1
      %p344 = por %p342, %p343
      %p346 = scmp.ne.s32.totalorder %s331, %s345
      %p347 = scmp.eq.s32.totalorder %s29, 0
      %p348 = por %p346, %p347
      %s349 = ssub.s32 %s30, %s42
      %s350 = ssub.s32 %s31, %s38
      %s351 = sor.u32 %s349, %s350
      %p352 = scmp.eq.s32.totalorder %s351, 0
      %s354 = sadd.s32 %s353, 1
      %s355 = scalar_select %p352, %s353, %s354
      %p358 = pneg %p352
      %p359 = scmp.eq.s32.totalorder %s23, 1
      %p360 = por %p358, %p359
      %p361 = scmp.ne.s32.totalorder %s353, %s356
      %p362 = scmp.eq.s32.totalorder %s23, 0
      %p363 = por %p361, %p362
      %p364 = scmp.ne.s32.totalorder %s353, %s356
      %p365 = scmp.eq.s32.totalorder %s28, 1
      %p366 = por %p364, %p365
      %p367 = scmp.ne.s32.totalorder %s356, %s357
      %p368 = scmp.eq.s32.totalorder %s28, 0
      %p369 = por %p367, %p368
      %p370 = scmp.ne.s32.totalorder %s356, %s357
      %p371 = scmp.eq.s32.totalorder %s29, 1
      %p372 = por %p370, %p371
      %p374 = scmp.ne.s32.totalorder %s357, %s373
      %p375 = scmp.eq.s32.totalorder %s29, 0
      %p376 = por %p374, %p375
      %p377 = scmp.le.s32.totalorder 1, %s23
      %p378 = scmp.lt.s32.totalorder %s23, 3
      %p379 = pnand %p377, %p378
      %p380 = pneg %p379
      // Predicated region
      $region9: #{transformer_forward.3} parent=5 // pred_check
        _
      $region10: #{transformer_forward.3} parent=5 // pred_check_branch
        %382 = sbr.rel (%p379) target = $region12
      $region11: #{transformer_forward.3} parent=5 // pred_region
        %s383 = ssub.s32 %s23, 1
        // Predicated region
        $region13: #{transformer_forward.3} parent=11 // pred_check
          %p384 = pneg %p89
        $region14: #{transformer_forward.3} parent=11 // pred_check_branch
          %386 = sbr.rel (%p384) target = $region16
        $region15: #{transformer_forward.3} parent=11 // pred_region
          %p387 = scmp.lt.s32.totalorder %s33, 0
          %s388 = scalar_select %p387, %s33, 0
          %s389 = smul.addr %s388, 4
          %s390 = scalar_lea.vmem %s1, %s389
        $region16: #{transformer_forward.3} parent=11 // pred_fallthru
          _
        // Predicated region
        $region17: #{transformer_forward.3} parent=11 // pred_check
          %p391 = pneg %p110
        $region18: #{transformer_forward.3} parent=11 // pred_check_branch
          %393 = sbr.rel (%p391) target = $region20
        $region19: #{transformer_forward.3} parent=11 // pred_region
          _
        $region20: #{transformer_forward.3} parent=11 // pred_fallthru
          _
        // Predicated region
        $region21: #{transformer_forward.3} parent=11 // pred_check
          %p394 = pneg %p131
        $region22: #{transformer_forward.3} parent=11 // pred_check_branch
          %396 = sbr.rel (%p394) target = $region24
        $region23: #{transformer_forward.3} parent=11 // pred_region
          _
        $region24: #{transformer_forward.3} parent=11 // pred_fallthru
          _
        // Predicated region
        $region25: #{transformer_forward.3} parent=11 // pred_check
          %p397 = pneg %p152
        $region26: #{transformer_forward.3} parent=11 // pred_check_branch
          %399 = sbr.rel (%p397) target = $region28
        $region27: #{transformer_forward.3} parent=11 // pred_region
          _
        $region28: #{transformer_forward.3} parent=11 // pred_fallthru
          _
        // Predicated region
        $region29: #{transformer_forward.3} parent=11 // pred_check
          %p400 = pneg %p173
        $region30: #{transformer_forward.3} parent=11 // pred_check_branch
          %402 = sbr.rel (%p400) target = $region32
        $region31: #{transformer_forward.3} parent=11 // pred_region
          _
        $region32: #{transformer_forward.3} parent=11 // pred_fallthru
          _
        // Predicated region
        $region33: #{transformer_forward.3} parent=11 // pred_check
          %p403 = pneg %p194
        $region34: #{transformer_forward.3} parent=11 // pred_check_branch
          %405 = sbr.rel (%p403) target = $region36
        $region35: #{transformer_forward.3} parent=11 // pred_region
          _
        $region36: #{transformer_forward.3} parent=11 // pred_fallthru
          _
        // Predicated region
        $region37: #{transformer_forward.3} parent=11 // pred_check
          %p406 = pneg %p215
        $region38: #{transformer_forward.3} parent=11 // pred_check_branch
          %408 = sbr.rel (%p406) target = $region40
        $region39: #{transformer_forward.3} parent=11 // pred_region
          _
        $region40: #{transformer_forward.3} parent=11 // pred_fallthru
          _
        // Predicated region
        $region41: #{transformer_forward.3} parent=11 // pred_check
          %p409 = pneg %p236
        $region42: #{transformer_forward.3} parent=11 // pred_check_branch
          %411 = sbr.rel (%p409) target = $region44
        $region43: #{transformer_forward.3} parent=11 // pred_region
          _
        $region44: #{transformer_forward.3} parent=11 // pred_fallthru
          _
        // Predicated region
        $region45: #{transformer_forward.3} parent=11 // pred_check
          %p412 = pneg %p257
        $region46: #{transformer_forward.3} parent=11 // pred_check_branch
          %414 = sbr.rel (%p412) target = $region48
        $region47: #{transformer_forward.3} parent=11 // pred_region
          _
        $region48: #{transformer_forward.3} parent=11 // pred_fallthru
          _
        // Predicated region
        $region49: #{transformer_forward.3} parent=11 // pred_check
          %p415 = pneg %p278
        $region50: #{transformer_forward.3} parent=11 // pred_check_branch
          %417 = sbr.rel (%p415) target = $region52
        $region51: #{transformer_forward.3} parent=11 // pred_region
          _
        $region52: #{transformer_forward.3} parent=11 // pred_fallthru
          _
        // Predicated region
        $region53: #{transformer_forward.3} parent=11 // pred_check
          %p418 = pneg %p299
        $region54: #{transformer_forward.3} parent=11 // pred_check_branch
          %420 = sbr.rel (%p418) target = $region56
        $region55: #{transformer_forward.3} parent=11 // pred_region
          _
        $region56: #{transformer_forward.3} parent=11 // pred_fallthru
          _
        // Predicated region
        $region57: #{transformer_forward.3} parent=11 // pred_check
          %p421 = pneg %p320
        $region58: #{transformer_forward.3} parent=11 // pred_check_branch
          %423 = sbr.rel (%p421) target = $region60
        $region59: #{transformer_forward.3} parent=11 // pred_region
          _
        $region60: #{transformer_forward.3} parent=11 // pred_fallthru
          _
        // Predicated region
        $region61: #{transformer_forward.3} parent=11 // pred_check
          %p424 = pneg %p341
        $region62: #{transformer_forward.3} parent=11 // pred_check_branch
          %426 = sbr.rel (%p424) target = $region64
        $region63: #{transformer_forward.3} parent=11 // pred_region
          _
        $region64: #{transformer_forward.3} parent=11 // pred_fallthru
          _
      $region12: #{transformer_forward.3} parent=5 // pred_fallthru
        _
      %p427 = scmp.lt.s32.totalorder %s23, 2
      // Predicated region
      $region65: #{transformer_forward.3} parent=5 // pred_check
        %p428 = pneg %p427
      $region66: #{transformer_forward.3} parent=5 // pred_check_branch
        %430 = sbr.rel (%p428) target = $region68
      $region67: #{transformer_forward.3} parent=5 // pred_region
        // Predicated region
        $region69: #{transformer_forward.3} parent=67 // pred_check
          %p431 = pneg %p57
        $region70: #{transformer_forward.3} parent=67 // pred_check_branch
          %433 = sbr.rel (%p431) target = $region72
        $region71: #{transformer_forward.3} parent=67 // pred_region
          %p434 = scmp.lt.s32.totalorder %s30, 1
          %s435 = scalar_select %p434, %s30, 1
          %p436 = scmp.lt.s32.totalorder %s31, 0
          %s437 = scalar_select %p436, %s31, 0
          %s438 = sadd.s32 %s437, %s435
          %s439 = smul.addr %s438, 8
          %s440 = scalar_lea.vmem %s0, %s439
        $region72: #{transformer_forward.3} parent=67 // pred_fallthru
          _
      $region68: #{transformer_forward.3} parent=5 // pred_fallthru
        _
      %p441 = scmp.le.s32.totalorder 1, %s23
      %p442 = scmp.lt.s32.totalorder %s23, 3
      %p443 = pnand %p441, %p442
      %p444 = pneg %p443
      // Predicated region
      $region73: #{transformer_forward.3} parent=5 // pred_check
        _
      $region74: #{transformer_forward.3} parent=5 // pred_check_branch
        %446 = sbr.rel (%p443) target = $region76
      $region75: #{transformer_forward.3} parent=5 // pred_region
        %s447 = ssub.s32 %s23, 1
        %p448 = scmp.lt.s32.totalorder %s32, 1
        %s449 = scalar_select %p448, %s32, 1
        %p450 = scmp.lt.s32.totalorder %s33, 0
        %s451 = scalar_select %p450, %s33, 0
        %s452 = sadd.s32 %s451, %s449
        %s453 = smul.addr %s452, 8
        %s454 = scalar_lea.vmem %s0, %s453
        %p455 = pneg %p63
        %p456 = pneg %p60
        %p457 = scmp.lt.s32.totalorder %s33, 0
        %s458 = scalar_select %p457, %s33, 0
        %s459 = smul.addr %s458, 4
        %s460 = scalar_lea.vmem %s1, %s459
        %p461 = pneg %p89
        %p462 = pneg %p86
        %p463 = pneg %p110
        %p464 = pneg %p107
        %p465 = pneg %p131
        %p466 = pneg %p128
        %p467 = pneg %p152
        %p468 = pneg %p149
        %p469 = pneg %p173
        %p470 = pneg %p170
        %p471 = pneg %p194
        %p472 = pneg %p191
        %p473 = pneg %p215
        %p474 = pneg %p212
        %p475 = pneg %p236
        %p476 = pneg %p233
        %p477 = pneg %p257
        %p478 = pneg %p254
        %p479 = pneg %p278
        %p480 = pneg %p275
        %p481 = pneg %p299
        %p482 = pneg %p296
        %p483 = pneg %p320
        %p484 = pneg %p317
        %p485 = pneg %p341
        %p486 = pneg %p338
        %p487 = pneg %p369
        %p488 = pneg %p366
        %s489 = sand.u32 %s356, 1
        %s490 = scalar_lea.sflag [#allocation3], %s489
        %s491 = sand.u32 %s356, 1
        %s492 = smul.addr %s491, 8
        %s493 = scalar_lea.vmem [#allocation2], %s492
        %p494 = scmp.lt.s32.totalorder %s32, 1
        %s495 = scalar_select %p494, %s32, 1
        %p496 = scmp.lt.s32.totalorder %s33, 0
        %s497 = scalar_select %p496, %s33, 0
        %s498 = sadd.s32 %s497, %s495
        %s499 = smul.addr %s498, 8
        %s500 = scalar_lea.vmem %s0, %s499
        %p501 = scmp.lt.s32.totalorder %s33, 0
        %s502 = scalar_select %p501, %s33, 0
        %s503 = smul.addr %s502, 4
        %s504 = scalar_lea.vmem %s1, %s503
        %v506 = vld [vmem:[%s500] sm:$0xff]
        %v507 = vld [vmem:[%s2] sm:$0x1]
        %v508 = vld [vmem:[%s3] sm:$0x1]
        %vm509 = vcmask 261120
        %v510 = vsel %vm509, %v506, 0.0
        %511 = vadd.xlane.f32.xlu0 %v510
        %v512 = vpop.xlane.xlu0 %511
        %v513 = vrcp.pop 32.0
        %v514 = vmul.f32 %v512, %v513
        %v515 = vsub.f32 %v506, %v514
        %v516 = vmul.f32 %v515, %v515
        %v517 = vsel %vm509, %v516, 0.0
        %518 = vadd.xlane.f32.xlu0 %v517
        %v519 = vpop.xlane.xlu0 %518
        %v520 = vmul.f32 %v519, %v513
        %v521 = vadd.f32 %v520, 1e-05
        %v522 = vrsqrt.pop %v521
        %v523 = vmul.f32 %v515, %v522
        %v525 = vlaneseq
        %v526 = vshrl.u32 %v525, 7
        %v527 = vsub.s32 0, %v526
        %v528 = vrot.slane %v507, %v527
        %v530 = vmul.f32 %v523, %v528
        %v532 = vlaneseq
        %v533 = vshrl.u32 %v532, 7
        %v534 = vsub.s32 0, %v533
        %v535 = vrot.slane %v508, %v534
        %v537 = vadd.f32 %v530, %v535
        %v538 = vpack.c.bf16 %v537, %v537
        %v539 = vld [vmem:[%s4] sm:$0xf]
        %v540 = vld [vmem:[%s4 + $0x4] sm:$0xf]
        %v541 = vld [vmem:[%s4 + $0x8] sm:$0xf]
        %v542 = vld [vmem:[%s4 + $0xc] sm:$0xf]
        %v543 = vld [vmem:[%s5] sm:$0x1]
        %v545 = vlaneseq
        %v546 = vshrl.u32 %v545, 7
        %v547 = vsub.s32 0, %v546
        %v548 = vrot.slane %v543, %v547
        %v554 = vunpack.c.l.b16 %v539
        %v555 = vunpack.c.l.b16 %v540
        %v556 = vunpack.c.l.b16 %v541
        %v557 = vunpack.c.l.b16 %v542
        %v558 = vpack.c.b16 %v555, %v554
        %v559 = vpack.c.b16 %v557, %v556
        %v563 = vsel %vm509, %v538, 0
        %565 = vmatprep.subr.bf16.mxu0 0
        %566 = vmatpush1.bf16.msra.mxu0 %v558
        %567 = vmatprep.subr.bf16.mxu0 0
        %568 = vmatpush1.bf16.msra.mxu0 %v559
        %569 = vmatprep.subr.bf16.mxu0 0
        %570 = vmatpush1.bf16.msra.mxu0 0
        %571 = vmatprep.subr.bf16.mxu0 0
        %572 = vmatpush1.bf16.msra.mxu0 0
        %573 = vmatprep.subr.bf16.mxu0 0
        %574 = vmatpush1.bf16.msra.mxu0 0
        %575 = vmatprep.subr.bf16.mxu0 0
        %576 = vmatpush1.bf16.msra.mxu0 0
        %577 = vmatprep.subr.bf16.mxu0 0
        %578 = vmatpush1.bf16.msra.mxu0 0
        %579 = vmatprep.subr.bf16.mxu0 0
        %580 = vmatpush1.bf16.msra.mxu0 0
        %581 = vmatprep.subr.bf16.mxu0 0
        %582 = vmatpush1.bf16.msra.mxu0 0
        %583 = vmatprep.subr.bf16.mxu0 0
        %584 = vmatpush1.bf16.msra.mxu0 0
        %585 = vmatprep.subr.bf16.mxu0 0
        %586 = vmatpush1.bf16.msra.mxu0 0
        %587 = vmatprep.subr.bf16.mxu0 0
        %588 = vmatpush1.bf16.msra.mxu0 0
        %589 = vmatprep.subr.bf16.mxu0 0
        %590 = vmatpush1.bf16.msra.mxu0 0
        %591 = vmatprep.subr.bf16.mxu0 0
        %592 = vmatpush1.bf16.msra.mxu0 0
        %593 = vmatprep.subr.bf16.mxu0 0
        %594 = vmatpush1.bf16.msra.mxu0 0
        %595 = vmatprep.subr.bf16.mxu0 0
        %596 = vmatpush1.bf16.msra.mxu0 0
        %597 = vmatprep.mubr.bf16.mxu0 0
        %598 = vmatmul.mubr.bf16.gmra.mrb[0].mxu0 %v563
        %v599 = vpop.f32.mrb[0].mxu0
        %v600 = vadd.f32 %v548, %v599
        %v601 = vpop.f32.mrb[0].mxu0
        %v602 = vpop.f32.mrb[0].mxu0
        %v603 = vpop.f32.mrb[0].mxu0
        %604 = vdwg.mxu0
        %v605 = vld [vmem:[%s504] sm:$0xf]
        %v606 = vpack.c.bf16 %v600, %v600
        %608 = vrot.lane.b32.xlu0 %v606, 120
        %v609 = vpop.permute.xlu0 %608
        %610 = vrot.lane.b32.xlu0 %v606, 112
        %v611 = vpop.permute.xlu0 %610
        %612 = vrot.lane.b32.xlu0 %v606, 104
        %v613 = vpop.permute.xlu0 %612
        %v615 = vunpack.c.l.s4 1983009808
        %v616 = vunpack.c.0.s8 %v615
        %v617 = vlaneseq
        %v618 = vshrl.u32 %v617, 7
        %v619 = vsub.s32 %v616, %v618
        %v620 = vrot.slane %v606, %v619
        %v623 = vunpack.c.l.s4 1983009808
        %v624 = vunpack.c.0.s8 %v623
        %v625 = vlaneseq
        %v626 = vshrl.u32 %v625, 7
        %v627 = vsub.s32 %v624, %v626
        %v628 = vrot.slane %v611, %v627
        %v629 = vcombine.low %v620, %v628
        %v630 = vcombine.high %v620, %v628
        %v632 = vunpack.c.l.s4 1934713408
        %v633 = vunpack.c.0.s8 %v632
        %v634 = vlaneseq
        %v635 = vshrl.u32 %v634, 7
        %v636 = vsub.s32 %v633, %v635
        %v637 = vrot.slane %v629, %v636
        %v639 = vunpack.c.l.s4 1934713408
        %v640 = vunpack.c.0.s8 %v639
        %v641 = vlaneseq
        %v642 = vshrl.u32 %v641, 7
        %v643 = vsub.s32 %v640, %v642
        %v644 = vrot.slane %v630, %v643
        %v645 = vcombine.high %v637, 0
        %v646 = vcombine.high %v644, 0
        %v649 = vunpack.c.l.s4 1983009808
        %v650 = vunpack.c.0.s8 %v649
        %v651 = vlaneseq
        %v652 = vshrl.u32 %v651, 7
        %v653 = vsub.s32 %v650, %v652
        %v654 = vrot.slane %v609, %v653
        %v657 = vunpack.c.l.s4 1983009808
        %v658 = vunpack.c.0.s8 %v657
        %v659 = vlaneseq
        %v660 = vshrl.u32 %v659, 7
        %v661 = vsub.s32 %v658, %v660
        %v662 = vrot.slane %v613, %v661
        %v663 = vcombine.low %v654, %v662
        %v664 = vcombine.high %v654, %v662
        %v666 = vunpack.c.l.s4 1934713408
        %v667 = vunpack.c.0.s8 %v666
        %v668 = vlaneseq
        %v669 = vshrl.u32 %v668, 7
        %v670 = vsub.s32 %v667, %v669
        %v671 = vrot.slane %v663, %v670
        %v673 = vunpack.c.l.s4 1934713408
        %v674 = vunpack.c.0.s8 %v673
        %v675 = vlaneseq
        %v676 = vshrl.u32 %v675, 7
        %v677 = vsub.s32 %v674, %v676
        %v678 = vrot.slane %v664, %v677
        %v679 = vcombine.high %v671, 0
        %v680 = vcombine.high %v678, 0
        %v683 = vpack.i.b16 %v671, %v637
        %v685 = vshrl.u32 %v637, 16
        %v686 = vshrl.u32 %v671, 16
        %v687 = vpack.i.b16 %v686, %v685
        %v691 = vpack.i.b16 %v679, %v645
        %v693 = vshrl.u32 %v645, 16
        %v694 = vshrl.u32 %v679, 16
        %v695 = vpack.i.b16 %v694, %v693
        %v699 = vpack.i.b16 %v678, %v644
        %v701 = vshrl.u32 %v644, 16
        %v702 = vshrl.u32 %v678, 16
        %v703 = vpack.i.b16 %v702, %v701
        %v707 = vpack.i.b16 %v680, %v646
        %v709 = vshrl.u32 %v646, 16
        %v710 = vshrl.u32 %v680, 16
        %v711 = vpack.i.b16 %v710, %v709
        %v713 = vcombine.low %v683, %v699
        %v715 = vunpack.c.l.s4 1983009808
        %v716 = vunpack.c.0.s8 %v715
        %v717 = vlaneseq
        %v718 = vshrl.u32 %v717, 7
        %v719 = vsub.s32 %v716, %v718
        %v720 = vrot.slane %v713, %v719
        %v721 = vcombine.low %v691, %v707
        %v723 = vunpack.c.l.s4 1983009808
        %v724 = vunpack.c.0.s8 %v723
        %v725 = vlaneseq
        %v726 = vshrl.u32 %v725, 7
        %v727 = vsub.s32 %v724, %v726
        %v728 = vrot.slane %v721, %v727
        %v729 = vcombine.low %v720, %v728
        %v731 = vunpack.c.l.s4 1934713408
        %v732 = vunpack.c.0.s8 %v731
        %v733 = vlaneseq
        %v734 = vshrl.u32 %v733, 7
        %v735 = vsub.s32 %v732, %v734
        %v736 = vrot.slane %v729, %v735
        %v737 = vcombine.high %v736, 0
        %v738 = vcombine.low %v687, %v703
        %v740 = vunpack.c.l.s4 1983009808
        %v741 = vunpack.c.0.s8 %v740
        %v742 = vlaneseq
        %v743 = vshrl.u32 %v742, 7
        %v744 = vsub.s32 %v741, %v743
        %v745 = vrot.slane %v738, %v744
        %v746 = vcombine.low %v695, %v711
        %v748 = vunpack.c.l.s4 1983009808
        %v749 = vunpack.c.0.s8 %v748
        %v750 = vlaneseq
        %v751 = vshrl.u32 %v750, 7
        %v752 = vsub.s32 %v749, %v751
        %v753 = vrot.slane %v746, %v752
        %v754 = vcombine.low %v745, %v753
        %v756 = vunpack.c.l.s4 1934713408
        %v757 = vunpack.c.0.s8 %v756
        %v758 = vlaneseq
        %v759 = vshrl.u32 %v758, 7
        %v760 = vsub.s32 %v757, %v759
        %v761 = vrot.slane %v754, %v760
        %v762 = vcombine.high %v761, 0
        %v765 = vpack.i.b16 %v761, %v736
        %v766 = vshrl.u32 %v736, 16
        %v767 = vshrl.u32 %v761, 16
        %v768 = vpack.i.b16 %v767, %v766
        %v771 = vpack.i.b16 %v762, %v737
        %v772 = vshrl.u32 %v737, 16
        %v773 = vshrl.u32 %v762, 16
        %v774 = vpack.i.b16 %v773, %v772
        %775 = vrot.lane.b32.xlu0 %v606, 96
        %v776 = vpop.permute.xlu0 %775
        %777 = vrot.lane.b32.xlu0 %v609, 96
        %v778 = vpop.permute.xlu0 %777
        %779 = vrot.lane.b32.xlu0 %v611, 96
        %v780 = vpop.permute.xlu0 %779
        %781 = vrot.lane.b32.xlu0 %v613, 96
        %v782 = vpop.permute.xlu0 %781
        %v785 = vunpack.c.l.s4 1983009808
        %v786 = vunpack.c.0.s8 %v785
        %v787 = vlaneseq
        %v788 = vshrl.u32 %v787, 7
        %v789 = vsub.s32 %v786, %v788
        %v790 = vrot.slane %v776, %v789
        %v793 = vunpack.c.l.s4 1983009808
        %v794 = vunpack.c.0.s8 %v793
        %v795 = vlaneseq
        %v796 = vshrl.u32 %v795, 7
        %v797 = vsub.s32 %v794, %v796
        %v798 = vrot.slane %v780, %v797
        %v799 = vcombine.low %v790, %v798
        %v800 = vcombine.high %v790, %v798
        %v802 = vunpack.c.l.s4 1934713408
        %v803 = vunpack.c.0.s8 %v802
        %v804 = vlaneseq
        %v805 = vshrl.u32 %v804, 7
        %v806 = vsub.s32 %v803, %v805
        %v807 = vrot.slane %v799, %v806
        %v809 = vunpack.c.l.s4 1934713408
        %v810 = vunpack.c.0.s8 %v809
        %v811 = vlaneseq
        %v812 = vshrl.u32 %v811, 7
        %v813 = vsub.s32 %v810, %v812
        %v814 = vrot.slane %v800, %v813
        %v815 = vcombine.high %v807, 0
        %v816 = vcombine.high %v814, 0
        %v819 = vunpack.c.l.s4 1983009808
        %v820 = vunpack.c.0.s8 %v819
        %v821 = vlaneseq
        %v822 = vshrl.u32 %v821, 7
        %v823 = vsub.s32 %v820, %v822
        %v824 = vrot.slane %v778, %v823
        %v827 = vunpack.c.l.s4 1983009808
        %v828 = vunpack.c.0.s8 %v827
        %v829 = vlaneseq
        %v830 = vshrl.u32 %v829, 7
        %v831 = vsub.s32 %v828, %v830
        %v832 = vrot.slane %v782, %v831
        %v833 = vcombine.low %v824, %v832
        %v834 = vcombine.high %v824, %v832
        %v836 = vunpack.c.l.s4 1934713408
        %v837 = vunpack.c.0.s8 %v836
        %v838 = vlaneseq
        %v839 = vshrl.u32 %v838, 7
        %v840 = vsub.s32 %v837, %v839
        %v841 = vrot.slane %v833, %v840
        %v843 = vunpack.c.l.s4 1934713408
        %v844 = vunpack.c.0.s8 %v843
        %v845 = vlaneseq
        %v846 = vshrl.u32 %v845, 7
        %v847 = vsub.s32 %v844, %v846
        %v848 = vrot.slane %v834, %v847
        %v849 = vcombine.high %v841, 0
        %v850 = vcombine.high %v848, 0
        %v853 = vpack.i.b16 %v841, %v807
        %v855 = vshrl.u32 %v807, 16
        %v856 = vshrl.u32 %v841, 16
        %v857 = vpack.i.b16 %v856, %v855
        %v861 = vpack.i.b16 %v849, %v815
        %v863 = vshrl.u32 %v815, 16
        %v864 = vshrl.u32 %v849, 16
        %v865 = vpack.i.b16 %v864, %v863
        %v869 = vpack.i.b16 %v848, %v814
        %v871 = vshrl.u32 %v814, 16
        %v872 = vshrl.u32 %v848, 16
        %v873 = vpack.i.b16 %v872, %v871
        %v877 = vpack.i.b16 %v850, %v816
        %v879 = vshrl.u32 %v816, 16
        %v880 = vshrl.u32 %v850, 16
        %v881 = vpack.i.b16 %v880, %v879
        %v883 = vcombine.low %v853, %v869
        %v885 = vunpack.c.l.s4 1983009808
        %v886 = vunpack.c.0.s8 %v885
        %v887 = vlaneseq
        %v888 = vshrl.u32 %v887, 7
        %v889 = vsub.s32 %v886, %v888
        %v890 = vrot.slane %v883, %v889
        %v891 = vcombine.low %v861, %v877
        %v893 = vunpack.c.l.s4 1983009808
        %v894 = vunpack.c.0.s8 %v893
        %v895 = vlaneseq
        %v896 = vshrl.u32 %v895, 7
        %v897 = vsub.s32 %v894, %v896
        %v898 = vrot.slane %v891, %v897
        %v899 = vcombine.low %v890, %v898
        %v901 = vunpack.c.l.s4 1934713408
        %v902 = vunpack.c.0.s8 %v901
        %v903 = vlaneseq
        %v904 = vshrl.u32 %v903, 7
        %v905 = vsub.s32 %v902, %v904
        %v906 = vrot.slane %v899, %v905
        %v907 = vcombine.high %v906, 0
        %v908 = vcombine.low %v857, %v873
        %v910 = vunpack.c.l.s4 1983009808
        %v911 = vunpack.c.0.s8 %v910
        %v912 = vlaneseq
        %v913 = vshrl.u32 %v912, 7
        %v914 = vsub.s32 %v911, %v913
        %v915 = vrot.slane %v908, %v914
        %v916 = vcombine.low %v865, %v881
        %v918 = vunpack.c.l.s4 1983009808
        %v919 = vunpack.c.0.s8 %v918
        %v920 = vlaneseq
        %v921 = vshrl.u32 %v920, 7
        %v922 = vsub.s32 %v919, %v921
        %v923 = vrot.slane %v916, %v922
        %v924 = vcombine.low %v915, %v923
        %v926 = vunpack.c.l.s4 1934713408
        %v927 = vunpack.c.0.s8 %v926
        %v928 = vlaneseq
        %v929 = vshrl.u32 %v928, 7
        %v930 = vsub.s32 %v927, %v929
        %v931 = vrot.slane %v924, %v930
        %v932 = vcombine.high %v931, 0
        %v935 = vpack.i.b16 %v931, %v906
        %v936 = vshrl.u32 %v906, 16
        %v937 = vshrl.u32 %v931, 16
        %v938 = vpack.i.b16 %v937, %v936
        %v941 = vpack.i.b16 %v932, %v907
        %v942 = vshrl.u32 %v907, 16
        %v943 = vshrl.u32 %v932, 16
        %v944 = vpack.i.b16 %v943, %v942
        %945 = vrot.lane.b32.xlu0 %v606, 64
        %v946 = vpop.permute.xlu0 %945
        %947 = vrot.lane.b32.xlu0 %v609, 64
        %v948 = vpop.permute.xlu0 %947
        %949 = vrot.lane.b32.xlu0 %v611, 64
        %v950 = vpop.permute.xlu0 %949
        %951 = vrot.lane.b32.xlu0 %v613, 64
        %v952 = vpop.permute.xlu0 %951
        %v955 = vunpack.c.l.s4 1983009808
        %v956 = vunpack.c.0.s8 %v955
        %v957 = vlaneseq
        %v958 = vshrl.u32 %v957, 7
        %v959 = vsub.s32 %v956, %v958
        %v960 = vrot.slane %v946, %v959
        %v963 = vunpack.c.l.s4 1983009808
        %v964 = vunpack.c.0.s8 %v963
        %v965 = vlaneseq
        %v966 = vshrl.u32 %v965, 7
        %v967 = vsub.s32 %v964, %v966
        %v968 = vrot.slane %v950, %v967
        %v969 = vcombine.low %v960, %v968
        %v970 = vcombine.high %v960, %v968
        %v972 = vunpack.c.l.s4 1934713408
        %v973 = vunpack.c.0.s8 %v972
        %v974 = vlaneseq
        %v975 = vshrl.u32 %v974, 7
        %v976 = vsub.s32 %v973, %v975
        %v977 = vrot.slane %v969, %v976
        %v979 = vunpack.c.l.s4 1934713408
        %v980 = vunpack.c.0.s8 %v979
        %v981 = vlaneseq
        %v982 = vshrl.u32 %v981, 7
        %v983 = vsub.s32 %v980, %v982
        %v984 = vrot.slane %v970, %v983
        %v985 = vcombine.high %v977, 0
        %v986 = vcombine.high %v984, 0
        %v989 = vunpack.c.l.s4 1983009808
        %v990 = vunpack.c.0.s8 %v989
        %v991 = vlaneseq
        %v992 = vshrl.u32 %v991, 7
        %v993 = vsub.s32 %v990, %v992
        %v994 = vrot.slane %v948, %v993
        %v997 = vunpack.c.l.s4 1983009808
        %v998 = vunpack.c.0.s8 %v997
        %v999 = vlaneseq
        %v1000 = vshrl.u32 %v999, 7
        %v1001 = vsub.s32 %v998, %v1000
        %v1002 = vrot.slane %v952, %v1001
        %v1003 = vcombine.low %v994, %v1002
        %v1004 = vcombine.high %v994, %v1002
        %v1006 = vunpack.c.l.s4 1934713408
        %v1007 = vunpack.c.0.s8 %v1006
        %v1008 = vlaneseq
        %v1009 = vshrl.u32 %v1008, 7
        %v1010 = vsub.s32 %v1007, %v1009
        %v1011 = vrot.slane %v1003, %v1010
        %v1013 = vunpack.c.l.s4 1934713408
        %v1014 = vunpack.c.0.s8 %v1013
        %v1015 = vlaneseq
        %v1016 = vshrl.u32 %v1015, 7
        %v1017 = vsub.s32 %v1014, %v1016
        %v1018 = vrot.slane %v1004, %v1017
        %v1019 = vcombine.high %v1011, 0
        %v1020 = vcombine.high %v1018, 0
        %v1023 = vpack.i.b16 %v1011, %v977
        %v1025 = vshrl.u32 %v977, 16
        %v1026 = vshrl.u32 %v1011, 16
        %v1027 = vpack.i.b16 %v1026, %v1025
        %v1031 = vpack.i.b16 %v1019, %v985
        %v1033 = vshrl.u32 %v985, 16
        %v1034 = vshrl.u32 %v1019, 16
        %v1035 = vpack.i.b16 %v1034, %v1033
        %v1039 = vpack.i.b16 %v1018, %v984
        %v1041 = vshrl.u32 %v984, 16
        %v1042 = vshrl.u32 %v1018, 16
        %v1043 = vpack.i.b16 %v1042, %v1041
        %v1047 = vpack.i.b16 %v1020, %v986
        %v1049 = vshrl.u32 %v986, 16
        %v1050 = vshrl.u32 %v1020, 16
        %v1051 = vpack.i.b16 %v1050, %v1049
        %v1053 = vcombine.low %v1023, %v1039
        %v1055 = vunpack.c.l.s4 1983009808
        %v1056 = vunpack.c.0.s8 %v1055
        %v1057 = vlaneseq
        %v1058 = vshrl.u32 %v1057, 7
        %v1059 = vsub.s32 %v1056, %v1058
        %v1060 = vrot.slane %v1053, %v1059
        %v1061 = vcombine.low %v1031, %v1047
        %v1063 = vunpack.c.l.s4 1983009808
        %v1064 = vunpack.c.0.s8 %v1063
        %v1065 = vlaneseq
        %v1066 = vshrl.u32 %v1065, 7
        %v1067 = vsub.s32 %v1064, %v1066
        %v1068 = vrot.slane %v1061, %v1067
        %v1069 = vcombine.low %v1060, %v1068
        %v1071 = vunpack.c.l.s4 1934713408
        %v1072 = vunpack.c.0.s8 %v1071
        %v1073 = vlaneseq
        %v1074 = vshrl.u32 %v1073, 7
        %v1075 = vsub.s32 %v1072, %v1074
        %v1076 = vrot.slane %v1069, %v1075
        %v1077 = vcombine.high %v1076, 0
        %v1078 = vcombine.low %v1027, %v1043
        %v1080 = vunpack.c.l.s4 1983009808
        %v1081 = vunpack.c.0.s8 %v1080
        %v1082 = vlaneseq
        %v1083 = vshrl.u32 %v1082, 7
        %v1084 = vsub.s32 %v1081, %v1083
        %v1085 = vrot.slane %v1078, %v1084
        %v1086 = vcombine.low %v1035, %v1051
        %v1088 = vunpack.c.l.s4 1983009808
        %v1089 = vunpack.c.0.s8 %v1088
        %v1090 = vlaneseq
        %v1091 = vshrl.u32 %v1090, 7
        %v1092 = vsub.s32 %v1089, %v1091
        %v1093 = vrot.slane %v1086, %v1092
        %v1094 = vcombine.low %v1085, %v1093
        %v1096 = vunpack.c.l.s4 1934713408
        %v1097 = vunpack.c.0.s8 %v1096
        %v1098 = vlaneseq
        %v1099 = vshrl.u32 %v1098, 7
        %v1100 = vsub.s32 %v1097, %v1099
        %v1101 = vrot.slane %v1094, %v1100
        %v1102 = vcombine.high %v1101, 0
        %v1105 = vpack.i.b16 %v1101, %v1076
        %v1106 = vshrl.u32 %v1076, 16
        %v1107 = vshrl.u32 %v1101, 16
        %v1108 = vpack.i.b16 %v1107, %v1106
        %v1111 = vpack.i.b16 %v1102, %v1077
        %v1112 = vshrl.u32 %v1077, 16
        %v1113 = vshrl.u32 %v1102, 16
        %v1114 = vpack.i.b16 %v1113, %v1112
        %v1115 = vunpack.c.l.bf16 %v605
        %vm1116 = vcmask 64512
        %v1118 = vsel %vm1116, %v765, 0
        %v1121 = vsel %vm1116, %v935, 0
        %1123 = vmatprep.subr.bf16.mxu0 0
        %1124 = vmatpush1.bf16.xpose.msra.mxu0 %v1121
        %1125 = vmatprep.subr.bf16.mxu0 0
        %1126 = vmatpush1.bf16.xpose.msra.mxu0 0
        %1127 = vmatprep.subr.bf16.mxu0 0
        %1128 = vmatpush1.bf16.xpose.msra.mxu0 0
        %1129 = vmatprep.subr.bf16.mxu0 0
        %1130 = vmatpush1.bf16.xpose.msra.mxu0 0
        %1131 = vmatprep.subr.bf16.mxu0 0
        %1132 = vmatpush1.bf16.xpose.msra.mxu0 0
        %1133 = vmatprep.subr.bf16.mxu0 0
        %1134 = vmatpush1.bf16.xpose.msra.mxu0 0
        %1135 = vmatprep.subr.bf16.mxu0 0
        %1136 = vmatpush1.bf16.xpose.msra.mxu0 0
        %1137 = vmatprep.subr.bf16.mxu0 0
        %1138 = vmatpush1.bf16.xpose.msra.mxu0 0
        %1139 = vmatprep.subr.bf16.mxu0 0
        %1140 = vmatpush1.bf16.xpose.msra.mxu0 0
        %1141 = vmatprep.subr.bf16.mxu0 0
        %1142 = vmatpush1.bf16.xpose.msra.mxu0 0
        %1143 = vmatprep.subr.bf16.mxu0 0
        %1144 = vmatpush1.bf16.xpose.msra.mxu0 0
        %1145 = vmatprep.subr.bf16.mxu0 0
        %1146 = vmatpush1.bf16.xpose.msra.mxu0 0
        %1147 = vmatprep.subr.bf16.mxu0 0
        %1148 = vmatpush1.bf16.xpose.msra.mxu0 0
        %1149 = vmatprep.subr.bf16.mxu0 0
        %1150 = vmatpush1.bf16.xpose.msra.mxu0 0
        %1151 = vmatprep.subr.bf16.mxu0 0
        %1152 = vmatpush1.bf16.xpose.msra.mxu0 0
        %1153 = vmatprep.subr.bf16.mxu0 0
        %1154 = vmatpush1.bf16.xpose.msra.mxu0 0
        %1155 = vmatprep.mubr.bf16.mxu0 0
        %1156 = vmatmul.mubr.bf16.gmra.mrb[0].mxu0 %v1118
        %v1157 = vpop.f32.mrb[0].mxu0
        %v1158 = vadd.f32 %v1115, %v1157
        %v1159 = vpop.f32.mrb[0].mxu0
        %v1160 = vpop.f32.mrb[0].mxu0
        %v1161 = vpop.f32.mrb[0].mxu0
        %1162 = vdwg.mxu0
        %v1164 = vsel %vm1116, %v768, 0
        %v1167 = vsel %vm1116, %v938, 0
        %1169 = vmatprep.subr.bf16.mxu0 0
        %1170 = vmatpush1.bf16.xpose.msra.mxu0 %v1167
        %1171 = vmatprep.subr.bf16.mxu0 0
        %1172 = vmatpush1.bf16.xpose.msra.mxu0 0
        %1173 = vmatprep.subr.bf16.mxu0 0
        %1174 = vmatpush1.bf16.xpose.msra.mxu0 0
        %1175 = vmatprep.subr.bf16.mxu0 0
        %1176 = vmatpush1.bf16.xpose.msra.mxu0 0
        %1177 = vmatprep.subr.bf16.mxu0 0
        %1178 = vmatpush1.bf16.xpose.msra.mxu0 0
        %1179 = vmatprep.subr.bf16.mxu0 0
        %1180 = vmatpush1.bf16.xpose.msra.mxu0 0
        %1181 = vmatprep.subr.bf16.mxu0 0
        %1182 = vmatpush1.bf16.xpose.msra.mxu0 0
        %1183 = vmatprep.subr.bf16.mxu0 0
        %1184 = vmatpush1.bf16.xpose.msra.mxu0 0
        %1185 = vmatprep.subr.bf16.mxu0 0
        %1186 = vmatpush1.bf16.xpose.msra.mxu0 0
        %1187 = vmatprep.subr.bf16.mxu0 0
        %1188 = vmatpush1.bf16.xpose.msra.mxu0 0
        %1189 = vmatprep.subr.bf16.mxu0 0
        %1190 = vmatpush1.bf16.xpose.msra.mxu0 0
        %1191 = vmatprep.subr.bf16.mxu0 0
        %1192 = vmatpush1.bf16.xpose.msra.mxu0 0
        %1193 = vmatprep.subr.bf16.mxu0 0
        %1194 = vmatpush1.bf16.xpose.msra.mxu0 0
        %1195 = vmatprep.subr.bf16.mxu0 0
        %1196 = vmatpush1.bf16.xpose.msra.mxu0 0
        %1197 = vmatprep.subr.bf16.mxu0 0
        %1198 = vmatpush1.bf16.xpose.msra.mxu0 0
        %1199 = vmatprep.subr.bf16.mxu0 0
        %1200 = vmatpush1.bf16.xpose.msra.mxu0 0
        %1201 = vmatprep.mubr.bf16.mxu0 0
        %1202 = vmatmul.mubr.bf16.gmra.mrb[0].mxu0 %v1164
        %v1203 = vpop.f32.mrb[0].mxu0
        %v1204 = vadd.f32 %v1115, %v1203
        %v1205 = vpop.f32.mrb[0].mxu0
        %v1206 = vpop.f32.mrb[0].mxu0
        %v1207 = vpop.f32.mrb[0].mxu0
        %1208 = vdwg.mxu0
        %v1210 = vsel %vm1116, %v771, 0
        %v1213 = vsel %vm1116, %v941, 0
        %1215 = vmatprep.subr.bf16.mxu0 0
        %1216 = vmatpush1.bf16.xpose.msra.mxu0 %v1213
        %1217 = vmatprep.subr.bf16.mxu0 0
        %1218 = vmatpush1.bf16.xpose.msra.mxu0 0
        %1219 = vmatprep.subr.bf16.mxu0 0
        %1220 = vmatpush1.bf16.xpose.msra.mxu0 0
        %1221 = vmatprep.subr.bf16.mxu0 0
        %1222 = vmatpush1.bf16.xpose.msra.mxu0 0
        %1223 = vmatprep.subr.bf16.mxu0 0
        %1224 = vmatpush1.bf16.xpose.msra.mxu0 0
        %1225 = vmatprep.subr.bf16.mxu0 0
        %1226 = vmatpush1.bf16.xpose.msra.mxu0 0
        %1227 = vmatprep.subr.bf16.mxu0 0
        %1228 = vmatpush1.bf16.xpose.msra.mxu0 0
        %1229 = vmatprep.subr.bf16.mxu0 0
        %1230 = vmatpush1.bf16.xpose.msra.mxu0 0
        %1231 = vmatprep.subr.bf16.mxu0 0
        %1232 = vmatpush1.bf16.xpose.msra.mxu0 0
        %1233 = vmatprep.subr.bf16.mxu0 0
        %1234 = vmatpush1.bf16.xpose.msra.mxu0 0
        %1235 = vmatprep.subr.bf16.mxu0 0
        %1236 = vmatpush1.bf16.xpose.msra.mxu0 0
        %1237 = vmatprep.subr.bf16.mxu0 0
        %1238 = vmatpush1.bf16.xpose.msra.mxu0 0
        %1239 = vmatprep.subr.bf16.mxu0 0
        %1240 = vmatpush1.bf16.xpose.msra.mxu0 0
        %1241 = vmatprep.subr.bf16.mxu0 0
        %1242 = vmatpush1.bf16.xpose.msra.mxu0 0
        %1243 = vmatprep.subr.bf16.mxu0 0
        %1244 = vmatpush1.bf16.xpose.msra.mxu0 0
        %1245 = vmatprep.subr.bf16.mxu0 0
        %1246 = vmatpush1.bf16.xpose.msra.mxu0 0
        %1247 = vmatprep.mubr.bf16.mxu0 0
        %1248 = vmatmul.mubr.bf16.gmra.mrb[0].mxu0 %v1210
        %v1249 = vpop.f32.mrb[0].mxu0
        %v1250 = vadd.f32 %v1115, %v1249
        %v1251 = vpop.f32.mrb[0].mxu0
        %v1252 = vpop.f32.mrb[0].mxu0
        %v1253 = vpop.f32.mrb[0].mxu0
        %1254 = vdwg.mxu0
        %v1256 = vsel %vm1116, %v774, 0
        %v1259 = vsel %vm1116, %v944, 0
        %1261 = vmatprep.subr.bf16.mxu0 0
        %1262 = vmatpush1.bf16.xpose.msra.mxu0 %v1259
        %1263 = vmatprep.subr.bf16.mxu0 0
        %1264 = vmatpush1.bf16.xpose.msra.mxu0 0
        %1265 = vmatprep.subr.bf16.mxu0 0
        %1266 = vmatpush1.bf16.xpose.msra.mxu0 0
        %1267 = vmatprep.subr.bf16.mxu0 0
        %1268 = vmatpush1.bf16.xpose.msra.mxu0 0
        %1269 = vmatprep.subr.bf16.mxu0 0
        %1270 = vmatpush1.bf16.xpose.msra.mxu0 0
        %1271 = vmatprep.subr.bf16.mxu0 0
        %1272 = vmatpush1.bf16.xpose.msra.mxu0 0
        %1273 = vmatprep.subr.bf16.mxu0 0
        %1274 = vmatpush1.bf16.xpose.msra.mxu0 0
        %1275 = vmatprep.subr.bf16.mxu0 0
        %1276 = vmatpush1.bf16.xpose.msra.mxu0 0
        %1277 = vmatprep.subr.bf16.mxu0 0
        %1278 = vmatpush1.bf16.xpose.msra.mxu0 0
        %1279 = vmatprep.subr.bf16.mxu0 0
        %1280 = vmatpush1.bf16.xpose.msra.mxu0 0
        %1281 = vmatprep.subr.bf16.mxu0 0
        %1282 = vmatpush1.bf16.xpose.msra.mxu0 0
        %1283 = vmatprep.subr.bf16.mxu0 0
        %1284 = vmatpush1.bf16.xpose.msra.mxu0 0
        %1285 = vmatprep.subr.bf16.mxu0 0
        %1286 = vmatpush1.bf16.xpose.msra.mxu0 0
        %1287 = vmatprep.subr.bf16.mxu0 0
        %1288 = vmatpush1.bf16.xpose.msra.mxu0 0
        %1289 = vmatprep.subr.bf16.mxu0 0
        %1290 = vmatpush1.bf16.xpose.msra.mxu0 0
        %1291 = vmatprep.subr.bf16.mxu0 0
        %1292 = vmatpush1.bf16.xpose.msra.mxu0 0
        %1293 = vmatprep.mubr.bf16.mxu0 0
        %1294 = vmatmul.mubr.bf16.gmra.mrb[0].mxu0 %v1256
        %v1295 = vpop.f32.mrb[0].mxu0
        %v1296 = vadd.f32 %v1115, %v1295
        %v1297 = vpop.f32.mrb[0].mxu0
        %v1298 = vpop.f32.mrb[0].mxu0
        %v1299 = vpop.f32.mrb[0].mxu0
        %1300 = vdwg.mxu0
        %v1301 = vsel %vm1116, %v1158, -inf
        %1302 = vmax.xlane.f32.xlu0 %v1301
        %v1303 = vpop.xlane.xlu0 %1302
        %v1304 = vsel %vm1116, %v1204, -inf
        %1305 = vmax.xlane.f32.xlu0 %v1304
        %v1306 = vpop.xlane.xlu0 %1305
        %v1307 = vsel %vm1116, %v1250, -inf
        %1308 = vmax.xlane.f32.xlu0 %v1307
        %v1309 = vpop.xlane.xlu0 %1308
        %v1310 = vsel %vm1116, %v1296, -inf
        %1311 = vmax.xlane.f32.xlu0 %v1310
        %v1312 = vpop.xlane.xlu0 %1311
        %v1313 = vsub.f32 %v1158, %v1303
        %v1314 = vsub.f32 %v1204, %v1306
        %v1315 = vsub.f32 %v1250, %v1309
        %v1316 = vsub.f32 %v1296, %v1312
        %v1317 = vmul.f32 %v1313, 1.442695
        %v1318 = vpow.pop %v1317
        %v1319 = vmul.f32 %v1314, 1.442695
        %v1320 = vpow.pop %v1319
        %v1321 = vmul.f32 %v1315, 1.442695
        %v1322 = vpow.pop %v1321
        %v1323 = vmul.f32 %v1316, 1.442695
        %v1324 = vpow.pop %v1323
        %v1325 = vsel %vm1116, %v1318, 0.0
        %1326 = vadd.xlane.f32.xlu0 %v1325
        %v1327 = vpop.xlane.xlu0 %1326
        %v1328 = vsel %vm1116, %v1320, 0.0
        %1329 = vadd.xlane.f32.xlu0 %v1328
        %v1330 = vpop.xlane.xlu0 %1329
        %v1331 = vsel %vm1116, %v1322, 0.0
        %1332 = vadd.xlane.f32.xlu0 %v1331
        %v1333 = vpop.xlane.xlu0 %1332
        %v1334 = vsel %vm1116, %v1324, 0.0
        %1335 = vadd.xlane.f32.xlu0 %v1334
        %v1336 = vpop.xlane.xlu0 %1335
        %v1337 = vrcp.pop %v1327
        %v1338 = vrcp.pop %v1330
        %v1339 = vrcp.pop %v1333
        %v1340 = vrcp.pop %v1336
        %v1341 = vmul.f32 %v1318, %v1337
        %v1342 = vmul.f32 %v1320, %v1338
        %v1343 = vmul.f32 %v1322, %v1339
        %v1344 = vmul.f32 %v1324, %v1340
        %v1345 = vpack.c.bf16 %v1341, %v1341
        %v1346 = vpack.c.bf16 %v1342, %v1342
        %v1347 = vpack.c.bf16 %v1343, %v1343
        %v1348 = vpack.c.bf16 %v1344, %v1344
        %v1350 = vsel %vm1116, %v1345, 0
        %vm1352 = vcmask 1043456
        %v1354 = vsel %vm1352, %v1105, 0
        %1356 = vmatprep.subr.bf16.mxu0 0
        %1357 = vmatpush1.bf16.msra.mxu0 %v1354
        %1358 = vmatprep.subr.bf16.mxu0 0
        %1359 = vmatpush1.bf16.msra.mxu0 0
        %1360 = vmatprep.subr.bf16.mxu0 0
        %1361 = vmatpush1.bf16.msra.mxu0 0
        %1362 = vmatprep.subr.bf16.mxu0 0
        %1363 = vmatpush1.bf16.msra.mxu0 0
        %1364 = vmatprep.subr.bf16.mxu0 0
        %1365 = vmatpush1.bf16.msra.mxu0 0
        %1366 = vmatprep.subr.bf16.mxu0 0
        %1367 = vmatpush1.bf16.msra.mxu0 0
        %1368 = vmatprep.subr.bf16.mxu0 0
        %1369 = vmatpush1.bf16.msra.mxu0 0
        %1370 = vmatprep.subr.bf16.mxu0 0
        %1371 = vmatpush1.bf16.msra.mxu0 0
        %1372 = vmatprep.subr.bf16.mxu0 0
        %1373 = vmatpush1.bf16.msra.mxu0 0
        %1374 = vmatprep.subr.bf16.mxu0 0
        %1375 = vmatpush1.bf16.msra.mxu0 0
        %1376 = vmatprep.subr.bf16.mxu0 0
        %1377 = vmatpush1.bf16.msra.mxu0 0
        %1378 = vmatprep.subr.bf16.mxu0 0
        %1379 = vmatpush1.bf16.msra.mxu0 0
        %1380 = vmatprep.subr.bf16.mxu0 0
        %1381 = vmatpush1.bf16.msra.mxu0 0
        %1382 = vmatprep.subr.bf16.mxu0 0
        %1383 = vmatpush1.bf16.msra.mxu0 0
        %1384 = vmatprep.subr.bf16.mxu0 0
        %1385 = vmatpush1.bf16.msra.mxu0 0
        %1386 = vmatprep.subr.bf16.mxu0 0
        %1387 = vmatpush1.bf16.msra.mxu0 0
        %1388 = vmatprep.mubr.bf16.mxu0 0
        %1389 = vmatmul.mubr.bf16.gmra.mrb[0].mxu0 %v1350
        %v1390 = vpop.f32.mrb[0].mxu0
        %v1391 = vadd.f32 0.0, %v1390
        %v1392 = vpop.f32.mrb[0].mxu0
        %v1393 = vpop.f32.mrb[0].mxu0
        %v1394 = vpop.f32.mrb[0].mxu0
        %1395 = vdwg.mxu0
        %v1397 = vsel %vm1116, %v1346, 0
        %v1400 = vsel %vm1352, %v1108, 0
        %1402 = vmatprep.subr.bf16.mxu0 0
        %1403 = vmatpush1.bf16.msra.mxu0 %v1400
        %1404 = vmatprep.subr.bf16.mxu0 0
        %1405 = vmatpush1.bf16.msra.mxu0 0
        %1406 = vmatprep.subr.bf16.mxu0 0
        %1407 = vmatpush1.bf16.msra.mxu0 0
        %1408 = vmatprep.subr.bf16.mxu0 0
        %1409 = vmatpush1.bf16.msra.mxu0 0
        %1410 = vmatprep.subr.bf16.mxu0 0
        %1411 = vmatpush1.bf16.msra.mxu0 0
        %1412 = vmatprep.subr.bf16.mxu0 0
        %1413 = vmatpush1.bf16.msra.mxu0 0
        %1414 = vmatprep.subr.bf16.mxu0 0
        %1415 = vmatpush1.bf16.msra.mxu0 0
        %1416 = vmatprep.subr.bf16.mxu0 0
        %1417 = vmatpush1.bf16.msra.mxu0 0
        %1418 = vmatprep.subr.bf16.mxu0 0
        %1419 = vmatpush1.bf16.msra.mxu0 0
        %1420 = vmatprep.subr.bf16.mxu0 0
        %1421 = vmatpush1.bf16.msra.mxu0 0
        %1422 = vmatprep.subr.bf16.mxu0 0
        %1423 = vmatpush1.bf16.msra.mxu0 0
        %1424 = vmatprep.subr.bf16.mxu0 0
        %1425 = vmatpush1.bf16.msra.mxu0 0
        %1426 = vmatprep.subr.bf16.mxu0 0
        %1427 = vmatpush1.bf16.msra.mxu0 0
        %1428 = vmatprep.subr.bf16.mxu0 0
        %1429 = vmatpush1.bf16.msra.mxu0 0
        %1430 = vmatprep.subr.bf16.mxu0 0
        %1431 = vmatpush1.bf16.msra.mxu0 0
        %1432 = vmatprep.subr.bf16.mxu0 0
        %1433 = vmatpush1.bf16.msra.mxu0 0
        %1434 = vmatprep.mubr.bf16.mxu0 0
        %1435 = vmatmul.mubr.bf16.gmra.mrb[0].mxu0 %v1397
        %v1436 = vpop.f32.mrb[0].mxu0
        %v1437 = vadd.f32 0.0, %v1436
        %v1438 = vpop.f32.mrb[0].mxu0
        %v1439 = vpop.f32.mrb[0].mxu0
        %v1440 = vpop.f32.mrb[0].mxu0
        %1441 = vdwg.mxu0
        %v1443 = vsel %vm1116, %v1347, 0
        %v1446 = vsel %vm1352, %v1111, 0
        %1448 = vmatprep.subr.bf16.mxu0 0
        %1449 = vmatpush1.bf16.msra.mxu0 %v1446
        %1450 = vmatprep.subr.bf16.mxu0 0
        %1451 = vmatpush1.bf16.msra.mxu0 0
        %1452 = vmatprep.subr.bf16.mxu0 0
        %1453 = vmatpush1.bf16.msra.mxu0 0
        %1454 = vmatprep.subr.bf16.mxu0 0
        %1455 = vmatpush1.bf16.msra.mxu0 0
        %1456 = vmatprep.subr.bf16.mxu0 0
        %1457 = vmatpush1.bf16.msra.mxu0 0
        %1458 = vmatprep.subr.bf16.mxu0 0
        %1459 = vmatpush1.bf16.msra.mxu0 0
        %1460 = vmatprep.subr.bf16.mxu0 0
        %1461 = vmatpush1.bf16.msra.mxu0 0
        %1462 = vmatprep.subr.bf16.mxu0 0
        %1463 = vmatpush1.bf16.msra.mxu0 0
        %1464 = vmatprep.subr.bf16.mxu0 0
        %1465 = vmatpush1.bf16.msra.mxu0 0
        %1466 = vmatprep.subr.bf16.mxu0 0
        %1467 = vmatpush1.bf16.msra.mxu0 0
        %1468 = vmatprep.subr.bf16.mxu0 0
        %1469 = vmatpush1.bf16.msra.mxu0 0
        %1470 = vmatprep.subr.bf16.mxu0 0
        %1471 = vmatpush1.bf16.msra.mxu0 0
        %1472 = vmatprep.subr.bf16.mxu0 0
        %1473 = vmatpush1.bf16.msra.mxu0 0
        %1474 = vmatprep.subr.bf16.mxu0 0
        %1475 = vmatpush1.bf16.msra.mxu0 0
        %1476 = vmatprep.subr.bf16.mxu0 0
        %1477 = vmatpush1.bf16.msra.mxu0 0
        %1478 = vmatprep.subr.bf16.mxu0 0
        %1479 = vmatpush1.bf16.msra.mxu0 0
        %1480 = vmatprep.mubr.bf16.mxu0 0
        %1481 = vmatmul.mubr.bf16.gmra.mrb[0].mxu0 %v1443
        %v1482 = vpop.f32.mrb[0].mxu0
        %v1483 = vadd.f32 0.0, %v1482
        %v1484 = vpop.f32.mrb[0].mxu0
        %v1485 = vpop.f32.mrb[0].mxu0
        %v1486 = vpop.f32.mrb[0].mxu0
        %1487 = vdwg.mxu0
        %v1489 = vsel %vm1116, %v1348, 0
        %v1492 = vsel %vm1352, %v1114, 0
        %1494 = vmatprep.subr.bf16.mxu0 0
        %1495 = vmatpush1.bf16.msra.mxu0 %v1492
        %1496 = vmatprep.subr.bf16.mxu0 0
        %1497 = vmatpush1.bf16.msra.mxu0 0
        %1498 = vmatprep.subr.bf16.mxu0 0
        %1499 = vmatpush1.bf16.msra.mxu0 0
        %1500 = vmatprep.subr.bf16.mxu0 0
        %1501 = vmatpush1.bf16.msra.mxu0 0
        %1502 = vmatprep.subr.bf16.mxu0 0
        %1503 = vmatpush1.bf16.msra.mxu0 0
        %1504 = vmatprep.subr.bf16.mxu0 0
        %1505 = vmatpush1.bf16.msra.mxu0 0
        %1506 = vmatprep.subr.bf16.mxu0 0
        %1507 = vmatpush1.bf16.msra.mxu0 0
        %1508 = vmatprep.subr.bf16.mxu0 0
        %1509 = vmatpush1.bf16.msra.mxu0 0
        %1510 = vmatprep.subr.bf16.mxu0 0
        %1511 = vmatpush1.bf16.msra.mxu0 0
        %1512 = vmatprep.subr.bf16.mxu0 0
        %1513 = vmatpush1.bf16.msra.mxu0 0
        %1514 = vmatprep.subr.bf16.mxu0 0
        %1515 = vmatpush1.bf16.msra.mxu0 0
        %1516 = vmatprep.subr.bf16.mxu0 0
        %1517 = vmatpush1.bf16.msra.mxu0 0
        %1518 = vmatprep.subr.bf16.mxu0 0
        %1519 = vmatpush1.bf16.msra.mxu0 0
        %1520 = vmatprep.subr.bf16.mxu0 0
        %1521 = vmatpush1.bf16.msra.mxu0 0
        %1522 = vmatprep.subr.bf16.mxu0 0
        %1523 = vmatpush1.bf16.msra.mxu0 0
        %1524 = vmatprep.subr.bf16.mxu0 0
        %1525 = vmatpush1.bf16.msra.mxu0 0
        %1526 = vmatprep.mubr.bf16.mxu0 0
        %1527 = vmatmul.mubr.bf16.gmra.mrb[0].mxu0 %v1489
        %v1528 = vpop.f32.mrb[0].mxu0
        %v1529 = vadd.f32 0.0, %v1528
        %v1530 = vpop.f32.mrb[0].mxu0
        %v1531 = vpop.f32.mrb[0].mxu0
        %v1532 = vpop.f32.mrb[0].mxu0
        %1533 = vdwg.mxu0
        %v1534 = vcombine.low %v1391, %v1483
        %v1535 = vcombine.high %v1391, %v1483
        %v1537 = vunpack.c.l.s4 1983009808
        %v1538 = vunpack.c.0.s8 %v1537
        %v1539 = vlaneseq
        %v1540 = vshrl.u32 %v1539, 7
        %v1541 = vsub.s32 %v1538, %v1540
        %v1542 = vrot.slane %v1534, %v1541
        %v1544 = vunpack.c.l.s4 1983009808
        %v1545 = vunpack.c.0.s8 %v1544
        %v1546 = vlaneseq
        %v1547 = vshrl.u32 %v1546, 7
        %v1548 = vsub.s32 %v1545, %v1547
        %v1549 = vrot.slane %v1535, %v1548
        %v1550 = vcombine.low %v1437, %v1529
        %v1551 = vcombine.high %v1437, %v1529
        %v1553 = vunpack.c.l.s4 1983009808
        %v1554 = vunpack.c.0.s8 %v1553
        %v1555 = vlaneseq
        %v1556 = vshrl.u32 %v1555, 7
        %v1557 = vsub.s32 %v1554, %v1556
        %v1558 = vrot.slane %v1550, %v1557
        %v1560 = vunpack.c.l.s4 1983009808
        %v1561 = vunpack.c.0.s8 %v1560
        %v1562 = vlaneseq
        %v1563 = vshrl.u32 %v1562, 7
        %v1564 = vsub.s32 %v1561, %v1563
        %v1565 = vrot.slane %v1551, %v1564
        %v1566 = vcombine.low %v1542, %v1558
        %v1567 = vcombine.high %v1542, %v1558
        %v1569 = vunpack.c.l.s4 1934713408
        %v1570 = vunpack.c.0.s8 %v1569
        %v1571 = vlaneseq
        %v1572 = vshrl.u32 %v1571, 7
        %v1573 = vsub.s32 %v1570, %v1572
        %v1574 = vrot.slane %v1566, %v1573
        %v1576 = vunpack.c.l.s4 1934713408
        %v1577 = vunpack.c.0.s8 %v1576
        %v1578 = vlaneseq
        %v1579 = vshrl.u32 %v1578, 7
        %v1580 = vsub.s32 %v1577, %v1579
        %v1581 = vrot.slane %v1567, %v1580
        %v1582 = vcombine.low %v1549, %v1565
        %v1583 = vcombine.high %v1549, %v1565
        %v1585 = vunpack.c.l.s4 1934713408
        %v1586 = vunpack.c.0.s8 %v1585
        %v1587 = vlaneseq
        %v1588 = vshrl.u32 %v1587, 7
        %v1589 = vsub.s32 %v1586, %v1588
        %v1590 = vrot.slane %v1582, %v1589
        %v1592 = vunpack.c.l.s4 1934713408
        %v1593 = vunpack.c.0.s8 %v1592
        %v1594 = vlaneseq
        %v1595 = vshrl.u32 %v1594, 7
        %v1596 = vsub.s32 %v1593, %v1595
        %v1597 = vrot.slane %v1583, %v1596
        %v1598 = vcombine.high %v1574, 0.0
        %v1599 = vcombine.high %v1581, 0.0
        %v1600 = vcombine.high %v1590, 0.0
        %v1601 = vcombine.high %v1597, 0.0
        %v1602 = vcombine.low %v1574, %v1581
        %v1604 = vunpack.c.l.s4 1983009808
        %v1605 = vunpack.c.0.s8 %v1604
        %v1606 = vlaneseq
        %v1607 = vshrl.u32 %v1606, 7
        %v1608 = vsub.s32 %v1605, %v1607
        %v1609 = vrot.slane %v1602, %v1608
        %v1610 = vcombine.low %v1598, %v1599
        %v1612 = vunpack.c.l.s4 1983009808
        %v1613 = vunpack.c.0.s8 %v1612
        %v1614 = vlaneseq
        %v1615 = vshrl.u32 %v1614, 7
        %v1616 = vsub.s32 %v1613, %v1615
        %v1617 = vrot.slane %v1610, %v1616
        %v1618 = vcombine.low %v1590, %v1597
        %v1620 = vunpack.c.l.s4 1983009808
        %v1621 = vunpack.c.0.s8 %v1620
        %v1622 = vlaneseq
        %v1623 = vshrl.u32 %v1622, 7
        %v1624 = vsub.s32 %v1621, %v1623
        %v1625 = vrot.slane %v1618, %v1624
        %v1626 = vcombine.low %v1600, %v1601
        %v1628 = vunpack.c.l.s4 1983009808
        %v1629 = vunpack.c.0.s8 %v1628
        %v1630 = vlaneseq
        %v1631 = vshrl.u32 %v1630, 7
        %v1632 = vsub.s32 %v1629, %v1631
        %v1633 = vrot.slane %v1626, %v1632
        %v1634 = vcombine.low %v1609, %v1617
        %v1635 = vcombine.high %v1609, %v1617
        %v1637 = vunpack.c.l.s4 1934713408
        %v1638 = vunpack.c.0.s8 %v1637
        %v1639 = vlaneseq
        %v1640 = vshrl.u32 %v1639, 7
        %v1641 = vsub.s32 %v1638, %v1640
        %v1642 = vrot.slane %v1634, %v1641
        %v1644 = vunpack.c.l.s4 1934713408
        %v1645 = vunpack.c.0.s8 %v1644
        %v1646 = vlaneseq
        %v1647 = vshrl.u32 %v1646, 7
        %v1648 = vsub.s32 %v1645, %v1647
        %v1649 = vrot.slane %v1635, %v1648
        %v1650 = vcombine.low %v1625, %v1633
        %v1651 = vcombine.high %v1625, %v1633
        %v1653 = vunpack.c.l.s4 1934713408
        %v1654 = vunpack.c.0.s8 %v1653
        %v1655 = vlaneseq
        %v1656 = vshrl.u32 %v1655, 7
        %v1657 = vsub.s32 %v1654, %v1656
        %v1658 = vrot.slane %v1650, %v1657
        %v1660 = vunpack.c.l.s4 1934713408
        %v1661 = vunpack.c.0.s8 %v1660
        %v1662 = vlaneseq
        %v1663 = vshrl.u32 %v1662, 7
        %v1664 = vsub.s32 %v1661, %v1663
        %v1665 = vrot.slane %v1651, %v1664
        %v1666 = vcombine.low %v1642, %v1658
        %v1667 = vcombine.high %v1642, %v1658
        %v1668 = vcombine.low %v1649, %v1665
        %v1669 = vcombine.high %v1649, %v1665
        %1671 = vrot.lane.b32.xlu0 %v1667, 8
        %v1672 = vpop.permute.xlu0 %1671
        %1675 = vrot.lane.b32.xlu0 %v1668, 16
        %v1676 = vpop.permute.xlu0 %1675
        %1679 = vrot.lane.b32.xlu0 %v1669, 24
        %v1680 = vpop.permute.xlu0 %1679
        %v1682 = vsel %vm1116, %v1666, %v1672
        %vm1683 = vcmask 130048
        %v1684 = vsel %vm1683, %v1682, %v1676
        %vm1685 = vcmask 195584
        %v1686 = vsel %vm1685, %v1684, %v1680
        %v1687 = vpack.c.bf16 %v1686, %v1686
        %v1688 = vld [vmem:[%s6] sm:$0xf]
        %v1689 = vld [vmem:[%s6 + $0x4] sm:$0xf]
        %v1690 = vld [vmem:[%s6 + $0x8] sm:$0xf]
        %v1691 = vld [vmem:[%s6 + $0xc] sm:$0xf]
        %v1692 = vld [vmem:[%s7] sm:$0x1]
        %v1694 = vlaneseq
        %v1695 = vshrl.u32 %v1694, 7
        %v1696 = vsub.s32 0, %v1695
        %v1697 = vrot.slane %v1692, %v1696
        %v1703 = vunpack.c.l.b16 %v1688
        %v1704 = vunpack.c.l.b16 %v1689
        %v1705 = vunpack.c.l.b16 %v1690
        %v1706 = vunpack.c.l.b16 %v1691
        %v1707 = vpack.c.b16 %v1704, %v1703
        %v1708 = vpack.c.b16 %v1706, %v1705
        %v1712 = vsel %vm509, %v1687, 0
        %1714 = vmatprep.subr.bf16.mxu0 0
        %1715 = vmatpush1.bf16.msra.mxu0 %v1707
        %1716 = vmatprep.subr.bf16.mxu0 0
        %1717 = vmatpush1.bf16.msra.mxu0 %v1708
        %1718 = vmatprep.subr.bf16.mxu0 0
        %1719 = vmatpush1.bf16.msra.mxu0 0
        %1720 = vmatprep.subr.bf16.mxu0 0
        %1721 = vmatpush1.bf16.msra.mxu0 0
        %1722 = vmatprep.subr.bf16.mxu0 0
        %1723 = vmatpush1.bf16.msra.mxu0 0
        %1724 = vmatprep.subr.bf16.mxu0 0
        %1725 = vmatpush1.bf16.msra.mxu0 0
        %1726 = vmatprep.subr.bf16.mxu0 0
        %1727 = vmatpush1.bf16.msra.mxu0 0
        %1728 = vmatprep.subr.bf16.mxu0 0
        %1729 = vmatpush1.bf16.msra.mxu0 0
        %1730 = vmatprep.subr.bf16.mxu0 0
        %1731 = vmatpush1.bf16.msra.mxu0 0
        %1732 = vmatprep.subr.bf16.mxu0 0
        %1733 = vmatpush1.bf16.msra.mxu0 0
        %1734 = vmatprep.subr.bf16.mxu0 0
        %1735 = vmatpush1.bf16.msra.mxu0 0
        %1736 = vmatprep.subr.bf16.mxu0 0
        %1737 = vmatpush1.bf16.msra.mxu0 0
        %1738 = vmatprep.subr.bf16.mxu0 0
        %1739 = vmatpush1.bf16.msra.mxu0 0
        %1740 = vmatprep.subr.bf16.mxu0 0
        %1741 = vmatpush1.bf16.msra.mxu0 0
        %1742 = vmatprep.subr.bf16.mxu0 0
        %1743 = vmatpush1.bf16.msra.mxu0 0
        %1744 = vmatprep.subr.bf16.mxu0 0
        %1745 = vmatpush1.bf16.msra.mxu0 0
        %1746 = vmatprep.mubr.bf16.mxu0 0
        %1747 = vmatmul.mubr.bf16.gmra.mrb[0].mxu0 %v1712
        %v1748 = vpop.f32.mrb[0].mxu0
        %v1749 = vadd.f32 %v1697, %v1748
        %v1750 = vpop.f32.mrb[0].mxu0
        %v1751 = vpop.f32.mrb[0].mxu0
        %v1752 = vpop.f32.mrb[0].mxu0
        %1753 = vdwg.mxu0
        %v1754 = vadd.f32 %v506, %v1749
        %v1755 = vld [vmem:[%s8] sm:$0x1]
        %v1756 = vld [vmem:[%s9] sm:$0x1]
        %v1757 = vsel %vm509, %v1754, 0.0
        %1758 = vadd.xlane.f32.xlu0 %v1757
        %v1759 = vpop.xlane.xlu0 %1758
        %v1760 = vmul.f32 %v1759, %v513
        %v1761 = vsub.f32 %v1754, %v1760
        %v1762 = vmul.f32 %v1761, %v1761
        %v1763 = vsel %vm509, %v1762, 0.0
        %1764 = vadd.xlane.f32.xlu0 %v1763
        %v1765 = vpop.xlane.xlu0 %1764
        %v1766 = vmul.f32 %v1765, %v513
        %v1767 = vadd.f32 %v1766, 1e-05
        %v1768 = vrsqrt.pop %v1767
        %v1769 = vmul.f32 %v1761, %v1768
        %v1771 = vlaneseq
        %v1772 = vshrl.u32 %v1771, 7
        %v1773 = vsub.s32 0, %v1772
        %v1774 = vrot.slane %v1755, %v1773
        %v1776 = vmul.f32 %v1769, %v1774
        %v1778 = vlaneseq
        %v1779 = vshrl.u32 %v1778, 7
        %v1780 = vsub.s32 0, %v1779
        %v1781 = vrot.slane %v1756, %v1780
        %v1783 = vadd.f32 %v1776, %v1781
        %v1784 = vpack.c.bf16 %v1783, %v1783
        %v1785 = vld [vmem:[%s10] sm:$0xf]
        %v1786 = vld [vmem:[%s10 + $0x4] sm:$0xf]
        %v1787 = vld [vmem:[%s10 + $0x8] sm:$0xf]
        %v1788 = vld [vmem:[%s10 + $0xc] sm:$0xf]
        %v1789 = vld [vmem:[%s11] sm:$0x1]
        %v1791 = vlaneseq
        %v1792 = vshrl.u32 %v1791, 7
        %v1793 = vsub.s32 0, %v1792
        %v1794 = vrot.slane %v1789, %v1793
        %v1800 = vunpack.c.l.b16 %v1785
        %v1801 = vunpack.c.l.b16 %v1786
        %v1802 = vunpack.c.l.b16 %v1787
        %v1803 = vunpack.c.l.b16 %v1788
        %v1804 = vpack.c.b16 %v1801, %v1800
        %v1805 = vpack.c.b16 %v1803, %v1802
        %v1809 = vsel %vm509, %v1784, 0
        %1811 = vmatprep.subr.bf16.mxu0 0
        %1812 = vmatpush1.bf16.msra.mxu0 %v1804
        %1813 = vmatprep.subr.bf16.mxu0 0
        %1814 = vmatpush1.bf16.msra.mxu0 %v1805
        %1815 = vmatprep.subr.bf16.mxu0 0
        %1816 = vmatpush1.bf16.msra.mxu0 0
        %1817 = vmatprep.subr.bf16.mxu0 0
        %1818 = vmatpush1.bf16.msra.mxu0 0
        %1819 = vmatprep.subr.bf16.mxu0 0
        %1820 = vmatpush1.bf16.msra.mxu0 0
        %1821 = vmatprep.subr.bf16.mxu0 0
        %1822 = vmatpush1.bf16.msra.mxu0 0
        %1823 = vmatprep.subr.bf16.mxu0 0
        %1824 = vmatpush1.bf16.msra.mxu0 0
        %1825 = vmatprep.subr.bf16.mxu0 0
        %1826 = vmatpush1.bf16.msra.mxu0 0
        %1827 = vmatprep.subr.bf16.mxu0 0
        %1828 = vmatpush1.bf16.msra.mxu0 0
        %1829 = vmatprep.subr.bf16.mxu0 0
        %1830 = vmatpush1.bf16.msra.mxu0 0
        %1831 = vmatprep.subr.bf16.mxu0 0
        %1832 = vmatpush1.bf16.msra.mxu0 0
        %1833 = vmatprep.subr.bf16.mxu0 0
        %1834 = vmatpush1.bf16.msra.mxu0 0
        %1835 = vmatprep.subr.bf16.mxu0 0
        %1836 = vmatpush1.bf16.msra.mxu0 0
        %1837 = vmatprep.subr.bf16.mxu0 0
        %1838 = vmatpush1.bf16.msra.mxu0 0
        %1839 = vmatprep.subr.bf16.mxu0 0
        %1840 = vmatpush1.bf16.msra.mxu0 0
        %1841 = vmatprep.subr.bf16.mxu0 0
        %1842 = vmatpush1.bf16.msra.mxu0 0
        %1843 = vmatprep.mubr.bf16.mxu0 0
        %1844 = vmatmul.mubr.bf16.gmra.mrb[0].mxu0 %v1809
        %v1845 = vpop.f32.mrb[0].mxu0
        %v1846 = vadd.f32 %v1794, %v1845
        %v1847 = vpop.f32.mrb[0].mxu0
        %v1848 = vpop.f32.mrb[0].mxu0
        %v1849 = vpop.f32.mrb[0].mxu0
        %1850 = vdwg.mxu0
        %v1851 = vmul.f32 %v1846, 1.702
        %v1852 = vxor.u32 %v1851, 2147483648
        %v1853 = vmul.f32 %v1852, 1.442695
        %v1854 = vpow.pop %v1853
        %v1855 = vadd.f32 %v1854, 1.0
        %v1856 = vrcp.pop %v1855
        %v1857 = vmul.f32 1.0, %v1856
        %v1858 = vmul.f32 %v1846, %v1857
        %v1859 = vpack.c.bf16 %v1858, %v1858
        %v1860 = vld [vmem:[%s12] sm:$0xf]
        %v1861 = vld [vmem:[%s12 + $0x4] sm:$0xf]
        %v1862 = vld [vmem:[%s12 + $0x8] sm:$0xf]
        %v1863 = vld [vmem:[%s12 + $0xc] sm:$0xf]
        %v1864 = vld [vmem:[%s12 + $0x10] sm:$0xf]
        %v1865 = vld [vmem:[%s12 + $0x14] sm:$0xf]
        %v1866 = vld [vmem:[%s12 + $0x18] sm:$0xf]
        %v1867 = vld [vmem:[%s12 + $0x1c] sm:$0xf]
        %v1868 = vld [vmem:[%s12 + $0x20] sm:$0xf]
        %v1869 = vld [vmem:[%s12 + $0x24] sm:$0xf]
        %v1870 = vld [vmem:[%s12 + $0x28] sm:$0xf]
        %v1871 = vld [vmem:[%s12 + $0x2c] sm:$0xf]
        %v1872 = vld [vmem:[%s12 + $0x30] sm:$0xf]
        %v1873 = vld [vmem:[%s12 + $0x34] sm:$0xf]
        %v1874 = vld [vmem:[%s12 + $0x38] sm:$0xf]
        %v1875 = vld [vmem:[%s12 + $0x3c] sm:$0xf]
        %v1876 = vld [vmem:[%s13] sm:$0x1]
        %v1878 = vlaneseq
        %v1879 = vshrl.u32 %v1878, 7
        %v1880 = vsub.s32 0, %v1879
        %v1881 = vrot.slane %v1876, %v1880
        %v1899 = vunpack.c.l.b16 %v1860
        %v1900 = vunpack.c.l.b16 %v1861
        %v1901 = vunpack.c.l.b16 %v1862
        %v1902 = vunpack.c.l.b16 %v1863
        %v1903 = vunpack.c.l.b16 %v1864
        %v1904 = vunpack.c.l.b16 %v1865
        %v1905 = vunpack.c.l.b16 %v1866
        %v1906 = vunpack.c.l.b16 %v1867
        %v1907 = vunpack.c.l.b16 %v1868
        %v1908 = vunpack.c.l.b16 %v1869
        %v1909 = vunpack.c.l.b16 %v1870
        %v1910 = vunpack.c.l.b16 %v1871
        %v1911 = vunpack.c.l.b16 %v1872
        %v1912 = vunpack.c.l.b16 %v1873
        %v1913 = vunpack.c.l.b16 %v1874
        %v1914 = vunpack.c.l.b16 %v1875
        %v1915 = vpack.c.b16 %v1900, %v1899
        %v1916 = vpack.c.b16 %v1902, %v1901
        %v1917 = vpack.c.b16 %v1904, %v1903
        %v1918 = vpack.c.b16 %v1906, %v1905
        %v1919 = vpack.c.b16 %v1908, %v1907
        %v1920 = vpack.c.b16 %v1910, %v1909
        %v1921 = vpack.c.b16 %v1912, %v1911
        %v1922 = vpack.c.b16 %v1914, %v1913
        %1931 = vmatprep.subr.bf16.mxu0 0
        %1932 = vmatpush1.bf16.msra.mxu0 %v1915
        %1933 = vmatprep.subr.bf16.mxu0 0
        %1934 = vmatpush1.bf16.msra.mxu0 %v1916
        %1935 = vmatprep.subr.bf16.mxu0 0
        %1936 = vmatpush1.bf16.msra.mxu0 %v1917
        %1937 = vmatprep.subr.bf16.mxu0 0
        %1938 = vmatpush1.bf16.msra.mxu0 %v1918
        %1939 = vmatprep.subr.bf16.mxu0 0
        %1940 = vmatpush1.bf16.msra.mxu0 %v1919
        %1941 = vmatprep.subr.bf16.mxu0 0
        %1942 = vmatpush1.bf16.msra.mxu0 %v1920
        %1943 = vmatprep.subr.bf16.mxu0 0
        %1944 = vmatpush1.bf16.msra.mxu0 %v1921
        %1945 = vmatprep.subr.bf16.mxu0 0
        %1946 = vmatpush1.bf16.msra.mxu0 %v1922
        %1947 = vmatprep.subr.bf16.mxu0 0
        %1948 = vmatpush1.bf16.msra.mxu0 0
        %1949 = vmatprep.subr.bf16.mxu0 0
        %1950 = vmatpush1.bf16.msra.mxu0 0
        %1951 = vmatprep.subr.bf16.mxu0 0
        %1952 = vmatpush1.bf16.msra.mxu0 0
        %1953 = vmatprep.subr.bf16.mxu0 0
        %1954 = vmatpush1.bf16.msra.mxu0 0
        %1955 = vmatprep.subr.bf16.mxu0 0
        %1956 = vmatpush1.bf16.msra.mxu0 0
        %1957 = vmatprep.subr.bf16.mxu0 0
        %1958 = vmatpush1.bf16.msra.mxu0 0
        %1959 = vmatprep.subr.bf16.mxu0 0
        %1960 = vmatpush1.bf16.msra.mxu0 0
        %1961 = vmatprep.subr.bf16.mxu0 0
        %1962 = vmatpush1.bf16.msra.mxu0 0
        %1963 = vmatprep.mubr.bf16.mxu0 0
        %1964 = vmatmul.mubr.bf16.gmra.mrb[0].mxu0 %v1859
        %v1965 = vpop.f32.mrb[0].mxu0
        %v1966 = vadd.f32 %v1881, %v1965
        %v1967 = vpop.f32.mrb[0].mxu0
        %v1968 = vpop.f32.mrb[0].mxu0
        %v1969 = vpop.f32.mrb[0].mxu0
        %1970 = vdwg.mxu0
        %v1971 = vadd.f32 %v1754, %v1966
        %1972 = vst.msk [vmem:[%s493] sm:$0xff] %vm509, %v1971
        %s1973 = sand.u32 %s356, 1
        %s1974 = scalar_lea.sflag [#allocation3], %s1973
        %s1975 = sand.u32 %s356, 1
        %s1976 = smul.addr %s1975, 8
        %s1977 = scalar_lea.vmem [#allocation2], %s1976
        // Predicated region
        $region77: #{transformer_forward.3} parent=75 // pred_check
          %p1978 = pneg %p366
        $region78: #{transformer_forward.3} parent=75 // pred_check_branch
          %1980 = sbr.rel (%p1978) target = $region80
        $region79: #{transformer_forward.3} parent=75 // pred_region
          %s1982 = ssub.s32 128, 128
          %1983 = vsyncadd %s1974, %s1982
          %s1984 = sadd.s32 %s33, %s32
          %s1985 = smul.addr %s1984, 128
          %s1986 = scalar_lea.hbm %s14, %s1985
          %s1988 = sshll.u32 %s1977, 4
          %s1989 = int_to_ptr.vmem [resolvable:$true] %s1988
          %1991 = dma.vmem_to_hbm [thread:$0]  %s1989, 128, %s1986, %s1974
        $region80: #{transformer_forward.3} parent=75 // pred_fallthru
          _
      $region76: #{transformer_forward.3} parent=5 // pred_fallthru
        _
      %p1992 = scmp.le.s32.totalorder 2, %s23
      // Predicated region
      $region81: #{transformer_forward.3} parent=5 // pred_check
        %p1993 = pneg %p1992
      $region82: #{transformer_forward.3} parent=5 // pred_check_branch
        %1995 = sbr.rel (%p1993) target = $region84
      $region83: #{transformer_forward.3} parent=5 // pred_region
        %s1996 = ssub.s32 %s23, 2
        // Predicated region
        $region85: #{transformer_forward.3} parent=83 // pred_check
          %p1997 = pneg %p372
        $region86: #{transformer_forward.3} parent=83 // pred_check_branch
          %1999 = sbr.rel (%p1997) target = $region88
        $region87: #{transformer_forward.3} parent=83 // pred_region
          %s2000 = sand.u32 %s357, 1
          %s2001 = scalar_lea.sflag [#allocation3], %s2000
          %s2002 = sand.u32 %s357, 1
          %s2003 = smul.addr %s2002, 8
          %s2004 = scalar_lea.vmem [#allocation2], %s2003
          %2005 = dma.done %s2001, 128
        $region88: #{transformer_forward.3} parent=83 // pred_fallthru
          _
      $region84: #{transformer_forward.3} parent=5 // pred_fallthru
        _
    $region6: #{transformer_forward.3} parent=1 // loop_footer
      %s27 = sadd.s32 1, %s23
    $region7: #{transformer_forward.3} parent=1 // loop_footer_branch
      %22 = sbr.rel target = $region3
    $region8: #{transformer_forward.3} parent=1 // loop_exit
      _
    %2006 = vsyncpa [#allocation3], 1
    %s2007 = scalar_lea.sflag [#allocation3], 1
    %2008 = vsyncpa %s2007, 1

// kernel: transformer_forward.2
$region0: #{transformer_forward.2}
  #allocation0 [shape = 'u32[]', space=smem, size = 0x4, offset = 0x4, fixed_abs, tag = 'smem constant byte address 0x4 - core index']
  #allocation1 [shape = 'u32[144,128]{1,0:T(1,128)}', space=vmem, size = 0x12000, scoped, tag = 'internal scratch']
  %s0 = inlined_call_operand.vmem [shape: f32[2,8,32], index: 0, kind: input, shape index: {}]
  %s1 = inlined_call_operand.vmem [shape: bf16[1,8,8], index: 1, kind: input, shape index: {}]
  %s2 = inlined_call_operand.vmem [shape: f32[1,32], index: 2, kind: input, shape index: {}]
  %s3 = inlined_call_operand.vmem [shape: f32[1,32], index: 3, kind: input, shape index: {}]
  %s4 = inlined_call_operand.vmem [shape: bf16[32,96], index: 4, kind: input, shape index: {}]
  %s5 = inlined_call_operand.vmem [shape: f32[1,96], index: 5, kind: input, shape index: {}]
  %s6 = inlined_call_operand.vmem [shape: bf16[32,32], index: 6, kind: input, shape index: {}]
  %s7 = inlined_call_operand.vmem [shape: f32[1,32], index: 7, kind: input, shape index: {}]
  %s8 = inlined_call_operand.vmem [shape: f32[1,32], index: 8, kind: input, shape index: {}]
  %s9 = inlined_call_operand.vmem [shape: f32[1,32], index: 9, kind: input, shape index: {}]
  %s10 = inlined_call_operand.vmem [shape: bf16[32,128], index: 10, kind: input, shape index: {}]
  %s11 = inlined_call_operand.vmem [shape: f32[1,128], index: 11, kind: input, shape index: {}]
  %s12 = inlined_call_operand.vmem [shape: bf16[128,32], index: 12, kind: input, shape index: {}]
  %s13 = inlined_call_operand.vmem [shape: f32[1,32], index: 13, kind: input, shape index: {}]
  %s14 = inlined_call_operand.vmem [shape: f32[2,8,32], index: 14, kind: output, shape index: {}]
  %s15 = sld [smem:[#allocation0]]
  $region89: #{transformer_forward.2} parent=0
    _
  %s17 = ssub.s32 1, %s15
  %s18 = scalar_select 0, %s17, %s15
  loop: start=0, step=1, limit=4
  $region2: #{transformer_forward.2} parent=0 // loop_pre_header
    _
  $region3: #{transformer_forward.2} parent=0 // loop_header
    %s20 = sphi 0, %s24
    %p21 = scmp.ge.s32.totalorder %s20, 4
    %s27 = sphi 0, %s39
    %s28 = sphi 0, %s35
    %s29 = sphi 0, %s27
    %s30 = sphi 0, %s28
    %s31 = sphi 0, %s29
    %s32 = sphi 0, %s30
    %s44 = sphi 0, %s46
    %s47 = sphi 0, %s44
    %s48 = sphi 0, %s47
    %s64 = sphi 0, %s48
    %s70 = sphi 0, %s72
    %s73 = sphi 0, %s70
    %s74 = sphi 0, %s73
    %s90 = sphi 0, %s74
    %s94 = sphi 0, %s94
    %s96 = sphi 0, %s94
    %s97 = sphi 0, %s96
    %s111 = sphi 0, %s97
    %s115 = sphi 0, %s115
    %s117 = sphi 0, %s115
    %s118 = sphi 0, %s117
    %s132 = sphi 0, %s118
    %s136 = sphi 0, %s136
    %s138 = sphi 0, %s136
    %s139 = sphi 0, %s138
    %s153 = sphi 0, %s139
    %s157 = sphi 0, %s157
    %s159 = sphi 0, %s157
    %s160 = sphi 0, %s159
    %s174 = sphi 0, %s160
    %s178 = sphi 0, %s178
    %s180 = sphi 0, %s178
    %s181 = sphi 0, %s180
    %s195 = sphi 0, %s181
    %s199 = sphi 0, %s199
    %s201 = sphi 0, %s199
    %s202 = sphi 0, %s201
    %s216 = sphi 0, %s202
    %s220 = sphi 0, %s220
    %s222 = sphi 0, %s220
    %s223 = sphi 0, %s222
    %s237 = sphi 0, %s223
    %s241 = sphi 0, %s241
    %s243 = sphi 0, %s241
    %s244 = sphi 0, %s243
    %s258 = sphi 0, %s244
    %s262 = sphi 0, %s262
    %s264 = sphi 0, %s262
    %s265 = sphi 0, %s264
    %s279 = sphi 0, %s265
    %s283 = sphi 0, %s283
    %s285 = sphi 0, %s283
    %s286 = sphi 0, %s285
    %s300 = sphi 0, %s286
    %s304 = sphi 0, %s304
    %s306 = sphi 0, %s304
    %s307 = sphi 0, %s306
    %s321 = sphi 0, %s307
    %s325 = sphi 0, %s325
    %s327 = sphi 0, %s325
    %s328 = sphi 0, %s327
    %s342 = sphi 0, %s328
    %s350 = sphi 0, %s352
    %s353 = sphi 0, %s350
    %s354 = sphi 0, %s353
    %s370 = sphi 0, %s354
  $region4: #{transformer_forward.2} parent=0 // loop_header_branch
    %23 = sbr.rel (%p21) target = $region8
  $region5: #{transformer_forward.2} parent=0 // loop_body
    %s25 = ssub.s32 %s20, 1
    %s26 = ssub.s32 %s20, 2
    %s33 = sadd.s32 1, %s28
    %p34 = scmp.ge.s32.totalorder %s33, 1
    %s35 = scalar_select %p34, 0, %s33
    %s36 = sadd.s32 1, %s27
    %s37 = scalar_select %p34, %s36, %s27
    %p38 = scmp.ge.s32.totalorder %s37, 2
    %s39 = scalar_select %p38, 0, %s37
    %s40 = ssub.s32 %s27, %s39
    %s41 = ssub.s32 %s28, %s35
    %s42 = sor.u32 %s40, %s41
    %p43 = scmp.eq.s32.totalorder %s42, 0
    %s45 = sadd.s32 %s44, 1
    %s46 = scalar_select %p43, %s44, %s45
    %p49 = pneg %p43
    %p50 = scmp.eq.s32.totalorder %s20, 1
    %p51 = por %p49, %p50
    %p52 = scmp.ne.s32.totalorder %s44, %s47
    %p53 = scmp.eq.s32.totalorder %s20, 0
    %p54 = por %p52, %p53
    %p55 = scmp.ne.s32.totalorder %s44, %s47
    %p56 = scmp.eq.s32.totalorder %s25, 1
    %p57 = por %p55, %p56
    %p58 = scmp.ne.s32.totalorder %s47, %s48
    %p59 = scmp.eq.s32.totalorder %s25, 0
    %p60 = por %p58, %p59
    %p61 = scmp.ne.s32.totalorder %s47, %s48
    %p62 = scmp.eq.s32.totalorder %s26, 1
    %p63 = por %p61, %p62
    %p65 = scmp.ne.s32.totalorder %s48, %s64
    %p66 = scmp.eq.s32.totalorder %s26, 0
    %p67 = por %p65, %p66
    %s68 = ssub.s32 %s28, %s35
    %p69 = scmp.eq.s32.totalorder %s68, 0
    %s71 = sadd.s32 %s70, 1
    %s72 = scalar_select %p69, %s70, %s71
    %p75 = pneg %p69
    %p76 = scmp.eq.s32.totalorder %s20, 1
    %p77 = por %p75, %p76
    %p78 = scmp.ne.s32.totalorder %s70, %s73
    %p79 = scmp.eq.s32.totalorder %s20, 0
    %p80 = por %p78, %p79
    %p81 = scmp.ne.s32.totalorder %s70, %s73
    %p82 = scmp.eq.s32.totalorder %s25, 1
    %p83 = por %p81, %p82
    %p84 = scmp.ne.s32.totalorder %s73, %s74
    %p85 = scmp.eq.s32.totalorder %s25, 0
    %p86 = por %p84, %p85
    %p87 = scmp.ne.s32.totalorder %s73, %s74
    %p88 = scmp.eq.s32.totalorder %s26, 1
    %p89 = por %p87, %p88
    %p91 = scmp.ne.s32.totalorder %s74, %s90
    %p92 = scmp.eq.s32.totalorder %s26, 0
    %p93 = por %p91, %p92
    %s95 = sadd.s32 %s94, 1
    %p98 = scmp.eq.s32.totalorder %s20, 1
    %p99 = scmp.ne.s32.totalorder %s94, %s96
    %p100 = scmp.eq.s32.totalorder %s20, 0
    %p101 = por %p99, %p100
    %p102 = scmp.ne.s32.totalorder %s94, %s96
    %p103 = scmp.eq.s32.totalorder %s25, 1
    %p104 = por %p102, %p103
    %p105 = scmp.ne.s32.totalorder %s96, %s97
    %p106 = scmp.eq.s32.totalorder %s25, 0
    %p107 = por %p105, %p106
    %p108 = scmp.ne.s32.totalorder %s96, %s97
    %p109 = scmp.eq.s32.totalorder %s26, 1
    %p110 = por %p108, %p109
    %p112 = scmp.ne.s32.totalorder %s97, %s111
    %p113 = scmp.eq.s32.totalorder %s26, 0
    %p114 = por %p112, %p113
    %s116 = sadd.s32 %s115, 1
    %p119 = scmp.eq.s32.totalorder %s20, 1
    %p120 = scmp.ne.s32.totalorder %s115, %s117
    %p121 = scmp.eq.s32.totalorder %s20, 0
    %p122 = por %p120, %p121
    %p123 = scmp.ne.s32.totalorder %s115, %s117
    %p124 = scmp.eq.s32.totalorder %s25, 1
    %p125 = por %p123, %p124
    %p126 = scmp.ne.s32.totalorder %s117, %s118
    %p127 = scmp.eq.s32.totalorder %s25, 0
    %p128 = por %p126, %p127
    %p129 = scmp.ne.s32.totalorder %s117, %s118
    %p130 = scmp.eq.s32.totalorder %s26, 1
    %p131 = por %p129, %p130
    %p133 = scmp.ne.s32.totalorder %s118, %s132
    %p134 = scmp.eq.s32.totalorder %s26, 0
    %p135 = por %p133, %p134
    %s137 = sadd.s32 %s136, 1
    %p140 = scmp.eq.s32.totalorder %s20, 1
    %p141 = scmp.ne.s32.totalorder %s136, %s138
    %p142 = scmp.eq.s32.totalorder %s20, 0
    %p143 = por %p141, %p142
    %p144 = scmp.ne.s32.totalorder %s136, %s138
    %p145 = scmp.eq.s32.totalorder %s25, 1
    %p146 = por %p144, %p145
    %p147 = scmp.ne.s32.totalorder %s138, %s139
    %p148 = scmp.eq.s32.totalorder %s25, 0
    %p149 = por %p147, %p148
    %p150 = scmp.ne.s32.totalorder %s138, %s139
    %p151 = scmp.eq.s32.totalorder %s26, 1
    %p152 = por %p150, %p151
    %p154 = scmp.ne.s32.totalorder %s139, %s153
    %p155 = scmp.eq.s32.totalorder %s26, 0
    %p156 = por %p154, %p155
    %s158 = sadd.s32 %s157, 1
    %p161 = scmp.eq.s32.totalorder %s20, 1
    %p162 = scmp.ne.s32.totalorder %s157, %s159
    %p163 = scmp.eq.s32.totalorder %s20, 0
    %p164 = por %p162, %p163
    %p165 = scmp.ne.s32.totalorder %s157, %s159
    %p166 = scmp.eq.s32.totalorder %s25, 1
    %p167 = por %p165, %p166
    %p168 = scmp.ne.s32.totalorder %s159, %s160
    %p169 = scmp.eq.s32.totalorder %s25, 0
    %p170 = por %p168, %p169
    %p171 = scmp.ne.s32.totalorder %s159, %s160
    %p172 = scmp.eq.s32.totalorder %s26, 1
    %p173 = por %p171, %p172
    %p175 = scmp.ne.s32.totalorder %s160, %s174
    %p176 = scmp.eq.s32.totalorder %s26, 0
    %p177 = por %p175, %p176
    %s179 = sadd.s32 %s178, 1
    %p182 = scmp.eq.s32.totalorder %s20, 1
    %p183 = scmp.ne.s32.totalorder %s178, %s180
    %p184 = scmp.eq.s32.totalorder %s20, 0
    %p185 = por %p183, %p184
    %p186 = scmp.ne.s32.totalorder %s178, %s180
    %p187 = scmp.eq.s32.totalorder %s25, 1
    %p188 = por %p186, %p187
    %p189 = scmp.ne.s32.totalorder %s180, %s181
    %p190 = scmp.eq.s32.totalorder %s25, 0
    %p191 = por %p189, %p190
    %p192 = scmp.ne.s32.totalorder %s180, %s181
    %p193 = scmp.eq.s32.totalorder %s26, 1
    %p194 = por %p192, %p193
    %p196 = scmp.ne.s32.totalorder %s181, %s195
    %p197 = scmp.eq.s32.totalorder %s26, 0
    %p198 = por %p196, %p197
    %s200 = sadd.s32 %s199, 1
    %p203 = scmp.eq.s32.totalorder %s20, 1
    %p204 = scmp.ne.s32.totalorder %s199, %s201
    %p205 = scmp.eq.s32.totalorder %s20, 0
    %p206 = por %p204, %p205
    %p207 = scmp.ne.s32.totalorder %s199, %s201
    %p208 = scmp.eq.s32.totalorder %s25, 1
    %p209 = por %p207, %p208
    %p210 = scmp.ne.s32.totalorder %s201, %s202
    %p211 = scmp.eq.s32.totalorder %s25, 0
    %p212 = por %p210, %p211
    %p213 = scmp.ne.s32.totalorder %s201, %s202
    %p214 = scmp.eq.s32.totalorder %s26, 1
    %p215 = por %p213, %p214
    %p217 = scmp.ne.s32.totalorder %s202, %s216
    %p218 = scmp.eq.s32.totalorder %s26, 0
    %p219 = por %p217, %p218
    %s221 = sadd.s32 %s220, 1
    %p224 = scmp.eq.s32.totalorder %s20, 1
    %p225 = scmp.ne.s32.totalorder %s220, %s222
    %p226 = scmp.eq.s32.totalorder %s20, 0
    %p227 = por %p225, %p226
    %p228 = scmp.ne.s32.totalorder %s220, %s222
    %p229 = scmp.eq.s32.totalorder %s25, 1
    %p230 = por %p228, %p229
    %p231 = scmp.ne.s32.totalorder %s222, %s223
    %p232 = scmp.eq.s32.totalorder %s25, 0
    %p233 = por %p231, %p232
    %p234 = scmp.ne.s32.totalorder %s222, %s223
    %p235 = scmp.eq.s32.totalorder %s26, 1
    %p236 = por %p234, %p235
    %p238 = scmp.ne.s32.totalorder %s223, %s237
    %p239 = scmp.eq.s32.totalorder %s26, 0
    %p240 = por %p238, %p239
    %s242 = sadd.s32 %s241, 1
    %p245 = scmp.eq.s32.totalorder %s20, 1
    %p246 = scmp.ne.s32.totalorder %s241, %s243
    %p247 = scmp.eq.s32.totalorder %s20, 0
    %p248 = por %p246, %p247
    %p249 = scmp.ne.s32.totalorder %s241, %s243
    %p250 = scmp.eq.s32.totalorder %s25, 1
    %p251 = por %p249, %p250
    %p252 = scmp.ne.s32.totalorder %s243, %s244
    %p253 = scmp.eq.s32.totalorder %s25, 0
    %p254 = por %p252, %p253
    %p255 = scmp.ne.s32.totalorder %s243, %s244
    %p256 = scmp.eq.s32.totalorder %s26, 1
    %p257 = por %p255, %p256
    %p259 = scmp.ne.s32.totalorder %s244, %s258
    %p260 = scmp.eq.s32.totalorder %s26, 0
    %p261 = por %p259, %p260
    %s263 = sadd.s32 %s262, 1
    %p266 = scmp.eq.s32.totalorder %s20, 1
    %p267 = scmp.ne.s32.totalorder %s262, %s264
    %p268 = scmp.eq.s32.totalorder %s20, 0
    %p269 = por %p267, %p268
    %p270 = scmp.ne.s32.totalorder %s262, %s264
    %p271 = scmp.eq.s32.totalorder %s25, 1
    %p272 = por %p270, %p271
    %p273 = scmp.ne.s32.totalorder %s264, %s265
    %p274 = scmp.eq.s32.totalorder %s25, 0
    %p275 = por %p273, %p274
    %p276 = scmp.ne.s32.totalorder %s264, %s265
    %p277 = scmp.eq.s32.totalorder %s26, 1
    %p278 = por %p276, %p277
    %p280 = scmp.ne.s32.totalorder %s265, %s279
    %p281 = scmp.eq.s32.totalorder %s26, 0
    %p282 = por %p280, %p281
    %s284 = sadd.s32 %s283, 1
    %p287 = scmp.eq.s32.totalorder %s20, 1
    %p288 = scmp.ne.s32.totalorder %s283, %s285
    %p289 = scmp.eq.s32.totalorder %s20, 0
    %p290 = por %p288, %p289
    %p291 = scmp.ne.s32.totalorder %s283, %s285
    %p292 = scmp.eq.s32.totalorder %s25, 1
    %p293 = por %p291, %p292
    %p294 = scmp.ne.s32.totalorder %s285, %s286
    %p295 = scmp.eq.s32.totalorder %s25, 0
    %p296 = por %p294, %p295
    %p297 = scmp.ne.s32.totalorder %s285, %s286
    %p298 = scmp.eq.s32.totalorder %s26, 1
    %p299 = por %p297, %p298
    %p301 = scmp.ne.s32.totalorder %s286, %s300
    %p302 = scmp.eq.s32.totalorder %s26, 0
    %p303 = por %p301, %p302
    %s305 = sadd.s32 %s304, 1
    %p308 = scmp.eq.s32.totalorder %s20, 1
    %p309 = scmp.ne.s32.totalorder %s304, %s306
    %p310 = scmp.eq.s32.totalorder %s20, 0
    %p311 = por %p309, %p310
    %p312 = scmp.ne.s32.totalorder %s304, %s306
    %p313 = scmp.eq.s32.totalorder %s25, 1
    %p314 = por %p312, %p313
    %p315 = scmp.ne.s32.totalorder %s306, %s307
    %p316 = scmp.eq.s32.totalorder %s25, 0
    %p317 = por %p315, %p316
    %p318 = scmp.ne.s32.totalorder %s306, %s307
    %p319 = scmp.eq.s32.totalorder %s26, 1
    %p320 = por %p318, %p319
    %p322 = scmp.ne.s32.totalorder %s307, %s321
    %p323 = scmp.eq.s32.totalorder %s26, 0
    %p324 = por %p322, %p323
    %s326 = sadd.s32 %s325, 1
    %p329 = scmp.eq.s32.totalorder %s20, 1
    %p330 = scmp.ne.s32.totalorder %s325, %s327
    %p331 = scmp.eq.s32.totalorder %s20, 0
    %p332 = por %p330, %p331
    %p333 = scmp.ne.s32.totalorder %s325, %s327
    %p334 = scmp.eq.s32.totalorder %s25, 1
    %p335 = por %p333, %p334
    %p336 = scmp.ne.s32.totalorder %s327, %s328
    %p337 = scmp.eq.s32.totalorder %s25, 0
    %p338 = por %p336, %p337
    %p339 = scmp.ne.s32.totalorder %s327, %s328
    %p340 = scmp.eq.s32.totalorder %s26, 1
    %p341 = por %p339, %p340
    %p343 = scmp.ne.s32.totalorder %s328, %s342
    %p344 = scmp.eq.s32.totalorder %s26, 0
    %p345 = por %p343, %p344
    %s346 = ssub.s32 %s27, %s39
    %s347 = ssub.s32 %s28, %s35
    %s348 = sor.u32 %s346, %s347
    %p349 = scmp.eq.s32.totalorder %s348, 0
    %s351 = sadd.s32 %s350, 1
    %s352 = scalar_select %p349, %s350, %s351
    %p355 = pneg %p349
    %p356 = scmp.eq.s32.totalorder %s20, 1
    %p357 = por %p355, %p356
    %p358 = scmp.ne.s32.totalorder %s350, %s353
    %p359 = scmp.eq.s32.totalorder %s20, 0
    %p360 = por %p358, %p359
    %p361 = scmp.ne.s32.totalorder %s350, %s353
    %p362 = scmp.eq.s32.totalorder %s25, 1
    %p363 = por %p361, %p362
    %p364 = scmp.ne.s32.totalorder %s353, %s354
    %p365 = scmp.eq.s32.totalorder %s25, 0
    %p366 = por %p364, %p365
    %p367 = scmp.ne.s32.totalorder %s353, %s354
    %p368 = scmp.eq.s32.totalorder %s26, 1
    %p369 = por %p367, %p368
    %p371 = scmp.ne.s32.totalorder %s354, %s370
    %p372 = scmp.eq.s32.totalorder %s26, 0
    %p373 = por %p371, %p372
    %p374 = scmp.le.s32.totalorder 1, %s20
    %p375 = scmp.lt.s32.totalorder %s20, 3
    %p376 = pnand %p374, %p375
    %p377 = pneg %p376
    // Predicated region
    $region9: #{transformer_forward.2} parent=5 // pred_check
      _
    $region10: #{transformer_forward.2} parent=5 // pred_check_branch
      %379 = sbr.rel (%p376) target = $region12
    $region11: #{transformer_forward.2} parent=5 // pred_region
      %s380 = ssub.s32 %s20, 1
      // Predicated region
      $region13: #{transformer_forward.2} parent=11 // pred_check
        %p381 = pneg %p86
      $region14: #{transformer_forward.2} parent=11 // pred_check_branch
        %383 = sbr.rel (%p381) target = $region16
      $region15: #{transformer_forward.2} parent=11 // pred_region
        %p384 = scmp.lt.s32.totalorder %s30, 0
        %s385 = scalar_select %p384, %s30, 0
        %s386 = smul.addr %s385, 4
        %s387 = scalar_lea.vmem %s1, %s386
      $region16: #{transformer_forward.2} parent=11 // pred_fallthru
        _
      // Predicated region
      $region17: #{transformer_forward.2} parent=11 // pred_check
        %p388 = pneg %p107
      $region18: #{transformer_forward.2} parent=11 // pred_check_branch
        %390 = sbr.rel (%p388) target = $region20
      $region19: #{transformer_forward.2} parent=11 // pred_region
        _
      $region20: #{transformer_forward.2} parent=11 // pred_fallthru
        _
      // Predicated region
      $region21: #{transformer_forward.2} parent=11 // pred_check
        %p391 = pneg %p128
      $region22: #{transformer_forward.2} parent=11 // pred_check_branch
        %393 = sbr.rel (%p391) target = $region24
      $region23: #{transformer_forward.2} parent=11 // pred_region
        _
      $region24: #{transformer_forward.2} parent=11 // pred_fallthru
        _
      // Predicated region
      $region25: #{transformer_forward.2} parent=11 // pred_check
        %p394 = pneg %p149
      $region26: #{transformer_forward.2} parent=11 // pred_check_branch
        %396 = sbr.rel (%p394) target = $region28
      $region27: #{transformer_forward.2} parent=11 // pred_region
        _
      $region28: #{transformer_forward.2} parent=11 // pred_fallthru
        _
      // Predicated region
      $region29: #{transformer_forward.2} parent=11 // pred_check
        %p397 = pneg %p170
      $region30: #{transformer_forward.2} parent=11 // pred_check_branch
        %399 = sbr.rel (%p397) target = $region32
      $region31: #{transformer_forward.2} parent=11 // pred_region
        _
      $region32: #{transformer_forward.2} parent=11 // pred_fallthru
        _
      // Predicated region
      $region33: #{transformer_forward.2} parent=11 // pred_check
        %p400 = pneg %p191
      $region34: #{transformer_forward.2} parent=11 // pred_check_branch
        %402 = sbr.rel (%p400) target = $region36
      $region35: #{transformer_forward.2} parent=11 // pred_region
        _
      $region36: #{transformer_forward.2} parent=11 // pred_fallthru
        _
      // Predicated region
      $region37: #{transformer_forward.2} parent=11 // pred_check
        %p403 = pneg %p212
      $region38: #{transformer_forward.2} parent=11 // pred_check_branch
        %405 = sbr.rel (%p403) target = $region40
      $region39: #{transformer_forward.2} parent=11 // pred_region
        _
      $region40: #{transformer_forward.2} parent=11 // pred_fallthru
        _
      // Predicated region
      $region41: #{transformer_forward.2} parent=11 // pred_check
        %p406 = pneg %p233
      $region42: #{transformer_forward.2} parent=11 // pred_check_branch
        %408 = sbr.rel (%p406) target = $region44
      $region43: #{transformer_forward.2} parent=11 // pred_region
        _
      $region44: #{transformer_forward.2} parent=11 // pred_fallthru
        _
      // Predicated region
      $region45: #{transformer_forward.2} parent=11 // pred_check
        %p409 = pneg %p254
      $region46: #{transformer_forward.2} parent=11 // pred_check_branch
        %411 = sbr.rel (%p409) target = $region48
      $region47: #{transformer_forward.2} parent=11 // pred_region
        _
      $region48: #{transformer_forward.2} parent=11 // pred_fallthru
        _
      // Predicated region
      $region49: #{transformer_forward.2} parent=11 // pred_check
        %p412 = pneg %p275
      $region50: #{transformer_forward.2} parent=11 // pred_check_branch
        %414 = sbr.rel (%p412) target = $region52
      $region51: #{transformer_forward.2} parent=11 // pred_region
        _
      $region52: #{transformer_forward.2} parent=11 // pred_fallthru
        _
      // Predicated region
      $region53: #{transformer_forward.2} parent=11 // pred_check
        %p415 = pneg %p296
      $region54: #{transformer_forward.2} parent=11 // pred_check_branch
        %417 = sbr.rel (%p415) target = $region56
      $region55: #{transformer_forward.2} parent=11 // pred_region
        _
      $region56: #{transformer_forward.2} parent=11 // pred_fallthru
        _
      // Predicated region
      $region57: #{transformer_forward.2} parent=11 // pred_check
        %p418 = pneg %p317
      $region58: #{transformer_forward.2} parent=11 // pred_check_branch
        %420 = sbr.rel (%p418) target = $region60
      $region59: #{transformer_forward.2} parent=11 // pred_region
        _
      $region60: #{transformer_forward.2} parent=11 // pred_fallthru
        _
      // Predicated region
      $region61: #{transformer_forward.2} parent=11 // pred_check
        %p421 = pneg %p338
      $region62: #{transformer_forward.2} parent=11 // pred_check_branch
        %423 = sbr.rel (%p421) target = $region64
      $region63: #{transformer_forward.2} parent=11 // pred_region
        _
      $region64: #{transformer_forward.2} parent=11 // pred_fallthru
        _
    $region12: #{transformer_forward.2} parent=5 // pred_fallthru
      _
    %p424 = scmp.lt.s32.totalorder %s20, 2
    // Predicated region
    $region65: #{transformer_forward.2} parent=5 // pred_check
      %p425 = pneg %p424
    $region66: #{transformer_forward.2} parent=5 // pred_check_branch
      %427 = sbr.rel (%p425) target = $region68
    $region67: #{transformer_forward.2} parent=5 // pred_region
      // Predicated region
      $region69: #{transformer_forward.2} parent=67 // pred_check
        %p428 = pneg %p54
      $region70: #{transformer_forward.2} parent=67 // pred_check_branch
        %430 = sbr.rel (%p428) target = $region72
      $region71: #{transformer_forward.2} parent=67 // pred_region
        %p431 = scmp.lt.s32.totalorder %s27, 1
        %s432 = scalar_select %p431, %s27, 1
        %p433 = scmp.lt.s32.totalorder %s28, 0
        %s434 = scalar_select %p433, %s28, 0
        %s435 = sadd.s32 %s434, %s432
        %s436 = smul.addr %s435, 8
        %s437 = scalar_lea.vmem %s0, %s436
      $region72: #{transformer_forward.2} parent=67 // pred_fallthru
        _
    $region68: #{transformer_forward.2} parent=5 // pred_fallthru
      _
    %p438 = scmp.le.s32.totalorder 1, %s20
    %p439 = scmp.lt.s32.totalorder %s20, 3
    %p440 = pnand %p438, %p439
    %p441 = pneg %p440
    // Predicated region
    $region73: #{transformer_forward.2} parent=5 // pred_check
      _
    $region74: #{transformer_forward.2} parent=5 // pred_check_branch
      %443 = sbr.rel (%p440) target = $region76
    $region75: #{transformer_forward.2} parent=5 // pred_region
      %s444 = ssub.s32 %s20, 1
      %p445 = scmp.lt.s32.totalorder %s29, 1
      %s446 = scalar_select %p445, %s29, 1
      %p447 = scmp.lt.s32.totalorder %s30, 0
      %s448 = scalar_select %p447, %s30, 0
      %s449 = sadd.s32 %s448, %s446
      %s450 = smul.addr %s449, 8
      %s451 = scalar_lea.vmem %s0, %s450
      %p452 = pneg %p60
      %p453 = pneg %p57
      %p454 = scmp.lt.s32.totalorder %s30, 0
      %s455 = scalar_select %p454, %s30, 0
      %s456 = smul.addr %s455, 4
      %s457 = scalar_lea.vmem %s1, %s456
      %p458 = pneg %p86
      %p459 = pneg %p83
      %p460 = pneg %p107
      %p461 = pneg %p104
      %p462 = pneg %p128
      %p463 = pneg %p125
      %p464 = pneg %p149
      %p465 = pneg %p146
      %p466 = pneg %p170
      %p467 = pneg %p167
      %p468 = pneg %p191
      %p469 = pneg %p188
      %p470 = pneg %p212
      %p471 = pneg %p209
      %p472 = pneg %p233
      %p473 = pneg %p230
      %p474 = pneg %p254
      %p475 = pneg %p251
      %p476 = pneg %p275
      %p477 = pneg %p272
      %p478 = pneg %p296
      %p479 = pneg %p293
      %p480 = pneg %p317
      %p481 = pneg %p314
      %p482 = pneg %p338
      %p483 = pneg %p335
      %p484 = pneg %p366
      %p485 = pneg %p363
      %p486 = scmp.lt.s32.totalorder %s29, 1
      %s487 = scalar_select %p486, %s29, 1
      %p488 = scmp.lt.s32.totalorder %s30, 0
      %s489 = scalar_select %p488, %s30, 0
      %s490 = sadd.s32 %s489, %s487
      %s491 = smul.addr %s490, 8
      %s492 = scalar_lea.vmem %s14, %s491
      %p493 = scmp.lt.s32.totalorder %s29, 1
      %s494 = scalar_select %p493, %s29, 1
      %p495 = scmp.lt.s32.totalorder %s30, 0
      %s496 = scalar_select %p495, %s30, 0
      %s497 = sadd.s32 %s496, %s494
      %s498 = smul.addr %s497, 8
      %s499 = scalar_lea.vmem %s0, %s498
      %p500 = scmp.lt.s32.totalorder %s30, 0
      %s501 = scalar_select %p500, %s30, 0
      %s502 = smul.addr %s501, 4
      %s503 = scalar_lea.vmem %s1, %s502
      %p504 = scmp.lt.s32.totalorder %s29, 1
      %s505 = scalar_select %p504, %s29, 1
      %p506 = scmp.lt.s32.totalorder %s30, 0
      %s507 = scalar_select %p506, %s30, 0
      %s508 = sadd.s32 %s507, %s505
      %s509 = smul.addr %s508, 8
      %s510 = scalar_lea.vmem %s14, %s509
      %v512 = vld [vmem:[%s499] sm:$0xff]
      %v513 = vld [vmem:[%s2] sm:$0x1]
      %v514 = vld [vmem:[%s3] sm:$0x1]
      %vm515 = vcmask 261120
      %v516 = vsel %vm515, %v512, 0.0
      %517 = vadd.xlane.f32.xlu0 %v516
      %v518 = vpop.xlane.xlu0 %517
      %v519 = vrcp.pop 32.0
      %v520 = vmul.f32 %v518, %v519
      %v521 = vsub.f32 %v512, %v520
      %v522 = vmul.f32 %v521, %v521
      %v523 = vsel %vm515, %v522, 0.0
      %524 = vadd.xlane.f32.xlu0 %v523
      %v525 = vpop.xlane.xlu0 %524
      %v526 = vmul.f32 %v525, %v519
      %v527 = vadd.f32 %v526, 1e-05
      %v528 = vrsqrt.pop %v527
      %v529 = vmul.f32 %v521, %v528
      %v531 = vlaneseq
      %v532 = vshrl.u32 %v531, 7
      %v533 = vsub.s32 0, %v532
      %v534 = vrot.slane %v513, %v533
      %v536 = vmul.f32 %v529, %v534
      %v538 = vlaneseq
      %v539 = vshrl.u32 %v538, 7
      %v540 = vsub.s32 0, %v539
      %v541 = vrot.slane %v514, %v540
      %v543 = vadd.f32 %v536, %v541
      %v544 = vpack.c.bf16 %v543, %v543
      %v545 = vld [vmem:[%s4] sm:$0xf]
      %v546 = vld [vmem:[%s4 + $0x4] sm:$0xf]
      %v547 = vld [vmem:[%s4 + $0x8] sm:$0xf]
      %v548 = vld [vmem:[%s4 + $0xc] sm:$0xf]
      %v549 = vld [vmem:[%s5] sm:$0x1]
      %v551 = vlaneseq
      %v552 = vshrl.u32 %v551, 7
      %v553 = vsub.s32 0, %v552
      %v554 = vrot.slane %v549, %v553
      %v560 = vunpack.c.l.b16 %v545
      %v561 = vunpack.c.l.b16 %v546
      %v562 = vunpack.c.l.b16 %v547
      %v563 = vunpack.c.l.b16 %v548
      %v564 = vpack.c.b16 %v561, %v560
      %v565 = vpack.c.b16 %v563, %v562
      %v569 = vsel %vm515, %v544, 0
      %571 = vmatprep.subr.bf16.mxu0 0
      %572 = vmatpush1.bf16.msra.mxu0 %v564
      %573 = vmatprep.subr.bf16.mxu0 0
      %574 = vmatpush1.bf16.msra.mxu0 %v565
      %575 = vmatprep.subr.bf16.mxu0 0
      %576 = vmatpush1.bf16.msra.mxu0 0
      %577 = vmatprep.subr.bf16.mxu0 0
      %578 = vmatpush1.bf16.msra.mxu0 0
      %579 = vmatprep.subr.bf16.mxu0 0
      %580 = vmatpush1.bf16.msra.mxu0 0
      %581 = vmatprep.subr.bf16.mxu0 0
      %582 = vmatpush1.bf16.msra.mxu0 0
      %583 = vmatprep.subr.bf16.mxu0 0
      %584 = vmatpush1.bf16.msra.mxu0 0
      %585 = vmatprep.subr.bf16.mxu0 0
      %586 = vmatpush1.bf16.msra.mxu0 0
      %587 = vmatprep.subr.bf16.mxu0 0
      %588 = vmatpush1.bf16.msra.mxu0 0
      %589 = vmatprep.subr.bf16.mxu0 0
      %590 = vmatpush1.bf16.msra.mxu0 0
      %591 = vmatprep.subr.bf16.mxu0 0
      %592 = vmatpush1.bf16.msra.mxu0 0
      %593 = vmatprep.subr.bf16.mxu0 0
      %594 = vmatpush1.bf16.msra.mxu0 0
      %595 = vmatprep.subr.bf16.mxu0 0
      %596 = vmatpush1.bf16.msra.mxu0 0
      %597 = vmatprep.subr.bf16.mxu0 0
      %598 = vmatpush1.bf16.msra.mxu0 0
      %599 = vmatprep.subr.bf16.mxu0 0
      %600 = vmatpush1.bf16.msra.mxu0 0
      %601 = vmatprep.subr.bf16.mxu0 0
      %602 = vmatpush1.bf16.msra.mxu0 0
      %603 = vmatprep.mubr.bf16.mxu0 0
      %604 = vmatmul.mubr.bf16.gmra.mrb[0].mxu0 %v569
      %v605 = vpop.f32.mrb[0].mxu0
      %v606 = vadd.f32 %v554, %v605
      %v607 = vpop.f32.mrb[0].mxu0
      %v608 = vpop.f32.mrb[0].mxu0
      %v609 = vpop.f32.mrb[0].mxu0
      %610 = vdwg.mxu0
      %v611 = vld [vmem:[%s503] sm:$0xf]
      %v612 = vpack.c.bf16 %v606, %v606
      %614 = vrot.lane.b32.xlu0 %v612, 120
      %v615 = vpop.permute.xlu0 %614
      %616 = vrot.lane.b32.xlu0 %v612, 112
      %v617 = vpop.permute.xlu0 %616
      %618 = vrot.lane.b32.xlu0 %v612, 104
      %v619 = vpop.permute.xlu0 %618
      %v621 = vunpack.c.l.s4 1983009808
      %v622 = vunpack.c.0.s8 %v621
      %v623 = vlaneseq
      %v624 = vshrl.u32 %v623, 7
      %v625 = vsub.s32 %v622, %v624
      %v626 = vrot.slane %v612, %v625
      %v629 = vunpack.c.l.s4 1983009808
      %v630 = vunpack.c.0.s8 %v629
      %v631 = vlaneseq
      %v632 = vshrl.u32 %v631, 7
      %v633 = vsub.s32 %v630, %v632
      %v634 = vrot.slane %v617, %v633
      %v635 = vcombine.low %v626, %v634
      %v636 = vcombine.high %v626, %v634
      %v638 = vunpack.c.l.s4 1934713408
      %v639 = vunpack.c.0.s8 %v638
      %v640 = vlaneseq
      %v641 = vshrl.u32 %v640, 7
      %v642 = vsub.s32 %v639, %v641
      %v643 = vrot.slane %v635, %v642
      %v645 = vunpack.c.l.s4 1934713408
      %v646 = vunpack.c.0.s8 %v645
      %v647 = vlaneseq
      %v648 = vshrl.u32 %v647, 7
      %v649 = vsub.s32 %v646, %v648
      %v650 = vrot.slane %v636, %v649
      %v651 = vcombine.high %v643, 0
      %v652 = vcombine.high %v650, 0
      %v655 = vunpack.c.l.s4 1983009808
      %v656 = vunpack.c.0.s8 %v655
      %v657 = vlaneseq
      %v658 = vshrl.u32 %v657, 7
      %v659 = vsub.s32 %v656, %v658
      %v660 = vrot.slane %v615, %v659
      %v663 = vunpack.c.l.s4 1983009808
      %v664 = vunpack.c.0.s8 %v663
      %v665 = vlaneseq
      %v666 = vshrl.u32 %v665, 7
      %v667 = vsub.s32 %v664, %v666
      %v668 = vrot.slane %v619, %v667
      %v669 = vcombine.low %v660, %v668
      %v670 = vcombine.high %v660, %v668
      %v672 = vunpack.c.l.s4 1934713408
      %v673 = vunpack.c.0.s8 %v672
      %v674 = vlaneseq
      %v675 = vshrl.u32 %v674, 7
      %v676 = vsub.s32 %v673, %v675
      %v677 = vrot.slane %v669, %v676
      %v679 = vunpack.c.l.s4 1934713408
      %v680 = vunpack.c.0.s8 %v679
      %v681 = vlaneseq
      %v682 = vshrl.u32 %v681, 7
      %v683 = vsub.s32 %v680, %v682
      %v684 = vrot.slane %v670, %v683
      %v685 = vcombine.high %v677, 0
      %v686 = vcombine.high %v684, 0
      %v689 = vpack.i.b16 %v677, %v643
      %v691 = vshrl.u32 %v643, 16
      %v692 = vshrl.u32 %v677, 16
      %v693 = vpack.i.b16 %v692, %v691
      %v697 = vpack.i.b16 %v685, %v651
      %v699 = vshrl.u32 %v651, 16
      %v700 = vshrl.u32 %v685, 16
      %v701 = vpack.i.b16 %v700, %v699
      %v705 = vpack.i.b16 %v684, %v650
      %v707 = vshrl.u32 %v650, 16
      %v708 = vshrl.u32 %v684, 16
      %v709 = vpack.i.b16 %v708, %v707
      %v713 = vpack.i.b16 %v686, %v652
      %v715 = vshrl.u32 %v652, 16
      %v716 = vshrl.u32 %v686, 16
      %v717 = vpack.i.b16 %v716, %v715
      %v719 = vcombine.low %v689, %v705
      %v721 = vunpack.c.l.s4 1983009808
      %v722 = vunpack.c.0.s8 %v721
      %v723 = vlaneseq
      %v724 = vshrl.u32 %v723, 7
      %v725 = vsub.s32 %v722, %v724
      %v726 = vrot.slane %v719, %v725
      %v727 = vcombine.low %v697, %v713
      %v729 = vunpack.c.l.s4 1983009808
      %v730 = vunpack.c.0.s8 %v729
      %v731 = vlaneseq
      %v732 = vshrl.u32 %v731, 7
      %v733 = vsub.s32 %v730, %v732
      %v734 = vrot.slane %v727, %v733
      %v735 = vcombine.low %v726, %v734
      %v737 = vunpack.c.l.s4 1934713408
      %v738 = vunpack.c.0.s8 %v737
      %v739 = vlaneseq
      %v740 = vshrl.u32 %v739, 7
      %v741 = vsub.s32 %v738, %v740
      %v742 = vrot.slane %v735, %v741
      %v743 = vcombine.high %v742, 0
      %v744 = vcombine.low %v693, %v709
      %v746 = vunpack.c.l.s4 1983009808
      %v747 = vunpack.c.0.s8 %v746
      %v748 = vlaneseq
      %v749 = vshrl.u32 %v748, 7
      %v750 = vsub.s32 %v747, %v749
      %v751 = vrot.slane %v744, %v750
      %v752 = vcombine.low %v701, %v717
      %v754 = vunpack.c.l.s4 1983009808
      %v755 = vunpack.c.0.s8 %v754
      %v756 = vlaneseq
      %v757 = vshrl.u32 %v756, 7
      %v758 = vsub.s32 %v755, %v757
      %v759 = vrot.slane %v752, %v758
      %v760 = vcombine.low %v751, %v759
      %v762 = vunpack.c.l.s4 1934713408
      %v763 = vunpack.c.0.s8 %v762
      %v764 = vlaneseq
      %v765 = vshrl.u32 %v764, 7
      %v766 = vsub.s32 %v763, %v765
      %v767 = vrot.slane %v760, %v766
      %v768 = vcombine.high %v767, 0
      %v771 = vpack.i.b16 %v767, %v742
      %v772 = vshrl.u32 %v742, 16
      %v773 = vshrl.u32 %v767, 16
      %v774 = vpack.i.b16 %v773, %v772
      %v777 = vpack.i.b16 %v768, %v743
      %v778 = vshrl.u32 %v743, 16
      %v779 = vshrl.u32 %v768, 16
      %v780 = vpack.i.b16 %v779, %v778
      %781 = vrot.lane.b32.xlu0 %v612, 96
      %v782 = vpop.permute.xlu0 %781
      %783 = vrot.lane.b32.xlu0 %v615, 96
      %v784 = vpop.permute.xlu0 %783
      %785 = vrot.lane.b32.xlu0 %v617, 96
      %v786 = vpop.permute.xlu0 %785
      %787 = vrot.lane.b32.xlu0 %v619, 96
      %v788 = vpop.permute.xlu0 %787
      %v791 = vunpack.c.l.s4 1983009808
      %v792 = vunpack.c.0.s8 %v791
      %v793 = vlaneseq
      %v794 = vshrl.u32 %v793, 7
      %v795 = vsub.s32 %v792, %v794
      %v796 = vrot.slane %v782, %v795
      %v799 = vunpack.c.l.s4 1983009808
      %v800 = vunpack.c.0.s8 %v799
      %v801 = vlaneseq
      %v802 = vshrl.u32 %v801, 7
      %v803 = vsub.s32 %v800, %v802
      %v804 = vrot.slane %v786, %v803
      %v805 = vcombine.low %v796, %v804
      %v806 = vcombine.high %v796, %v804
      %v808 = vunpack.c.l.s4 1934713408
      %v809 = vunpack.c.0.s8 %v808
      %v810 = vlaneseq
      %v811 = vshrl.u32 %v810, 7
      %v812 = vsub.s32 %v809, %v811
      %v813 = vrot.slane %v805, %v812
      %v815 = vunpack.c.l.s4 1934713408
      %v816 = vunpack.c.0.s8 %v815
      %v817 = vlaneseq
      %v818 = vshrl.u32 %v817, 7
      %v819 = vsub.s32 %v816, %v818
      %v820 = vrot.slane %v806, %v819
      %v821 = vcombine.high %v813, 0
      %v822 = vcombine.high %v820, 0
      %v825 = vunpack.c.l.s4 1983009808
      %v826 = vunpack.c.0.s8 %v825
      %v827 = vlaneseq
      %v828 = vshrl.u32 %v827, 7
      %v829 = vsub.s32 %v826, %v828
      %v830 = vrot.slane %v784, %v829
      %v833 = vunpack.c.l.s4 1983009808
      %v834 = vunpack.c.0.s8 %v833
      %v835 = vlaneseq
      %v836 = vshrl.u32 %v835, 7
      %v837 = vsub.s32 %v834, %v836
      %v838 = vrot.slane %v788, %v837
      %v839 = vcombine.low %v830, %v838
      %v840 = vcombine.high %v830, %v838
      %v842 = vunpack.c.l.s4 1934713408
      %v843 = vunpack.c.0.s8 %v842
      %v844 = vlaneseq
      %v845 = vshrl.u32 %v844, 7
      %v846 = vsub.s32 %v843, %v845
      %v847 = vrot.slane %v839, %v846
      %v849 = vunpack.c.l.s4 1934713408
      %v850 = vunpack.c.0.s8 %v849
      %v851 = vlaneseq
      %v852 = vshrl.u32 %v851, 7
      %v853 = vsub.s32 %v850, %v852
      %v854 = vrot.slane %v840, %v853
      %v855 = vcombine.high %v847, 0
      %v856 = vcombine.high %v854, 0
      %v859 = vpack.i.b16 %v847, %v813
      %v861 = vshrl.u32 %v813, 16
      %v862 = vshrl.u32 %v847, 16
      %v863 = vpack.i.b16 %v862, %v861
      %v867 = vpack.i.b16 %v855, %v821
      %v869 = vshrl.u32 %v821, 16
      %v870 = vshrl.u32 %v855, 16
      %v871 = vpack.i.b16 %v870, %v869
      %v875 = vpack.i.b16 %v854, %v820
      %v877 = vshrl.u32 %v820, 16
      %v878 = vshrl.u32 %v854, 16
      %v879 = vpack.i.b16 %v878, %v877
      %v883 = vpack.i.b16 %v856, %v822
      %v885 = vshrl.u32 %v822, 16
      %v886 = vshrl.u32 %v856, 16
      %v887 = vpack.i.b16 %v886, %v885
      %v889 = vcombine.low %v859, %v875
      %v891 = vunpack.c.l.s4 1983009808
      %v892 = vunpack.c.0.s8 %v891
      %v893 = vlaneseq
      %v894 = vshrl.u32 %v893, 7
      %v895 = vsub.s32 %v892, %v894
      %v896 = vrot.slane %v889, %v895
      %v897 = vcombine.low %v867, %v883
      %v899 = vunpack.c.l.s4 1983009808
      %v900 = vunpack.c.0.s8 %v899
      %v901 = vlaneseq
      %v902 = vshrl.u32 %v901, 7
      %v903 = vsub.s32 %v900, %v902
      %v904 = vrot.slane %v897, %v903
      %v905 = vcombine.low %v896, %v904
      %v907 = vunpack.c.l.s4 1934713408
      %v908 = vunpack.c.0.s8 %v907
      %v909 = vlaneseq
      %v910 = vshrl.u32 %v909, 7
      %v911 = vsub.s32 %v908, %v910
      %v912 = vrot.slane %v905, %v911
      %v913 = vcombine.high %v912, 0
      %v914 = vcombine.low %v863, %v879
      %v916 = vunpack.c.l.s4 1983009808
      %v917 = vunpack.c.0.s8 %v916
      %v918 = vlaneseq
      %v919 = vshrl.u32 %v918, 7
      %v920 = vsub.s32 %v917, %v919
      %v921 = vrot.slane %v914, %v920
      %v922 = vcombine.low %v871, %v887
      %v924 = vunpack.c.l.s4 1983009808
      %v925 = vunpack.c.0.s8 %v924
      %v926 = vlaneseq
      %v927 = vshrl.u32 %v926, 7
      %v928 = vsub.s32 %v925, %v927
      %v929 = vrot.slane %v922, %v928
      %v930 = vcombine.low %v921, %v929
      %v932 = vunpack.c.l.s4 1934713408
      %v933 = vunpack.c.0.s8 %v932
      %v934 = vlaneseq
      %v935 = vshrl.u32 %v934, 7
      %v936 = vsub.s32 %v933, %v935
      %v937 = vrot.slane %v930, %v936
      %v938 = vcombine.high %v937, 0
      %v941 = vpack.i.b16 %v937, %v912
      %v942 = vshrl.u32 %v912, 16
      %v943 = vshrl.u32 %v937, 16
      %v944 = vpack.i.b16 %v943, %v942
      %v947 = vpack.i.b16 %v938, %v913
      %v948 = vshrl.u32 %v913, 16
      %v949 = vshrl.u32 %v938, 16
      %v950 = vpack.i.b16 %v949, %v948
      %951 = vrot.lane.b32.xlu0 %v612, 64
      %v952 = vpop.permute.xlu0 %951
      %953 = vrot.lane.b32.xlu0 %v615, 64
      %v954 = vpop.permute.xlu0 %953
      %955 = vrot.lane.b32.xlu0 %v617, 64
      %v956 = vpop.permute.xlu0 %955
      %957 = vrot.lane.b32.xlu0 %v619, 64
      %v958 = vpop.permute.xlu0 %957
      %v961 = vunpack.c.l.s4 1983009808
      %v962 = vunpack.c.0.s8 %v961
      %v963 = vlaneseq
      %v964 = vshrl.u32 %v963, 7
      %v965 = vsub.s32 %v962, %v964
      %v966 = vrot.slane %v952, %v965
      %v969 = vunpack.c.l.s4 1983009808
      %v970 = vunpack.c.0.s8 %v969
      %v971 = vlaneseq
      %v972 = vshrl.u32 %v971, 7
      %v973 = vsub.s32 %v970, %v972
      %v974 = vrot.slane %v956, %v973
      %v975 = vcombine.low %v966, %v974
      %v976 = vcombine.high %v966, %v974
      %v978 = vunpack.c.l.s4 1934713408
      %v979 = vunpack.c.0.s8 %v978
      %v980 = vlaneseq
      %v981 = vshrl.u32 %v980, 7
      %v982 = vsub.s32 %v979, %v981
      %v983 = vrot.slane %v975, %v982
      %v985 = vunpack.c.l.s4 1934713408
      %v986 = vunpack.c.0.s8 %v985
      %v987 = vlaneseq
      %v988 = vshrl.u32 %v987, 7
      %v989 = vsub.s32 %v986, %v988
      %v990 = vrot.slane %v976, %v989
      %v991 = vcombine.high %v983, 0
      %v992 = vcombine.high %v990, 0
      %v995 = vunpack.c.l.s4 1983009808
      %v996 = vunpack.c.0.s8 %v995
      %v997 = vlaneseq
      %v998 = vshrl.u32 %v997, 7
      %v999 = vsub.s32 %v996, %v998
      %v1000 = vrot.slane %v954, %v999
      %v1003 = vunpack.c.l.s4 1983009808
      %v1004 = vunpack.c.0.s8 %v1003
      %v1005 = vlaneseq
      %v1006 = vshrl.u32 %v1005, 7
      %v1007 = vsub.s32 %v1004, %v1006
      %v1008 = vrot.slane %v958, %v1007
      %v1009 = vcombine.low %v1000, %v1008
      %v1010 = vcombine.high %v1000, %v1008
      %v1012 = vunpack.c.l.s4 1934713408
      %v1013 = vunpack.c.0.s8 %v1012
      %v1014 = vlaneseq
      %v1015 = vshrl.u32 %v1014, 7
      %v1016 = vsub.s32 %v1013, %v1015
      %v1017 = vrot.slane %v1009, %v1016
      %v1019 = vunpack.c.l.s4 1934713408
      %v1020 = vunpack.c.0.s8 %v1019
      %v1021 = vlaneseq
      %v1022 = vshrl.u32 %v1021, 7
      %v1023 = vsub.s32 %v1020, %v1022
      %v1024 = vrot.slane %v1010, %v1023
      %v1025 = vcombine.high %v1017, 0
      %v1026 = vcombine.high %v1024, 0
      %v1029 = vpack.i.b16 %v1017, %v983
      %v1031 = vshrl.u32 %v983, 16
      %v1032 = vshrl.u32 %v1017, 16
      %v1033 = vpack.i.b16 %v1032, %v1031
      %v1037 = vpack.i.b16 %v1025, %v991
      %v1039 = vshrl.u32 %v991, 16
      %v1040 = vshrl.u32 %v1025, 16
      %v1041 = vpack.i.b16 %v1040, %v1039
      %v1045 = vpack.i.b16 %v1024, %v990
      %v1047 = vshrl.u32 %v990, 16
      %v1048 = vshrl.u32 %v1024, 16
      %v1049 = vpack.i.b16 %v1048, %v1047
      %v1053 = vpack.i.b16 %v1026, %v992
      %v1055 = vshrl.u32 %v992, 16
      %v1056 = vshrl.u32 %v1026, 16
      %v1057 = vpack.i.b16 %v1056, %v1055
      %v1059 = vcombine.low %v1029, %v1045
      %v1061 = vunpack.c.l.s4 1983009808
      %v1062 = vunpack.c.0.s8 %v1061
      %v1063 = vlaneseq
      %v1064 = vshrl.u32 %v1063, 7
      %v1065 = vsub.s32 %v1062, %v1064
      %v1066 = vrot.slane %v1059, %v1065
      %v1067 = vcombine.low %v1037, %v1053
      %v1069 = vunpack.c.l.s4 1983009808
      %v1070 = vunpack.c.0.s8 %v1069
      %v1071 = vlaneseq
      %v1072 = vshrl.u32 %v1071, 7
      %v1073 = vsub.s32 %v1070, %v1072
      %v1074 = vrot.slane %v1067, %v1073
      %v1075 = vcombine.low %v1066, %v1074
      %v1077 = vunpack.c.l.s4 1934713408
      %v1078 = vunpack.c.0.s8 %v1077
      %v1079 = vlaneseq
      %v1080 = vshrl.u32 %v1079, 7
      %v1081 = vsub.s32 %v1078, %v1080
      %v1082 = vrot.slane %v1075, %v1081
      %v1083 = vcombine.high %v1082, 0
      %v1084 = vcombine.low %v1033, %v1049
      %v1086 = vunpack.c.l.s4 1983009808
      %v1087 = vunpack.c.0.s8 %v1086
      %v1088 = vlaneseq
      %v1089 = vshrl.u32 %v1088, 7
      %v1090 = vsub.s32 %v1087, %v1089
      %v1091 = vrot.slane %v1084, %v1090
      %v1092 = vcombine.low %v1041, %v1057
      %v1094 = vunpack.c.l.s4 1983009808
      %v1095 = vunpack.c.0.s8 %v1094
      %v1096 = vlaneseq
      %v1097 = vshrl.u32 %v1096, 7
      %v1098 = vsub.s32 %v1095, %v1097
      %v1099 = vrot.slane %v1092, %v1098
      %v1100 = vcombine.low %v1091, %v1099
      %v1102 = vunpack.c.l.s4 1934713408
      %v1103 = vunpack.c.0.s8 %v1102
      %v1104 = vlaneseq
      %v1105 = vshrl.u32 %v1104, 7
      %v1106 = vsub.s32 %v1103, %v1105
      %v1107 = vrot.slane %v1100, %v1106
      %v1108 = vcombine.high %v1107, 0
      %v1111 = vpack.i.b16 %v1107, %v1082
      %v1112 = vshrl.u32 %v1082, 16
      %v1113 = vshrl.u32 %v1107, 16
      %v1114 = vpack.i.b16 %v1113, %v1112
      %v1117 = vpack.i.b16 %v1108, %v1083
      %v1118 = vshrl.u32 %v1083, 16
      %v1119 = vshrl.u32 %v1108, 16
      %v1120 = vpack.i.b16 %v1119, %v1118
      %v1121 = vunpack.c.l.bf16 %v611
      %vm1122 = vcmask 64512
      %v1124 = vsel %vm1122, %v771, 0
      %v1127 = vsel %vm1122, %v941, 0
      %1129 = vmatprep.subr.bf16.mxu0 0
      %1130 = vmatpush1.bf16.xpose.msra.mxu0 %v1127
      %1131 = vmatprep.subr.bf16.mxu0 0
      %1132 = vmatpush1.bf16.xpose.msra.mxu0 0
      %1133 = vmatprep.subr.bf16.mxu0 0
      %1134 = vmatpush1.bf16.xpose.msra.mxu0 0
      %1135 = vmatprep.subr.bf16.mxu0 0
      %1136 = vmatpush1.bf16.xpose.msra.mxu0 0
      %1137 = vmatprep.subr.bf16.mxu0 0
      %1138 = vmatpush1.bf16.xpose.msra.mxu0 0
      %1139 = vmatprep.subr.bf16.mxu0 0
      %1140 = vmatpush1.bf16.xpose.msra.mxu0 0
      %1141 = vmatprep.subr.bf16.mxu0 0
      %1142 = vmatpush1.bf16.xpose.msra.mxu0 0
      %1143 = vmatprep.subr.bf16.mxu0 0
      %1144 = vmatpush1.bf16.xpose.msra.mxu0 0
      %1145 = vmatprep.subr.bf16.mxu0 0
      %1146 = vmatpush1.bf16.xpose.msra.mxu0 0
      %1147 = vmatprep.subr.bf16.mxu0 0
      %1148 = vmatpush1.bf16.xpose.msra.mxu0 0
      %1149 = vmatprep.subr.bf16.mxu0 0
      %1150 = vmatpush1.bf16.xpose.msra.mxu0 0
      %1151 = vmatprep.subr.bf16.mxu0 0
      %1152 = vmatpush1.bf16.xpose.msra.mxu0 0
      %1153 = vmatprep.subr.bf16.mxu0 0
      %1154 = vmatpush1.bf16.xpose.msra.mxu0 0
      %1155 = vmatprep.subr.bf16.mxu0 0
      %1156 = vmatpush1.bf16.xpose.msra.mxu0 0
      %1157 = vmatprep.subr.bf16.mxu0 0
      %1158 = vmatpush1.bf16.xpose.msra.mxu0 0
      %1159 = vmatprep.subr.bf16.mxu0 0
      %1160 = vmatpush1.bf16.xpose.msra.mxu0 0
      %1161 = vmatprep.mubr.bf16.mxu0 0
      %1162 = vmatmul.mubr.bf16.gmra.mrb[0].mxu0 %v1124
      %v1163 = vpop.f32.mrb[0].mxu0
      %v1164 = vadd.f32 %v1121, %v1163
      %v1165 = vpop.f32.mrb[0].mxu0
      %v1166 = vpop.f32.mrb[0].mxu0
      %v1167 = vpop.f32.mrb[0].mxu0
      %1168 = vdwg.mxu0
      %v1170 = vsel %vm1122, %v774, 0
      %v1173 = vsel %vm1122, %v944, 0
      %1175 = vmatprep.subr.bf16.mxu0 0
      %1176 = vmatpush1.bf16.xpose.msra.mxu0 %v1173
      %1177 = vmatprep.subr.bf16.mxu0 0
      %1178 = vmatpush1.bf16.xpose.msra.mxu0 0
      %1179 = vmatprep.subr.bf16.mxu0 0
      %1180 = vmatpush1.bf16.xpose.msra.mxu0 0
      %1181 = vmatprep.subr.bf16.mxu0 0
      %1182 = vmatpush1.bf16.xpose.msra.mxu0 0
      %1183 = vmatprep.subr.bf16.mxu0 0
      %1184 = vmatpush1.bf16.xpose.msra.mxu0 0
      %1185 = vmatprep.subr.bf16.mxu0 0
      %1186 = vmatpush1.bf16.xpose.msra.mxu0 0
      %1187 = vmatprep.subr.bf16.mxu0 0
      %1188 = vmatpush1.bf16.xpose.msra.mxu0 0
      %1189 = vmatprep.subr.bf16.mxu0 0
      %1190 = vmatpush1.bf16.xpose.msra.mxu0 0
      %1191 = vmatprep.subr.bf16.mxu0 0
      %1192 = vmatpush1.bf16.xpose.msra.mxu0 0
      %1193 = vmatprep.subr.bf16.mxu0 0
      %1194 = vmatpush1.bf16.xpose.msra.mxu0 0
      %1195 = vmatprep.subr.bf16.mxu0 0
      %1196 = vmatpush1.bf16.xpose.msra.mxu0 0
      %1197 = vmatprep.subr.bf16.mxu0 0
      %1198 = vmatpush1.bf16.xpose.msra.mxu0 0
      %1199 = vmatprep.subr.bf16.mxu0 0
      %1200 = vmatpush1.bf16.xpose.msra.mxu0 0
      %1201 = vmatprep.subr.bf16.mxu0 0
      %1202 = vmatpush1.bf16.xpose.msra.mxu0 0
      %1203 = vmatprep.subr.bf16.mxu0 0
      %1204 = vmatpush1.bf16.xpose.msra.mxu0 0
      %1205 = vmatprep.subr.bf16.mxu0 0
      %1206 = vmatpush1.bf16.xpose.msra.mxu0 0
      %1207 = vmatprep.mubr.bf16.mxu0 0
      %1208 = vmatmul.mubr.bf16.gmra.mrb[0].mxu0 %v1170
      %v1209 = vpop.f32.mrb[0].mxu0
      %v1210 = vadd.f32 %v1121, %v1209
      %v1211 = vpop.f32.mrb[0].mxu0
      %v1212 = vpop.f32.mrb[0].mxu0
      %v1213 = vpop.f32.mrb[0].mxu0
      %1214 = vdwg.mxu0
      %v1216 = vsel %vm1122, %v777, 0
      %v1219 = vsel %vm1122, %v947, 0
      %1221 = vmatprep.subr.bf16.mxu0 0
      %1222 = vmatpush1.bf16.xpose.msra.mxu0 %v1219
      %1223 = vmatprep.subr.bf16.mxu0 0
      %1224 = vmatpush1.bf16.xpose.msra.mxu0 0
      %1225 = vmatprep.subr.bf16.mxu0 0
      %1226 = vmatpush1.bf16.xpose.msra.mxu0 0
      %1227 = vmatprep.subr.bf16.mxu0 0
      %1228 = vmatpush1.bf16.xpose.msra.mxu0 0
      %1229 = vmatprep.subr.bf16.mxu0 0
      %1230 = vmatpush1.bf16.xpose.msra.mxu0 0
      %1231 = vmatprep.subr.bf16.mxu0 0
      %1232 = vmatpush1.bf16.xpose.msra.mxu0 0
      %1233 = vmatprep.subr.bf16.mxu0 0
      %1234 = vmatpush1.bf16.xpose.msra.mxu0 0
      %1235 = vmatprep.subr.bf16.mxu0 0
      %1236 = vmatpush1.bf16.xpose.msra.mxu0 0
      %1237 = vmatprep.subr.bf16.mxu0 0
      %1238 = vmatpush1.bf16.xpose.msra.mxu0 0
      %1239 = vmatprep.subr.bf16.mxu0 0
      %1240 = vmatpush1.bf16.xpose.msra.mxu0 0
      %1241 = vmatprep.subr.bf16.mxu0 0
      %1242 = vmatpush1.bf16.xpose.msra.mxu0 0
      %1243 = vmatprep.subr.bf16.mxu0 0
      %1244 = vmatpush1.bf16.xpose.msra.mxu0 0
      %1245 = vmatprep.subr.bf16.mxu0 0
      %1246 = vmatpush1.bf16.xpose.msra.mxu0 0
      %1247 = vmatprep.subr.bf16.mxu0 0
      %1248 = vmatpush1.bf16.xpose.msra.mxu0 0
      %1249 = vmatprep.subr.bf16.mxu0 0
      %1250 = vmatpush1.bf16.xpose.msra.mxu0 0
      %1251 = vmatprep.subr.bf16.mxu0 0
      %1252 = vmatpush1.bf16.xpose.msra.mxu0 0
      %1253 = vmatprep.mubr.bf16.mxu0 0
      %1254 = vmatmul.mubr.bf16.gmra.mrb[0].mxu0 %v1216
      %v1255 = vpop.f32.mrb[0].mxu0
      %v1256 = vadd.f32 %v1121, %v1255
      %v1257 = vpop.f32.mrb[0].mxu0
      %v1258 = vpop.f32.mrb[0].mxu0
      %v1259 = vpop.f32.mrb[0].mxu0
      %1260 = vdwg.mxu0
      %v1262 = vsel %vm1122, %v780, 0
      %v1265 = vsel %vm1122, %v950, 0
      %1267 = vmatprep.subr.bf16.mxu0 0
      %1268 = vmatpush1.bf16.xpose.msra.mxu0 %v1265
      %1269 = vmatprep.subr.bf16.mxu0 0
      %1270 = vmatpush1.bf16.xpose.msra.mxu0 0
      %1271 = vmatprep.subr.bf16.mxu0 0
      %1272 = vmatpush1.bf16.xpose.msra.mxu0 0
      %1273 = vmatprep.subr.bf16.mxu0 0
      %1274 = vmatpush1.bf16.xpose.msra.mxu0 0
      %1275 = vmatprep.subr.bf16.mxu0 0
      %1276 = vmatpush1.bf16.xpose.msra.mxu0 0
      %1277 = vmatprep.subr.bf16.mxu0 0
      %1278 = vmatpush1.bf16.xpose.msra.mxu0 0
      %1279 = vmatprep.subr.bf16.mxu0 0
      %1280 = vmatpush1.bf16.xpose.msra.mxu0 0
      %1281 = vmatprep.subr.bf16.mxu0 0
      %1282 = vmatpush1.bf16.xpose.msra.mxu0 0
      %1283 = vmatprep.subr.bf16.mxu0 0
      %1284 = vmatpush1.bf16.xpose.msra.mxu0 0
      %1285 = vmatprep.subr.bf16.mxu0 0
      %1286 = vmatpush1.bf16.xpose.msra.mxu0 0
      %1287 = vmatprep.subr.bf16.mxu0 0
      %1288 = vmatpush1.bf16.xpose.msra.mxu0 0
      %1289 = vmatprep.subr.bf16.mxu0 0
      %1290 = vmatpush1.bf16.xpose.msra.mxu0 0
      %1291 = vmatprep.subr.bf16.mxu0 0
      %1292 = vmatpush1.bf16.xpose.msra.mxu0 0
      %1293 = vmatprep.subr.bf16.mxu0 0
      %1294 = vmatpush1.bf16.xpose.msra.mxu0 0
      %1295 = vmatprep.subr.bf16.mxu0 0
      %1296 = vmatpush1.bf16.xpose.msra.mxu0 0
      %1297 = vmatprep.subr.bf16.mxu0 0
      %1298 = vmatpush1.bf16.xpose.msra.mxu0 0
      %1299 = vmatprep.mubr.bf16.mxu0 0
      %1300 = vmatmul.mubr.bf16.gmra.mrb[0].mxu0 %v1262
      %v1301 = vpop.f32.mrb[0].mxu0
      %v1302 = vadd.f32 %v1121, %v1301
      %v1303 = vpop.f32.mrb[0].mxu0
      %v1304 = vpop.f32.mrb[0].mxu0
      %v1305 = vpop.f32.mrb[0].mxu0
      %1306 = vdwg.mxu0
      %v1307 = vsel %vm1122, %v1164, -inf
      %1308 = vmax.xlane.f32.xlu0 %v1307
      %v1309 = vpop.xlane.xlu0 %1308
      %v1310 = vsel %vm1122, %v1210, -inf
      %1311 = vmax.xlane.f32.xlu0 %v1310
      %v1312 = vpop.xlane.xlu0 %1311
      %v1313 = vsel %vm1122, %v1256, -inf
      %1314 = vmax.xlane.f32.xlu0 %v1313
      %v1315 = vpop.xlane.xlu0 %1314
      %v1316 = vsel %vm1122, %v1302, -inf
      %1317 = vmax.xlane.f32.xlu0 %v1316
      %v1318 = vpop.xlane.xlu0 %1317
      %v1319 = vsub.f32 %v1164, %v1309
      %v1320 = vsub.f32 %v1210, %v1312
      %v1321 = vsub.f32 %v1256, %v1315
      %v1322 = vsub.f32 %v1302, %v1318
      %v1323 = vmul.f32 %v1319, 1.442695
      %v1324 = vpow.pop %v1323
      %v1325 = vmul.f32 %v1320, 1.442695
      %v1326 = vpow.pop %v1325
      %v1327 = vmul.f32 %v1321, 1.442695
      %v1328 = vpow.pop %v1327
      %v1329 = vmul.f32 %v1322, 1.442695
      %v1330 = vpow.pop %v1329
      %v1331 = vsel %vm1122, %v1324, 0.0
      %1332 = vadd.xlane.f32.xlu0 %v1331
      %v1333 = vpop.xlane.xlu0 %1332
      %v1334 = vsel %vm1122, %v1326, 0.0
      %1335 = vadd.xlane.f32.xlu0 %v1334
      %v1336 = vpop.xlane.xlu0 %1335
      %v1337 = vsel %vm1122, %v1328, 0.0
      %1338 = vadd.xlane.f32.xlu0 %v1337
      %v1339 = vpop.xlane.xlu0 %1338
      %v1340 = vsel %vm1122, %v1330, 0.0
      %1341 = vadd.xlane.f32.xlu0 %v1340
      %v1342 = vpop.xlane.xlu0 %1341
      %v1343 = vrcp.pop %v1333
      %v1344 = vrcp.pop %v1336
      %v1345 = vrcp.pop %v1339
      %v1346 = vrcp.pop %v1342
      %v1347 = vmul.f32 %v1324, %v1343
      %v1348 = vmul.f32 %v1326, %v1344
      %v1349 = vmul.f32 %v1328, %v1345
      %v1350 = vmul.f32 %v1330, %v1346
      %v1351 = vpack.c.bf16 %v1347, %v1347
      %v1352 = vpack.c.bf16 %v1348, %v1348
      %v1353 = vpack.c.bf16 %v1349, %v1349
      %v1354 = vpack.c.bf16 %v1350, %v1350
      %v1356 = vsel %vm1122, %v1351, 0
      %vm1358 = vcmask 1043456
      %v1360 = vsel %vm1358, %v1111, 0
      %1362 = vmatprep.subr.bf16.mxu0 0
      %1363 = vmatpush1.bf16.msra.mxu0 %v1360
      %1364 = vmatprep.subr.bf16.mxu0 0
      %1365 = vmatpush1.bf16.msra.mxu0 0
      %1366 = vmatprep.subr.bf16.mxu0 0
      %1367 = vmatpush1.bf16.msra.mxu0 0
      %1368 = vmatprep.subr.bf16.mxu0 0
      %1369 = vmatpush1.bf16.msra.mxu0 0
      %1370 = vmatprep.subr.bf16.mxu0 0
      %1371 = vmatpush1.bf16.msra.mxu0 0
      %1372 = vmatprep.subr.bf16.mxu0 0
      %1373 = vmatpush1.bf16.msra.mxu0 0
      %1374 = vmatprep.subr.bf16.mxu0 0
      %1375 = vmatpush1.bf16.msra.mxu0 0
      %1376 = vmatprep.subr.bf16.mxu0 0
      %1377 = vmatpush1.bf16.msra.mxu0 0
      %1378 = vmatprep.subr.bf16.mxu0 0
      %1379 = vmatpush1.bf16.msra.mxu0 0
      %1380 = vmatprep.subr.bf16.mxu0 0
      %1381 = vmatpush1.bf16.msra.mxu0 0
      %1382 = vmatprep.subr.bf16.mxu0 0
      %1383 = vmatpush1.bf16.msra.mxu0 0
      %1384 = vmatprep.subr.bf16.mxu0 0
      %1385 = vmatpush1.bf16.msra.mxu0 0
      %1386 = vmatprep.subr.bf16.mxu0 0
      %1387 = vmatpush1.bf16.msra.mxu0 0
      %1388 = vmatprep.subr.bf16.mxu0 0
      %1389 = vmatpush1.bf16.msra.mxu0 0
      %1390 = vmatprep.subr.bf16.mxu0 0
      %1391 = vmatpush1.bf16.msra.mxu0 0
      %1392 = vmatprep.subr.bf16.mxu0 0
      %1393 = vmatpush1.bf16.msra.mxu0 0
      %1394 = vmatprep.mubr.bf16.mxu0 0
      %1395 = vmatmul.mubr.bf16.gmra.mrb[0].mxu0 %v1356
      %v1396 = vpop.f32.mrb[0].mxu0
      %v1397 = vadd.f32 0.0, %v1396
      %v1398 = vpop.f32.mrb[0].mxu0
      %v1399 = vpop.f32.mrb[0].mxu0
      %v1400 = vpop.f32.mrb[0].mxu0
      %1401 = vdwg.mxu0
      %v1403 = vsel %vm1122, %v1352, 0
      %v1406 = vsel %vm1358, %v1114, 0
      %1408 = vmatprep.subr.bf16.mxu0 0
      %1409 = vmatpush1.bf16.msra.mxu0 %v1406
      %1410 = vmatprep.subr.bf16.mxu0 0
      %1411 = vmatpush1.bf16.msra.mxu0 0
      %1412 = vmatprep.subr.bf16.mxu0 0
      %1413 = vmatpush1.bf16.msra.mxu0 0
      %1414 = vmatprep.subr.bf16.mxu0 0
      %1415 = vmatpush1.bf16.msra.mxu0 0
      %1416 = vmatprep.subr.bf16.mxu0 0
      %1417 = vmatpush1.bf16.msra.mxu0 0
      %1418 = vmatprep.subr.bf16.mxu0 0
      %1419 = vmatpush1.bf16.msra.mxu0 0
      %1420 = vmatprep.subr.bf16.mxu0 0
      %1421 = vmatpush1.bf16.msra.mxu0 0
      %1422 = vmatprep.subr.bf16.mxu0 0
      %1423 = vmatpush1.bf16.msra.mxu0 0
      %1424 = vmatprep.subr.bf16.mxu0 0
      %1425 = vmatpush1.bf16.msra.mxu0 0
      %1426 = vmatprep.subr.bf16.mxu0 0
      %1427 = vmatpush1.bf16.msra.mxu0 0
      %1428 = vmatprep.subr.bf16.mxu0 0
      %1429 = vmatpush1.bf16.msra.mxu0 0
      %1430 = vmatprep.subr.bf16.mxu0 0
      %1431 = vmatpush1.bf16.msra.mxu0 0
      %1432 = vmatprep.subr.bf16.mxu0 0
      %1433 = vmatpush1.bf16.msra.mxu0 0
      %1434 = vmatprep.subr.bf16.mxu0 0
      %1435 = vmatpush1.bf16.msra.mxu0 0
      %1436 = vmatprep.subr.bf16.mxu0 0
      %1437 = vmatpush1.bf16.msra.mxu0 0
      %1438 = vmatprep.subr.bf16.mxu0 0
      %1439 = vmatpush1.bf16.msra.mxu0 0
      %1440 = vmatprep.mubr.bf16.mxu0 0
      %1441 = vmatmul.mubr.bf16.gmra.mrb[0].mxu0 %v1403
      %v1442 = vpop.f32.mrb[0].mxu0
      %v1443 = vadd.f32 0.0, %v1442
      %v1444 = vpop.f32.mrb[0].mxu0
      %v1445 = vpop.f32.mrb[0].mxu0
      %v1446 = vpop.f32.mrb[0].mxu0
      %1447 = vdwg.mxu0
      %v1449 = vsel %vm1122, %v1353, 0
      %v1452 = vsel %vm1358, %v1117, 0
      %1454 = vmatprep.subr.bf16.mxu0 0
      %1455 = vmatpush1.bf16.msra.mxu0 %v1452
      %1456 = vmatprep.subr.bf16.mxu0 0
      %1457 = vmatpush1.bf16.msra.mxu0 0
      %1458 = vmatprep.subr.bf16.mxu0 0
      %1459 = vmatpush1.bf16.msra.mxu0 0
      %1460 = vmatprep.subr.bf16.mxu0 0
      %1461 = vmatpush1.bf16.msra.mxu0 0
      %1462 = vmatprep.subr.bf16.mxu0 0
      %1463 = vmatpush1.bf16.msra.mxu0 0
      %1464 = vmatprep.subr.bf16.mxu0 0
      %1465 = vmatpush1.bf16.msra.mxu0 0
      %1466 = vmatprep.subr.bf16.mxu0 0
      %1467 = vmatpush1.bf16.msra.mxu0 0
      %1468 = vmatprep.subr.bf16.mxu0 0
      %1469 = vmatpush1.bf16.msra.mxu0 0
      %1470 = vmatprep.subr.bf16.mxu0 0
      %1471 = vmatpush1.bf16.msra.mxu0 0
      %1472 = vmatprep.subr.bf16.mxu0 0
      %1473 = vmatpush1.bf16.msra.mxu0 0
      %1474 = vmatprep.subr.bf16.mxu0 0
      %1475 = vmatpush1.bf16.msra.mxu0 0
      %1476 = vmatprep.subr.bf16.mxu0 0
      %1477 = vmatpush1.bf16.msra.mxu0 0
      %1478 = vmatprep.subr.bf16.mxu0 0
      %1479 = vmatpush1.bf16.msra.mxu0 0
      %1480 = vmatprep.subr.bf16.mxu0 0
      %1481 = vmatpush1.bf16.msra.mxu0 0
      %1482 = vmatprep.subr.bf16.mxu0 0
      %1483 = vmatpush1.bf16.msra.mxu0 0
      %1484 = vmatprep.subr.bf16.mxu0 0
      %1485 = vmatpush1.bf16.msra.mxu0 0
      %1486 = vmatprep.mubr.bf16.mxu0 0
      %1487 = vmatmul.mubr.bf16.gmra.mrb[0].mxu0 %v1449
      %v1488 = vpop.f32.mrb[0].mxu0
      %v1489 = vadd.f32 0.0, %v1488
      %v1490 = vpop.f32.mrb[0].mxu0
      %v1491 = vpop.f32.mrb[0].mxu0
      %v1492 = vpop.f32.mrb[0].mxu0
      %1493 = vdwg.mxu0
      %v1495 = vsel %vm1122, %v1354, 0
      %v1498 = vsel %vm1358, %v1120, 0
      %1500 = vmatprep.subr.bf16.mxu0 0
      %1501 = vmatpush1.bf16.msra.mxu0 %v1498
      %1502 = vmatprep.subr.bf16.mxu0 0
      %1503 = vmatpush1.bf16.msra.mxu0 0
      %1504 = vmatprep.subr.bf16.mxu0 0
      %1505 = vmatpush1.bf16.msra.mxu0 0
      %1506 = vmatprep.subr.bf16.mxu0 0
      %1507 = vmatpush1.bf16.msra.mxu0 0
      %1508 = vmatprep.subr.bf16.mxu0 0
      %1509 = vmatpush1.bf16.msra.mxu0 0
      %1510 = vmatprep.subr.bf16.mxu0 0
      %1511 = vmatpush1.bf16.msra.mxu0 0
      %1512 = vmatprep.subr.bf16.mxu0 0
      %1513 = vmatpush1.bf16.msra.mxu0 0
      %1514 = vmatprep.subr.bf16.mxu0 0
      %1515 = vmatpush1.bf16.msra.mxu0 0
      %1516 = vmatprep.subr.bf16.mxu0 0
      %1517 = vmatpush1.bf16.msra.mxu0 0
      %1518 = vmatprep.subr.bf16.mxu0 0
      %1519 = vmatpush1.bf16.msra.mxu0 0
      %1520 = vmatprep.subr.bf16.mxu0 0
      %1521 = vmatpush1.bf16.msra.mxu0 0
      %1522 = vmatprep.subr.bf16.mxu0 0
      %1523 = vmatpush1.bf16.msra.mxu0 0
      %1524 = vmatprep.subr.bf16.mxu0 0
      %1525 = vmatpush1.bf16.msra.mxu0 0
      %1526 = vmatprep.subr.bf16.mxu0 0
      %1527 = vmatpush1.bf16.msra.mxu0 0
      %1528 = vmatprep.subr.bf16.mxu0 0
      %1529 = vmatpush1.bf16.msra.mxu0 0
      %1530 = vmatprep.subr.bf16.mxu0 0
      %1531 = vmatpush1.bf16.msra.mxu0 0
      %1532 = vmatprep.mubr.bf16.mxu0 0
      %1533 = vmatmul.mubr.bf16.gmra.mrb[0].mxu0 %v1495
      %v1534 = vpop.f32.mrb[0].mxu0
      %v1535 = vadd.f32 0.0, %v1534
      %v1536 = vpop.f32.mrb[0].mxu0
      %v1537 = vpop.f32.mrb[0].mxu0
      %v1538 = vpop.f32.mrb[0].mxu0
      %1539 = vdwg.mxu0
      %v1540 = vcombine.low %v1397, %v1489
      %v1541 = vcombine.high %v1397, %v1489
      %v1543 = vunpack.c.l.s4 1983009808
      %v1544 = vunpack.c.0.s8 %v1543
      %v1545 = vlaneseq
      %v1546 = vshrl.u32 %v1545, 7
      %v1547 = vsub.s32 %v1544, %v1546
      %v1548 = vrot.slane %v1540, %v1547
      %v1550 = vunpack.c.l.s4 1983009808
      %v1551 = vunpack.c.0.s8 %v1550
      %v1552 = vlaneseq
      %v1553 = vshrl.u32 %v1552, 7
      %v1554 = vsub.s32 %v1551, %v1553
      %v1555 = vrot.slane %v1541, %v1554
      %v1556 = vcombine.low %v1443, %v1535
      %v1557 = vcombine.high %v1443, %v1535
      %v1559 = vunpack.c.l.s4 1983009808
      %v1560 = vunpack.c.0.s8 %v1559
      %v1561 = vlaneseq
      %v1562 = vshrl.u32 %v1561, 7
      %v1563 = vsub.s32 %v1560, %v1562
      %v1564 = vrot.slane %v1556, %v1563
      %v1566 = vunpack.c.l.s4 1983009808
      %v1567 = vunpack.c.0.s8 %v1566
      %v1568 = vlaneseq
      %v1569 = vshrl.u32 %v1568, 7
      %v1570 = vsub.s32 %v1567, %v1569
      %v1571 = vrot.slane %v1557, %v1570
      %v1572 = vcombine.low %v1548, %v1564
      %v1573 = vcombine.high %v1548, %v1564
      %v1575 = vunpack.c.l.s4 1934713408
      %v1576 = vunpack.c.0.s8 %v1575
      %v1577 = vlaneseq
      %v1578 = vshrl.u32 %v1577, 7
      %v1579 = vsub.s32 %v1576, %v1578
      %v1580 = vrot.slane %v1572, %v1579
      %v1582 = vunpack.c.l.s4 1934713408
      %v1583 = vunpack.c.0.s8 %v1582
      %v1584 = vlaneseq
      %v1585 = vshrl.u32 %v1584, 7
      %v1586 = vsub.s32 %v1583, %v1585
      %v1587 = vrot.slane %v1573, %v1586
      %v1588 = vcombine.low %v1555, %v1571
      %v1589 = vcombine.high %v1555, %v1571
      %v1591 = vunpack.c.l.s4 1934713408
      %v1592 = vunpack.c.0.s8 %v1591
      %v1593 = vlaneseq
      %v1594 = vshrl.u32 %v1593, 7
      %v1595 = vsub.s32 %v1592, %v1594
      %v1596 = vrot.slane %v1588, %v1595
      %v1598 = vunpack.c.l.s4 1934713408
      %v1599 = vunpack.c.0.s8 %v1598
      %v1600 = vlaneseq
      %v1601 = vshrl.u32 %v1600, 7
      %v1602 = vsub.s32 %v1599, %v1601
      %v1603 = vrot.slane %v1589, %v1602
      %v1604 = vcombine.high %v1580, 0.0
      %v1605 = vcombine.high %v1587, 0.0
      %v1606 = vcombine.high %v1596, 0.0
      %v1607 = vcombine.high %v1603, 0.0
      %v1608 = vcombine.low %v1580, %v1587
      %v1610 = vunpack.c.l.s4 1983009808
      %v1611 = vunpack.c.0.s8 %v1610
      %v1612 = vlaneseq
      %v1613 = vshrl.u32 %v1612, 7
      %v1614 = vsub.s32 %v1611, %v1613
      %v1615 = vrot.slane %v1608, %v1614
      %v1616 = vcombine.low %v1604, %v1605
      %v1618 = vunpack.c.l.s4 1983009808
      %v1619 = vunpack.c.0.s8 %v1618
      %v1620 = vlaneseq
      %v1621 = vshrl.u32 %v1620, 7
      %v1622 = vsub.s32 %v1619, %v1621
      %v1623 = vrot.slane %v1616, %v1622
      %v1624 = vcombine.low %v1596, %v1603
      %v1626 = vunpack.c.l.s4 1983009808
      %v1627 = vunpack.c.0.s8 %v1626
      %v1628 = vlaneseq
      %v1629 = vshrl.u32 %v1628, 7
      %v1630 = vsub.s32 %v1627, %v1629
      %v1631 = vrot.slane %v1624, %v1630
      %v1632 = vcombine.low %v1606, %v1607
      %v1634 = vunpack.c.l.s4 1983009808
      %v1635 = vunpack.c.0.s8 %v1634
      %v1636 = vlaneseq
      %v1637 = vshrl.u32 %v1636, 7
      %v1638 = vsub.s32 %v1635, %v1637
      %v1639 = vrot.slane %v1632, %v1638
      %v1640 = vcombine.low %v1615, %v1623
      %v1641 = vcombine.high %v1615, %v1623
      %v1643 = vunpack.c.l.s4 1934713408
      %v1644 = vunpack.c.0.s8 %v1643
      %v1645 = vlaneseq
      %v1646 = vshrl.u32 %v1645, 7
      %v1647 = vsub.s32 %v1644, %v1646
      %v1648 = vrot.slane %v1640, %v1647
      %v1650 = vunpack.c.l.s4 1934713408
      %v1651 = vunpack.c.0.s8 %v1650
      %v1652 = vlaneseq
      %v1653 = vshrl.u32 %v1652, 7
      %v1654 = vsub.s32 %v1651, %v1653
      %v1655 = vrot.slane %v1641, %v1654
      %v1656 = vcombine.low %v1631, %v1639
      %v1657 = vcombine.high %v1631, %v1639
      %v1659 = vunpack.c.l.s4 1934713408
      %v1660 = vunpack.c.0.s8 %v1659
      %v1661 = vlaneseq
      %v1662 = vshrl.u32 %v1661, 7
      %v1663 = vsub.s32 %v1660, %v1662
      %v1664 = vrot.slane %v1656, %v1663
      %v1666 = vunpack.c.l.s4 1934713408
      %v1667 = vunpack.c.0.s8 %v1666
      %v1668 = vlaneseq
      %v1669 = vshrl.u32 %v1668, 7
      %v1670 = vsub.s32 %v1667, %v1669
      %v1671 = vrot.slane %v1657, %v1670
      %v1672 = vcombine.low %v1648, %v1664
      %v1673 = vcombine.high %v1648, %v1664
      %v1674 = vcombine.low %v1655, %v1671
      %v1675 = vcombine.high %v1655, %v1671
      %1677 = vrot.lane.b32.xlu0 %v1673, 8
      %v1678 = vpop.permute.xlu0 %1677
      %1681 = vrot.lane.b32.xlu0 %v1674, 16
      %v1682 = vpop.permute.xlu0 %1681
      %1685 = vrot.lane.b32.xlu0 %v1675, 24
      %v1686 = vpop.permute.xlu0 %1685
      %v1688 = vsel %vm1122, %v1672, %v1678
      %vm1689 = vcmask 130048
      %v1690 = vsel %vm1689, %v1688, %v1682
      %vm1691 = vcmask 195584
      %v1692 = vsel %vm1691, %v1690, %v1686
      %v1693 = vpack.c.bf16 %v1692, %v1692
      %v1694 = vld [vmem:[%s6] sm:$0xf]
      %v1695 = vld [vmem:[%s6 + $0x4] sm:$0xf]
      %v1696 = vld [vmem:[%s6 + $0x8] sm:$0xf]
      %v1697 = vld [vmem:[%s6 + $0xc] sm:$0xf]
      %v1698 = vld [vmem:[%s7] sm:$0x1]
      %v1700 = vlaneseq
      %v1701 = vshrl.u32 %v1700, 7
      %v1702 = vsub.s32 0, %v1701
      %v1703 = vrot.slane %v1698, %v1702
      %v1709 = vunpack.c.l.b16 %v1694
      %v1710 = vunpack.c.l.b16 %v1695
      %v1711 = vunpack.c.l.b16 %v1696
      %v1712 = vunpack.c.l.b16 %v1697
      %v1713 = vpack.c.b16 %v1710, %v1709
      %v1714 = vpack.c.b16 %v1712, %v1711
      %v1718 = vsel %vm515, %v1693, 0
      %1720 = vmatprep.subr.bf16.mxu0 0
      %1721 = vmatpush1.bf16.msra.mxu0 %v1713
      %1722 = vmatprep.subr.bf16.mxu0 0
      %1723 = vmatpush1.bf16.msra.mxu0 %v1714
      %1724 = vmatprep.subr.bf16.mxu0 0
      %1725 = vmatpush1.bf16.msra.mxu0 0
      %1726 = vmatprep.subr.bf16.mxu0 0
      %1727 = vmatpush1.bf16.msra.mxu0 0
      %1728 = vmatprep.subr.bf16.mxu0 0
      %1729 = vmatpush1.bf16.msra.mxu0 0
      %1730 = vmatprep.subr.bf16.mxu0 0
      %1731 = vmatpush1.bf16.msra.mxu0 0
      %1732 = vmatprep.subr.bf16.mxu0 0
      %1733 = vmatpush1.bf16.msra.mxu0 0
      %1734 = vmatprep.subr.bf16.mxu0 0
      %1735 = vmatpush1.bf16.msra.mxu0 0
      %1736 = vmatprep.subr.bf16.mxu0 0
      %1737 = vmatpush1.bf16.msra.mxu0 0
      %1738 = vmatprep.subr.bf16.mxu0 0
      %1739 = vmatpush1.bf16.msra.mxu0 0
      %1740 = vmatprep.subr.bf16.mxu0 0
      %1741 = vmatpush1.bf16.msra.mxu0 0
      %1742 = vmatprep.subr.bf16.mxu0 0
      %1743 = vmatpush1.bf16.msra.mxu0 0
      %1744 = vmatprep.subr.bf16.mxu0 0
      %1745 = vmatpush1.bf16.msra.mxu0 0
      %1746 = vmatprep.subr.bf16.mxu0 0
      %1747 = vmatpush1.bf16.msra.mxu0 0
      %1748 = vmatprep.subr.bf16.mxu0 0
      %1749 = vmatpush1.bf16.msra.mxu0 0
      %1750 = vmatprep.subr.bf16.mxu0 0
      %1751 = vmatpush1.bf16.msra.mxu0 0
      %1752 = vmatprep.mubr.bf16.mxu0 0
      %1753 = vmatmul.mubr.bf16.gmra.mrb[0].mxu0 %v1718
      %v1754 = vpop.f32.mrb[0].mxu0
      %v1755 = vadd.f32 %v1703, %v1754
      %v1756 = vpop.f32.mrb[0].mxu0
      %v1757 = vpop.f32.mrb[0].mxu0
      %v1758 = vpop.f32.mrb[0].mxu0
      %1759 = vdwg.mxu0
      %v1760 = vadd.f32 %v512, %v1755
      %v1761 = vld [vmem:[%s8] sm:$0x1]
      %v1762 = vld [vmem:[%s9] sm:$0x1]
      %v1763 = vsel %vm515, %v1760, 0.0
      %1764 = vadd.xlane.f32.xlu0 %v1763
      %v1765 = vpop.xlane.xlu0 %1764
      %v1766 = vmul.f32 %v1765, %v519
      %v1767 = vsub.f32 %v1760, %v1766
      %v1768 = vmul.f32 %v1767, %v1767
      %v1769 = vsel %vm515, %v1768, 0.0
      %1770 = vadd.xlane.f32.xlu0 %v1769
      %v1771 = vpop.xlane.xlu0 %1770
      %v1772 = vmul.f32 %v1771, %v519
      %v1773 = vadd.f32 %v1772, 1e-05
      %v1774 = vrsqrt.pop %v1773
      %v1775 = vmul.f32 %v1767, %v1774
      %v1777 = vlaneseq
      %v1778 = vshrl.u32 %v1777, 7
      %v1779 = vsub.s32 0, %v1778
      %v1780 = vrot.slane %v1761, %v1779
      %v1782 = vmul.f32 %v1775, %v1780
      %v1784 = vlaneseq
      %v1785 = vshrl.u32 %v1784, 7
      %v1786 = vsub.s32 0, %v1785
      %v1787 = vrot.slane %v1762, %v1786
      %v1789 = vadd.f32 %v1782, %v1787
      %v1790 = vpack.c.bf16 %v1789, %v1789
      %v1791 = vld [vmem:[%s10] sm:$0xf]
      %v1792 = vld [vmem:[%s10 + $0x4] sm:$0xf]
      %v1793 = vld [vmem:[%s10 + $0x8] sm:$0xf]
      %v1794 = vld [vmem:[%s10 + $0xc] sm:$0xf]
      %v1795 = vld [vmem:[%s11] sm:$0x1]
      %v1797 = vlaneseq
      %v1798 = vshrl.u32 %v1797, 7
      %v1799 = vsub.s32 0, %v1798
      %v1800 = vrot.slane %v1795, %v1799
      %v1806 = vunpack.c.l.b16 %v1791
      %v1807 = vunpack.c.l.b16 %v1792
      %v1808 = vunpack.c.l.b16 %v1793
      %v1809 = vunpack.c.l.b16 %v1794
      %v1810 = vpack.c.b16 %v1807, %v1806
      %v1811 = vpack.c.b16 %v1809, %v1808
      %v1815 = vsel %vm515, %v1790, 0
      %1817 = vmatprep.subr.bf16.mxu0 0
      %1818 = vmatpush1.bf16.msra.mxu0 %v1810
      %1819 = vmatprep.subr.bf16.mxu0 0
      %1820 = vmatpush1.bf16.msra.mxu0 %v1811
      %1821 = vmatprep.subr.bf16.mxu0 0
      %1822 = vmatpush1.bf16.msra.mxu0 0
      %1823 = vmatprep.subr.bf16.mxu0 0
      %1824 = vmatpush1.bf16.msra.mxu0 0
      %1825 = vmatprep.subr.bf16.mxu0 0
      %1826 = vmatpush1.bf16.msra.mxu0 0
      %1827 = vmatprep.subr.bf16.mxu0 0
      %1828 = vmatpush1.bf16.msra.mxu0 0
      %1829 = vmatprep.subr.bf16.mxu0 0
      %1830 = vmatpush1.bf16.msra.mxu0 0
      %1831 = vmatprep.subr.bf16.mxu0 0
      %1832 = vmatpush1.bf16.msra.mxu0 0
      %1833 = vmatprep.subr.bf16.mxu0 0
      %1834 = vmatpush1.bf16.msra.mxu0 0
      %1835 = vmatprep.subr.bf16.mxu0 0
      %1836 = vmatpush1.bf16.msra.mxu0 0
      %1837 = vmatprep.subr.bf16.mxu0 0
      %1838 = vmatpush1.bf16.msra.mxu0 0
      %1839 = vmatprep.subr.bf16.mxu0 0
      %1840 = vmatpush1.bf16.msra.mxu0 0
      %1841 = vmatprep.subr.bf16.mxu0 0
      %1842 = vmatpush1.bf16.msra.mxu0 0
      %1843 = vmatprep.subr.bf16.mxu0 0
      %1844 = vmatpush1.bf16.msra.mxu0 0
      %1845 = vmatprep.subr.bf16.mxu0 0
      %1846 = vmatpush1.bf16.msra.mxu0 0
      %1847 = vmatprep.subr.bf16.mxu0 0
      %1848 = vmatpush1.bf16.msra.mxu0 0
      %1849 = vmatprep.mubr.bf16.mxu0 0
      %1850 = vmatmul.mubr.bf16.gmra.mrb[0].mxu0 %v1815
      %v1851 = vpop.f32.mrb[0].mxu0
      %v1852 = vadd.f32 %v1800, %v1851
      %v1853 = vpop.f32.mrb[0].mxu0
      %v1854 = vpop.f32.mrb[0].mxu0
      %v1855 = vpop.f32.mrb[0].mxu0
      %1856 = vdwg.mxu0
      %v1857 = vmul.f32 %v1852, 1.702
      %v1858 = vxor.u32 %v1857, 2147483648
      %v1859 = vmul.f32 %v1858, 1.442695
      %v1860 = vpow.pop %v1859
      %v1861 = vadd.f32 %v1860, 1.0
      %v1862 = vrcp.pop %v1861
      %v1863 = vmul.f32 1.0, %v1862
      %v1864 = vmul.f32 %v1852, %v1863
      %v1865 = vpack.c.bf16 %v1864, %v1864
      %v1866 = vld [vmem:[%s12] sm:$0xf]
      %v1867 = vld [vmem:[%s12 + $0x4] sm:$0xf]
      %v1868 = vld [vmem:[%s12 + $0x8] sm:$0xf]
      %v1869 = vld [vmem:[%s12 + $0xc] sm:$0xf]
      %v1870 = vld [vmem:[%s12 + $0x10] sm:$0xf]
      %v1871 = vld [vmem:[%s12 + $0x14] sm:$0xf]
      %v1872 = vld [vmem:[%s12 + $0x18] sm:$0xf]
      %v1873 = vld [vmem:[%s12 + $0x1c] sm:$0xf]
      %v1874 = vld [vmem:[%s12 + $0x20] sm:$0xf]
      %v1875 = vld [vmem:[%s12 + $0x24] sm:$0xf]
      %v1876 = vld [vmem:[%s12 + $0x28] sm:$0xf]
      %v1877 = vld [vmem:[%s12 + $0x2c] sm:$0xf]
      %v1878 = vld [vmem:[%s12 + $0x30] sm:$0xf]
      %v1879 = vld [vmem:[%s12 + $0x34] sm:$0xf]
      %v1880 = vld [vmem:[%s12 + $0x38] sm:$0xf]
      %v1881 = vld [vmem:[%s12 + $0x3c] sm:$0xf]
      %v1882 = vld [vmem:[%s13] sm:$0x1]
      %v1884 = vlaneseq
      %v1885 = vshrl.u32 %v1884, 7
      %v1886 = vsub.s32 0, %v1885
      %v1887 = vrot.slane %v1882, %v1886
      %v1905 = vunpack.c.l.b16 %v1866
      %v1906 = vunpack.c.l.b16 %v1867
      %v1907 = vunpack.c.l.b16 %v1868
      %v1908 = vunpack.c.l.b16 %v1869
      %v1909 = vunpack.c.l.b16 %v1870
      %v1910 = vunpack.c.l.b16 %v1871
      %v1911 = vunpack.c.l.b16 %v1872
      %v1912 = vunpack.c.l.b16 %v1873
      %v1913 = vunpack.c.l.b16 %v1874
      %v1914 = vunpack.c.l.b16 %v1875
      %v1915 = vunpack.c.l.b16 %v1876
      %v1916 = vunpack.c.l.b16 %v1877
      %v1917 = vunpack.c.l.b16 %v1878
      %v1918 = vunpack.c.l.b16 %v1879
      %v1919 = vunpack.c.l.b16 %v1880
      %v1920 = vunpack.c.l.b16 %v1881
      %v1921 = vpack.c.b16 %v1906, %v1905
      %v1922 = vpack.c.b16 %v1908, %v1907
      %v1923 = vpack.c.b16 %v1910, %v1909
      %v1924 = vpack.c.b16 %v1912, %v1911
      %v1925 = vpack.c.b16 %v1914, %v1913
      %v1926 = vpack.c.b16 %v1916, %v1915
      %v1927 = vpack.c.b16 %v1918, %v1917
      %v1928 = vpack.c.b16 %v1920, %v1919
      %1937 = vmatprep.subr.bf16.mxu0 0
      %1938 = vmatpush1.bf16.msra.mxu0 %v1921
      %1939 = vmatprep.subr.bf16.mxu0 0
      %1940 = vmatpush1.bf16.msra.mxu0 %v1922
      %1941 = vmatprep.subr.bf16.mxu0 0
      %1942 = vmatpush1.bf16.msra.mxu0 %v1923
      %1943 = vmatprep.subr.bf16.mxu0 0
      %1944 = vmatpush1.bf16.msra.mxu0 %v1924
      %1945 = vmatprep.subr.bf16.mxu0 0
      %1946 = vmatpush1.bf16.msra.mxu0 %v1925
      %1947 = vmatprep.subr.bf16.mxu0 0
      %1948 = vmatpush1.bf16.msra.mxu0 %v1926
      %1949 = vmatprep.subr.bf16.mxu0 0
      %1950 = vmatpush1.bf16.msra.mxu0 %v1927
      %1951 = vmatprep.subr.bf16.mxu0 0
      %1952 = vmatpush1.bf16.msra.mxu0 %v1928
      %1953 = vmatprep.subr.bf16.mxu0 0
      %1954 = vmatpush1.bf16.msra.mxu0 0
      %1955 = vmatprep.subr.bf16.mxu0 0
      %1956 = vmatpush1.bf16.msra.mxu0 0
      %1957 = vmatprep.subr.bf16.mxu0 0
      %1958 = vmatpush1.bf16.msra.mxu0 0
      %1959 = vmatprep.subr.bf16.mxu0 0
      %1960 = vmatpush1.bf16.msra.mxu0 0
      %1961 = vmatprep.subr.bf16.mxu0 0
      %1962 = vmatpush1.bf16.msra.mxu0 0
      %1963 = vmatprep.subr.bf16.mxu0 0
      %1964 = vmatpush1.bf16.msra.mxu0 0
      %1965 = vmatprep.subr.bf16.mxu0 0
      %1966 = vmatpush1.bf16.msra.mxu0 0
      %1967 = vmatprep.subr.bf16.mxu0 0
      %1968 = vmatpush1.bf16.msra.mxu0 0
      %1969 = vmatprep.mubr.bf16.mxu0 0
      %1970 = vmatmul.mubr.bf16.gmra.mrb[0].mxu0 %v1865
      %v1971 = vpop.f32.mrb[0].mxu0
      %v1972 = vadd.f32 %v1887, %v1971
      %v1973 = vpop.f32.mrb[0].mxu0
      %v1974 = vpop.f32.mrb[0].mxu0
      %v1975 = vpop.f32.mrb[0].mxu0
      %1976 = vdwg.mxu0
      %v1977 = vadd.f32 %v1760, %v1972
      %1978 = vst.msk [vmem:[%s510] sm:$0xff] %vm515, %v1977
      %p1979 = scmp.lt.s32.totalorder %s29, 1
      %s1980 = scalar_select %p1979, %s29, 1
      %p1981 = scmp.lt.s32.totalorder %s30, 0
      %s1982 = scalar_select %p1981, %s30, 0
      %s1983 = sadd.s32 %s1982, %s1980
      %s1984 = smul.addr %s1983, 8
      %s1985 = scalar_lea.vmem %s14, %s1984
      // Predicated region
      $region77: #{transformer_forward.2} parent=75 // pred_check
        %p1986 = pneg %p363
      $region78: #{transformer_forward.2} parent=75 // pred_check_branch
        %1988 = sbr.rel (%p1986) target = $region80
      $region79: #{transformer_forward.2} parent=75 // pred_region
        _
      $region80: #{transformer_forward.2} parent=75 // pred_fallthru
        _
    $region76: #{transformer_forward.2} parent=5 // pred_fallthru
      _
    %p1989 = scmp.le.s32.totalorder 2, %s20
    // Predicated region
    $region81: #{transformer_forward.2} parent=5 // pred_check
      %p1990 = pneg %p1989
    $region82: #{transformer_forward.2} parent=5 // pred_check_branch
      %1992 = sbr.rel (%p1990) target = $region84
    $region83: #{transformer_forward.2} parent=5 // pred_region
      %s1993 = ssub.s32 %s20, 2
      // Predicated region
      $region85: #{transformer_forward.2} parent=83 // pred_check
        %p1994 = pneg %p369
      $region86: #{transformer_forward.2} parent=83 // pred_check_branch
        %1996 = sbr.rel (%p1994) target = $region88
      $region87: #{transformer_forward.2} parent=83 // pred_region
        %p1997 = scmp.lt.s32.totalorder %s31, 1
        %s1998 = scalar_select %p1997, %s31, 1
        %p1999 = scmp.lt.s32.totalorder %s32, 0
        %s2000 = scalar_select %p1999, %s32, 0
        %s2001 = sadd.s32 %s2000, %s1998
        %s2002 = smul.addr %s2001, 8
        %s2003 = scalar_lea.vmem %s14, %s2002
      $region88: #{transformer_forward.2} parent=83 // pred_fallthru
        _
    $region84: #{transformer_forward.2} parent=5 // pred_fallthru
      _
  $region6: #{transformer_forward.2} parent=0 // loop_footer
    %s24 = sadd.s32 1, %s20
  $region7: #{transformer_forward.2} parent=0 // loop_footer_branch
    %19 = sbr.rel target = $region3
  $region8: #{transformer_forward.2} parent=0 // loop_exit
    _

// kernel: transformer_forward.3
$region0: #{transformer_forward.3}
  #allocation0 [shape = 'u32[]', space=smem, size = 0x4, offset = 0x4, fixed_abs, tag = 'smem constant byte address 0x4 - core index']
  #allocation1 [shape = 'u32[144,128]{1,0:T(1,128)}', space=vmem, size = 0x12000, scoped, tag = 'internal scratch']
  %s0 = inlined_call_operand.vmem [shape: f32[2,8,32], index: 0, kind: input, shape index: {}]
  %s1 = inlined_call_operand.vmem [shape: bf16[1,8,8], index: 1, kind: input, shape index: {}]
  %s2 = inlined_call_operand.vmem [shape: f32[1,32], index: 2, kind: input, shape index: {}]
  %s3 = inlined_call_operand.vmem [shape: f32[1,32], index: 3, kind: input, shape index: {}]
  %s4 = inlined_call_operand.vmem [shape: bf16[32,96], index: 4, kind: input, shape index: {}]
  %s5 = inlined_call_operand.vmem [shape: f32[1,96], index: 5, kind: input, shape index: {}]
  %s6 = inlined_call_operand.vmem [shape: bf16[32,32], index: 6, kind: input, shape index: {}]
  %s7 = inlined_call_operand.vmem [shape: f32[1,32], index: 7, kind: input, shape index: {}]
  %s8 = inlined_call_operand.vmem [shape: f32[1,32], index: 8, kind: input, shape index: {}]
  %s9 = inlined_call_operand.vmem [shape: f32[1,32], index: 9, kind: input, shape index: {}]
  %s10 = inlined_call_operand.vmem [shape: bf16[32,128], index: 10, kind: input, shape index: {}]
  %s11 = inlined_call_operand.vmem [shape: f32[1,128], index: 11, kind: input, shape index: {}]
  %s12 = inlined_call_operand.vmem [shape: bf16[128,32], index: 12, kind: input, shape index: {}]
  %s13 = inlined_call_operand.vmem [shape: f32[1,32], index: 13, kind: input, shape index: {}]
  %s14 = inlined_call_operand.hbm [shape: f32[2,8,32], index: 14, kind: output, shape index: {}]
  %s15 = sld [smem:[#allocation0]]
  $region89: #{transformer_forward.3} parent=0
    _
  %s17 = ssub.s32 1, %s15
  %s18 = scalar_select 0, %s17, %s15
  $region1: #{transformer_forward.3} parent=0
    #allocation2 [shape = 'u8[8192]{0}', space=vmem, size = 0x2000, scoped, tag = 'output window, operand 0']
    #allocation3 [shape = 's32[2]{0}', space=sflag, size = 0x8, scoped, tag = 'scoped memory for transformer_forward.3']
    %19 = vsyncpa [#allocation3], 0
    %s20 = scalar_lea.sflag [#allocation3], 1
    %21 = vsyncpa %s20, 0
    loop: start=0, step=1, limit=4
    $region2: #{transformer_forward.3} parent=1 // loop_pre_header
      _
    $region3: #{transformer_forward.3} parent=1 // loop_header
      %s23 = sphi 0, %s27
      %p24 = scmp.ge.s32.totalorder %s23, 4
      %s30 = sphi 0, %s42
      %s31 = sphi 0, %s38
      %s32 = sphi 0, %s30
      %s33 = sphi 0, %s31
      %s34 = sphi 0, %s32
      %s35 = sphi 0, %s33
      %s47 = sphi 0, %s49
      %s50 = sphi 0, %s47
      %s51 = sphi 0, %s50
      %s67 = sphi 0, %s51
      %s73 = sphi 0, %s75
      %s76 = sphi 0, %s73
      %s77 = sphi 0, %s76
      %s93 = sphi 0, %s77
      %s97 = sphi 0, %s97
      %s99 = sphi 0, %s97
      %s100 = sphi 0, %s99
      %s114 = sphi 0, %s100
      %s118 = sphi 0, %s118
      %s120 = sphi 0, %s118
      %s121 = sphi 0, %s120
      %s135 = sphi 0, %s121
      %s139 = sphi 0, %s139
      %s141 = sphi 0, %s139
      %s142 = sphi 0, %s141
      %s156 = sphi 0, %s142
      %s160 = sphi 0, %s160
      %s162 = sphi 0, %s160
      %s163 = sphi 0, %s162
      %s177 = sphi 0, %s163
      %s181 = sphi 0, %s181
      %s183 = sphi 0, %s181
      %s184 = sphi 0, %s183
      %s198 = sphi 0, %s184
      %s202 = sphi 0, %s202
      %s204 = sphi 0, %s202
      %s205 = sphi 0, %s204
      %s219 = sphi 0, %s205
      %s223 = sphi 0, %s223
      %s225 = sphi 0, %s223
      %s226 = sphi 0, %s225
      %s240 = sphi 0, %s226
      %s244 = sphi 0, %s244
      %s246 = sphi 0, %s244
      %s247 = sphi 0, %s246
      %s261 = sphi 0, %s247
      %s265 = sphi 0, %s265
      %s267 = sphi 0, %s265
      %s268 = sphi 0, %s267
      %s282 = sphi 0, %s268
      %s286 = sphi 0, %s286
      %s288 = sphi 0, %s286
      %s289 = sphi 0, %s288
      %s303 = sphi 0, %s289
      %s307 = sphi 0, %s307
      %s309 = sphi 0, %s307
      %s310 = sphi 0, %s309
      %s324 = sphi 0, %s310
      %s328 = sphi 0, %s328
      %s330 = sphi 0, %s328
      %s331 = sphi 0, %s330
      %s345 = sphi 0, %s331
      %s353 = sphi 0, %s355
      %s356 = sphi 0, %s353
      %s357 = sphi 0, %s356
      %s373 = sphi 0, %s357
    $region4: #{transformer_forward.3} parent=1 // loop_header_branch
      %26 = sbr.rel (%p24) target = $region8
    $region5: #{transformer_forward.3} parent=1 // loop_body
      %s28 = ssub.s32 %s23, 1
      %s29 = ssub.s32 %s23, 2
      %s36 = sadd.s32 1, %s31
      %p37 = scmp.ge.s32.totalorder %s36, 1
      %s38 = scalar_select %p37, 0, %s36
      %s39 = sadd.s32 1, %s30
      %s40 = scalar_select %p37, %s39, %s30
      %p41 = scmp.ge.s32.totalorder %s40, 2
      %s42 = scalar_select %p41, 0, %s40
      %s43 = ssub.s32 %s30, %s42
      %s44 = ssub.s32 %s31, %s38
      %s45 = sor.u32 %s43, %s44
      %p46 = scmp.eq.s32.totalorder %s45, 0
      %s48 = sadd.s32 %s47, 1
      %s49 = scalar_select %p46, %s47, %s48
      %p52 = pneg %p46
      %p53 = scmp.eq.s32.totalorder %s23, 1
      %p54 = por %p52, %p53
      %p55 = scmp.ne.s32.totalorder %s47, %s50
      %p56 = scmp.eq.s32.totalorder %s23, 0
      %p57 = por %p55, %p56
      %p58 = scmp.ne.s32.totalorder %s47, %s50
      %p59 = scmp.eq.s32.totalorder %s28, 1
      %p60 = por %p58, %p59
      %p61 = scmp.ne.s32.totalorder %s50, %s51
      %p62 = scmp.eq.s32.totalorder %s28, 0
      %p63 = por %p61, %p62
      %p64 = scmp.ne.s32.totalorder %s50, %s51
      %p65 = scmp.eq.s32.totalorder %s29, 1
      %p66 = por %p64, %p65
      %p68 = scmp.ne.s32.totalorder %s51, %s67
      %p69 = scmp.eq.s32.totalorder %s29, 0
      %p70 = por %p68, %p69
      %s71 = ssub.s32 %s31, %s38
      %p72 = scmp.eq.s32.totalorder %s71, 0
      %s74 = sadd.s32 %s73, 1
      %s75 = scalar_select %p72, %s73, %s74
      %p78 = pneg %p72
      %p79 = scmp.eq.s32.totalorder %s23, 1
      %p80 = por %p78, %p79
      %p81 = scmp.ne.s32.totalorder %s73, %s76
      %p82 = scmp.eq.s32.totalorder %s23, 0
      %p83 = por %p81, %p82
      %p84 = scmp.ne.s32.totalorder %s73, %s76
      %p85 = scmp.eq.s32.totalorder %s28, 1
      %p86 = por %p84, %p85
      %p87 = scmp.ne.s32.totalorder %s76, %s77
      %p88 = scmp.eq.s32.totalorder %s28, 0
      %p89 = por %p87, %p88
      %p90 = scmp.ne.s32.totalorder %s76, %s77
      %p91 = scmp.eq.s32.totalorder %s29, 1
      %p92 = por %p90, %p91
      %p94 = scmp.ne.s32.totalorder %s77, %s93
      %p95 = scmp.eq.s32.totalorder %s29, 0
      %p96 = por %p94, %p95
      %s98 = sadd.s32 %s97, 1
      %p101 = scmp.eq.s32.totalorder %s23, 1
      %p102 = scmp.ne.s32.totalorder %s97, %s99
      %p103 = scmp.eq.s32.totalorder %s23, 0
      %p104 = por %p102, %p103
      %p105 = scmp.ne.s32.totalorder %s97, %s99
      %p106 = scmp.eq.s32.totalorder %s28, 1
      %p107 = por %p105, %p106
      %p108 = scmp.ne.s32.totalorder %s99, %s100
      %p109 = scmp.eq.s32.totalorder %s28, 0
      %p110 = por %p108, %p109
      %p111 = scmp.ne.s32.totalorder %s99, %s100
      %p112 = scmp.eq.s32.totalorder %s29, 1
      %p113 = por %p111, %p112
      %p115 = scmp.ne.s32.totalorder %s100, %s114
      %p116 = scmp.eq.s32.totalorder %s29, 0
      %p117 = por %p115, %p116
      %s119 = sadd.s32 %s118, 1
      %p122 = scmp.eq.s32.totalorder %s23, 1
      %p123 = scmp.ne.s32.totalorder %s118, %s120
      %p124 = scmp.eq.s32.totalorder %s23, 0
      %p125 = por %p123, %p124
      %p126 = scmp.ne.s32.totalorder %s118, %s120
      %p127 = scmp.eq.s32.totalorder %s28, 1
      %p128 = por %p126, %p127
      %p129 = scmp.ne.s32.totalorder %s120, %s121
      %p130 = scmp.eq.s32.totalorder %s28, 0
      %p131 = por %p129, %p130
      %p132 = scmp.ne.s32.totalorder %s120, %s121
      %p133 = scmp.eq.s32.totalorder %s29, 1
      %p134 = por %p132, %p133
      %p136 = scmp.ne.s32.totalorder %s121, %s135
      %p137 = scmp.eq.s32.totalorder %s29, 0
      %p138 = por %p136, %p137
      %s140 = sadd.s32 %s139, 1
      %p143 = scmp.eq.s32.totalorder %s23, 1
      %p144 = scmp.ne.s32.totalorder %s139, %s141
      %p145 = scmp.eq.s32.totalorder %s23, 0
      %p146 = por %p144, %p145
      %p147 = scmp.ne.s32.totalorder %s139, %s141
      %p148 = scmp.eq.s32.totalorder %s28, 1
      %p149 = por %p147, %p148
      %p150 = scmp.ne.s32.totalorder %s141, %s142
      %p151 = scmp.eq.s32.totalorder %s28, 0
      %p152 = por %p150, %p151
      %p153 = scmp.ne.s32.totalorder %s141, %s142
      %p154 = scmp.eq.s32.totalorder %s29, 1
      %p155 = por %p153, %p154
      %p157 = scmp.ne.s32.totalorder %s142, %s156
      %p158 = scmp.eq.s32.totalorder %s29, 0
      %p159 = por %p157, %p158
      %s161 = sadd.s32 %s160, 1
      %p164 = scmp.eq.s32.totalorder %s23, 1
      %p165 = scmp.ne.s32.totalorder %s160, %s162
      %p166 = scmp.eq.s32.totalorder %s23, 0
      %p167 = por %p165, %p166
      %p168 = scmp.ne.s32.totalorder %s160, %s162
      %p169 = scmp.eq.s32.totalorder %s28, 1
      %p170 = por %p168, %p169
      %p171 = scmp.ne.s32.totalorder %s162, %s163
      %p172 = scmp.eq.s32.totalorder %s28, 0
      %p173 = por %p171, %p172
      %p174 = scmp.ne.s32.totalorder %s162, %s163
      %p175 = scmp.eq.s32.totalorder %s29, 1
      %p176 = por %p174, %p175
      %p178 = scmp.ne.s32.totalorder %s163, %s177
      %p179 = scmp.eq.s32.totalorder %s29, 0
      %p180 = por %p178, %p179
      %s182 = sadd.s32 %s181, 1
      %p185 = scmp.eq.s32.totalorder %s23, 1
      %p186 = scmp.ne.s32.totalorder %s181, %s183
      %p187 = scmp.eq.s32.totalorder %s23, 0
      %p188 = por %p186, %p187
      %p189 = scmp.ne.s32.totalorder %s181, %s183
      %p190 = scmp.eq.s32.totalorder %s28, 1
      %p191 = por %p189, %p190
      %p192 = scmp.ne.s32.totalorder %s183, %s184
      %p193 = scmp.eq.s32.totalorder %s28, 0
      %p194 = por %p192, %p193
      %p195 = scmp.ne.s32.totalorder %s183, %s184
      %p196 = scmp.eq.s32.totalorder %s29, 1
      %p197 = por %p195, %p196
      %p199 = scmp.ne.s32.totalorder %s184, %s198
      %p200 = scmp.eq.s32.totalorder %s29, 0
      %p201 = por %p199, %p200
      %s203 = sadd.s32 %s202, 1
      %p206 = scmp.eq.s32.totalorder %s23, 1
      %p207 = scmp.ne.s32.totalorder %s202, %s204
      %p208 = scmp.eq.s32.totalorder %s23, 0
      %p209 = por %p207, %p208
      %p210 = scmp.ne.s32.totalorder %s202, %s204
      %p211 = scmp.eq.s32.totalorder %s28, 1
      %p212 = por %p210, %p211
      %p213 = scmp.ne.s32.totalorder %s204, %s205
      %p214 = scmp.eq.s32.totalorder %s28, 0
      %p215 = por %p213, %p214
      %p216 = scmp.ne.s32.totalorder %s204, %s205
      %p217 = scmp.eq.s32.totalorder %s29, 1
      %p218 = por %p216, %p217
      %p220 = scmp.ne.s32.totalorder %s205, %s219
      %p221 = scmp.eq.s32.totalorder %s29, 0
      %p222 = por %p220, %p221
      %s224 = sadd.s32 %s223, 1
      %p227 = scmp.eq.s32.totalorder %s23, 1
      %p228 = scmp.ne.s32.totalorder %s223, %s225
      %p229 = scmp.eq.s32.totalorder %s23, 0
      %p230 = por %p228, %p229
      %p231 = scmp.ne.s32.totalorder %s223, %s225
      %p232 = scmp.eq.s32.totalorder %s28, 1
      %p233 = por %p231, %p232
      %p234 = scmp.ne.s32.totalorder %s225, %s226
      %p235 = scmp.eq.s32.totalorder %s28, 0
      %p236 = por %p234, %p235
      %p237 = scmp.ne.s32.totalorder %s225, %s226
      %p238 = scmp.eq.s32.totalorder %s29, 1
      %p239 = por %p237, %p238
      %p241 = scmp.ne.s32.totalorder %s226, %s240
      %p242 = scmp.eq.s32.totalorder %s29, 0
      %p243 = por %p241, %p242
      %s245 = sadd.s32 %s244, 1
      %p248 = scmp.eq.s32.totalorder %s23, 1
      %p249 = scmp.ne.s32.totalorder %s244, %s246
      %p250 = scmp.eq.s32.totalorder %s23, 0
      %p251 = por %p249, %p250
      %p252 = scmp.ne.s32.totalorder %s244, %s246
      %p253 = scmp.eq.s32.totalorder %s28, 1
      %p254 = por %p252, %p253
      %p255 = scmp.ne.s32.totalorder %s246, %s247
      %p256 = scmp.eq.s32.totalorder %s28, 0
      %p257 = por %p255, %p256
      %p258 = scmp.ne.s32.totalorder %s246, %s247
      %p259 = scmp.eq.s32.totalorder %s29, 1
      %p260 = por %p258, %p259
      %p262 = scmp.ne.s32.totalorder %s247, %s261
      %p263 = scmp.eq.s32.totalorder %s29, 0
      %p264 = por %p262, %p263
      %s266 = sadd.s32 %s265, 1
      %p269 = scmp.eq.s32.totalorder %s23, 1
      %p270 = scmp.ne.s32.totalorder %s265, %s267
      %p271 = scmp.eq.s32.totalorder %s23, 0
      %p272 = por %p270, %p271
      %p273 = scmp.ne.s32.totalorder %s265, %s267
      %p274 = scmp.eq.s32.totalorder %s28, 1
      %p275 = por %p273, %p274
      %p276 = scmp.ne.s32.totalorder %s267, %s268
      %p277 = scmp.eq.s32.totalorder %s28, 0
      %p278 = por %p276, %p277
      %p279 = scmp.ne.s32.totalorder %s267, %s268
      %p280 = scmp.eq.s32.totalorder %s29, 1
      %p281 = por %p279, %p280
      %p283 = scmp.ne.s32.totalorder %s268, %s282
      %p284 = scmp.eq.s32.totalorder %s29, 0
      %p285 = por %p283, %p284
      %s287 = sadd.s32 %s286, 1
      %p290 = scmp.eq.s32.totalorder %s23, 1
      %p291 = scmp.ne.s32.totalorder %s286, %s288
      %p292 = scmp.eq.s32.totalorder %s23, 0
      %p293 = por %p291, %p292
      %p294 = scmp.ne.s32.totalorder %s286, %s288
      %p295 = scmp.eq.s32.totalorder %s28, 1
      %p296 = por %p294, %p295
      %p297 = scmp.ne.s32.totalorder %s288, %s289
      %p298 = scmp.eq.s32.totalorder %s28, 0
      %p299 = por %p297, %p298
      %p300 = scmp.ne.s32.totalorder %s288, %s289
      %p301 = scmp.eq.s32.totalorder %s29, 1
      %p302 = por %p300, %p301
      %p304 = scmp.ne.s32.totalorder %s289, %s303
      %p305 = scmp.eq.s32.totalorder %s29, 0
      %p306 = por %p304, %p305
      %s308 = sadd.s32 %s307, 1
      %p311 = scmp.eq.s32.totalorder %s23, 1
      %p312 = scmp.ne.s32.totalorder %s307, %s309
      %p313 = scmp.eq.s32.totalorder %s23, 0
      %p314 = por %p312, %p313
      %p315 = scmp.ne.s32.totalorder %s307, %s309
      %p316 = scmp.eq.s32.totalorder %s28, 1
      %p317 = por %p315, %p316
      %p318 = scmp.ne.s32.totalorder %s309, %s310
      %p319 = scmp.eq.s32.totalorder %s28, 0
      %p320 = por %p318, %p319
      %p321 = scmp.ne.s32.totalorder %s309, %s310
      %p322 = scmp.eq.s32.totalorder %s29, 1
      %p323 = por %p321, %p322
      %p325 = scmp.ne.s32.totalorder %s310, %s324
      %p326 = scmp.eq.s32.totalorder %s29, 0
      %p327 = por %p325, %p326
      %s329 = sadd.s32 %s328, 1
      %p332 = scmp.eq.s32.totalorder %s23, 1
      %p333 = scmp.ne.s32.totalorder %s328, %s330
      %p334 = scmp.eq.s32.totalorder %s23, 0
      %p335 = por %p333, %p334
      %p336 = scmp.ne.s32.totalorder %s328, %s330
      %p337 = scmp.eq.s32.totalorder %s28, 1
      %p338 = por %p336, %p337
      %p339 = scmp.ne.s32.totalorder %s330, %s331
      %p340 = scmp.eq.s32.totalorder %s28, 0
      %p341 = por %p339, %p340
      %p342 = scmp.ne.s32.totalorder %s330, %s331
      %p343 = scmp.eq.s32.totalorder %s29, 1
      %p344 = por %p342, %p343
      %p346 = scmp.ne.s32.totalorder %s331, %s345
      %p347 = scmp.eq.s32.totalorder %s29, 0
      %p348 = por %p346, %p347
      %s349 = ssub.s32 %s30, %s42
      %s350 = ssub.s32 %s31, %s38
      %s351 = sor.u32 %s349, %s350
      %p352 = scmp.eq.s32.totalorder %s351, 0
      %s354 = sadd.s32 %s353, 1
      %s355 = scalar_select %p352, %s353, %s354
      %p358 = pneg %p352
      %p359 = scmp.eq.s32.totalorder %s23, 1
      %p360 = por %p358, %p359
      %p361 = scmp.ne.s32.totalorder %s353, %s356
      %p362 = scmp.eq.s32.totalorder %s23, 0
      %p363 = por %p361, %p362
      %p364 = scmp.ne.s32.totalorder %s353, %s356
      %p365 = scmp.eq.s32.totalorder %s28, 1
      %p366 = por %p364, %p365
      %p367 = scmp.ne.s32.totalorder %s356, %s357
      %p368 = scmp.eq.s32.totalorder %s28, 0
      %p369 = por %p367, %p368
      %p370 = scmp.ne.s32.totalorder %s356, %s357
      %p371 = scmp.eq.s32.totalorder %s29, 1
      %p372 = por %p370, %p371
      %p374 = scmp.ne.s32.totalorder %s357, %s373
      %p375 = scmp.eq.s32.totalorder %s29, 0
      %p376 = por %p374, %p375
      %p377 = scmp.le.s32.totalorder 1, %s23
      %p378 = scmp.lt.s32.totalorder %s23, 3
      %p379 = pnand %p377, %p378
      %p380 = pneg %p379
      // Predicated region
      $region9: #{transformer_forward.3} parent=5 // pred_check
        _
      $region10: #{transformer_forward.3} parent=5 // pred_check_branch
        %382 = sbr.rel (%p379) target = $region12
      $region11: #{transformer_forward.3} parent=5 // pred_region
        %s383 = ssub.s32 %s23, 1
        // Predicated region
        $region13: #{transformer_forward.3} parent=11 // pred_check
          %p384 = pneg %p89
        $region14: #{transformer_forward.3} parent=11 // pred_check_branch
          %386 = sbr.rel (%p384) target = $region16
        $region15: #{transformer_forward.3} parent=11 // pred_region
          %p387 = scmp.lt.s32.totalorder %s33, 0
          %s388 = scalar_select %p387, %s33, 0
          %s389 = smul.addr %s388, 4
          %s390 = scalar_lea.vmem %s1, %s389
        $region16: #{transformer_forward.3} parent=11 // pred_fallthru
          _
        // Predicated region
        $region17: #{transformer_forward.3} parent=11 // pred_check
          %p391 = pneg %p110
        $region18: #{transformer_forward.3} parent=11 // pred_check_branch
          %393 = sbr.rel (%p391) target = $region20
        $region19: #{transformer_forward.3} parent=11 // pred_region
          _
        $region20: #{transformer_forward.3} parent=11 // pred_fallthru
          _
        // Predicated region
        $region21: #{transformer_forward.3} parent=11 // pred_check
          %p394 = pneg %p131
        $region22: #{transformer_forward.3} parent=11 // pred_check_branch
          %396 = sbr.rel (%p394) target = $region24
        $region23: #{transformer_forward.3} parent=11 // pred_region
          _
        $region24: #{transformer_forward.3} parent=11 // pred_fallthru
          _
        // Predicated region
        $region25: #{transformer_forward.3} parent=11 // pred_check
          %p397 = pneg %p152
        $region26: #{transformer_forward.3} parent=11 // pred_check_branch
          %399 = sbr.rel (%p397) target = $region28
        $region27: #{transformer_forward.3} parent=11 // pred_region
          _
        $region28: #{transformer_forward.3} parent=11 // pred_fallthru
          _
        // Predicated region
        $region29: #{transformer_forward.3} parent=11 // pred_check
          %p400 = pneg %p173
        $region30: #{transformer_forward.3} parent=11 // pred_check_branch
          %402 = sbr.rel (%p400) target = $region32
        $region31: #{transformer_forward.3} parent=11 // pred_region
          _
        $region32: #{transformer_forward.3} parent=11 // pred_fallthru
          _
        // Predicated region
        $region33: #{transformer_forward.3} parent=11 // pred_check
          %p403 = pneg %p194
        $region34: #{transformer_forward.3} parent=11 // pred_check_branch
          %405 = sbr.rel (%p403) target = $region36
        $region35: #{transformer_forward.3} parent=11 // pred_region
          _
        $region36: #{transformer_forward.3} parent=11 // pred_fallthru
          _
        // Predicated region
        $region37: #{transformer_forward.3} parent=11 // pred_check
          %p406 = pneg %p215
        $region38: #{transformer_forward.3} parent=11 // pred_check_branch
          %408 = sbr.rel (%p406) target = $region40
        $region39: #{transformer_forward.3} parent=11 // pred_region
          _
        $region40: #{transformer_forward.3} parent=11 // pred_fallthru
          _
        // Predicated region
        $region41: #{transformer_forward.3} parent=11 // pred_check
          %p409 = pneg %p236
        $region42: #{transformer_forward.3} parent=11 // pred_check_branch
          %411 = sbr.rel (%p409) target = $region44
        $region43: #{transformer_forward.3} parent=11 // pred_region
          _
        $region44: #{transformer_forward.3} parent=11 // pred_fallthru
          _
        // Predicated region
        $region45: #{transformer_forward.3} parent=11 // pred_check
          %p412 = pneg %p257
        $region46: #{transformer_forward.3} parent=11 // pred_check_branch
          %414 = sbr.rel (%p412) target = $region48
        $region47: #{transformer_forward.3} parent=11 // pred_region
          _
        $region48: #{transformer_forward.3} parent=11 // pred_fallthru
          _
        // Predicated region
        $region49: #{transformer_forward.3} parent=11 // pred_check
          %p415 = pneg %p278
        $region50: #{transformer_forward.3} parent=11 // pred_check_branch
          %417 = sbr.rel (%p415) target = $region52
        $region51: #{transformer_forward.3} parent=11 // pred_region
          _
        $region52: #{transformer_forward.3} parent=11 // pred_fallthru
          _
        // Predicated region
        $region53: #{transformer_forward.3} parent=11 // pred_check
          %p418 = pneg %p299
        $region54: #{transformer_forward.3} parent=11 // pred_check_branch
          %420 = sbr.rel (%p418) target = $region56
        $region55: #{transformer_forward.3} parent=11 // pred_region
          _
        $region56: #{transformer_forward.3} parent=11 // pred_fallthru
          _
        // Predicated region
        $region57: #{transformer_forward.3} parent=11 // pred_check
          %p421 = pneg %p320
        $region58: #{transformer_forward.3} parent=11 // pred_check_branch
          %423 = sbr.rel (%p421) target = $region60
        $region59: #{transformer_forward.3} parent=11 // pred_region
          _
        $region60: #{transformer_forward.3} parent=11 // pred_fallthru
          _
        // Predicated region
        $region61: #{transformer_forward.3} parent=11 // pred_check
          %p424 = pneg %p341
        $region62: #{transformer_forward.3} parent=11 // pred_check_branch
          %426 = sbr.rel (%p424) target = $region64
        $region63: #{transformer_forward.3} parent=11 // pred_region
          _
        $region64: #{transformer_forward.3} parent=11 // pred_fallthru
          _
      $region12: #{transformer_forward.3} parent=5 // pred_fallthru
        _
      %p427 = scmp.lt.s32.totalorder %s23, 2
      // Predicated region
      $region65: #{transformer_forward.3} parent=5 // pred_check
        %p428 = pneg %p427
      $region66: #{transformer_forward.3} parent=5 // pred_check_branch
        %430 = sbr.rel (%p428) target = $region68
      $region67: #{transformer_forward.3} parent=5 // pred_region
        // Predicated region
        $region69: #{transformer_forward.3} parent=67 // pred_check
          %p431 = pneg %p57
        $region70: #{transformer_forward.3} parent=67 // pred_check_branch
          %433 = sbr.rel (%p431) target = $region72
        $region71: #{transformer_forward.3} parent=67 // pred_region
          %p434 = scmp.lt.s32.totalorder %s30, 1
          %s435 = scalar_select %p434, %s30, 1
          %p436 = scmp.lt.s32.totalorder %s31, 0
          %s437 = scalar_select %p436, %s31, 0
          %s438 = sadd.s32 %s437, %s435
          %s439 = smul.addr %s438, 8
          %s440 = scalar_lea.vmem %s0, %s439
        $region72: #{transformer_forward.3} parent=67 // pred_fallthru
          _
      $region68: #{transformer_forward.3} parent=5 // pred_fallthru
        _
      %p441 = scmp.le.s32.totalorder 1, %s23
      %p442 = scmp.lt.s32.totalorder %s23, 3
      %p443 = pnand %p441, %p442
      %p444 = pneg %p443
      // Predicated region
      $region73: #{transformer_forward.3} parent=5 // pred_check
        _
      $region74: #{transformer_forward.3} parent=5 // pred_check_branch
        %446 = sbr.rel (%p443) target = $region76
      $region75: #{transformer_forward.3} parent=5 // pred_region
        %s447 = ssub.s32 %s23, 1
        %p448 = scmp.lt.s32.totalorder %s32, 1
        %s449 = scalar_select %p448, %s32, 1
        %p450 = scmp.lt.s32.totalorder %s33, 0
        %s451 = scalar_select %p450, %s33, 0
        %s452 = sadd.s32 %s451, %s449
        %s453 = smul.addr %s452, 8
        %s454 = scalar_lea.vmem %s0, %s453
        %p455 = pneg %p63
        %p456 = pneg %p60
        %p457 = scmp.lt.s32.totalorder %s33, 0
        %s458 = scalar_select %p457, %s33, 0
        %s459 = smul.addr %s458, 4
        %s460 = scalar_lea.vmem %s1, %s459
        %p461 = pneg %p89
        %p462 = pneg %p86
        %p463 = pneg %p110
        %p464 = pneg %p107
        %p465 = pneg %p131
        %p466 = pneg %p128
        %p467 = pneg %p152
        %p468 = pneg %p149
        %p469 = pneg %p173
        %p470 = pneg %p170
        %p471 = pneg %p194
        %p472 = pneg %p191
        %p473 = pneg %p215
        %p474 = pneg %p212
        %p475 = pneg %p236
        %p476 = pneg %p233
        %p477 = pneg %p257
        %p478 = pneg %p254
        %p479 = pneg %p278
        %p480 = pneg %p275
        %p481 = pneg %p299
        %p482 = pneg %p296
        %p483 = pneg %p320
        %p484 = pneg %p317
        %p485 = pneg %p341
        %p486 = pneg %p338
        %p487 = pneg %p369
        %p488 = pneg %p366
        %s489 = sand.u32 %s356, 1
        %s490 = scalar_lea.sflag [#allocation3], %s489
        %s491 = sand.u32 %s356, 1
        %s492 = smul.addr %s491, 8
        %s493 = scalar_lea.vmem [#allocation2], %s492
        %p494 = scmp.lt.s32.totalorder %s32, 1
        %s495 = scalar_select %p494, %s32, 1
        %p496 = scmp.lt.s32.totalorder %s33, 0
        %s497 = scalar_select %p496, %s33, 0
        %s498 = sadd.s32 %s497, %s495
        %s499 = smul.addr %s498, 8
        %s500 = scalar_lea.vmem %s0, %s499
        %p501 = scmp.lt.s32.totalorder %s33, 0
        %s502 = scalar_select %p501, %s33, 0
        %s503 = smul.addr %s502, 4
        %s504 = scalar_lea.vmem %s1, %s503
        %v506 = vld [vmem:[%s500] sm:$0xff]
        %v507 = vld [vmem:[%s2] sm:$0x1]
        %v508 = vld [vmem:[%s3] sm:$0x1]
        %vm509 = vcmask 261120
        %v510 = vsel %vm509, %v506, 0.0
        %511 = vadd.xlane.f32.xlu0 %v510
        %v512 = vpop.xlane.xlu0 %511
        %v513 = vrcp.pop 32.0
        %v514 = vmul.f32 %v512, %v513
        %v515 = vsub.f32 %v506, %v514
        %v516 = vmul.f32 %v515, %v515
        %v517 = vsel %vm509, %v516, 0.0
        %518 = vadd.xlane.f32.xlu0 %v517
        %v519 = vpop.xlane.xlu0 %518
        %v520 = vmul.f32 %v519, %v513
        %v521 = vadd.f32 %v520, 1e-05
        %v522 = vrsqrt.pop %v521
        %v523 = vmul.f32 %v515, %v522
        %v525 = vlaneseq
        %v526 = vshrl.u32 %v525, 7
        %v527 = vsub.s32 0, %v526
        %v528 = vrot.slane %v507, %v527
        %v530 = vmul.f32 %v523, %v528
        %v532 = vlaneseq
        %v533 = vshrl.u32 %v532, 7
        %v534 = vsub.s32 0, %v533
        %v535 = vrot.slane %v508, %v534
        %v537 = vadd.f32 %v530, %v535
        %v538 = vpack.c.bf16 %v537, %v537
        %v539 = vld [vmem:[%s4] sm:$0xf]
        %v540 = vld [vmem:[%s4 + $0x4] sm:$0xf]
        %v541 = vld [vmem:[%s4 + $0x8] sm:$0xf]
        %v542 = vld [vmem:[%s4 + $0xc] sm:$0xf]
        %v543 = vld [vmem:[%s5] sm:$0x1]
        %v545 = vlaneseq
        %v546 = vshrl.u32 %v545, 7
        %v547 = vsub.s32 0, %v546
        %v548 = vrot.slane %v543, %v547
        %v554 = vunpack.c.l.b16 %v539
        %v555 = vunpack.c.l.b16 %v540
        %v556 = vunpack.c.l.b16 %v541
        %v557 = vunpack.c.l.b16 %v542
        %v558 = vpack.c.b16 %v555, %v554
        %v559 = vpack.c.b16 %v557, %v556
        %v563 = vsel %vm509, %v538, 0
        %565 = vmatprep.subr.bf16.mxu0 0
        %566 = vmatpush1.bf16.msra.mxu0 %v558
        %567 = vmatprep.subr.bf16.mxu0 0
        %568 = vmatpush1.bf16.msra.mxu0 %v559
        %569 = vmatprep.subr.bf16.mxu0 0
        %570 = vmatpush1.bf16.msra.mxu0 0
        %571 = vmatprep.subr.bf16.mxu0 0
        %572 = vmatpush1.bf16.msra.mxu0 0
        %573 = vmatprep.subr.bf16.mxu0 0
        %574 = vmatpush1.bf16.msra.mxu0 0
        %575 = vmatprep.subr.bf16.mxu0 0
        %576 = vmatpush1.bf16.msra.mxu0 0
        %577 = vmatprep.subr.bf16.mxu0 0
        %578 = vmatpush1.bf16.msra.mxu0 0
        %579 = vmatprep.subr.bf16.mxu0 0
        %580 = vmatpush1.bf16.msra.mxu0 0
        %581 = vmatprep.subr.bf16.mxu0 0
        %582 = vmatpush1.bf16.msra.mxu0 0
        %583 = vmatprep.subr.bf16.mxu0 0
        %584 = vmatpush1.bf16.msra.mxu0 0
        %585 = vmatprep.subr.bf16.mxu0 0
        %586 = vmatpush1.bf16.msra.mxu0 0
        %587 = vmatprep.subr.bf16.mxu0 0
        %588 = vmatpush1.bf16.msra.mxu0 0
        %589 = vmatprep.subr.bf16.mxu0 0
        %590 = vmatpush1.bf16.msra.mxu0 0
        %591 = vmatprep.subr.bf16.mxu0 0
        %592 = vmatpush1.bf16.msra.mxu0 0
        %593 = vmatprep.subr.bf16.mxu0 0
        %594 = vmatpush1.bf16.msra.mxu0 0
        %595 = vmatprep.subr.bf16.mxu0 0
        %596 = vmatpush1.bf16.msra.mxu0 0
        %597 = vmatprep.mubr.bf16.mxu0 0
        %598 = vmatmul.mubr.bf16.gmra.mrb[0].mxu0 %v563
        %v599 = vpop.f32.mrb[0].mxu0
        %v600 = vadd.f32 %v548, %v599
        %v601 = vpop.f32.mrb[0].mxu0
        %v602 = vpop.f32.mrb[0].mxu0
        %v603 = vpop.f32.mrb[0].mxu0
        %604 = vdwg.mxu0
        %v605 = vld [vmem:[%s504] sm:$0xf]
        %v606 = vpack.c.bf16 %v600, %v600
        %608 = vrot.lane.b32.xlu0 %v606, 120
        %v609 = vpop.permute.xlu0 %608
        %610 = vrot.lane.b32.xlu0 %v606, 112
        %v611 = vpop.permute.xlu0 %610
        %612 = vrot.lane.b32.xlu0 %v606, 104
        %v613 = vpop.permute.xlu0 %612
        %v615 = vunpack.c.l.s4 1983009808
        %v616 = vunpack.c.0.s8 %v615
        %v617 = vlaneseq
        %v618 = vshrl.u32 %v617, 7
        %v619 = vsub.s32 %v616, %v618
        %v620 = vrot.slane %v606, %v619
        %v623 = vunpack.c.l.s4 1983009808
        %v624 = vunpack.c.0.s8 %v623
        %v625 = vlaneseq
        %v626 = vshrl.u32 %v625, 7
        %v627 = vsub.s32 %v624, %v626
        %v628 = vrot.slane %v611, %v627
        %v629 = vcombine.low %v620, %v628
        %v630 = vcombine.high %v620, %v628
        %v632 = vunpack.c.l.s4 1934713408
        %v633 = vunpack.c.0.s8 %v632
        %v634 = vlaneseq
        %v635 = vshrl.u32 %v634, 7
        %v636 = vsub.s32 %v633, %v635
        %v637 = vrot.slane %v629, %v636
        %v639 = vunpack.c.l.s4 1934713408
        %v640 = vunpack.c.0.s8 %v639
        %v641 = vlaneseq
        %v642 = vshrl.u32 %v641, 7
        %v643 = vsub.s32 %v640, %v642
        %v644 = vrot.slane %v630, %v643
        %v645 = vcombine.high %v637, 0
        %v646 = vcombine.high %v644, 0
        %v649 = vunpack.c.l.s4 1983009808
        %v650 = vunpack.c.0.s8 %v649
        %v651 = vlaneseq
        %v652 = vshrl.u32 %v651, 7
        %v653 = vsub.s32 %v650, %v652
        %v654 = vrot.slane %v609, %v653
        %v657 = vunpack.c.l.s4 1983009808
        %v658 = vunpack.c.0.s8 %v657
        %v659 = vlaneseq
        %v660 = vshrl.u32 %v659, 7
        %v661 = vsub.s32 %v658, %v660
        %v662 = vrot.slane %v613, %v661
        %v663 = vcombine.low %v654, %v662
        %v664 = vcombine.high %v654, %v662
        %v666 = vunpack.c.l.s4 1934713408
        %v667 = vunpack.c.0.s8 %v666
        %v668 = vlaneseq
        %v669 = vshrl.u32 %v668, 7
        %v670 = vsub.s32 %v667, %v669
        %v671 = vrot.slane %v663, %v670
        %v673 = vunpack.c.l.s4 1934713408
        %v674 = vunpack.c.0.s8 %v673
        %v675 = vlaneseq
        %v676 = vshrl.u32 %v675, 7
        %v677 = vsub.s32 %v674, %v676
        %v678 = vrot.slane %v664, %v677
        %v679 = vcombine.high %v671, 0
        %v680 = vcombine.high %v678, 0
        %v683 = vpack.i.b16 %v671, %v637
        %v685 = vshrl.u32 %v637, 16
        %v686 = vshrl.u32 %v671, 16
        %v687 = vpack.i.b16 %v686, %v685
        %v691 = vpack.i.b16 %v679, %v645
        %v693 = vshrl.u32 %v645, 16
        %v694 = vshrl.u32 %v679, 16
        %v695 = vpack.i.b16 %v694, %v693
        %v699 = vpack.i.b16 %v678, %v644
        %v701 = vshrl.u32 %v644, 16
        %v702 = vshrl.u32 %v678, 16
        %v703 = vpack.i.b16 %v702, %v701
        %v707 = vpack.i.b16 %v680, %v646
        %v709 = vshrl.u32 %v646, 16
        %v710 = vshrl.u32 %v680, 16
        %v711 = vpack.i.b16 %v710, %v709
        %v713 = vcombine.low %v683, %v699
        %v715 = vunpack.c.l.s4 1983009808
        %v716 = vunpack.c.0.s8 %v715
        %v717 = vlaneseq
        %v718 = vshrl.u32 %v717, 7
        %v719 = vsub.s32 %v716, %v718
        %v720 = vrot.slane %v713, %v719
        %v721 = vcombine.low %v691, %v707
        %v723 = vunpack.c.l.s4 1983009808
        %v724 = vunpack.c.0.s8 %v723
        %v725 = vlaneseq
        %v726 = vshrl.u32 %v725, 7
        %v727 = vsub.s32 %v724, %v726
        %v728 = vrot.slane %v721, %v727
        %v729 = vcombine.low %v720, %v728
        %v731 = vunpack.c.l.s4 1934713408
        %v732 = vunpack.c.0.s8 %v731
        %v733 = vlaneseq
        %v734 = vshrl.u32 %v733, 7
        %v735 = vsub.s32 %v732, %v734
        %v736 = vrot.slane %v729, %v735
        %v737 = vcombine.high %v736, 0
        %v738 = vcombine.low %v687, %v703
        %v740 = vunpack.c.l.s4 1983009808
        %v741 = vunpack.c.0.s8 %v740
        %v742 = vlaneseq
        %v743 = vshrl.u32 %v742, 7
        %v744 = vsub.s32 %v741, %v743
        %v745 = vrot.slane %v738, %v744
        %v746 = vcombine.low %v695, %v711
        %v748 = vunpack.c.l.s4 1983009808
        %v749 = vunpack.c.0.s8 %v748
        %v750 = vlaneseq
        %v751 = vshrl.u32 %v750, 7
        %v752 = vsub.s32 %v749, %v751
        %v753 = vrot.slane %v746, %v752
        %v754 = vcombine.low %v745, %v753
        %v756 = vunpack.c.l.s4 1934713408
        %v757 = vunpack.c.0.s8 %v756
        %v758 = vlaneseq
        %v759 = vshrl.u32 %v758, 7
        %v760 = vsub.s32 %v757, %v759
        %v761 = vrot.slane %v754, %v760
        %v762 = vcombine.high %v761, 0
        %v765 = vpack.i.b16 %v761, %v736
        %v766 = vshrl.u32 %v736, 16
        %v767 = vshrl.u32 %v761, 16
        %v768 = vpack.i.b16 %v767, %v766
        %v771 = vpack.i.b16 %v762, %v737
        %v772 = vshrl.u32 %v737, 16
        %v773 = vshrl.u32 %v762, 16
        %v774 = vpack.i.b16 %v773, %v772
        %775 = vrot.lane.b32.xlu0 %v606, 96
        %v776 = vpop.permute.xlu0 %775
        %777 = vrot.lane.b32.xlu0 %v609, 96
        %v778 = vpop.permute.xlu0 %777
        %779 = vrot.lane.b32.xlu0 %v611, 96
        %v780 = vpop.permute.xlu0 %779
        %781 = vrot.lane.b32.xlu0 %v613, 96
        %v782 = vpop.permute.xlu0 %781
        %v785 = vunpack.c.l.s4 1983009808
        %v786 = vunpack.c.0.s8 %v785
        %v787 = vlaneseq
        %v788 = vshrl.u32 %v787, 7
        %v789 = vsub.s32 %v786, %v788
        %v790 = vrot.slane %v776, %v789
        %v793 = vunpack.c.l.s4 1983009808
        %v794 = vunpack.c.0.s8 %v793
        %v795 = vlaneseq
        %v796 = vshrl.u32 %v795, 7
        %v797 = vsub.s32 %v794, %v796
        %v798 = vrot.slane %v780, %v797
        %v799 = vcombine.low %v790, %v798
        %v800 = vcombine.high %v790, %v798
        %v802 = vunpack.c.l.s4 1934713408
        %v803 = vunpack.c.0.s8 %v802
        %v804 = vlaneseq
        %v805 = vshrl.u32 %v804, 7
        %v806 = vsub.s32 %v803, %v805
        %v807 = vrot.slane %v799, %v806
        %v809 = vunpack.c.l.s4 1934713408
        %v810 = vunpack.c.0.s8 %v809
        %v811 = vlaneseq
        %v812 = vshrl.u32 %v811, 7
        %v813 = vsub.s32 %v810, %v812
        %v814 = vrot.slane %v800, %v813
        %v815 = vcombine.high %v807, 0
        %v816 = vcombine.high %v814, 0
        %v819 = vunpack.c.l.s4 1983009808
        %v820 = vunpack.c.0.s8 %v819
        %v821 = vlaneseq
        %v822 = vshrl.u32 %v821, 7
        %v823 = vsub.s32 %v820, %v822
        %v824 = vrot.slane %v778, %v823
        %v827 = vunpack.c.l.s4 1983009808
        %v828 = vunpack.c.0.s8 %v827
        %v829 = vlaneseq
        %v830 = vshrl.u32 %v829, 7
        %v831 = vsub.s32 %v828, %v830
        %v832 = vrot.slane %v782, %v831
        %v833 = vcombine.low %v824, %v832
        %v834 = vcombine.high %v824, %v832
        %v836 = vunpack.c.l.s4 1934713408
        %v837 = vunpack.c.0.s8 %v836
        %v838 = vlaneseq
        %v839 = vshrl.u32 %v838, 7
        %v840 = vsub.s32 %v837, %v839
        %v841 = vrot.slane %v833, %v840
        %v843 = vunpack.c.l.s4 1934713408
        %v844 = vunpack.c.0.s8 %v843
        %v845 = vlaneseq
        %v846 = vshrl.u32 %v845, 7
        %v847 = vsub.s32 %v844, %v846
        %v848 = vrot.slane %v834, %v847
        %v849 = vcombine.high %v841, 0
        %v850 = vcombine.high %v848, 0
        %v853 = vpack.i.b16 %v841, %v807
        %v855 = vshrl.u32 %v807, 16
        %v856 = vshrl.u32 %v841, 16
        %v857 = vpack.i.b16 %v856, %v855
        %v861 = vpack.i.b16 %v849, %v815
        %v863 = vshrl.u32 %v815, 16
        %v864 = vshrl.u32 %v849, 16
        %v865 = vpack.i.b16 %v864, %v863
        %v869 = vpack.i.b16 %v848, %v814
        %v871 = vshrl.u32 %v814, 16
        %v872 = vshrl.u32 %v848, 16
        %v873 = vpack.i.b16 %v872, %v871
        %v877 = vpack.i.b16 %v850, %v816
        %v879 = vshrl.u32 %v816, 16
        %v880 = vshrl.u32 %v850, 16
        %v881 = vpack.i.b16 %v880, %v879
        %v883 = vcombine.low %v853, %v869
        %v885 = vunpack.c.l.s4 1983009808
        %v886 = vunpack.c.0.s8 %v885
        %v887 = vlaneseq
        %v888 = vshrl.u32 %v887, 7
        %v889 = vsub.s32 %v886, %v888
        %v890 = vrot.slane %v883, %v889
        %v891 = vcombine.low %v861, %v877
        %v893 = vunpack.c.l.s4 1983009808
        %v894 = vunpack.c.0.s8 %v893
        %v895 = vlaneseq
        %v896 = vshrl.u32 %v895, 7
        %v897 = vsub.s32 %v894, %v896
        %v898 = vrot.slane %v891, %v897
        %v899 = vcombine.low %v890, %v898
        %v901 = vunpack.c.l.s4 1934713408
        %v902 = vunpack.c.0.s8 %v901
        %v903 = vlaneseq
        %v904 = vshrl.u32 %v903, 7
        %v905 = vsub.s32 %v902, %v904
        %v906 = vrot.slane %v899, %v905
        %v907 = vcombine.high %v906, 0
        %v908 = vcombine.low %v857, %v873
        %v910 = vunpack.c.l.s4 1983009808
        %v911 = vunpack.c.0.s8 %v910
        %v912 = vlaneseq
        %v913 = vshrl.u32 %v912, 7
        %v914 = vsub.s32 %v911, %v913
        %v915 = vrot.slane %v908, %v914
        %v916 = vcombine.low %v865, %v881
        %v918 = vunpack.c.l.s4 1983009808
        %v919 = vunpack.c.0.s8 %v918
        %v920 = vlaneseq
        %v921 = vshrl.u32 %v920, 7
        %v922 = vsub.s32 %v919, %v921
        %v923 = vrot.slane %v916, %v922
        %v924 = vcombine.low %v915, %v923
        %v926 = vunpack.c.l.s4 1934713408
        %v927 = vunpack.c.0.s8 %v926
        %v928 = vlaneseq
        %v929 = vshrl.u32 %v928, 7
        %v930 = vsub.s32 %v927, %v929
        %v931 = vrot.slane %v924, %v930
        %v932 = vcombine.high %v931, 0
        %v935 = vpack.i.b16 %v931, %v906
        %v936 = vshrl.u32 %v906, 16
        %v937 = vshrl.u32 %v931, 16
        %v938 = vpack.i.b16 %v937, %v936
        %v941 = vpack.i.b16 %v932, %v907
        %v942 = vshrl.u32 %v907, 16
        %v943 = vshrl.u32 %v932, 16
        %v944 = vpack.i.b16 %v943, %v942
        %945 = vrot.lane.b32.xlu0 %v606, 64
        %v946 = vpop.permute.xlu0 %945
        %947 = vrot.lane.b32.xlu0 %v609, 64
        %v948 = vpop.permute.xlu0 %947
        %949 = vrot.lane.b32.xlu0 %v611, 64
        %v950 = vpop.permute.xlu0 %949
        %951 = vrot.lane.b32.xlu0 %v613, 64
        %v952 = vpop.permute.xlu0 %951
        %v955 = vunpack.c.l.s4 1983009808
        %v956 = vunpack.c.0.s8 %v955
        %v957 = vlaneseq
        %v958 = vshrl.u32 %v957, 7
        %v959 = vsub.s32 %v956, %v958
        %v960 = vrot.slane %v946, %v959
        %v963 = vunpack.c.l.s4 1983009808
        %v964 = vunpack.c.0.s8 %v963
        %v965 = vlaneseq
        %v966 = vshrl.u32 %v965, 7
        %v967 = vsub.s32 %v964, %v966
        %v968 = vrot.slane %v950, %v967
        %v969 = vcombine.low %v960, %v968
        %v970 = vcombine.high %v960, %v968
        %v972 = vunpack.c.l.s4 1934713408
        %v973 = vunpack.c.0.s8 %v972
        %v974 = vlaneseq
        %v975 = vshrl.u32 %v974, 7
        %v976 = vsub.s32 %v973, %v975
        %v977 = vrot.slane %v969, %v976
        %v979 = vunpack.c.l.s4 1934713408
        %v980 = vunpack.c.0.s8 %v979
        %v981 = vlaneseq
        %v982 = vshrl.u32 %v981, 7
        %v983 = vsub.s32 %v980, %v982
        %v984 = vrot.slane %v970, %v983
        %v985 = vcombine.high %v977, 0
        %v986 = vcombine.high %v984, 0
        %v989 = vunpack.c.l.s4 1983009808
        %v990 = vunpack.c.0.s8 %v989
        %v991 = vlaneseq
        %v992 = vshrl.u32 %v991, 7
        %v993 = vsub.s32 %v990, %v992
        %v994 = vrot.slane %v948, %v993
        %v997 = vunpack.c.l.s4 1983009808
        %v998 = vunpack.c.0.s8 %v997
        %v999 = vlaneseq
        %v1000 = vshrl.u32 %v999, 7
        %v1001 = vsub.s32 %v998, %v1000
        %v1002 = vrot.slane %v952, %v1001
        %v1003 = vcombine.low %v994, %v1002
        %v1004 = vcombine.high %v994, %v1002
        %v1006 = vunpack.c.l.s4 1934713408
        %v1007 = vunpack.c.0.s8 %v1006
        %v1008 = vlaneseq
        %v1009 = vshrl.u32 %v1008, 7
        %v1010 = vsub.s32 %v1007, %v1009
        %v1011 = vrot.slane %v1003, %v1010
        %v1013 = vunpack.c.l.s4 1934713408
        %v1014 = vunpack.c.0.s8 %v1013
        %v1015 = vlaneseq
        %v1016 = vshrl.u32 %v1015, 7
        %v1017 = vsub.s32 %v1014, %v1016
        %v1018 = vrot.slane %v1004, %v1017
        %v1019 = vcombine.high %v1011, 0
        %v1020 = vcombine.high %v1018, 0
        %v1023 = vpack.i.b16 %v1011, %v977
        %v1025 = vshrl.u32 %v977, 16
        %v1026 = vshrl.u32 %v1011, 16
        %v1027 = vpack.i.b16 %v1026, %v1025
        %v1031 = vpack.i.b16 %v1019, %v985
        %v1033 = vshrl.u32 %v985, 16
        %v1034 = vshrl.u32 %v1019, 16
        %v1035 = vpack.i.b16 %v1034, %v1033
        %v1039 = vpack.i.b16 %v1018, %v984
        %v1041 = vshrl.u32 %v984, 16
        %v1042 = vshrl.u32 %v1018, 16
        %v1043 = vpack.i.b16 %v1042, %v1041
        %v1047 = vpack.i.b16 %v1020, %v986
        %v1049 = vshrl.u32 %v986, 16
        %v1050 = vshrl.u32 %v1020, 16
        %v1051 = vpack.i.b16 %v1050, %v1049
        %v1053 = vcombine.low %v1023, %v1039
        %v1055 = vunpack.c.l.s4 1983009808
        %v1056 = vunpack.c.0.s8 %v1055
        %v1057 = vlaneseq
        %v1058 = vshrl.u32 %v1057, 7
        %v1059 = vsub.s32 %v1056, %v1058
        %v1060 = vrot.slane %v1053, %v1059
        %v1061 = vcombine.low %v1031, %v1047
        %v1063 = vunpack.c.l.s4 1983009808
        %v1064 = vunpack.c.0.s8 %v1063
        %v1065 = vlaneseq
        %v1066 = vshrl.u32 %v1065, 7
        %v1067 = vsub.s32 %v1064, %v1066
        %v1068 = vrot.slane %v1061, %v1067
        %v1069 = vcombine.low %v1060, %v1068
        %v1071 = vunpack.c.l.s4 1934713408
        %v1072 = vunpack.c.0.s8 %v1071
        %v1073 = vlaneseq
        %v1074 = vshrl.u32 %v1073, 7
        %v1075 = vsub.s32 %v1072, %v1074
        %v1076 = vrot.slane %v1069, %v1075
        %v1077 = vcombine.high %v1076, 0
        %v1078 = vcombine.low %v1027, %v1043
        %v1080 = vunpack.c.l.s4 1983009808
        %v1081 = vunpack.c.0.s8 %v1080
        %v1082 = vlaneseq
        %v1083 = vshrl.u32 %v1082, 7
        %v1084 = vsub.s32 %v1081, %v1083
        %v1085 = vrot.slane %v1078, %v1084
        %v1086 = vcombine.low %v1035, %v1051
        %v1088 = vunpack.c.l.s4 1983009808
        %v1089 = vunpack.c.0.s8 %v1088
        %v1090 = vlaneseq
        %v1091 = vshrl.u32 %v1090, 7
        %v1092 = vsub.s32 %v1089, %v1091
        %v1093 = vrot.slane %v1086, %v1092
        %v1094 = vcombine.low %v1085, %v1093
        %v1096 = vunpack.c.l.s4 1934713408
        %v1097 = vunpack.c.0.s8 %v1096
        %v1098 = vlaneseq
        %v1099 = vshrl.u32 %v1098, 7
        %v1100 = vsub.s32 %v1097, %v1099
        %v1101 = vrot.slane %v1094, %v1100
        %v1102 = vcombine.high %v1101, 0
        %v1105 = vpack.i.b16 %v1101, %v1076
        %v1106 = vshrl.u32 %v1076, 16
        %v1107 = vshrl.u32 %v1101, 16
        %v1108 = vpack.i.b16 %v1107, %v1106
        %v1111 = vpack.i.b16 %v1102, %v1077
        %v1112 = vshrl.u32 %v1077, 16
        %v1113 = vshrl.u32 %v1102, 16
        %v1114 = vpack.i.b16 %v1113, %v1112
        %v1115 = vunpack.c.l.bf16 %v605
        %vm1116 = vcmask 64512
        %v1118 = vsel %vm1116, %v765, 0
        %v1121 = vsel %vm1116, %v935, 0
        %1123 = vmatprep.subr.bf16.mxu0 0
        %1124 = vmatpush1.bf16.xpose.msra.mxu0 %v1121
        %1125 = vmatprep.subr.bf16.mxu0 0
        %1126 = vmatpush1.bf16.xpose.msra.mxu0 0
        %1127 = vmatprep.subr.bf16.mxu0 0
        %1128 = vmatpush1.bf16.xpose.msra.mxu0 0
        %1129 = vmatprep.subr.bf16.mxu0 0
        %1130 = vmatpush1.bf16.xpose.msra.mxu0 0
        %1131 = vmatprep.subr.bf16.mxu0 0
        %1132 = vmatpush1.bf16.xpose.msra.mxu0 0
        %1133 = vmatprep.subr.bf16.mxu0 0
        %1134 = vmatpush1.bf16.xpose.msra.mxu0 0
        %1135 = vmatprep.subr.bf16.mxu0 0
        %1136 = vmatpush1.bf16.xpose.msra.mxu0 0
        %1137 = vmatprep.subr.bf16.mxu0 0
        %1138 = vmatpush1.bf16.xpose.msra.mxu0 0
        %1139 = vmatprep.subr.bf16.mxu0 0
        %1140 = vmatpush1.bf16.xpose.msra.mxu0 0
        %1141 = vmatprep.subr.bf16.mxu0 0
        %1142 = vmatpush1.bf16.xpose.msra.mxu0 0
        %1143 = vmatprep.subr.bf16.mxu0 0
        %1144 = vmatpush1.bf16.xpose.msra.mxu0 0
        %1145 = vmatprep.subr.bf16.mxu0 0
        %1146 = vmatpush1.bf16.xpose.msra.mxu0 0
        %1147 = vmatprep.subr.bf16.mxu0 0
        %1148 = vmatpush1.bf16.xpose.msra.mxu0 0
        %1149 = vmatprep.subr.bf16.mxu0 0
        %1150 = vmatpush1.bf16.xpose.msra.mxu0 0
        %1151 = vmatprep.subr.bf16.mxu0 0
        %1152 = vmatpush1.bf16.xpose.msra.mxu0 0
        %1153 = vmatprep.subr.bf16.mxu0 0
        %1154 = vmatpush1.bf16.xpose.msra.mxu0 0
        %1155 = vmatprep.mubr.bf16.mxu0 0
        %1156 = vmatmul.mubr.bf16.gmra.mrb[0].mxu0 %v1118
        %v1157 = vpop.f32.mrb[0].mxu0
        %v1158 = vadd.f32 %v1115, %v1157
        %v1159 = vpop.f32.mrb[0].mxu0
        %v1160 = vpop.f32.mrb[0].mxu0
        %v1161 = vpop.f32.mrb[0].mxu0
        %1162 = vdwg.mxu0
        %v1164 = vsel %vm1116, %v768, 0
        %v1167 = vsel %vm1116, %v938, 0
        %1169 = vmatprep.subr.bf16.mxu0 0
        %1170 = vmatpush1.bf16.xpose.msra.mxu0 %v1167
        %1171 = vmatprep.subr.bf16.mxu0 0
        %1172 = vmatpush1.bf16.xpose.msra.mxu0 0
        %1173 = vmatprep.subr.bf16.mxu0 0
        %1174 = vmatpush1.bf16.xpose.msra.mxu0 0
        %1175 = vmatprep.subr.bf16.mxu0 0
        %1176 = vmatpush1.bf16.xpose.msra.mxu0 0
        %1177 = vmatprep.subr.bf16.mxu0 0
        %1178 = vmatpush1.bf16.xpose.msra.mxu0 0
        %1179 = vmatprep.subr.bf16.mxu0 0
        %1180 = vmatpush1.bf16.xpose.msra.mxu0 0
        %1181 = vmatprep.subr.bf16.mxu0 0
        %1182 = vmatpush1.bf16.xpose.msra.mxu0 0
        %1183 = vmatprep.subr.bf16.mxu0 0
        %1184 = vmatpush1.bf16.xpose.msra.mxu0 0
        %1185 = vmatprep.subr.bf16.mxu0 0
        %1186 = vmatpush1.bf16.xpose.msra.mxu0 0
        %1187 = vmatprep.subr.bf16.mxu0 0
        %1188 = vmatpush1.bf16.xpose.msra.mxu0 0
        %1189 = vmatprep.subr.bf16.mxu0 0
        %1190 = vmatpush1.bf16.xpose.msra.mxu0 0
        %1191 = vmatprep.subr.bf16.mxu0 0
        %1192 = vmatpush1.bf16.xpose.msra.mxu0 0
        %1193 = vmatprep.subr.bf16.mxu0 0
        %1194 = vmatpush1.bf16.xpose.msra.mxu0 0
        %1195 = vmatprep.subr.bf16.mxu0 0
        %1196 = vmatpush1.bf16.xpose.msra.mxu0 0
        %1197 = vmatprep.subr.bf16.mxu0 0
        %1198 = vmatpush1.bf16.xpose.msra.mxu0 0
        %1199 = vmatprep.subr.bf16.mxu0 0
        %1200 = vmatpush1.bf16.xpose.msra.mxu0 0
        %1201 = vmatprep.mubr.bf16.mxu0 0
        %1202 = vmatmul.mubr.bf16.gmra.mrb[0].mxu0 %v1164
        %v1203 = vpop.f32.mrb[0].mxu0
        %v1204 = vadd.f32 %v1115, %v1203
        %v1205 = vpop.f32.mrb[0].mxu0
        %v1206 = vpop.f32.mrb[0].mxu0
        %v1207 = vpop.f32.mrb[0].mxu0
        %1208 = vdwg.mxu0
        %v1210 = vsel %vm1116, %v771, 0
        %v1213 = vsel %vm1116, %v941, 0
        %1215 = vmatprep.subr.bf16.mxu0 0
        %1216 = vmatpush1.bf16.xpose.msra.mxu0 %v1213
        %1217 = vmatprep.subr.bf16.mxu0 0
        %1218 = vmatpush1.bf16.xpose.msra.mxu0 0
        %1219 = vmatprep.subr.bf16.mxu0 0
        %1220 = vmatpush1.bf16.xpose.msra.mxu0 0
        %1221 = vmatprep.subr.bf16.mxu0 0
        %1222 = vmatpush1.bf16.xpose.msra.mxu0 0
        %1223 = vmatprep.subr.bf16.mxu0 0
        %1224 = vmatpush1.bf16.xpose.msra.mxu0 0
        %1225 = vmatprep.subr.bf16.mxu0 0
        %1226 = vmatpush1.bf16.xpose.msra.mxu0 0
        %1227 = vmatprep.subr.bf16.mxu0 0
        %1228 = vmatpush1.bf16.xpose.msra.mxu0 0
        %1229 = vmatprep.subr.bf16.mxu0 0
        %1230 = vmatpush1.bf16.xpose.msra.mxu0 0
        %1231 = vmatprep.subr.bf16.mxu0 0
        %1232 = vmatpush1.bf16.xpose.msra.mxu0 0
        %1233 = vmatprep.subr.bf16.mxu0 0
        %1234 = vmatpush1.bf16.xpose.msra.mxu0 0
        %1235 = vmatprep.subr.bf16.mxu0 0
        %1236 = vmatpush1.bf16.xpose.msra.mxu0 0
        %1237 = vmatprep.subr.bf16.mxu0 0
        %1238 = vmatpush1.bf16.xpose.msra.mxu0 0
        %1239 = vmatprep.subr.bf16.mxu0 0
        %1240 = vmatpush1.bf16.xpose.msra.mxu0 0
        %1241 = vmatprep.subr.bf16.mxu0 0
        %1242 = vmatpush1.bf16.xpose.msra.mxu0 0
        %1243 = vmatprep.subr.bf16.mxu0 0
        %1244 = vmatpush1.bf16.xpose.msra.mxu0 0
        %1245 = vmatprep.subr.bf16.mxu0 0
        %1246 = vmatpush1.bf16.xpose.msra.mxu0 0
        %1247 = vmatprep.mubr.bf16.mxu0 0
        %1248 = vmatmul.mubr.bf16.gmra.mrb[0].mxu0 %v1210
        %v1249 = vpop.f32.mrb[0].mxu0
        %v1250 = vadd.f32 %v1115, %v1249
        %v1251 = vpop.f32.mrb[0].mxu0
        %v1252 = vpop.f32.mrb[0].mxu0
        %v1253 = vpop.f32.mrb[0].mxu0
        %1254 = vdwg.mxu0
        %v1256 = vsel %vm1116, %v774, 0
        %v1259 = vsel %vm1116, %v944, 0
        %1261 = vmatprep.subr.bf16.mxu0 0
        %1262 = vmatpush1.bf16.xpose.msra.mxu0 %v1259
        %1263 = vmatprep.subr.bf16.mxu0 0
        %1264 = vmatpush1.bf16.xpose.msra.mxu0 0
        %1265 = vmatprep.subr.bf16.mxu0 0
        %1266 = vmatpush1.bf16.xpose.msra.mxu0 0
        %1267 = vmatprep.subr.bf16.mxu0 0
        %1268 = vmatpush1.bf16.xpose.msra.mxu0 0
        %1269 = vmatprep.subr.bf16.mxu0 0
        %1270 = vmatpush1.bf16.xpose.msra.mxu0 0
        %1271 = vmatprep.subr.bf16.mxu0 0
        %1272 = vmatpush1.bf16.xpose.msra.mxu0 0
        %1273 = vmatprep.subr.bf16.mxu0 0
        %1274 = vmatpush1.bf16.xpose.msra.mxu0 0
        %1275 = vmatprep.subr.bf16.mxu0 0
        %1276 = vmatpush1.bf16.xpose.msra.mxu0 0
        %1277 = vmatprep.subr.bf16.mxu0 0
        %1278 = vmatpush1.bf16.xpose.msra.mxu0 0
        %1279 = vmatprep.subr.bf16.mxu0 0
        %1280 = vmatpush1.bf16.xpose.msra.mxu0 0
        %1281 = vmatprep.subr.bf16.mxu0 0
        %1282 = vmatpush1.bf16.xpose.msra.mxu0 0
        %1283 = vmatprep.subr.bf16.mxu0 0
        %1284 = vmatpush1.bf16.xpose.msra.mxu0 0
        %1285 = vmatprep.subr.bf16.mxu0 0
        %1286 = vmatpush1.bf16.xpose.msra.mxu0 0
        %1287 = vmatprep.subr.bf16.mxu0 0
        %1288 = vmatpush1.bf16.xpose.msra.mxu0 0
        %1289 = vmatprep.subr.bf16.mxu0 0
        %1290 = vmatpush1.bf16.xpose.msra.mxu0 0
        %1291 = vmatprep.subr.bf16.mxu0 0
        %1292 = vmatpush1.bf16.xpose.msra.mxu0 0
        %1293 = vmatprep.mubr.bf16.mxu0 0
        %1294 = vmatmul.mubr.bf16.gmra.mrb[0].mxu0 %v1256
        %v1295 = vpop.f32.mrb[0].mxu0
        %v1296 = vadd.f32 %v1115, %v1295
        %v1297 = vpop.f32.mrb[0].mxu0
        %v1298 = vpop.f32.mrb[0].mxu0
        %v1299 = vpop.f32.mrb[0].mxu0
        %1300 = vdwg.mxu0
        %v1301 = vsel %vm1116, %v1158, -inf
        %1302 = vmax.xlane.f32.xlu0 %v1301
        %v1303 = vpop.xlane.xlu0 %1302
        %v1304 = vsel %vm1116, %v1204, -inf
        %1305 = vmax.xlane.f32.xlu0 %v1304
        %v1306 = vpop.xlane.xlu0 %1305
        %v1307 = vsel %vm1116, %v1250, -inf
        %1308 = vmax.xlane.f32.xlu0 %v1307
        %v1309 = vpop.xlane.xlu0 %1308
        %v1310 = vsel %vm1116, %v1296, -inf
        %1311 = vmax.xlane.f32.xlu0 %v1310
        %v1312 = vpop.xlane.xlu0 %1311
        %v1313 = vsub.f32 %v1158, %v1303
        %v1314 = vsub.f32 %v1204, %v1306
        %v1315 = vsub.f32 %v1250, %v1309
        %v1316 = vsub.f32 %v1296, %v1312
        %v1317 = vmul.f32 %v1313, 1.442695
        %v1318 = vpow.pop %v1317
        %v1319 = vmul.f32 %v1314, 1.442695
        %v1320 = vpow.pop %v1319
        %v1321 = vmul.f32 %v1315, 1.442695
        %v1322 = vpow.pop %v1321
        %v1323 = vmul.f32 %v1316, 1.442695
        %v1324 = vpow.pop %v1323
        %v1325 = vsel %vm1116, %v1318, 0.0
        %1326 = vadd.xlane.f32.xlu0 %v1325
        %v1327 = vpop.xlane.xlu0 %1326
        %v1328 = vsel %vm1116, %v1320, 0.0
        %1329 = vadd.xlane.f32.xlu0 %v1328
        %v1330 = vpop.xlane.xlu0 %1329
        %v1331 = vsel %vm1116, %v1322, 0.0
        %1332 = vadd.xlane.f32.xlu0 %v1331
        %v1333 = vpop.xlane.xlu0 %1332
        %v1334 = vsel %vm1116, %v1324, 0.0
        %1335 = vadd.xlane.f32.xlu0 %v1334
        %v1336 = vpop.xlane.xlu0 %1335
        %v1337 = vrcp.pop %v1327
        %v1338 = vrcp.pop %v1330
        %v1339 = vrcp.pop %v1333
        %v1340 = vrcp.pop %v1336
        %v1341 = vmul.f32 %v1318, %v1337
        %v1342 = vmul.f32 %v1320, %v1338
        %v1343 = vmul.f32 %v1322, %v1339
        %v1344 = vmul.f32 %v1324, %v1340
        %v1345 = vpack.c.bf16 %v1341, %v1341
        %v1346 = vpack.c.bf16 %v1342, %v1342
        %v1347 = vpack.c.bf16 %v1343, %v1343
        %v1348 = vpack.c.bf16 %v1344, %v1344
        %v1350 = vsel %vm1116, %v1345, 0
        %vm1352 = vcmask 1043456
        %v1354 = vsel %vm1352, %v1105, 0
        %1356 = vmatprep.subr.bf16.mxu0 0
        %1357 = vmatpush1.bf16.msra.mxu0 %v1354
        %1358 = vmatprep.subr.bf16.mxu0 0
        %1359 = vmatpush1.bf16.msra.mxu0 0
        %1360 = vmatprep.subr.bf16.mxu0 0
        %1361 = vmatpush1.bf16.msra.mxu0 0
        %1362 = vmatprep.subr.bf16.mxu0 0
        %1363 = vmatpush1.bf16.msra.mxu0 0
        %1364 = vmatprep.subr.bf16.mxu0 0
        %1365 = vmatpush1.bf16.msra.mxu0 0
        %1366 = vmatprep.subr.bf16.mxu0 0
        %1367 = vmatpush1.bf16.msra.mxu0 0
        %1368 = vmatprep.subr.bf16.mxu0 0
        %1369 = vmatpush1.bf16.msra.mxu0 0
        %1370 = vmatprep.subr.bf16.mxu0 0
        %1371 = vmatpush1.bf16.msra.mxu0 0
        %1372 = vmatprep.subr.bf16.mxu0 0
        %1373 = vmatpush1.bf16.msra.mxu0 0
        %1374 = vmatprep.subr.bf16.mxu0 0
        %1375 = vmatpush1.bf16.msra.mxu0 0
        %1376 = vmatprep.subr.bf16.mxu0 0
        %1377 = vmatpush1.bf16.msra.mxu0 0
        %1378 = vmatprep.subr.bf16.mxu0 0
        %1379 = vmatpush1.bf16.msra.mxu0 0
        %1380 = vmatprep.subr.bf16.mxu0 0
        %1381 = vmatpush1.bf16.msra.mxu0 0
        %1382 = vmatprep.subr.bf16.mxu0 0
        %1383 = vmatpush1.bf16.msra.mxu0 0
        %1384 = vmatprep.subr.bf16.mxu0 0
        %1385 = vmatpush1.bf16.msra.mxu0 0
        %1386 = vmatprep.subr.bf16.mxu0 0
        %1387 = vmatpush1.bf16.msra.mxu0 0
        %1388 = vmatprep.mubr.bf16.mxu0 0
        %1389 = vmatmul.mubr.bf16.gmra.mrb[0].mxu0 %v1350
        %v1390 = vpop.f32.mrb[0].mxu0
        %v1391 = vadd.f32 0.0, %v1390
        %v1392 = vpop.f32.mrb[0].mxu0
        %v1393 = vpop.f32.mrb[0].mxu0
        %v1394 = vpop.f32.mrb[0].mxu0
        %1395 = vdwg.mxu0
        %v1397 = vsel %vm1116, %v1346, 0
        %v1400 = vsel %vm1352, %v1108, 0
        %1402 = vmatprep.subr.bf16.mxu0 0
        %1403 = vmatpush1.bf16.msra.mxu0 %v1400
        %1404 = vmatprep.subr.bf16.mxu0 0
        %1405 = vmatpush1.bf16.msra.mxu0 0
        %1406 = vmatprep.subr.bf16.mxu0 0
        %1407 = vmatpush1.bf16.msra.mxu0 0
        %1408 = vmatprep.subr.bf16.mxu0 0
        %1409 = vmatpush1.bf16.msra.mxu0 0
        %1410 = vmatprep.subr.bf16.mxu0 0
        %1411 = vmatpush1.bf16.msra.mxu0 0
        %1412 = vmatprep.subr.bf16.mxu0 0
        %1413 = vmatpush1.bf16.msra.mxu0 0
        %1414 = vmatprep.subr.bf16.mxu0 0
        %1415 = vmatpush1.bf16.msra.mxu0 0
        %1416 = vmatprep.subr.bf16.mxu0 0
        %1417 = vmatpush1.bf16.msra.mxu0 0
        %1418 = vmatprep.subr.bf16.mxu0 0
        %1419 = vmatpush1.bf16.msra.mxu0 0
        %1420 = vmatprep.subr.bf16.mxu0 0
        %1421 = vmatpush1.bf16.msra.mxu0 0
        %1422 = vmatprep.subr.bf16.mxu0 0
        %1423 = vmatpush1.bf16.msra.mxu0 0
        %1424 = vmatprep.subr.bf16.mxu0 0
        %1425 = vmatpush1.bf16.msra.mxu0 0
        %1426 = vmatprep.subr.bf16.mxu0 0
        %1427 = vmatpush1.bf16.msra.mxu0 0
        %1428 = vmatprep.subr.bf16.mxu0 0
        %1429 = vmatpush1.bf16.msra.mxu0 0
        %1430 = vmatprep.subr.bf16.mxu0 0
        %1431 = vmatpush1.bf16.msra.mxu0 0
        %1432 = vmatprep.subr.bf16.mxu0 0
        %1433 = vmatpush1.bf16.msra.mxu0 0
        %1434 = vmatprep.mubr.bf16.mxu0 0
        %1435 = vmatmul.mubr.bf16.gmra.mrb[0].mxu0 %v1397
        %v1436 = vpop.f32.mrb[0].mxu0
        %v1437 = vadd.f32 0.0, %v1436
        %v1438 = vpop.f32.mrb[0].mxu0
        %v1439 = vpop.f32.mrb[0].mxu0
        %v1440 = vpop.f32.mrb[0].mxu0
        %1441 = vdwg.mxu0
        %v1443 = vsel %vm1116, %v1347, 0
        %v1446 = vsel %vm1352, %v1111, 0
        %1448 = vmatprep.subr.bf16.mxu0 0
        %1449 = vmatpush1.bf16.msra.mxu0 %v1446
        %1450 = vmatprep.subr.bf16.mxu0 0
        %1451 = vmatpush1.bf16.msra.mxu0 0
        %1452 = vmatprep.subr.bf16.mxu0 0
        %1453 = vmatpush1.bf16.msra.mxu0 0
        %1454 = vmatprep.subr.bf16.mxu0 0
        %1455 = vmatpush1.bf16.msra.mxu0 0
        %1456 = vmatprep.subr.bf16.mxu0 0
        %1457 = vmatpush1.bf16.msra.mxu0 0
        %1458 = vmatprep.subr.bf16.mxu0 0
        %1459 = vmatpush1.bf16.msra.mxu0 0
        %1460 = vmatprep.subr.bf16.mxu0 0
        %1461 = vmatpush1.bf16.msra.mxu0 0
        %1462 = vmatprep.subr.bf16.mxu0 0
        %1463 = vmatpush1.bf16.msra.mxu0 0
        %1464 = vmatprep.subr.bf16.mxu0 0
        %1465 = vmatpush1.bf16.msra.mxu0 0
        %1466 = vmatprep.subr.bf16.mxu0 0
        %1467 = vmatpush1.bf16.msra.mxu0 0
        %1468 = vmatprep.subr.bf16.mxu0 0
        %1469 = vmatpush1.bf16.msra.mxu0 0
        %1470 = vmatprep.subr.bf16.mxu0 0
        %1471 = vmatpush1.bf16.msra.mxu0 0
        %1472 = vmatprep.subr.bf16.mxu0 0
        %1473 = vmatpush1.bf16.msra.mxu0 0
        %1474 = vmatprep.subr.bf16.mxu0 0
        %1475 = vmatpush1.bf16.msra.mxu0 0
        %1476 = vmatprep.subr.bf16.mxu0 0
        %1477 = vmatpush1.bf16.msra.mxu0 0
        %1478 = vmatprep.subr.bf16.mxu0 0
        %1479 = vmatpush1.bf16.msra.mxu0 0
        %1480 = vmatprep.mubr.bf16.mxu0 0
        %1481 = vmatmul.mubr.bf16.gmra.mrb[0].mxu0 %v1443
        %v1482 = vpop.f32.mrb[0].mxu0
        %v1483 = vadd.f32 0.0, %v1482
        %v1484 = vpop.f32.mrb[0].mxu0
        %v1485 = vpop.f32.mrb[0].mxu0
        %v1486 = vpop.f32.mrb[0].mxu0
        %1487 = vdwg.mxu0
        %v1489 = vsel %vm1116, %v1348, 0
        %v1492 = vsel %vm1352, %v1114, 0
        %1494 = vmatprep.subr.bf16.mxu0 0
        %1495 = vmatpush1.bf16.msra.mxu0 %v1492
        %1496 = vmatprep.subr.bf16.mxu0 0
        %1497 = vmatpush1.bf16.msra.mxu0 0
        %1498 = vmatprep.subr.bf16.mxu0 0
        %1499 = vmatpush1.bf16.msra.mxu0 0
        %1500 = vmatprep.subr.bf16.mxu0 0
        %1501 = vmatpush1.bf16.msra.mxu0 0
        %1502 = vmatprep.subr.bf16.mxu0 0
        %1503 = vmatpush1.bf16.msra.mxu0 0
        %1504 = vmatprep.subr.bf16.mxu0 0
        %1505 = vmatpush1.bf16.msra.mxu0 0
        %1506 = vmatprep.subr.bf16.mxu0 0
        %1507 = vmatpush1.bf16.msra.mxu0 0
        %1508 = vmatprep.subr.bf16.mxu0 0
        %1509 = vmatpush1.bf16.msra.mxu0 0
        %1510 = vmatprep.subr.bf16.mxu0 0
        %1511 = vmatpush1.bf16.msra.mxu0 0
        %1512 = vmatprep.subr.bf16.mxu0 0
        %1513 = vmatpush1.bf16.msra.mxu0 0
        %1514 = vmatprep.subr.bf16.mxu0 0
        %1515 = vmatpush1.bf16.msra.mxu0 0
        %1516 = vmatprep.subr.bf16.mxu0 0
        %1517 = vmatpush1.bf16.msra.mxu0 0
        %1518 = vmatprep.subr.bf16.mxu0 0
        %1519 = vmatpush1.bf16.msra.mxu0 0
        %1520 = vmatprep.subr.bf16.mxu0 0
        %1521 = vmatpush1.bf16.msra.mxu0 0
        %1522 = vmatprep.subr.bf16.mxu0 0
        %1523 = vmatpush1.bf16.msra.mxu0 0
        %1524 = vmatprep.subr.bf16.mxu0 0
        %1525 = vmatpush1.bf16.msra.mxu0 0
        %1526 = vmatprep.mubr.bf16.mxu0 0
        %1527 = vmatmul.mubr.bf16.gmra.mrb[0].mxu0 %v1489
        %v1528 = vpop.f32.mrb[0].mxu0
        %v1529 = vadd.f32 0.0, %v1528
        %v1530 = vpop.f32.mrb[0].mxu0
        %v1531 = vpop.f32.mrb[0].mxu0
        %v1532 = vpop.f32.mrb[0].mxu0
        %1533 = vdwg.mxu0
        %v1534 = vcombine.low %v1391, %v1483
        %v1535 = vcombine.high %v1391, %v1483
        %v1537 = vunpack.c.l.s4 1983009808
        %v1538 = vunpack.c.0.s8 %v1537
        %v1539 = vlaneseq
        %v1540 = vshrl.u32 %v1539, 7
        %v1541 = vsub.s32 %v1538, %v1540
        %v1542 = vrot.slane %v1534, %v1541
        %v1544 = vunpack.c.l.s4 1983009808
        %v1545 = vunpack.c.0.s8 %v1544
        %v1546 = vlaneseq
        %v1547 = vshrl.u32 %v1546, 7
        %v1548 = vsub.s32 %v1545, %v1547
        %v1549 = vrot.slane %v1535, %v1548
        %v1550 = vcombine.low %v1437, %v1529
        %v1551 = vcombine.high %v1437, %v1529
        %v1553 = vunpack.c.l.s4 1983009808
        %v1554 = vunpack.c.0.s8 %v1553
        %v1555 = vlaneseq
        %v1556 = vshrl.u32 %v1555, 7
        %v1557 = vsub.s32 %v1554, %v1556
        %v1558 = vrot.slane %v1550, %v1557
        %v1560 = vunpack.c.l.s4 1983009808
        %v1561 = vunpack.c.0.s8 %v1560
        %v1562 = vlaneseq
        %v1563 = vshrl.u32 %v1562, 7
        %v1564 = vsub.s32 %v1561, %v1563
        %v1565 = vrot.slane %v1551, %v1564
        %v1566 = vcombine.low %v1542, %v1558
        %v1567 = vcombine.high %v1542, %v1558
        %v1569 = vunpack.c.l.s4 1934713408
        %v1570 = vunpack.c.0.s8 %v1569
        %v1571 = vlaneseq
        %v1572 = vshrl.u32 %v1571, 7
        %v1573 = vsub.s32 %v1570, %v1572
        %v1574 = vrot.slane %v1566, %v1573
        %v1576 = vunpack.c.l.s4 1934713408
        %v1577 = vunpack.c.0.s8 %v1576
        %v1578 = vlaneseq
        %v1579 = vshrl.u32 %v1578, 7
        %v1580 = vsub.s32 %v1577, %v1579
        %v1581 = vrot.slane %v1567, %v1580
        %v1582 = vcombine.low %v1549, %v1565
        %v1583 = vcombine.high %v1549, %v1565
        %v1585 = vunpack.c.l.s4 1934713408
        %v1586 = vunpack.c.0.s8 %v1585
        %v1587 = vlaneseq
        %v1588 = vshrl.u32 %v1587, 7
        %v1589 = vsub.s32 %v1586, %v1588
        %v1590 = vrot.slane %v1582, %v1589
        %v1592 = vunpack.c.l.s4 1934713408
        %v1593 = vunpack.c.0.s8 %v1592
        %v1594 = vlaneseq
        %v1595 = vshrl.u32 %v1594, 7
        %v1596 = vsub.s32 %v1593, %v1595
        %v1597 = vrot.slane %v1583, %v1596
        %v1598 = vcombine.high %v1574, 0.0
        %v1599 = vcombine.high %v1581, 0.0
        %v1600 = vcombine.high %v1590, 0.0
        %v1601 = vcombine.high %v1597, 0.0
        %v1602 = vcombine.low %v1574, %v1581
        %v1604 = vunpack.c.l.s4 1983009808
        %v1605 = vunpack.c.0.s8 %v1604
        %v1606 = vlaneseq
        %v1607 = vshrl.u32 %v1606, 7
        %v1608 = vsub.s32 %v1605, %v1607
        %v1609 = vrot.slane %v1602, %v1608
        %v1610 = vcombine.low %v1598, %v1599
        %v1612 = vunpack.c.l.s4 1983009808
        %v1613 = vunpack.c.0.s8 %v1612
        %v1614 = vlaneseq
        %v1615 = vshrl.u32 %v1614, 7
        %v1616 = vsub.s32 %v1613, %v1615
        %v1617 = vrot.slane %v1610, %v1616
        %v1618 = vcombine.low %v1590, %v1597
        %v1620 = vunpack.c.l.s4 1983009808
        %v1621 = vunpack.c.0.s8 %v1620
        %v1622 = vlaneseq
        %v1623 = vshrl.u32 %v1622, 7
        %v1624 = vsub.s32 %v1621, %v1623
        %v1625 = vrot.slane %v1618, %v1624
        %v1626 = vcombine.low %v1600, %v1601
        %v1628 = vunpack.c.l.s4 1983009808
        %v1629 = vunpack.c.0.s8 %v1628
        %v1630 = vlaneseq
        %v1631 = vshrl.u32 %v1630, 7
        %v1632 = vsub.s32 %v1629, %v1631
        %v1633 = vrot.slane %v1626, %v1632
        %v1634 = vcombine.low %v1609, %v1617
        %v1635 = vcombine.high %v1609, %v1617
        %v1637 = vunpack.c.l.s4 1934713408
        %v1638 = vunpack.c.0.s8 %v1637
        %v1639 = vlaneseq
        %v1640 = vshrl.u32 %v1639, 7
        %v1641 = vsub.s32 %v1638, %v1640
        %v1642 = vrot.slane %v1634, %v1641
        %v1644 = vunpack.c.l.s4 1934713408
        %v1645 = vunpack.c.0.s8 %v1644
        %v1646 = vlaneseq
        %v1647 = vshrl.u32 %v1646, 7
        %v1648 = vsub.s32 %v1645, %v1647
        %v1649 = vrot.slane %v1635, %v1648
        %v1650 = vcombine.low %v1625, %v1633
        %v1651 = vcombine.high %v1625, %v1633
        %v1653 = vunpack.c.l.s4 1934713408
        %v1654 = vunpack.c.0.s8 %v1653
        %v1655 = vlaneseq
        %v1656 = vshrl.u32 %v1655, 7
        %v1657 = vsub.s32 %v1654, %v1656
        %v1658 = vrot.slane %v1650, %v1657
        %v1660 = vunpack.c.l.s4 1934713408
        %v1661 = vunpack.c.0.s8 %v1660
        %v1662 = vlaneseq
        %v1663 = vshrl.u32 %v1662, 7
        %v1664 = vsub.s32 %v1661, %v1663
        %v1665 = vrot.slane %v1651, %v1664
        %v1666 = vcombine.low %v1642, %v1658
        %v1667 = vcombine.high %v1642, %v1658
        %v1668 = vcombine.low %v1649, %v1665
        %v1669 = vcombine.high %v1649, %v1665
        %1671 = vrot.lane.b32.xlu0 %v1667, 8
        %v1672 = vpop.permute.xlu0 %1671
        %1675 = vrot.lane.b32.xlu0 %v1668, 16
        %v1676 = vpop.permute.xlu0 %1675
        %1679 = vrot.lane.b32.xlu0 %v1669, 24
        %v1680 = vpop.permute.xlu0 %1679
        %v1682 = vsel %vm1116, %v1666, %v1672
        %vm1683 = vcmask 130048
        %v1684 = vsel %vm1683, %v1682, %v1676
        %vm1685 = vcmask 195584
        %v1686 = vsel %vm1685, %v1684, %v1680
        %v1687 = vpack.c.bf16 %v1686, %v1686
        %v1688 = vld [vmem:[%s6] sm:$0xf]
        %v1689 = vld [vmem:[%s6 + $0x4] sm:$0xf]
        %v1690 = vld [vmem:[%s6 + $0x8] sm:$0xf]
        %v1691 = vld [vmem:[%s6 + $0xc] sm:$0xf]
        %v1692 = vld [vmem:[%s7] sm:$0x1]
        %v1694 = vlaneseq
        %v1695 = vshrl.u32 %v1694, 7
        %v1696 = vsub.s32 0, %v1695
        %v1697 = vrot.slane %v1692, %v1696
        %v1703 = vunpack.c.l.b16 %v1688
        %v1704 = vunpack.c.l.b16 %v1689
        %v1705 = vunpack.c.l.b16 %v1690
        %v1706 = vunpack.c.l.b16 %v1691
        %v1707 = vpack.c.b16 %v1704, %v1703
        %v1708 = vpack.c.b16 %v1706, %v1705
        %v1712 = vsel %vm509, %v1687, 0
        %1714 = vmatprep.subr.bf16.mxu0 0
        %1715 = vmatpush1.bf16.msra.mxu0 %v1707
        %1716 = vmatprep.subr.bf16.mxu0 0
        %1717 = vmatpush1.bf16.msra.mxu0 %v1708
        %1718 = vmatprep.subr.bf16.mxu0 0
        %1719 = vmatpush1.bf16.msra.mxu0 0
        %1720 = vmatprep.subr.bf16.mxu0 0
        %1721 = vmatpush1.bf16.msra.mxu0 0
        %1722 = vmatprep.subr.bf16.mxu0 0
        %1723 = vmatpush1.bf16.msra.mxu0 0
        %1724 = vmatprep.subr.bf16.mxu0 0
        %1725 = vmatpush1.bf16.msra.mxu0 0
        %1726 = vmatprep.subr.bf16.mxu0 0
        %1727 = vmatpush1.bf16.msra.mxu0 0
        %1728 = vmatprep.subr.bf16.mxu0 0
        %1729 = vmatpush1.bf16.msra.mxu0 0
        %1730 = vmatprep.subr.bf16.mxu0 0
        %1731 = vmatpush1.bf16.msra.mxu0 0
        %1732 = vmatprep.subr.bf16.mxu0 0
        %1733 = vmatpush1.bf16.msra.mxu0 0
        %1734 = vmatprep.subr.bf16.mxu0 0
        %1735 = vmatpush1.bf16.msra.mxu0 0
        %1736 = vmatprep.subr.bf16.mxu0 0
        %1737 = vmatpush1.bf16.msra.mxu0 0
        %1738 = vmatprep.subr.bf16.mxu0 0
        %1739 = vmatpush1.bf16.msra.mxu0 0
        %1740 = vmatprep.subr.bf16.mxu0 0
        %1741 = vmatpush1.bf16.msra.mxu0 0
        %1742 = vmatprep.subr.bf16.mxu0 0
        %1743 = vmatpush1.bf16.msra.mxu0 0
        %1744 = vmatprep.subr.bf16.mxu0 0
        %1745 = vmatpush1.bf16.msra.mxu0 0
        %1746 = vmatprep.mubr.bf16.mxu0 0
        %1747 = vmatmul.mubr.bf16.gmra.mrb[0].mxu0 %v1712
        %v1748 = vpop.f32.mrb[0].mxu0
        %v1749 = vadd.f32 %v1697, %v1748
        %v1750 = vpop.f32.mrb[0].mxu0
        %v1751 = vpop.f32.mrb[0].mxu0
        %v1752 = vpop.f32.mrb[0].mxu0
        %1753 = vdwg.mxu0
        %v1754 = vadd.f32 %v506, %v1749
        %v1755 = vld [vmem:[%s8] sm:$0x1]
        %v1756 = vld [vmem:[%s9] sm:$0x1]
        %v1757 = vsel %vm509, %v1754, 0.0
        %1758 = vadd.xlane.f32.xlu0 %v1757
        %v1759 = vpop.xlane.xlu0 %1758
        %v1760 = vmul.f32 %v1759, %v513
        %v1761 = vsub.f32 %v1754, %v1760
        %v1762 = vmul.f32 %v1761, %v1761
        %v1763 = vsel %vm509, %v1762, 0.0
        %1764 = vadd.xlane.f32.xlu0 %v1763
        %v1765 = vpop.xlane.xlu0 %1764
        %v1766 = vmul.f32 %v1765, %v513
        %v1767 = vadd.f32 %v1766, 1e-05
        %v1768 = vrsqrt.pop %v1767
        %v1769 = vmul.f32 %v1761, %v1768
        %v1771 = vlaneseq
        %v1772 = vshrl.u32 %v1771, 7
        %v1773 = vsub.s32 0, %v1772
        %v1774 = vrot.slane %v1755, %v1773
        %v1776 = vmul.f32 %v1769, %v1774
        %v1778 = vlaneseq
        %v1779 = vshrl.u32 %v1778, 7
        %v1780 = vsub.s32 0, %v1779
        %v1781 = vrot.slane %v1756, %v1780
        %v1783 = vadd.f32 %v1776, %v1781
        %v1784 = vpack.c.bf16 %v1783, %v1783
        %v1785 = vld [vmem:[%s10] sm:$0xf]
        %v1786 = vld [vmem:[%s10 + $0x4] sm:$0xf]
        %v1787 = vld [vmem:[%s10 + $0x8] sm:$0xf]
        %v1788 = vld [vmem:[%s10 + $0xc] sm:$0xf]
        %v1789 = vld [vmem:[%s11] sm:$0x1]
        %v1791 = vlaneseq
        %v1792 = vshrl.u32 %v1791, 7
        %v1793 = vsub.s32 0, %v1792
        %v1794 = vrot.slane %v1789, %v1793
        %v1800 = vunpack.c.l.b16 %v1785
        %v1801 = vunpack.c.l.b16 %v1786
        %v1802 = vunpack.c.l.b16 %v1787
        %v1803 = vunpack.c.l.b16 %v1788
        %v1804 = vpack.c.b16 %v1801, %v1800
        %v1805 = vpack.c.b16 %v1803, %v1802
        %v1809 = vsel %vm509, %v1784, 0
        %1811 = vmatprep.subr.bf16.mxu0 0
        %1812 = vmatpush1.bf16.msra.mxu0 %v1804
        %1813 = vmatprep.subr.bf16.mxu0 0
        %1814 = vmatpush1.bf16.msra.mxu0 %v1805
        %1815 = vmatprep.subr.bf16.mxu0 0
        %1816 = vmatpush1.bf16.msra.mxu0 0
        %1817 = vmatprep.subr.bf16.mxu0 0
        %1818 = vmatpush1.bf16.msra.mxu0 0
        %1819 = vmatprep.subr.bf16.mxu0 0
        %1820 = vmatpush1.bf16.msra.mxu0 0
        %1821 = vmatprep.subr.bf16.mxu0 0
        %1822 = vmatpush1.bf16.msra.mxu0 0
        %1823 = vmatprep.subr.bf16.mxu0 0
        %1824 = vmatpush1.bf16.msra.mxu0 0
        %1825 = vmatprep.subr.bf16.mxu0 0
        %1826 = vmatpush1.bf16.msra.mxu0 0
        %1827 = vmatprep.subr.bf16.mxu0 0
        %1828 = vmatpush1.bf16.msra.mxu0 0
        %1829 = vmatprep.subr.bf16.mxu0 0
        %1830 = vmatpush1.bf16.msra.mxu0 0
        %1831 = vmatprep.subr.bf16.mxu0 0
        %1832 = vmatpush1.bf16.msra.mxu0 0
        %1833 = vmatprep.subr.bf16.mxu0 0
        %1834 = vmatpush1.bf16.msra.mxu0 0
        %1835 = vmatprep.subr.bf16.mxu0 0
        %1836 = vmatpush1.bf16.msra.mxu0 0
        %1837 = vmatprep.subr.bf16.mxu0 0
        %1838 = vmatpush1.bf16.msra.mxu0 0
        %1839 = vmatprep.subr.bf16.mxu0 0
        %1840 = vmatpush1.bf16.msra.mxu0 0
        %1841 = vmatprep.subr.bf16.mxu0 0
        %1842 = vmatpush1.bf16.msra.mxu0 0
        %1843 = vmatprep.mubr.bf16.mxu0 0
        %1844 = vmatmul.mubr.bf16.gmra.mrb[0].mxu0 %v1809
        %v1845 = vpop.f32.mrb[0].mxu0
        %v1846 = vadd.f32 %v1794, %v1845
        %v1847 = vpop.f32.mrb[0].mxu0
        %v1848 = vpop.f32.mrb[0].mxu0
        %v1849 = vpop.f32.mrb[0].mxu0
        %1850 = vdwg.mxu0
        %v1851 = vmul.f32 %v1846, 1.702
        %v1852 = vxor.u32 %v1851, 2147483648
        %v1853 = vmul.f32 %v1852, 1.442695
        %v1854 = vpow.pop %v1853
        %v1855 = vadd.f32 %v1854, 1.0
        %v1856 = vrcp.pop %v1855
        %v1857 = vmul.f32 1.0, %v1856
        %v1858 = vmul.f32 %v1846, %v1857
        %v1859 = vpack.c.bf16 %v1858, %v1858
        %v1860 = vld [vmem:[%s12] sm:$0xf]
        %v1861 = vld [vmem:[%s12 + $0x4] sm:$0xf]
        %v1862 = vld [vmem:[%s12 + $0x8] sm:$0xf]
        %v1863 = vld [vmem:[%s12 + $0xc] sm:$0xf]
        %v1864 = vld [vmem:[%s12 + $0x10] sm:$0xf]
        %v1865 = vld [vmem:[%s12 + $0x14] sm:$0xf]
        %v1866 = vld [vmem:[%s12 + $0x18] sm:$0xf]
        %v1867 = vld [vmem:[%s12 + $0x1c] sm:$0xf]
        %v1868 = vld [vmem:[%s12 + $0x20] sm:$0xf]
        %v1869 = vld [vmem:[%s12 + $0x24] sm:$0xf]
        %v1870 = vld [vmem:[%s12 + $0x28] sm:$0xf]
        %v1871 = vld [vmem:[%s12 + $0x2c] sm:$0xf]
        %v1872 = vld [vmem:[%s12 + $0x30] sm:$0xf]
        %v1873 = vld [vmem:[%s12 + $0x34] sm:$0xf]
        %v1874 = vld [vmem:[%s12 + $0x38] sm:$0xf]
        %v1875 = vld [vmem:[%s12 + $0x3c] sm:$0xf]
        %v1876 = vld [vmem:[%s13] sm:$0x1]
        %v1878 = vlaneseq
        %v1879 = vshrl.u32 %v1878, 7
        %v1880 = vsub.s32 0, %v1879
        %v1881 = vrot.slane %v1876, %v1880
        %v1899 = vunpack.c.l.b16 %v1860
        %v1900 = vunpack.c.l.b16 %v1861
        %v1901 = vunpack.c.l.b16 %v1862
        %v1902 = vunpack.c.l.b16 %v1863
        %v1903 = vunpack.c.l.b16 %v1864
        %v1904 = vunpack.c.l.b16 %v1865
        %v1905 = vunpack.c.l.b16 %v1866
        %v1906 = vunpack.c.l.b16 %v1867
        %v1907 = vunpack.c.l.b16 %v1868
        %v1908 = vunpack.c.l.b16 %v1869
        %v1909 = vunpack.c.l.b16 %v1870
        %v1910 = vunpack.c.l.b16 %v1871
        %v1911 = vunpack.c.l.b16 %v1872
        %v1912 = vunpack.c.l.b16 %v1873
        %v1913 = vunpack.c.l.b16 %v1874
        %v1914 = vunpack.c.l.b16 %v1875
        %v1915 = vpack.c.b16 %v1900, %v1899
        %v1916 = vpack.c.b16 %v1902, %v1901
        %v1917 = vpack.c.b16 %v1904, %v1903
        %v1918 = vpack.c.b16 %v1906, %v1905
        %v1919 = vpack.c.b16 %v1908, %v1907
        %v1920 = vpack.c.b16 %v1910, %v1909
        %v1921 = vpack.c.b16 %v1912, %v1911
        %v1922 = vpack.c.b16 %v1914, %v1913
        %1931 = vmatprep.subr.bf16.mxu0 0
        %1932 = vmatpush1.bf16.msra.mxu0 %v1915
        %1933 = vmatprep.subr.bf16.mxu0 0
        %1934 = vmatpush1.bf16.msra.mxu0 %v1916
        %1935 = vmatprep.subr.bf16.mxu0 0
        %1936 = vmatpush1.bf16.msra.mxu0 %v1917
        %1937 = vmatprep.subr.bf16.mxu0 0
        %1938 = vmatpush1.bf16.msra.mxu0 %v1918
        %1939 = vmatprep.subr.bf16.mxu0 0
        %1940 = vmatpush1.bf16.msra.mxu0 %v1919
        %1941 = vmatprep.subr.bf16.mxu0 0
        %1942 = vmatpush1.bf16.msra.mxu0 %v1920
        %1943 = vmatprep.subr.bf16.mxu0 0
        %1944 = vmatpush1.bf16.msra.mxu0 %v1921
        %1945 = vmatprep.subr.bf16.mxu0 0
        %1946 = vmatpush1.bf16.msra.mxu0 %v1922
        %1947 = vmatprep.subr.bf16.mxu0 0
        %1948 = vmatpush1.bf16.msra.mxu0 0
        %1949 = vmatprep.subr.bf16.mxu0 0
        %1950 = vmatpush1.bf16.msra.mxu0 0
        %1951 = vmatprep.subr.bf16.mxu0 0
        %1952 = vmatpush1.bf16.msra.mxu0 0
        %1953 = vmatprep.subr.bf16.mxu0 0
        %1954 = vmatpush1.bf16.msra.mxu0 0
        %1955 = vmatprep.subr.bf16.mxu0 0
        %1956 = vmatpush1.bf16.msra.mxu0 0
        %1957 = vmatprep.subr.bf16.mxu0 0
        %1958 = vmatpush1.bf16.msra.mxu0 0
        %1959 = vmatprep.subr.bf16.mxu0 0
        %1960 = vmatpush1.bf16.msra.mxu0 0
        %1961 = vmatprep.subr.bf16.mxu0 0
        %1962 = vmatpush1.bf16.msra.mxu0 0
        %1963 = vmatprep.mubr.bf16.mxu0 0
        %1964 = vmatmul.mubr.bf16.gmra.mrb[0].mxu0 %v1859
        %v1965 = vpop.f32.mrb[0].mxu0
        %v1966 = vadd.f32 %v1881, %v1965
        %v1967 = vpop.f32.mrb[0].mxu0
        %v1968 = vpop.f32.mrb[0].mxu0
        %v1969 = vpop.f32.mrb[0].mxu0
        %1970 = vdwg.mxu0
        %v1971 = vadd.f32 %v1754, %v1966
        %1972 = vst.msk [vmem:[%s493] sm:$0xff] %vm509, %v1971
        %s1973 = sand.u32 %s356, 1
        %s1974 = scalar_lea.sflag [#allocation3], %s1973
        %s1975 = sand.u32 %s356, 1
        %s1976 = smul.addr %s1975, 8
        %s1977 = scalar_lea.vmem [#allocation2], %s1976
        // Predicated region
        $region77: #{transformer_forward.3} parent=75 // pred_check
          %p1978 = pneg %p366
        $region78: #{transformer_forward.3} parent=75 // pred_check_branch
          %1980 = sbr.rel (%p1978) target = $region80
        $region79: #{transformer_forward.3} parent=75 // pred_region
          %s1982 = ssub.s32 128, 128
          %1983 = vsyncadd %s1974, %s1982
          %s1984 = sadd.s32 %s33, %s32
          %s1985 = smul.addr %s1984, 128
          %s1986 = scalar_lea.hbm %s14, %s1985
          %s1988 = sshll.u32 %s1977, 4
          %s1989 = int_to_ptr.vmem [resolvable:$true] %s1988
          %1991 = dma.vmem_to_hbm [thread:$0]  %s1989, 128, %s1986, %s1974
        $region80: #{transformer_forward.3} parent=75 // pred_fallthru
          _
      $region76: #{transformer_forward.3} parent=5 // pred_fallthru
        _
      %p1992 = scmp.le.s32.totalorder 2, %s23
      // Predicated region
      $region81: #{transformer_forward.3} parent=5 // pred_check
        %p1993 = pneg %p1992
      $region82: #{transformer_forward.3} parent=5 // pred_check_branch
        %1995 = sbr.rel (%p1993) target = $region84
      $region83: #{transformer_forward.3} parent=5 // pred_region
        %s1996 = ssub.s32 %s23, 2
        // Predicated region
        $region85: #{transformer_forward.3} parent=83 // pred_check
          %p1997 = pneg %p372
        $region86: #{transformer_forward.3} parent=83 // pred_check_branch
          %1999 = sbr.rel (%p1997) target = $region88
        $region87: #{transformer_forward.3} parent=83 // pred_region
          %s2000 = sand.u32 %s357, 1
          %s2001 = scalar_lea.sflag [#allocation3], %s2000
          %s2002 = sand.u32 %s357, 1
          %s2003 = smul.addr %s2002, 8
          %s2004 = scalar_lea.vmem [#allocation2], %s2003
          %2005 = dma.done %s2001, 128
        $region88: #{transformer_forward.3} parent=83 // pred_fallthru
          _
      $region84: #{transformer_forward.3} parent=5 // pred_fallthru
        _
    $region6: #{transformer_forward.3} parent=1 // loop_footer
      %s27 = sadd.s32 1, %s23
    $region7: #{transformer_forward.3} parent=1 // loop_footer_branch
      %22 = sbr.rel target = $region3
    $region8: #{transformer_forward.3} parent=1 // loop_exit
      _
    %2006 = vsyncpa [#allocation3], 1
    %s2007 = scalar_lea.sflag [#allocation3], 1
    %2008 = vsyncpa %s2007, 1

// kernel: transformer_forward.2
$region0: #{transformer_forward.2}
  #allocation0 [shape = 'u32[]', space=smem, size = 0x4, offset = 0x4, fixed_abs, tag = 'smem constant byte address 0x4 - core index']
  #allocation1 [shape = 'u32[144,128]{1,0:T(1,128)}', space=vmem, size = 0x12000, scoped, tag = 'internal scratch']
  %s0 = inlined_call_operand.vmem [shape: f32[2,8,32], index: 0, kind: input, shape index: {}]
  %s1 = inlined_call_operand.vmem [shape: bf16[1,8,8], index: 1, kind: input, shape index: {}]
  %s2 = inlined_call_operand.vmem [shape: f32[1,32], index: 2, kind: input, shape index: {}]
  %s3 = inlined_call_operand.vmem [shape: f32[1,32], index: 3, kind: input, shape index: {}]
  %s4 = inlined_call_operand.vmem [shape: bf16[32,96], index: 4, kind: input, shape index: {}]
  %s5 = inlined_call_operand.vmem [shape: f32[1,96], index: 5, kind: input, shape index: {}]
  %s6 = inlined_call_operand.vmem [shape: bf16[32,32], index: 6, kind: input, shape index: {}]
  %s7 = inlined_call_operand.vmem [shape: f32[1,32], index: 7, kind: input, shape index: {}]
  %s8 = inlined_call_operand.vmem [shape: f32[1,32], index: 8, kind: input, shape index: {}]
  %s9 = inlined_call_operand.vmem [shape: f32[1,32], index: 9, kind: input, shape index: {}]
  %s10 = inlined_call_operand.vmem [shape: bf16[32,128], index: 10, kind: input, shape index: {}]
  %s11 = inlined_call_operand.vmem [shape: f32[1,128], index: 11, kind: input, shape index: {}]
  %s12 = inlined_call_operand.vmem [shape: bf16[128,32], index: 12, kind: input, shape index: {}]
  %s13 = inlined_call_operand.vmem [shape: f32[1,32], index: 13, kind: input, shape index: {}]
  %s14 = inlined_call_operand.vmem [shape: f32[2,8,32], index: 14, kind: output, shape index: {}]
  %s15 = sld [smem:[#allocation0]]
  $region89: #{transformer_forward.2} parent=0
    _
  %s17 = ssub.s32 1, %s15
  %s18 = scalar_select 0, %s17, %s15
  loop: start=0, step=1, limit=4
  $region2: #{transformer_forward.2} parent=0 // loop_pre_header
    _
  $region3: #{transformer_forward.2} parent=0 // loop_header
    %s20 = sphi 0, %s24
    %p21 = scmp.ge.s32.totalorder %s20, 4
    %s27 = sphi 0, %s39
    %s28 = sphi 0, %s35
    %s29 = sphi 0, %s27
    %s30 = sphi 0, %s28
    %s31 = sphi 0, %s29
    %s32 = sphi 0, %s30
    %s44 = sphi 0, %s46
    %s47 = sphi 0, %s44
    %s48 = sphi 0, %s47
    %s64 = sphi 0, %s48
    %s70 = sphi 0, %s72
    %s73 = sphi 0, %s70
    %s74 = sphi 0, %s73
    %s90 = sphi 0, %s74
    %s94 = sphi 0, %s94
    %s96 = sphi 0, %s94
    %s97 = sphi 0, %s96
    %s111 = sphi 0, %s97
    %s115 = sphi 0, %s115
    %s117 = sphi 0, %s115
    %s118 = sphi 0, %s117
    %s132 = sphi 0, %s118
    %s136 = sphi 0, %s136
    %s138 = sphi 0, %s136
    %s139 = sphi 0, %s138
    %s153 = sphi 0, %s139
    %s157 = sphi 0, %s157
    %s159 = sphi 0, %s157
    %s160 = sphi 0, %s159
    %s174 = sphi 0, %s160
    %s178 = sphi 0, %s178
    %s180 = sphi 0, %s178
    %s181 = sphi 0, %s180
    %s195 = sphi 0, %s181
    %s199 = sphi 0, %s199
    %s201 = sphi 0, %s199
    %s202 = sphi 0, %s201
    %s216 = sphi 0, %s202
    %s220 = sphi 0, %s220
    %s222 = sphi 0, %s220
    %s223 = sphi 0, %s222
    %s237 = sphi 0, %s223
    %s241 = sphi 0, %s241
    %s243 = sphi 0, %s241
    %s244 = sphi 0, %s243
    %s258 = sphi 0, %s244
    %s262 = sphi 0, %s262
    %s264 = sphi 0, %s262
    %s265 = sphi 0, %s264
    %s279 = sphi 0, %s265
    %s283 = sphi 0, %s283
    %s285 = sphi 0, %s283
    %s286 = sphi 0, %s285
    %s300 = sphi 0, %s286
    %s304 = sphi 0, %s304
    %s306 = sphi 0, %s304
    %s307 = sphi 0, %s306
    %s321 = sphi 0, %s307
    %s325 = sphi 0, %s325
    %s327 = sphi 0, %s325
    %s328 = sphi 0, %s327
    %s342 = sphi 0, %s328
    %s350 = sphi 0, %s352
    %s353 = sphi 0, %s350
    %s354 = sphi 0, %s353
    %s370 = sphi 0, %s354
  $region4: #{transformer_forward.2} parent=0 // loop_header_branch
    %23 = sbr.rel (%p21) target = $region8
  $region5: #{transformer_forward.2} parent=0 // loop_body
    %s25 = ssub.s32 %s20, 1
    %s26 = ssub.s32 %s20, 2
    %s33 = sadd.s32 1, %s28
    %p34 = scmp.ge.s32.totalorder %s33, 1
    %s35 = scalar_select %p34, 0, %s33
    %s36 = sadd.s32 1, %s27
    %s37 = scalar_select %p34, %s36, %s27
    %p38 = scmp.ge.s32.totalorder %s37, 2
    %s39 = scalar_select %p38, 0, %s37
    %s40 = ssub.s32 %s27, %s39
    %s41 = ssub.s32 %s28, %s35
    %s42 = sor.u32 %s40, %s41
    %p43 = scmp.eq.s32.totalorder %s42, 0
    %s45 = sadd.s32 %s44, 1
    %s46 = scalar_select %p43, %s44, %s45
    %p49 = pneg %p43
    %p50 = scmp.eq.s32.totalorder %s20, 1
    %p51 = por %p49, %p50
    %p52 = scmp.ne.s32.totalorder %s44, %s47
    %p53 = scmp.eq.s32.totalorder %s20, 0
    %p54 = por %p52, %p53
    %p55 = scmp.ne.s32.totalorder %s44, %s47
    %p56 = scmp.eq.s32.totalorder %s25, 1
    %p57 = por %p55, %p56
    %p58 = scmp.ne.s32.totalorder %s47, %s48
    %p59 = scmp.eq.s32.totalorder %s25, 0
    %p60 = por %p58, %p59
    %p61 = scmp.ne.s32.totalorder %s47, %s48
    %p62 = scmp.eq.s32.totalorder %s26, 1
    %p63 = por %p61, %p62
    %p65 = scmp.ne.s32.totalorder %s48, %s64
    %p66 = scmp.eq.s32.totalorder %s26, 0
    %p67 = por %p65, %p66
    %s68 = ssub.s32 %s28, %s35
    %p69 = scmp.eq.s32.totalorder %s68, 0
    %s71 = sadd.s32 %s70, 1
    %s72 = scalar_select %p69, %s70, %s71
    %p75 = pneg %p69
    %p76 = scmp.eq.s32.totalorder %s20, 1
    %p77 = por %p75, %p76
    %p78 = scmp.ne.s32.totalorder %s70, %s73
    %p79 = scmp.eq.s32.totalorder %s20, 0
    %p80 = por %p78, %p79
    %p81 = scmp.ne.s32.totalorder %s70, %s73
    %p82 = scmp.eq.s32.totalorder %s25, 1
    %p83 = por %p81, %p82
    %p84 = scmp.ne.s32.totalorder %s73, %s74
    %p85 = scmp.eq.s32.totalorder %s25, 0
    %p86 = por %p84, %p85
    %p87 = scmp.ne.s32.totalorder %s73, %s74
    %p88 = scmp.eq.s32.totalorder %s26, 1
    %p89 = por %p87, %p88
    %p91 = scmp.ne.s32.totalorder %s74, %s90
    %p92 = scmp.eq.s32.totalorder %s26, 0
    %p93 = por %p91, %p92
    %s95 = sadd.s32 %s94, 1
    %p98 = scmp.eq.s32.totalorder %s20, 1
    %p99 = scmp.ne.s32.totalorder %s94, %s96
    %p100 = scmp.eq.s32.totalorder %s20, 0
    %p101 = por %p99, %p100
    %p102 = scmp.ne.s32.totalorder %s94, %s96
    %p103 = scmp.eq.s32.totalorder %s25, 1
    %p104 = por %p102, %p103
    %p105 = scmp.ne.s32.totalorder %s96, %s97
    %p106 = scmp.eq.s32.totalorder %s25, 0
    %p107 = por %p105, %p106
    %p108 = scmp.ne.s32.totalorder %s96, %s97
    %p109 = scmp.eq.s32.totalorder %s26, 1
    %p110 = por %p108, %p109
    %p112 = scmp.ne.s32.totalorder %s97, %s111
    %p113 = scmp.eq.s32.totalorder %s26, 0
    %p114 = por %p112, %p113
    %s116 = sadd.s32 %s115, 1
    %p119 = scmp.eq.s32.totalorder %s20, 1
    %p120 = scmp.ne.s32.totalorder %s115, %s117
    %p121 = scmp.eq.s32.totalorder %s20, 0
    %p122 = por %p120, %p121
    %p123 = scmp.ne.s32.totalorder %s115, %s117
    %p124 = scmp.eq.s32.totalorder %s25, 1
    %p125 = por %p123, %p124
    %p126 = scmp.ne.s32.totalorder %s117, %s118
    %p127 = scmp.eq.s32.totalorder %s25, 0
    %p128 = por %p126, %p127
    %p129 = scmp.ne.s32.totalorder %s117, %s118
    %p130 = scmp.eq.s32.totalorder %s26, 1
    %p131 = por %p129, %p130
    %p133 = scmp.ne.s32.totalorder %s118, %s132
    %p134 = scmp.eq.s32.totalorder %s26, 0
    %p135 = por %p133, %p134
    %s137 = sadd.s32 %s136, 1
    %p140 = scmp.eq.s32.totalorder %s20, 1
    %p141 = scmp.ne.s32.totalorder %s136, %s138
    %p142 = scmp.eq.s32.totalorder %s20, 0
    %p143 = por %p141, %p142
    %p144 = scmp.ne.s32.totalorder %s136, %s138
    %p145 = scmp.eq.s32.totalorder %s25, 1
    %p146 = por %p144, %p145
    %p147 = scmp.ne.s32.totalorder %s138, %s139
    %p148 = scmp.eq.s32.totalorder %s25, 0
    %p149 = por %p147, %p148
    %p150 = scmp.ne.s32.totalorder %s138, %s139
    %p151 = scmp.eq.s32.totalorder %s26, 1
    %p152 = por %p150, %p151
    %p154 = scmp.ne.s32.totalorder %s139, %s153
    %p155 = scmp.eq.s32.totalorder %s26, 0
    %p156 = por %p154, %p155
    %s158 = sadd.s32 %s157, 1
    %p161 = scmp.eq.s32.totalorder %s20, 1
    %p162 = scmp.ne.s32.totalorder %s157, %s159
    %p163 = scmp.eq.s32.totalorder %s20, 0
    %p164 = por %p162, %p163
    %p165 = scmp.ne.s32.totalorder %s157, %s159
    %p166 = scmp.eq.s32.totalorder %s25, 1
    %p167 = por %p165, %p166
    %p168 = scmp.ne.s32.totalorder %s159, %s160
    %p169 = scmp.eq.s32.totalorder %s25, 0
    %p170 = por %p168, %p169
    %p171 = scmp.ne.s32.totalorder %s159, %s160
    %p172 = scmp.eq.s32.totalorder %s26, 1
    %p173 = por %p171, %p172
    %p175 = scmp.ne.s32.totalorder %s160, %s174
    %p176 = scmp.eq.s32.totalorder %s26, 0
    %p177 = por %p175, %p176
    %s179 = sadd.s32 %s178, 1
    %p182 = scmp.eq.s32.totalorder %s20, 1
    %p183 = scmp.ne.s32.totalorder %s178, %s180
    %p184 = scmp.eq.s32.totalorder %s20, 0
    %p185 = por %p183, %p184
    %p186 = scmp.ne.s32.totalorder %s178, %s180
    %p187 = scmp.eq.s32.totalorder %s25, 1
    %p188 = por %p186, %p187
    %p189 = scmp.ne.s32.totalorder %s180, %s181
    %p190 = scmp.eq.s32.totalorder %s25, 0
    %p191 = por %p189, %p190
    %p192 = scmp.ne.s32.totalorder %s180, %s181
    %p193 = scmp.eq.s32.totalorder %s26, 1
    %p194 = por %p192, %p193
    %p196 = scmp.ne.s32.totalorder %s181, %s195
    %p197 = scmp.eq.s32.totalorder %s26, 0
    %p198 = por %p196, %p197
    %s200 = sadd.s32 %s199, 1
    %p203 = scmp.eq.s32.totalorder %s20, 1
    %p204 = scmp.ne.s32.totalorder %s199, %s201
    %p205 = scmp.eq.s32.totalorder %s20, 0
    %p206 = por %p204, %p205
    %p207 = scmp.ne.s32.totalorder %s199, %s201
    %p208 = scmp.eq.s32.totalorder %s25, 1
    %p209 = por %p207, %p208
    %p210 = scmp.ne.s32.totalorder %s201, %s202
    %p211 = scmp.eq.s32.totalorder %s25, 0
    %p212 = por %p210, %p211
    %p213 = scmp.ne.s32.totalorder %s201, %s202
    %p214 = scmp.eq.s32.totalorder %s26, 1
    %p215 = por %p213, %p214
    %p217 = scmp.ne.s32.totalorder %s202, %s216
    %p218 = scmp.eq.s32.totalorder %s26, 0
    %p219 = por %p217, %p218
    %s221 = sadd.s32 %s220, 1
    %p224 = scmp.eq.s32.totalorder %s20, 1
    %p225 = scmp.ne.s32.totalorder %s220, %s222
    %p226 = scmp.eq.s32.totalorder %s20, 0
    %p227 = por %p225, %p226
    %p228 = scmp.ne.s32.totalorder %s220, %s222
    %p229 = scmp.eq.s32.totalorder %s25, 1
    %p230 = por %p228, %p229
    %p231 = scmp.ne.s32.totalorder %s222, %s223
    %p232 = scmp.eq.s32.totalorder %s25, 0
    %p233 = por %p231, %p232
    %p234 = scmp.ne.s32.totalorder %s222, %s223
    %p235 = scmp.eq.s32.totalorder %s26, 1
    %p236 = por %p234, %p235
    %p238 = scmp.ne.s32.totalorder %s223, %s237
    %p239 = scmp.eq.s32.totalorder %s26, 0
    %p240 = por %p238, %p239
    %s242 = sadd.s32 %s241, 1
    %p245 = scmp.eq.s32.totalorder %s20, 1
    %p246 = scmp.ne.s32.totalorder %s241, %s243
    %p247 = scmp.eq.s32.totalorder %s20, 0
    %p248 = por %p246, %p247
    %p249 = scmp.ne.s32.totalorder %s241, %s243
    %p250 = scmp.eq.s32.totalorder %s25, 1
    %p251 = por %p249, %p250
    %p252 = scmp.ne.s32.totalorder %s243, %s244
    %p253 = scmp.eq.s32.totalorder %s25, 0
    %p254 = por %p252, %p253
    %p255 = scmp.ne.s32.totalorder %s243, %s244
    %p256 = scmp.eq.s32.totalorder %s26, 1
    %p257 = por %p255, %p256
    %p259 = scmp.ne.s32.totalorder %s244, %s258
    %p260 = scmp.eq.s32.totalorder %s26, 0
    %p261 = por %p259, %p260
    %s263 = sadd.s32 %s262, 1
    %p266 = scmp.eq.s32.totalorder %s20, 1
    %p267 = scmp.ne.s32.totalorder %s262, %s264
    %p268 = scmp.eq.s32.totalorder %s20, 0
    %p269 = por %p267, %p268
    %p270 = scmp.ne.s32.totalorder %s262, %s264
    %p271 = scmp.eq.s32.totalorder %s25, 1
    %p272 = por %p270, %p271
    %p273 = scmp.ne.s32.totalorder %s264, %s265
    %p274 = scmp.eq.s32.totalorder %s25, 0
    %p275 = por %p273, %p274
    %p276 = scmp.ne.s32.totalorder %s264, %s265
    %p277 = scmp.eq.s32.totalorder %s26, 1
    %p278 = por %p276, %p277
    %p280 = scmp.ne.s32.totalorder %s265, %s279
    %p281 = scmp.eq.s32.totalorder %s26, 0
    %p282 = por %p280, %p281
    %s284 = sadd.s32 %s283, 1
    %p287 = scmp.eq.s32.totalorder %s20, 1
    %p288 = scmp.ne.s32.totalorder %s283, %s285
    %p289 = scmp.eq.s32.totalorder %s20, 0
    %p290 = por %p288, %p289
    %p291 = scmp.ne.s32.totalorder %s283, %s285
    %p292 = scmp.eq.s32.totalorder %s25, 1
    %p293 = por %p291, %p292
    %p294 = scmp.ne.s32.totalorder %s285, %s286
    %p295 = scmp.eq.s32.totalorder %s25, 0
    %p296 = por %p294, %p295
    %p297 = scmp.ne.s32.totalorder %s285, %s286
    %p298 = scmp.eq.s32.totalorder %s26, 1
    %p299 = por %p297, %p298
    %p301 = scmp.ne.s32.totalorder %s286, %s300
    %p302 = scmp.eq.s32.totalorder %s26, 0
    %p303 = por %p301, %p302
    %s305 = sadd.s32 %s304, 1
    %p308 = scmp.eq.s32.totalorder %s20, 1
    %p309 = scmp.ne.s32.totalorder %s304, %s306
    %p310 = scmp.eq.s32.totalorder %s20, 0
    %p311 = por %p309, %p310
    %p312 = scmp.ne.s32.totalorder %s304, %s306
    %p313 = scmp.eq.s32.totalorder %s25, 1
    %p314 = por %p312, %p313
    %p315 = scmp.ne.s32.totalorder %s306, %s307
    %p316 = scmp.eq.s32.totalorder %s25, 0
    %p317 = por %p315, %p316
    %p318 = scmp.ne.s32.totalorder %s306, %s307
    %p319 = scmp.eq.s32.totalorder %s26, 1
    %p320 = por %p318, %p319
    %p322 = scmp.ne.s32.totalorder %s307, %s321
    %p323 = scmp.eq.s32.totalorder %s26, 0
    %p324 = por %p322, %p323
    %s326 = sadd.s32 %s325, 1
    %p329 = scmp.eq.s32.totalorder %s20, 1
    %p330 = scmp.ne.s32.totalorder %s325, %s327
    %p331 = scmp.eq.s32.totalorder %s20, 0
    %p332 = por %p330, %p331
    %p333 = scmp.ne.s32.totalorder %s325, %s327
    %p334 = scmp.eq.s32.totalorder %s25, 1
    %p335 = por %p333, %p334
    %p336 = scmp.ne.s32.totalorder %s327, %s328
    %p337 = scmp.eq.s32.totalorder %s25, 0
    %p338 = por %p336, %p337
    %p339 = scmp.ne.s32.totalorder %s327, %s328
    %p340 = scmp.eq.s32.totalorder %s26, 1
    %p341 = por %p339, %p340
    %p343 = scmp.ne.s32.totalorder %s328, %s342
    %p344 = scmp.eq.s32.totalorder %s26, 0
    %p345 = por %p343, %p344
    %s346 = ssub.s32 %s27, %s39
    %s347 = ssub.s32 %s28, %s35
    %s348 = sor.u32 %s346, %s347
    %p349 = scmp.eq.s32.totalorder %s348, 0
    %s351 = sadd.s32 %s350, 1
    %s352 = scalar_select %p349, %s350, %s351
    %p355 = pneg %p349
    %p356 = scmp.eq.s32.totalorder %s20, 1
    %p357 = por %p355, %p356
    %p358 = scmp.ne.s32.totalorder %s350, %s353
    %p359 = scmp.eq.s32.totalorder %s20, 0
    %p360 = por %p358, %p359
    %p361 = scmp.ne.s32.totalorder %s350, %s353
    %p362 = scmp.eq.s32.totalorder %s25, 1
    %p363 = por %p361, %p362
    %p364 = scmp.ne.s32.totalorder %s353, %s354
    %p365 = scmp.eq.s32.totalorder %s25, 0
    %p366 = por %p364, %p365
    %p367 = scmp.ne.s32.totalorder %s353, %s354
    %p368 = scmp.eq.s32.totalorder %s26, 1
    %p369 = por %p367, %p368
    %p371 = scmp.ne.s32.totalorder %s354, %s370
    %p372 = scmp.eq.s32.totalorder %s26, 0
    %p373 = por %p371, %p372
    %p374 = scmp.le.s32.totalorder 1, %s20
    %p375 = scmp.lt.s32.totalorder %s20, 3
    %p376 = pnand %p374, %p375
    %p377 = pneg %p376
    // Predicated region
    $region9: #{transformer_forward.2} parent=5 // pred_check
      _
    $region10: #{transformer_forward.2} parent=5 // pred_check_branch
      %379 = sbr.rel (%p376) target = $region12
    $region11: #{transformer_forward.2} parent=5 // pred_region
      %s380 = ssub.s32 %s20, 1
      // Predicated region
      $region13: #{transformer_forward.2} parent=11 // pred_check
        %p381 = pneg %p86
      $region14: #{transformer_forward.2} parent=11 // pred_check_branch
        %383 = sbr.rel (%p381) target = $region16
      $region15: #{transformer_forward.2} parent=11 // pred_region
        %p384 = scmp.lt.s32.totalorder %s30, 0
        %s385 = scalar_select %p384, %s30, 0
        %s386 = smul.addr %s385, 4
        %s387 = scalar_lea.vmem %s1, %s386
      $region16: #{transformer_forward.2} parent=11 // pred_fallthru
        _
      // Predicated region
      $region17: #{transformer_forward.2} parent=11 // pred_check
        %p388 = pneg %p107
      $region18: #{transformer_forward.2} parent=11 // pred_check_branch
        %390 = sbr.rel (%p388) target = $region20
      $region19: #{transformer_forward.2} parent=11 // pred_region
        _
      $region20: #{transformer_forward.2} parent=11 // pred_fallthru
        _
      // Predicated region
      $region21: #{transformer_forward.2} parent=11 // pred_check
        %p391 = pneg %p128
      $region22: #{transformer_forward.2} parent=11 // pred_check_branch
        %393 = sbr.rel (%p391) target = $region24
      $region23: #{transformer_forward.2} parent=11 // pred_region
        _
      $region24: #{transformer_forward.2} parent=11 // pred_fallthru
        _
      // Predicated region
      $region25: #{transformer_forward.2} parent=11 // pred_check
        %p394 = pneg %p149
      $region26: #{transformer_forward.2} parent=11 // pred_check_branch
        %396 = sbr.rel (%p394) target = $region28
      $region27: #{transformer_forward.2} parent=11 // pred_region
        _
      $region28: #{transformer_forward.2} parent=11 // pred_fallthru
        _
      // Predicated region
      $region29: #{transformer_forward.2} parent=11 // pred_check
        %p397 = pneg %p170
      $region30: #{transformer_forward.2} parent=11 // pred_check_branch
        %399 = sbr.rel (%p397) target = $region32
      $region31: #{transformer_forward.2} parent=11 // pred_region
        _
      $region32: #{transformer_forward.2} parent=11 // pred_fallthru
        _
      // Predicated region
      $region33: #{transformer_forward.2} parent=11 // pred_check
        %p400 = pneg %p191
      $region34: #{transformer_forward.2} parent=11 // pred_check_branch
        %402 = sbr.rel (%p400) target = $region36
      $region35: #{transformer_forward.2} parent=11 // pred_region
        _
      $region36: #{transformer_forward.2} parent=11 // pred_fallthru
        _
      // Predicated region
      $region37: #{transformer_forward.2} parent=11 // pred_check
        %p403 = pneg %p212
      $region38: #{transformer_forward.2} parent=11 // pred_check_branch
        %405 = sbr.rel (%p403) target = $region40
      $region39: #{transformer_forward.2} parent=11 // pred_region
        _
      $region40: #{transformer_forward.2} parent=11 // pred_fallthru
        _
      // Predicated region
      $region41: #{transformer_forward.2} parent=11 // pred_check
        %p406 = pneg %p233
      $region42: #{transformer_forward.2} parent=11 // pred_check_branch
        %408 = sbr.rel (%p406) target = $region44
      $region43: #{transformer_forward.2} parent=11 // pred_region
        _
      $region44: #{transformer_forward.2} parent=11 // pred_fallthru
        _
      // Predicated region
      $region45: #{transformer_forward.2} parent=11 // pred_check
        %p409 = pneg %p254
      $region46: #{transformer_forward.2} parent=11 // pred_check_branch
        %411 = sbr.rel (%p409) target = $region48
      $region47: #{transformer_forward.2} parent=11 // pred_region
        _
      $region48: #{transformer_forward.2} parent=11 // pred_fallthru
        _
      // Predicated region
      $region49: #{transformer_forward.2} parent=11 // pred_check
        %p412 = pneg %p275
      $region50: #{transformer_forward.2} parent=11 // pred_check_branch
        %414 = sbr.rel (%p412) target = $region52
      $region51: #{transformer_forward.2} parent=11 // pred_region
        _
      $region52: #{transformer_forward.2} parent=11 // pred_fallthru
        _
      // Predicated region
      $region53: #{transformer_forward.2} parent=11 // pred_check
        %p415 = pneg %p296
      $region54: #{transformer_forward.2} parent=11 // pred_check_branch
        %417 = sbr.rel (%p415) target = $region56
      $region55: #{transformer_forward.2} parent=11 // pred_region
        _
      $region56: #{transformer_forward.2} parent=11 // pred_fallthru
        _
      // Predicated region
      $region57: #{transformer_forward.2} parent=11 // pred_check
        %p418 = pneg %p317
      $region58: #{transformer_forward.2} parent=11 // pred_check_branch
        %420 = sbr.rel (%p418) target = $region60
      $region59: #{transformer_forward.2} parent=11 // pred_region
        _
      $region60: #{transformer_forward.2} parent=11 // pred_fallthru
        _
      // Predicated region
      $region61: #{transformer_forward.2} parent=11 // pred_check
        %p421 = pneg %p338
      $region62: #{transformer_forward.2} parent=11 // pred_check_branch
        %423 = sbr.rel (%p421) target = $region64
      $region63: #{transformer_forward.2} parent=11 // pred_region
        _
      $region64: #{transformer_forward.2} parent=11 // pred_fallthru
        _
    $region12: #{transformer_forward.2} parent=5 // pred_fallthru
      _
    %p424 = scmp.lt.s32.totalorder %s20, 2
    // Predicated region
    $region65: #{transformer_forward.2} parent=5 // pred_check
      %p425 = pneg %p424
    $region66: #{transformer_forward.2} parent=5 // pred_check_branch
      %427 = sbr.rel (%p425) target = $region68
    $region67: #{transformer_forward.2} parent=5 // pred_region
      // Predicated region
      $region69: #{transformer_forward.2} parent=67 // pred_check
        %p428 = pneg %p54
      $region70: #{transformer_forward.2} parent=67 // pred_check_branch
        %430 = sbr.rel (%p428) target = $region72
      $region71: #{transformer_forward.2} parent=67 // pred_region
        %p431 = scmp.lt.s32.totalorder %s27, 1
        %s432 = scalar_select %p431, %s27, 1
        %p433 = scmp.lt.s32.totalorder %s28, 0
        %s434 = scalar_select %p433, %s28, 0
        %s435 = sadd.s32 %s434, %s432
        %s436 = smul.addr %s435, 8
        %s437 = scalar_lea.vmem %s0, %s436
      $region72: #{transformer_forward.2} parent=67 // pred_fallthru
        _
    $region68: #{transformer_forward.2} parent=5 // pred_fallthru
      _
    %p438 = scmp.le.s32.totalorder 1, %s20
    %p439 = scmp.lt.s32.totalorder %s20, 3
    %p440 = pnand %p438, %p439
    %p441 = pneg %p440
    // Predicated region
    $region73: #{transformer_forward.2} parent=5 // pred_check
      _
    $region74: #{transformer_forward.2} parent=5 // pred_check_branch
      %443 = sbr.rel (%p440) target = $region76
    $region75: #{transformer_forward.2} parent=5 // pred_region
      %s444 = ssub.s32 %s20, 1
      %p445 = scmp.lt.s32.totalorder %s29, 1
      %s446 = scalar_select %p445, %s29, 1
      %p447 = scmp.lt.s32.totalorder %s30, 0
      %s448 = scalar_select %p447, %s30, 0
      %s449 = sadd.s32 %s448, %s446
      %s450 = smul.addr %s449, 8
      %s451 = scalar_lea.vmem %s0, %s450
      %p452 = pneg %p60
      %p453 = pneg %p57
      %p454 = scmp.lt.s32.totalorder %s30, 0
      %s455 = scalar_select %p454, %s30, 0
      %s456 = smul.addr %s455, 4
      %s457 = scalar_lea.vmem %s1, %s456
      %p458 = pneg %p86
      %p459 = pneg %p83
      %p460 = pneg %p107
      %p461 = pneg %p104
      %p462 = pneg %p128
      %p463 = pneg %p125
      %p464 = pneg %p149
      %p465 = pneg %p146
      %p466 = pneg %p170
      %p467 = pneg %p167
      %p468 = pneg %p191
      %p469 = pneg %p188
      %p470 = pneg %p212
      %p471 = pneg %p209
      %p472 = pneg %p233
      %p473 = pneg %p230
      %p474 = pneg %p254
      %p475 = pneg %p251
      %p476 = pneg %p275
      %p477 = pneg %p272
      %p478 = pneg %p296
      %p479 = pneg %p293
      %p480 = pneg %p317
      %p481 = pneg %p314
      %p482 = pneg %p338
      %p483 = pneg %p335
      %p484 = pneg %p366
      %p485 = pneg %p363
      %p486 = scmp.lt.s32.totalorder %s29, 1
      %s487 = scalar_select %p486, %s29, 1
      %p488 = scmp.lt.s32.totalorder %s30, 0
      %s489 = scalar_select %p488, %s30, 0
      %s490 = sadd.s32 %s489, %s487
      %s491 = smul.addr %s490, 8
      %s492 = scalar_lea.vmem %s14, %s491
      %p493 = scmp.lt.s32.totalorder %s29, 1
      %s494 = scalar_select %p493, %s29, 1
      %p495 = scmp.lt.s32.totalorder %s30, 0
      %s496 = scalar_select %p495, %s30, 0
      %s497 = sadd.s32 %s496, %s494
      %s498 = smul.addr %s497, 8
      %s499 = scalar_lea.vmem %s0, %s498
      %p500 = scmp.lt.s32.totalorder %s30, 0
      %s501 = scalar_select %p500, %s30, 0
      %s502 = smul.addr %s501, 4
      %s503 = scalar_lea.vmem %s1, %s502
      %p504 = scmp.lt.s32.totalorder %s29, 1
      %s505 = scalar_select %p504, %s29, 1
      %p506 = scmp.lt.s32.totalorder %s30, 0
      %s507 = scalar_select %p506, %s30, 0
      %s508 = sadd.s32 %s507, %s505
      %s509 = smul.addr %s508, 8
      %s510 = scalar_lea.vmem %s14, %s509
      %v512 = vld [vmem:[%s499] sm:$0xff]
      %v513 = vld [vmem:[%s2] sm:$0x1]
      %v514 = vld [vmem:[%s3] sm:$0x1]
      %vm515 = vcmask 261120
      %v516 = vsel %vm515, %v512, 0.0
      %517 = vadd.xlane.f32.xlu0 %v516
      %v518 = vpop.xlane.xlu0 %517
      %v519 = vrcp.pop 32.0
      %v520 = vmul.f32 %v518, %v519
      %v521 = vsub.f32 %v512, %v520
      %v522 = vmul.f32 %v521, %v521
      %v523 = vsel %vm515, %v522, 0.0
      %524 = vadd.xlane.f32.xlu0 %v523
      %v525 = vpop.xlane.xlu0 %524
      %v526 = vmul.f32 %v525, %v519
      %v527 = vadd.f32 %v526, 1e-05
      %v528 = vrsqrt.pop %v527
      %v529 = vmul.f32 %v521, %v528
      %v531 = vlaneseq
      %v532 = vshrl.u32 %v531, 7
      %v533 = vsub.s32 0, %v532
      %v534 = vrot.slane %v513, %v533
      %v536 = vmul.f32 %v529, %v534
      %v538 = vlaneseq
      %v539 = vshrl.u32 %v538, 7
      %v540 = vsub.s32 0, %v539
      %v541 = vrot.slane %v514, %v540
      %v543 = vadd.f32 %v536, %v541
      %v544 = vpack.c.bf16 %v543, %v543
      %v545 = vld [vmem:[%s4] sm:$0xf]
      %v546 = vld [vmem:[%s4 + $0x4] sm:$0xf]
      %v547 = vld [vmem:[%s4 + $0x8] sm:$0xf]
      %v548 = vld [vmem:[%s4 + $0xc] sm:$0xf]
      %v549 = vld [vmem:[%s5] sm:$0x1]
      %v551 = vlaneseq
      %v552 = vshrl.u32 %v551, 7
      %v553 = vsub.s32 0, %v552
      %v554 = vrot.slane %v549, %v553
      %v560 = vunpack.c.l.b16 %v545
      %v561 = vunpack.c.l.b16 %v546
      %v562 = vunpack.c.l.b16 %v547
      %v563 = vunpack.c.l.b16 %v548
      %v564 = vpack.c.b16 %v561, %v560
      %v565 = vpack.c.b16 %v563, %v562
      %v569 = vsel %vm515, %v544, 0
      %571 = vmatprep.subr.bf16.mxu0 0
      %572 = vmatpush1.bf16.msra.mxu0 %v564
      %573 = vmatprep.subr.bf16.mxu0 0
      %574 = vmatpush1.bf16.msra.mxu0 %v565
      %575 = vmatprep.subr.bf16.mxu0 0
      %576 = vmatpush1.bf16.msra.mxu0 0
      %577 = vmatprep.subr.bf16.mxu0 0
      %578 = vmatpush1.bf16.msra.mxu0 0
      %579 = vmatprep.subr.bf16.mxu0 0
      %580 = vmatpush1.bf16.msra.mxu0 0
      %581 = vmatprep.subr.bf16.mxu0 0
      %582 = vmatpush1.bf16.msra.mxu0 0
      %583 = vmatprep.subr.bf16.mxu0 0
      %584 = vmatpush1.bf16.msra.mxu0 0
      %585 = vmatprep.subr.bf16.mxu0 0
      %586 = vmatpush1.bf16.msra.mxu0 0
      %587 = vmatprep.subr.bf16.mxu0 0
      %588 = vmatpush1.bf16.msra.mxu0 0
      %589 = vmatprep.subr.bf16.mxu0 0
      %590 = vmatpush1.bf16.msra.mxu0 0
      %591 = vmatprep.subr.bf16.mxu0 0
      %592 = vmatpush1.bf16.msra.mxu0 0
      %593 = vmatprep.subr.bf16.mxu0 0
      %594 = vmatpush1.bf16.msra.mxu0 0
      %595 = vmatprep.subr.bf16.mxu0 0
      %596 = vmatpush1.bf16.msra.mxu0 0
      %597 = vmatprep.subr.bf16.mxu0 0
      %598 = vmatpush1.bf16.msra.mxu0 0
      %599 = vmatprep.subr.bf16.mxu0 0
      %600 = vmatpush1.bf16.msra.mxu0 0
      %601 = vmatprep.subr.bf16.mxu0 0
      %602 = vmatpush1.bf16.msra.mxu0 0
      %603 = vmatprep.mubr.bf16.mxu0 0
      %604 = vmatmul.mubr.bf16.gmra.mrb[0].mxu0 %v569
      %v605 = vpop.f32.mrb[0].mxu0
      %v606 = vadd.f32 %v554, %v605
      %v607 = vpop.f32.mrb[0].mxu0
      %v608 = vpop.f32.mrb[0].mxu0
      %v609 = vpop.f32.mrb[0].mxu0
      %610 = vdwg.mxu0
      %v611 = vld [vmem:[%s503] sm:$0xf]
      %v612 = vpack.c.bf16 %v606, %v606
      %614 = vrot.lane.b32.xlu0 %v612, 120
      %v615 = vpop.permute.xlu0 %614
      %616 = vrot.lane.b32.xlu0 %v612, 112
      %v617 = vpop.permute.xlu0 %616
      %618 = vrot.lane.b32.xlu0 %v612, 104
      %v619 = vpop.permute.xlu0 %618
      %v621 = vunpack.c.l.s4 1983009808
      %v622 = vunpack.c.0.s8 %v621
      %v623 = vlaneseq
      %v624 = vshrl.u32 %v623, 7
      %v625 = vsub.s32 %v622, %v624
      %v626 = vrot.slane %v612, %v625
      %v629 = vunpack.c.l.s4 1983009808
      %v630 = vunpack.c.0.s8 %v629
      %v631 = vlaneseq
      %v632 = vshrl.u32 %v631, 7
      %v633 = vsub.s32 %v630, %v632
      %v634 = vrot.slane %v617, %v633
      %v635 = vcombine.low %v626, %v634
      %v636 = vcombine.high %v626, %v634
      %v638 = vunpack.c.l.s4 1934713408
      %v639 = vunpack.c.0.s8 %v638
      %v640 = vlaneseq
      %v641 = vshrl.u32 %v640, 7
      %v642 = vsub.s32 %v639, %v641
      %v643 = vrot.slane %v635, %v642
      %v645 = vunpack.c.l.s4 1934713408
      %v646 = vunpack.c.0.s8 %v645
      %v647 = vlaneseq
      %v648 = vshrl.u32 %v647, 7
      %v649 = vsub.s32 %v646, %v648
      %v650 = vrot.slane %v636, %v649
      %v651 = vcombine.high %v643, 0
      %v652 = vcombine.high %v650, 0
      %v655 = vunpack.c.l.s4 1983009808
      %v656 = vunpack.c.0.s8 %v655
      %v657 = vlaneseq
      %v658 = vshrl.u32 %v657, 7
      %v659 = vsub.s32 %v656, %v658
      %v660 = vrot.slane %v615, %v659
      %v663 = vunpack.c.l.s4 1983009808
      %v664 = vunpack.c.0.s8 %v663
      %v665 = vlaneseq
      %v666 = vshrl.u32 %v665, 7
      %v667 = vsub.s32 %v664, %v666
      %v668 = vrot.slane %v619, %v667
      %v669 = vcombine.low %v660, %v668
      %v670 = vcombine.high %v660, %v668
      %v672 = vunpack.c.l.s4 1934713408
      %v673 = vunpack.c.0.s8 %v672
      %v674 = vlaneseq
      %v675 = vshrl.u32 %v674, 7
      %v676 = vsub.s32 %v673, %v675
      %v677 = vrot.slane %v669, %v676
      %v679 = vunpack.c.l.s4 1934713408
      %v680 = vunpack.c.0.s8 %v679
      %v681 = vlaneseq
      %v682 = vshrl.u32 %v681, 7
      %v683 = vsub.s32 %v680, %v682
      %v684 = vrot.slane %v670, %v683
      %v685 = vcombine.high %v677, 0
      %v686 = vcombine.high %v684, 0
      %v689 = vpack.i.b16 %v677, %v643
      %v691 = vshrl.u32 %v643, 16
      %v692 = vshrl.u32 %v677, 16
      %v693 = vpack.i.b16 %v692, %v691
      %v697 = vpack.i.b16 %v685, %v651
      %v699 = vshrl.u32 %v651, 16
      %v700 = vshrl.u32 %v685, 16
      %v701 = vpack.i.b16 %v700, %v699
      %v705 = vpack.i.b16 %v684, %v650
      %v707 = vshrl.u32 %v650, 16
      %v708 = vshrl.u32 %v684, 16
      %v709 = vpack.i.b16 %v708, %v707
      %v713 = vpack.i.b16 %v686, %v652
      %v715 = vshrl.u32 %v652, 16
      %v716 = vshrl.u32 %v686, 16
      %v717 = vpack.i.b16 %v716, %v715
      %v719 = vcombine.low %v689, %v705
      %v721 = vunpack.c.l.s4 1983009808
      %v722 = vunpack.c.0.s8 %v721
      %v723 = vlaneseq
      %v724 = vshrl.u32 %v723, 7
      %v725 = vsub.s32 %v722, %v724
      %v726 = vrot.slane %v719, %v725
      %v727 = vcombine.low %v697, %v713
      %v729 = vunpack.c.l.s4 1983009808
      %v730 = vunpack.c.0.s8 %v729
      %v731 = vlaneseq
      %v732 = vshrl.u32 %v731, 7
      %v733 = vsub.s32 %v730, %v732
      %v734 = vrot.slane %v727, %v733
      %v735 = vcombine.low %v726, %v734
      %v737 = vunpack.c.l.s4 1934713408
      %v738 = vunpack.c.0.s8 %v737
      %v739 = vlaneseq
      %v740 = vshrl.u32 %v739, 7
      %v741 = vsub.s32 %v738, %v740
      %v742 = vrot.slane %v735, %v741
      %v743 = vcombine.high %v742, 0
      %v744 = vcombine.low %v693, %v709
      %v746 = vunpack.c.l.s4 1983009808
      %v747 = vunpack.c.0.s8 %v746
      %v748 = vlaneseq
      %v749 = vshrl.u32 %v748, 7
      %v750 = vsub.s32 %v747, %v749
      %v751 = vrot.slane %v744, %v750
      %v752 = vcombine.low %v701, %v717
      %v754 = vunpack.c.l.s4 1983009808
      %v755 = vunpack.c.0.s8 %v754
      %v756 = vlaneseq
      %v757 = vshrl.u32 %v756, 7
      %v758 = vsub.s32 %v755, %v757
      %v759 = vrot.slane %v752, %v758
      %v760 = vcombine.low %v751, %v759
      %v762 = vunpack.c.l.s4 1934713408
      %v763 = vunpack.c.0.s8 %v762
      %v764 = vlaneseq
      %v765 = vshrl.u32 %v764, 7
      %v766 = vsub.s32 %v763, %v765
      %v767 = vrot.slane %v760, %v766
      %v768 = vcombine.high %v767, 0
      %v771 = vpack.i.b16 %v767, %v742
      %v772 = vshrl.u32 %v742, 16
      %v773 = vshrl.u32 %v767, 16
      %v774 = vpack.i.b16 %v773, %v772
      %v777 = vpack.i.b16 %v768, %v743
      %v778 = vshrl.u32 %v743, 16
      %v779 = vshrl.u32 %v768, 16
      %v780 = vpack.i.b16 %v779, %v778
      %781 = vrot.lane.b32.xlu0 %v612, 96
      %v782 = vpop.permute.xlu0 %781
      %783 = vrot.lane.b32.xlu0 %v615, 96
      %v784 = vpop.permute.xlu0 %783
      %785 = vrot.lane.b32.xlu0 %v617, 96
      %v786 = vpop.permute.xlu0 %785
      %787 = vrot.lane.b32.xlu0 %v619, 96
      %v788 = vpop.permute.xlu0 %787
      %v791 = vunpack.c.l.s4 1983009808
      %v792 = vunpack.c.0.s8 %v791
      %v793 = vlaneseq
      %v794 = vshrl.u32 %v793, 7
      %v795 = vsub.s32 %v792, %v794
      %v796 = vrot.slane %v782, %v795
      %v799 = vunpack.c.l.s4 1983009808
      %v800 = vunpack.c.0.s8 %v799
      %v801 = vlaneseq
      %v802 = vshrl.u32 %v801, 7
      %v803 = vsub.s32 %v800, %v802
      %v804 = vrot.slane %v786, %v803
      %v805 = vcombine.low %v796, %v804
      %v806 = vcombine.high %v796, %v804
      %v808 = vunpack.c.l.s4 1934713408
      %v809 = vunpack.c.0.s8 %v808
      %v810 = vlaneseq
      %v811 = vshrl.u32 %v810, 7
      %v812 = vsub.s32 %v809, %v811
      %v813 = vrot.slane %v805, %v812
      %v815 = vunpack.c.l.s4 1934713408
      %v816 = vunpack.c.0.s8 %v815
      %v817 = vlaneseq
      %v818 = vshrl.u32 %v817, 7
      %v819 = vsub.s32 %v816, %v818
      %v820 = vrot.slane %v806, %v819
      %v821 = vcombine.high %v813, 0
      %v822 = vcombine.high %v820, 0
      %v825 = vunpack.c.l.s4 1983009808
      %v826 = vunpack.c.0.s8 %v825
      %v827 = vlaneseq
      %v828 = vshrl.u32 %v827, 7
      %v829 = vsub.s32 %v826, %v828
      %v830 = vrot.slane %v784, %v829
      %v833 = vunpack.c.l.s4 1983009808
      %v834 = vunpack.c.0.s8 %v833
      %v835 = vlaneseq
      %v836 = vshrl.u32 %v835, 7
      %v837 = vsub.s32 %v834, %v836
      %v838 = vrot.slane %v788, %v837
      %v839 = vcombine.low %v830, %v838
      %v840 = vcombine.high %v830, %v838
      %v842 = vunpack.c.l.s4 1934713408
      %v843 = vunpack.c.0.s8 %v842
      %v844 = vlaneseq
      %v845 = vshrl.u32 %v844, 7
      %v846 = vsub.s32 %v843, %v845
      %v847 = vrot.slane %v839, %v846
      %v849 = vunpack.c.l.s4 1934713408
      %v850 = vunpack.c.0.s8 %v849
      %v851 = vlaneseq
      %v852 = vshrl.u32 %v851, 7
      %v853 = vsub.s32 %v850, %v852
      %v854 = vrot.slane %v840, %v853
      %v855 = vcombine.high %v847, 0
      %v856 = vcombine.high %v854, 0
      %v859 = vpack.i.b16 %v847, %v813
      %v861 = vshrl.u32 %v813, 16
      %v862 = vshrl.u32 %v847, 16
      %v863 = vpack.i.b16 %v862, %v861
      %v867 = vpack.i.b16 %v855, %v821
      %v869 = vshrl.u32 %v821, 16
      %v870 = vshrl.u32 %v855, 16
      %v871 = vpack.i.b16 %v870, %v869
      %v875 = vpack.i.b16 %v854, %v820
      %v877 = vshrl.u32 %v820, 16
      %v878 = vshrl.u32 %v854, 16
      %v879 = vpack.i.b16 %v878, %v877
      %v883 = vpack.i.b16 %v856, %v822
      %v885 = vshrl.u32 %v822, 16
      %v886 = vshrl.u32 %v856, 16
      %v887 = vpack.i.b16 %v886, %v885
      %v889 = vcombine.low %v859, %v875
      %v891 = vunpack.c.l.s4 1983009808
      %v892 = vunpack.c.0.s8 %v891
      %v893 = vlaneseq
      %v894 = vshrl.u32 %v893, 7
      %v895 = vsub.s32 %v892, %v894
      %v896 = vrot.slane %v889, %v895
      %v897 = vcombine.low %v867, %v883
      %v899 = vunpack.c.l.s4 1983009808
      %v900 = vunpack.c.0.s8 %v899
      %v901 = vlaneseq
      %v902 = vshrl.u32 %v901, 7
      %v903 = vsub.s32 %v900, %v902
      %v904 = vrot.slane %v897, %v903
      %v905 = vcombine.low %v896, %v904
      %v907 = vunpack.c.l.s4 1934713408
      %v908 = vunpack.c.0.s8 %v907
      %v909 = vlaneseq
      %v910 = vshrl.u32 %v909, 7
      %v911 = vsub.s32 %v908, %v910
      %v912 = vrot.slane %v905, %v911
      %v913 = vcombine.high %v912, 0
      %v914 = vcombine.low %v863, %v879
      %v916 = vunpack.c.l.s4 1983009808
      %v917 = vunpack.c.0.s8 %v916
      %v918 = vlaneseq
      %v919 = vshrl.u32 %v918, 7
      %v920 = vsub.s32 %v917, %v919
      %v921 = vrot.slane %v914, %v920
      %v922 = vcombine.low %v871, %v887
      %v924 = vunpack.c.l.s4 1983009808
      %v925 = vunpack.c.0.s8 %v924
      %v926 = vlaneseq
      %v927 = vshrl.u32 %v926, 7
      %v928 = vsub.s32 %v925, %v927
      %v929 = vrot.slane %v922, %v928
      %v930 = vcombine.low %v921, %v929
      %v932 = vunpack.c.l.s4 1934713408
      %v933 = vunpack.c.0.s8 %v932
      %v934 = vlaneseq
      %v935 = vshrl.u32 %v934, 7
      %v936 = vsub.s32 %v933, %v935
      %v937 = vrot.slane %v930, %v936
      %v938 = vcombine.high %v937, 0
      %v941 = vpack.i.b16 %v937, %v912
      %v942 = vshrl.u32 %v912, 16
      %v943 = vshrl.u32 %v937, 16
      %v944 = vpack.i.b16 %v943, %v942
      %v947 = vpack.i.b16 %v938, %v913
      %v948 = vshrl.u32 %v913, 16
      %v949 = vshrl.u32 %v938, 16
      %v950 = vpack.i.b16 %v949, %v948
      %951 = vrot.lane.b32.xlu0 %v612, 64
      %v952 = vpop.permute.xlu0 %951
      %953 = vrot.lane.b32.xlu0 %v615, 64
      %v954 = vpop.permute.xlu0 %953
      %955 = vrot.lane.b32.xlu0 %v617, 64
      %v956 = vpop.permute.xlu0 %955
      %957 = vrot.lane.b32.xlu0 %v619, 64
      %v958 = vpop.permute.xlu0 %957
      %v961 = vunpack.c.l.s4 1983009808
      %v962 = vunpack.c.0.s8 %v961
      %v963 = vlaneseq
      %v964 = vshrl.u32 %v963, 7
      %v965 = vsub.s32 %v962, %v964
      %v966 = vrot.slane %v952, %v965
      %v969 = vunpack.c.l.s4 1983009808
      %v970 = vunpack.c.0.s8 %v969
      %v971 = vlaneseq
      %v972 = vshrl.u32 %v971, 7
      %v973 = vsub.s32 %v970, %v972
      %v974 = vrot.slane %v956, %v973
      %v975 = vcombine.low %v966, %v974
      %v976 = vcombine.high %v966, %v974
      %v978 = vunpack.c.l.s4 1934713408
      %v979 = vunpack.c.0.s8 %v978
      %v980 = vlaneseq
      %v981 = vshrl.u32 %v980, 7
      %v982 = vsub.s32 %v979, %v981
      %v983 = vrot.slane %v975, %v982
      %v985 = vunpack.c.l.s4 1934713408
      %v986 = vunpack.c.0.s8 %v985
      %v987 = vlaneseq
      %v988 = vshrl.u32 %v987, 7
      %v989 = vsub.s32 %v986, %v988
      %v990 = vrot.slane %v976, %v989
      %v991 = vcombine.high %v983, 0
      %v992 = vcombine.high %v990, 0
      %v995 = vunpack.c.l.s4 1983009808
      %v996 = vunpack.c.0.s8 %v995
      %v997 = vlaneseq
      %v998 = vshrl.u32 %v997, 7
      %v999 = vsub.s32 %v996, %v998
      %v1000 = vrot.slane %v954, %v999
      %v1003 = vunpack.c.l.s4 1983009808
      %v1004 = vunpack.c.0.s8 %v1003
      %v1005 = vlaneseq
      %v1006 = vshrl.u32 %v1005, 7
      %v1007 = vsub.s32 %v1004, %v1006
      %v1008 = vrot.slane %v958, %v1007
      %v1009 = vcombine.low %v1000, %v1008
      %v1010 = vcombine.high %v1000, %v1008
      %v1012 = vunpack.c.l.s4 1934713408
      %v1013 = vunpack.c.0.s8 %v1012
      %v1014 = vlaneseq
      %v1015 = vshrl.u32 %v1014, 7
      %v1016 = vsub.s32 %v1013, %v1015
      %v1017 = vrot.slane %v1009, %v1016
      %v1019 = vunpack.c.l.s4 1934713408
      %v1020 = vunpack.c.0.s8 %v1019
      %v1021 = vlaneseq
      %v1022 = vshrl.u32 %v1021, 7
      %v1023 = vsub.s32 %v1020, %v1022
      %v1024 = vrot.slane %v1010, %v1023
      %v1025 = vcombine.high %v1017, 0
      %v1026 = vcombine.high %v1024, 0
      %v1029 = vpack.i.b16 %v1017, %v983
      %v1031 = vshrl.u32 %v983, 16
      %v1032 = vshrl.u32 %v1017, 16
      %v1033 = vpack.i.b16 %v1032, %v1031
      %v1037 = vpack.i.b16 %v1025, %v991
      %v1039 = vshrl.u32 %v991, 16
      %v1040 = vshrl.u32 %v1025, 16
      %v1041 = vpack.i.b16 %v1040, %v1039
      %v1045 = vpack.i.b16 %v1024, %v990
      %v1047 = vshrl.u32 %v990, 16
      %v1048 = vshrl.u32 %v1024, 16
      %v1049 = vpack.i.b16 %v1048, %v1047
      %v1053 = vpack.i.b16 %v1026, %v992
      %v1055 = vshrl.u32 %v992, 16
      %v1056 = vshrl.u32 %v1026, 16
      %v1057 = vpack.i.b16 %v1056, %v1055
      %v1059 = vcombine.low %v1029, %v1045
      %v1061 = vunpack.c.l.s4 1983009808
      %v1062 = vunpack.c.0.s8 %v1061
      %v1063 = vlaneseq
      %v1064 = vshrl.u32 %v1063, 7
      %v1065 = vsub.s32 %v1062, %v1064
      %v1066 = vrot.slane %v1059, %v1065
      %v1067 = vcombine.low %v1037, %v1053
      %v1069 = vunpack.c.l.s4 1983009808
      %v1070 = vunpack.c.0.s8 %v1069
      %v1071 = vlaneseq
      %v1072 = vshrl.u32 %v1071, 7
      %v1073 = vsub.s32 %v1070, %v1072
      %v1074 = vrot.slane %v1067, %v1073
      %v1075 = vcombine.low %v1066, %v1074
      %v1077 = vunpack.c.l.s4 1934713408
      %v1078 = vunpack.c.0.s8 %v1077
      %v1079 = vlaneseq
      %v1080 = vshrl.u32 %v1079, 7
      %v1081 = vsub.s32 %v1078, %v1080
      %v1082 = vrot.slane %v1075, %v1081
      %v1083 = vcombine.high %v1082, 0
      %v1084 = vcombine.low %v1033, %v1049
      %v1086 = vunpack.c.l.s4 1983009808
      %v1087 = vunpack.c.0.s8 %v1086
      %v1088 = vlaneseq
      %v1089 = vshrl.u32 %v1088, 7
      %v1090 = vsub.s32 %v1087, %v1089
      %v1091 = vrot.slane %v1084, %v1090
      %v1092 = vcombine.low %v1041, %v1057
      %v1094 = vunpack.c.l.s4 1983009808
      %v1095 = vunpack.c.0.s8 %v1094
      %v1096 = vlaneseq
      %v1097 = vshrl.u32 %v1096, 7
      %v1098 = vsub.s32 %v1095, %v1097
      %v1099 = vrot.slane %v1092, %v1098
      %v1100 = vcombine.low %v1091, %v1099
      %v1102 = vunpack.c.l.s4 1934713408
      %v1103 = vunpack.c.0.s8 %v1102
      %v1104 = vlaneseq
      %v1105 = vshrl.u32 %v1104, 7
      %v1106 = vsub.s32 %v1103, %v1105
      %v1107 = vrot.slane %v1100, %v1106
      %v1108 = vcombine.high %v1107, 0
      %v1111 = vpack.i.b16 %v1107, %v1082
      %v1112 = vshrl.u32 %v1082, 16
      %v1113 = vshrl.u32 %v1107, 16
      %v1114 = vpack.i.b16 %v1113, %v1112
      %v1117 = vpack.i.b16 %v1108, %v1083
      %v1118 = vshrl.u32 %v1083, 16
      %v1119 = vshrl.u32 %v1108, 16
      %v1120 = vpack.i.b16 %v1119, %v1118
      %v1121 = vunpack.c.l.bf16 %v611
      %vm1122 = vcmask 64512
      %v1124 = vsel %vm1122, %v771, 0
      %v1127 = vsel %vm1122, %v941, 0
      %1129 = vmatprep.subr.bf16.mxu0 0
      %1130 = vmatpush1.bf16.xpose.msra.mxu0 %v1127
      %1131 = vmatprep.subr.bf16.mxu0 0
      %1132 = vmatpush1.bf16.xpose.msra.mxu0 0
      %1133 = vmatprep.subr.bf16.mxu0 0
      %1134 = vmatpush1.bf16.xpose.msra.mxu0 0
      %1135 = vmatprep.subr.bf16.mxu0 0
      %1136 = vmatpush1.bf16.xpose.msra.mxu0 0
      %1137 = vmatprep.subr.bf16.mxu0 0
      %1138 = vmatpush1.bf16.xpose.msra.mxu0 0
      %1139 = vmatprep.subr.bf16.mxu0 0
      %1140 = vmatpush1.bf16.xpose.msra.mxu0 0
      %1141 = vmatprep.subr.bf16.mxu0 0
      %1142 = vmatpush1.bf16.xpose.msra.mxu0 0
      %1143 = vmatprep.subr.bf16.mxu0 0
      %1144 = vmatpush1.bf16.xpose.msra.mxu0 0
      %1145 = vmatprep.subr.bf16.mxu0 0
      %1146 = vmatpush1.bf16.xpose.msra.mxu0 0
      %1147 = vmatprep.subr.bf16.mxu0 0
      %1148 = vmatpush1.bf16.xpose.msra.mxu0 0
      %1149 = vmatprep.subr.bf16.mxu0 0
      %1150 = vmatpush1.bf16.xpose.msra.mxu0 0
      %1151 = vmatprep.subr.bf16.mxu0 0
      %1152 = vmatpush1.bf16.xpose.msra.mxu0 0
      %1153 = vmatprep.subr.bf16.mxu0 0
      %1154 = vmatpush1.bf16.xpose.msra.mxu0 0
      %1155 = vmatprep.subr.bf16.mxu0 0
      %1156 = vmatpush1.bf16.xpose.msra.mxu0 0
      %1157 = vmatprep.subr.bf16.mxu0 0
      %1158 = vmatpush1.bf16.xpose.msra.mxu0 0
      %1159 = vmatprep.subr.bf16.mxu0 0
      %1160 = vmatpush1.bf16.xpose.msra.mxu0 0
      %1161 = vmatprep.mubr.bf16.mxu0 0
      %1162 = vmatmul.mubr.bf16.gmra.mrb[0].mxu0 %v1124
      %v1163 = vpop.f32.mrb[0].mxu0
      %v1164 = vadd.f32 %v1121, %v1163
      %v1165 = vpop.f32.mrb[0].mxu0
      %v1166 = vpop.f32.mrb[0].mxu0
      %v1167 = vpop.f32.mrb[0].mxu0
      %1168 = vdwg.mxu0
      %v1170 = vsel %vm1122, %v774, 0
      %v1173 = vsel %vm1122, %v944, 0
      %1175 = vmatprep.subr.bf16.mxu0 0
      %1176 = vmatpush1.bf16.xpose.msra.mxu0 %v1173
      %1177 = vmatprep.subr.bf16.mxu0 0
      %1178 = vmatpush1.bf16.xpose.msra.mxu0 0
      %1179 = vmatprep.subr.bf16.mxu0 0
      %1180 = vmatpush1.bf16.xpose.msra.mxu0 0
      %1181 = vmatprep.subr.bf16.mxu0 0
      %1182 = vmatpush1.bf16.xpose.msra.mxu0 0
      %1183 = vmatprep.subr.bf16.mxu0 0
      %1184 = vmatpush1.bf16.xpose.msra.mxu0 0
      %1185 = vmatprep.subr.bf16.mxu0 0
      %1186 = vmatpush1.bf16.xpose.msra.mxu0 0
      %1187 = vmatprep.subr.bf16.mxu0 0
      %1188 = vmatpush1.bf16.xpose.msra.mxu0 0
      %1189 = vmatprep.subr.bf16.mxu0 0
      %1190 = vmatpush1.bf16.xpose.msra.mxu0 0
      %1191 = vmatprep.subr.bf16.mxu0 0
      %1192 = vmatpush1.bf16.xpose.msra.mxu0 0
      %1193 = vmatprep.subr.bf16.mxu0 0
      %1194 = vmatpush1.bf16.xpose.msra.mxu0 0
      %1195 = vmatprep.subr.bf16.mxu0 0
      %1196 = vmatpush1.bf16.xpose.msra.mxu0 0
      %1197 = vmatprep.subr.bf16.mxu0 0
      %1198 = vmatpush1.bf16.xpose.msra.mxu0 0
      %1199 = vmatprep.subr.bf16.mxu0 0
      %1200 = vmatpush1.bf16.xpose.msra.mxu0 0
      %1201 = vmatprep.subr.bf16.mxu0 0
      %1202 = vmatpush1.bf16.xpose.msra.mxu0 0
      %1203 = vmatprep.subr.bf16.mxu0 0
      %1204 = vmatpush1.bf16.xpose.msra.mxu0 0
      %1205 = vmatprep.subr.bf16.mxu0 0
      %1206 = vmatpush1.bf16.xpose.msra.mxu0 0
      %1207 = vmatprep.mubr.bf16.mxu0 0
      %1208 = vmatmul.mubr.bf16.gmra.mrb[0].mxu0 %v1170
      %v1209 = vpop.f32.mrb[0].mxu0
      %v1210 = vadd.f32 %v1121, %v1209
      %v1211 = vpop.f32.mrb[0].mxu0
      %v1212 = vpop.f32.mrb[0].mxu0
      %v1213 = vpop.f32.mrb[0].mxu0
      %1214 = vdwg.mxu0
      %v1216 = vsel %vm1122, %v777, 0
      %v1219 = vsel %vm1122, %v947, 0
      %1221 = vmatprep.subr.bf16.mxu0 0
      %1222 = vmatpush1.bf16.xpose.msra.mxu0 %v1219
      %1223 = vmatprep.subr.bf16.mxu0 0
      %1224 = vmatpush1.bf16.xpose.msra.mxu0 0
      %1225 = vmatprep.subr.bf16.mxu0 0
      %1226 = vmatpush1.bf16.xpose.msra.mxu0 0
      %1227 = vmatprep.subr.bf16.mxu0 0
      %1228 = vmatpush1.bf16.xpose.msra.mxu0 0
      %1229 = vmatprep.subr.bf16.mxu0 0
      %1230 = vmatpush1.bf16.xpose.msra.mxu0 0
      %1231 = vmatprep.subr.bf16.mxu0 0
      %1232 = vmatpush1.bf16.xpose.msra.mxu0 0
      %1233 = vmatprep.subr.bf16.mxu0 0
      %1234 = vmatpush1.bf16.xpose.msra.mxu0 0
      %1235 = vmatprep.subr.bf16.mxu0 0
      %1236 = vmatpush1.bf16.xpose.msra.mxu0 0
      %1237 = vmatprep.subr.bf16.mxu0 0
      %1238 = vmatpush1.bf16.xpose.msra.mxu0 0
      %1239 = vmatprep.subr.bf16.mxu0 0
      %1240 = vmatpush1.bf16.xpose.msra.mxu0 0
      %1241 = vmatprep.subr.bf16.mxu0 0
      %1242 = vmatpush1.bf16.xpose.msra.mxu0 0
      %1243 = vmatprep.subr.bf16.mxu0 0
      %1244 = vmatpush1.bf16.xpose.msra.mxu0 0
      %1245 = vmatprep.subr.bf16.mxu0 0
      %1246 = vmatpush1.bf16.xpose.msra.mxu0 0
      %1247 = vmatprep.subr.bf16.mxu0 0
      %1248 = vmatpush1.bf16.xpose.msra.mxu0 0
      %1249 = vmatprep.subr.bf16.mxu0 0
      %1250 = vmatpush1.bf16.xpose.msra.mxu0 0
      %1251 = vmatprep.subr.bf16.mxu0 0
      %1252 = vmatpush1.bf16.xpose.msra.mxu0 0
      %1253 = vmatprep.mubr.bf16.mxu0 0
      %1254 = vmatmul.mubr.bf16.gmra.mrb[0].mxu0 %v1216
      %v1255 = vpop.f32.mrb[0].mxu0
      %v1256 = vadd.f32 %v1121, %v1255
      %v1257 = vpop.f32.mrb[0].mxu0
      %v1258 = vpop.f32.mrb[0].mxu0
      %v1259 = vpop.f32.mrb[0].mxu0
      %1260 = vdwg.mxu0
      %v1262 = vsel %vm1122, %v780, 0
      %v1265 = vsel %vm1122, %v950, 0
      %1267 = vmatprep.subr.bf16.mxu0 0
      %1268 = vmatpush1.bf16.xpose.msra.mxu0 %v1265
      %1269 = vmatprep.subr.bf16.mxu0 0
      %1270 = vmatpush1.bf16.xpose.msra.mxu0 0
      %1271 = vmatprep.subr.bf16.mxu0 0
      %1272 = vmatpush1.bf16.xpose.msra.mxu0 0
      %1273 = vmatprep.subr.bf16.mxu0 0
      %1274 = vmatpush1.bf16.xpose.msra.mxu0 0
      %1275 = vmatprep.subr.bf16.mxu0 0
      %1276 = vmatpush1.bf16.xpose.msra.mxu0 0
      %1277 = vmatprep.subr.bf16.mxu0 0
      %1278 = vmatpush1.bf16.xpose.msra.mxu0 0
      %1279 = vmatprep.subr.bf16.mxu0 0
      %1280 = vmatpush1.bf16.xpose.msra.mxu0 0
      %1281 = vmatprep.subr.bf16.mxu0 0
      %1282 = vmatpush1.bf16.xpose.msra.mxu0 0
      %1283 = vmatprep.subr.bf16.mxu0 0
      %1284 = vmatpush1.bf16.xpose.msra.mxu0 0
      %1285 = vmatprep.subr.bf16.mxu0 0
      %1286 = vmatpush1.bf16.xpose.msra.mxu0 0
      %1287 = vmatprep.subr.bf16.mxu0 0
      %1288 = vmatpush1.bf16.xpose.msra.mxu0 0
      %1289 = vmatprep.subr.bf16.mxu0 0
      %1290 = vmatpush1.bf16.xpose.msra.mxu0 0
      %1291 = vmatprep.subr.bf16.mxu0 0
      %1292 = vmatpush1.bf16.xpose.msra.mxu0 0
      %1293 = vmatprep.subr.bf16.mxu0 0
      %1294 = vmatpush1.bf16.xpose.msra.mxu0 0
      %1295 = vmatprep.subr.bf16.mxu0 0
      %1296 = vmatpush1.bf16.xpose.msra.mxu0 0
      %1297 = vmatprep.subr.bf16.mxu0 0
      %1298 = vmatpush1.bf16.xpose.msra.mxu0 0
      %1299 = vmatprep.mubr.bf16.mxu0 0
      %1300 = vmatmul.mubr.bf16.gmra.mrb[0].mxu0 %v1262
      %v1301 = vpop.f32.mrb[0].mxu0
      %v1302 = vadd.f32 %v1121, %v1301
      %v1303 = vpop.f32.mrb[0].mxu0
      %v1304 = vpop.f32.mrb[0].mxu0
      %v1305 = vpop.f32.mrb[0].mxu0
      %1306 = vdwg.mxu0
      %v1307 = vsel %vm1122, %v1164, -inf
      %1308 = vmax.xlane.f32.xlu0 %v1307
      %v1309 = vpop.xlane.xlu0 %1308
      %v1310 = vsel %vm1122, %v1210, -inf
      %1311 = vmax.xlane.f32.xlu0 %v1310
      %v1312 = vpop.xlane.xlu0 %1311
      %v1313 = vsel %vm1122, %v1256, -inf
      %1314 = vmax.xlane.f32.xlu0 %v1313
      %v1315 = vpop.xlane.xlu0 %1314
      %v1316 = vsel %vm1122, %v1302, -inf
      %1317 = vmax.xlane.f32.xlu0 %v1316
      %v1318 = vpop.xlane.xlu0 %1317
      %v1319 = vsub.f32 %v1164, %v1309
      %v1320 = vsub.f32 %v1210, %v1312
      %v1321 = vsub.f32 %v1256, %v1315
      %v1322 = vsub.f32 %v1302, %v1318
      %v1323 = vmul.f32 %v1319, 1.442695
      %v1324 = vpow.pop %v1323
      %v1325 = vmul.f32 %v1320, 1.442695
      %v1326 = vpow.pop %v1325
      %v1327 = vmul.f32 %v1321, 1.442695
      %v1328 = vpow.pop %v1327
      %v1329 = vmul.f32 %v1322, 1.442695
      %v1330 = vpow.pop %v1329
      %v1331 = vsel %vm1122, %v1324, 0.0
      %1332 = vadd.xlane.f32.xlu0 %v1331
      %v1333 = vpop.xlane.xlu0 %1332
      %v1334 = vsel %vm1122, %v1326, 0.0
      %1335 = vadd.xlane.f32.xlu0 %v1334
      %v1336 = vpop.xlane.xlu0 %1335
      %v1337 = vsel %vm1122, %v1328, 0.0
      %1338 = vadd.xlane.f32.xlu0 %v1337
      %v1339 = vpop.xlane.xlu0 %1338
      %v1340 = vsel %vm1122, %v1330, 0.0
      %1341 = vadd.xlane.f32.xlu0 %v1340
      %v1342 = vpop.xlane.xlu0 %1341
      %v1343 = vrcp.pop %v1333
      %v1344 = vrcp.pop %v1336
      %v1345 = vrcp.pop %v1339
      %v1346 = vrcp.pop %v1342
      %v1347 = vmul.f32 %v1324, %v1343
      %v1348 = vmul.f32 %v1326, %v1344
      %v1349 = vmul.f32 %v1328, %v1345
      %v1350 = vmul.f32 %v1330, %v1346
      %v1351 = vpack.c.bf16 %v1347, %v1347
      %v1352 = vpack.c.bf16 %v1348, %v1348
      %v1353 = vpack.c.bf16 %v1349, %v1349
      %v1354 = vpack.c.bf16 %v1350, %v1350
      %v1356 = vsel %vm1122, %v1351, 0
      %vm1358 = vcmask 1043456
      %v1360 = vsel %vm1358, %v1111, 0
      %1362 = vmatprep.subr.bf16.mxu0 0
      %1363 = vmatpush1.bf16.msra.mxu0 %v1360
      %1364 = vmatprep.subr.bf16.mxu0 0
      %1365 = vmatpush1.bf16.msra.mxu0 0
      %1366 = vmatprep.subr.bf16.mxu0 0
      %1367 = vmatpush1.bf16.msra.mxu0 0
      %1368 = vmatprep.subr.bf16.mxu0 0
      %1369 = vmatpush1.bf16.msra.mxu0 0
      %1370 = vmatprep.subr.bf16.mxu0 0
      %1371 = vmatpush1.bf16.msra.mxu0 0
      %1372 = vmatprep.subr.bf16.mxu0 0
      %1373 = vmatpush1.bf16.msra.mxu0 0
      %1374 = vmatprep.subr.bf16.mxu0 0
      %1375 = vmatpush1.bf16.msra.mxu0 0
      %1376 = vmatprep.subr.bf16.mxu0 0
      %1377 = vmatpush1.bf16.msra.mxu0 0
      %1378 = vmatprep.subr.bf16.mxu0 0
      %1379 = vmatpush1.bf16.msra.mxu0 0
      %1380 = vmatprep.subr.bf16.mxu0 0
      %1381 = vmatpush1.bf16.msra.mxu0 0
      %1382 = vmatprep.subr.bf16.mxu0 0
      %1383 = vmatpush1.bf16.msra.mxu0 0
      %1384 = vmatprep.subr.bf16.mxu0 0
      %1385 = vmatpush1.bf16.msra.mxu0 0
      %1386 = vmatprep.subr.bf16.mxu0 0
      %1387 = vmatpush1.bf16.msra.mxu0 0
      %1388 = vmatprep.subr.bf16.mxu0 0
      %1389 = vmatpush1.bf16.msra.mxu0 0
      %1390 = vmatprep.subr.bf16.mxu0 0
      %1391 = vmatpush1.bf16.msra.mxu0 0
      %1392 = vmatprep.subr.bf16.mxu0 0
      %1393 = vmatpush1.bf16.msra.mxu0 0
      %1394 = vmatprep.mubr.bf16.mxu0 0
      %1395 = vmatmul.mubr.bf16.gmra.mrb[0].mxu0 %v1356
      %v1396 = vpop.f32.mrb[0].mxu0
      %v1397 = vadd.f32 0.0, %v1396
      %v1398 = vpop.f32.mrb[0].mxu0
      %v1399 = vpop.f32.mrb[0].mxu0
      %v1400 = vpop.f32.mrb[0].mxu0
      %1401 = vdwg.mxu0
      %v1403 = vsel %vm1122, %v1352, 0
      %v1406 = vsel %vm1358, %v1114, 0
      %1408 = vmatprep.subr.bf16.mxu0 0
      %1409 = vmatpush1.bf16.msra.mxu0 %v1406
      %1410 = vmatprep.subr.bf16.mxu0 0
      %1411 = vmatpush1.bf16.msra.mxu0 0
      %1412 = vmatprep.subr.bf16.mxu0 0
      %1413 = vmatpush1.bf16.msra.mxu0 0
      %1414 = vmatprep.subr.bf16.mxu0 0
      %1415 = vmatpush1.bf16.msra.mxu0 0
      %1416 = vmatprep.subr.bf16.mxu0 0
      %1417 = vmatpush1.bf16.msra.mxu0 0
      %1418 = vmatprep.subr.bf16.mxu0 0
      %1419 = vmatpush1.bf16.msra.mxu0 0
      %1420 = vmatprep.subr.bf16.mxu0 0
      %1421 = vmatpush1.bf16.msra.mxu0 0
      %1422 = vmatprep.subr.bf16.mxu0 0
      %1423 = vmatpush1.bf16.msra.mxu0 0
      %1424 = vmatprep.subr.bf16.mxu0 0
      %1425 = vmatpush1.bf16.msra.mxu0 0
      %1426 = vmatprep.subr.bf16.mxu0 0
      %1427 = vmatpush1.bf16.msra.mxu0 0
      %1428 = vmatprep.subr.bf16.mxu0 0
      %1429 = vmatpush1.bf16.msra.mxu0 0
      %1430 = vmatprep.subr.bf16.mxu0 0
      %1431 = vmatpush1.bf16.msra.mxu0 0
      %1432 = vmatprep.subr.bf16.mxu0 0
      %1433 = vmatpush1.bf16.msra.mxu0 0
      %1434 = vmatprep.subr.bf16.mxu0 0
      %1435 = vmatpush1.bf16.msra.mxu0 0
      %1436 = vmatprep.subr.bf16.mxu0 0
      %1437 = vmatpush1.bf16.msra.mxu0 0
      %1438 = vmatprep.subr.bf16.mxu0 0
      %1439 = vmatpush1.bf16.msra.mxu0 0
      %1440 = vmatprep.mubr.bf16.mxu0 0
      %1441 = vmatmul.mubr.bf16.gmra.mrb[0].mxu0 %v1403
      %v1442 = vpop.f32.mrb[0].mxu0
      %v1443 = vadd.f32 0.0, %v1442
      %v1444 = vpop.f32.mrb[0].mxu0
      %v1445 = vpop.f32.mrb[0].mxu0
      %v1446 = vpop.f32.mrb[0].mxu0
      %1447 = vdwg.mxu0
      %v1449 = vsel %vm1122, %v1353, 0
      %v1452 = vsel %vm1358, %v1117, 0
      %1454 = vmatprep.subr.bf16.mxu0 0
      %1455 = vmatpush1.bf16.msra.mxu0 %v1452
      %1456 = vmatprep.subr.bf16.mxu0 0
      %1457 = vmatpush1.bf16.msra.mxu0 0
      %1458 = vmatprep.subr.bf16.mxu0 0
      %1459 = vmatpush1.bf16.msra.mxu0 0
      %1460 = vmatprep.subr.bf16.mxu0 0
      %1461 = vmatpush1.bf16.msra.mxu0 0
      %1462 = vmatprep.subr.bf16.mxu0 0
      %1463 = vmatpush1.bf16.msra.mxu0 0
      %1464 = vmatprep.subr.bf16.mxu0 0
      %1465 = vmatpush1.bf16.msra.mxu0 0
      %1466 = vmatprep.subr.bf16.mxu0 0
      %1467 = vmatpush1.bf16.msra.mxu0 0
      %1468 = vmatprep.subr.bf16.mxu0 0
      %1469 = vmatpush1.bf16.msra.mxu0 0
      %1470 = vmatprep.subr.bf16.mxu0 0
      %1471 = vmatpush1.bf16.msra.mxu0 0
      %1472 = vmatprep.subr.bf16.mxu0 0
      %1473 = vmatpush1.bf16.msra.mxu0 0
      %1474 = vmatprep.subr.bf16.mxu0 0
      %1475 = vmatpush1.bf16.msra.mxu0 0
      %1476 = vmatprep.subr.bf16.mxu0 0
      %1477 = vmatpush1.bf16.msra.mxu0 0
      %1478 = vmatprep.subr.bf16.mxu0 0
      %1479 = vmatpush1.bf16.msra.mxu0 0
      %1480 = vmatprep.subr.bf16.mxu0 0
      %1481 = vmatpush1.bf16.msra.mxu0 0
      %1482 = vmatprep.subr.bf16.mxu0 0
      %1483 = vmatpush1.bf16.msra.mxu0 0
      %1484 = vmatprep.subr.bf16.mxu0 0
      %1485 = vmatpush1.bf16.msra.mxu0 0
      %1486 = vmatprep.mubr.bf16.mxu0 0
      %1487 = vmatmul.mubr.bf16.gmra.mrb[0].mxu0 %v1449
      %v1488 = vpop.f32.mrb[0].mxu0
      %v1489 = vadd.f32 0.0, %v1488
      %v1490 = vpop.f32.mrb[0].mxu0
      %v1491 = vpop.f32.mrb[0].mxu0
      %v1492 = vpop.f32.mrb[0].mxu0
      %1493 = vdwg.mxu0
      %v1495 = vsel %vm1122, %v1354, 0
      %v1498 = vsel %vm1358, %v1120, 0
      %1500 = vmatprep.subr.bf16.mxu0 0
      %1501 = vmatpush1.bf16.msra.mxu0 %v1498
      %1502 = vmatprep.subr.bf16.mxu0 0
      %1503 = vmatpush1.bf16.msra.mxu0 0
      %1504 = vmatprep.subr.bf16.mxu0 0
      %1505 = vmatpush1.bf16.msra.mxu0 0
      %1506 = vmatprep.subr.bf16.mxu0 0
      %1507 = vmatpush1.bf16.msra.mxu0 0
      %1508 = vmatprep.subr.bf16.mxu0 0
      %1509 = vmatpush1.bf16.msra.mxu0 0
      %1510 = vmatprep.subr.bf16.mxu0 0
      %1511 = vmatpush1.bf16.msra.mxu0 0
      %1512 = vmatprep.subr.bf16.mxu0 0
      %1513 = vmatpush1.bf16.msra.mxu0 0
      %1514 = vmatprep.subr.bf16.mxu0 0
      %1515 = vmatpush1.bf16.msra.mxu0 0
      %1516 = vmatprep.subr.bf16.mxu0 0
      %1517 = vmatpush1.bf16.msra.mxu0 0
      %1518 = vmatprep.subr.bf16.mxu0 0
      %1519 = vmatpush1.bf16.msra.mxu0 0
      %1520 = vmatprep.subr.bf16.mxu0 0
      %1521 = vmatpush1.bf16.msra.mxu0 0
      %1522 = vmatprep.subr.bf16.mxu0 0
      %1523 = vmatpush1.bf16.msra.mxu0 0
      %1524 = vmatprep.subr.bf16.mxu0 0
      %1525 = vmatpush1.bf16.msra.mxu0 0
      %1526 = vmatprep.subr.bf16.mxu0 0
      %1527 = vmatpush1.bf16.msra.mxu0 0
      %1528 = vmatprep.subr.bf16.mxu0 0
      %1529 = vmatpush1.bf16.msra.mxu0 0
      %1530 = vmatprep.subr.bf16.mxu0 0
      %1531 = vmatpush1.bf16.msra.mxu0 0
      %1532 = vmatprep.mubr.bf16.mxu0 0
      %1533 = vmatmul.mubr.bf16.gmra.mrb[0].mxu0 %v1495
      %v1534 = vpop.f32.mrb[0].mxu0
      %v1535 = vadd.f32 0.0, %v1534
      %v1536 = vpop.f32.mrb[0].mxu0
      %v1537 = vpop.f32.mrb[0].mxu0
      %v1538 = vpop.f32.mrb[0].mxu0
      %1539 = vdwg.mxu0
      %v1540 = vcombine.low %v1397, %v1489
      %v1541 = vcombine.high %v1397, %v1489
      %v1543 = vunpack.c.l.s4 1983009808
      %v1544 = vunpack.c.0.s8 %v1543
      %v1545 = vlaneseq
      %v1546 = vshrl.u32 %v1545, 7
      %v1547 = vsub.s32 %v1544, %v1546
      %v1548 = vrot.slane %v1540, %v1547
      %v1550 = vunpack.c.l.s4 1983009808
      %v1551 = vunpack.c.0.s8 %v1550
      %v1552 = vlaneseq
      %v1553 = vshrl.u32 %v1552, 7
      %v1554 = vsub.s32 %v1551, %v1553
      %v1555 = vrot.slane %v1541, %v1554
      %v1556 = vcombine.low %v1443, %v1535
      %v1557 = vcombine.high %v1443, %v1535
      %v1559 = vunpack.c.l.s4 1983009808
      %v1560 = vunpack.c.0.s8 %v1559
      %v1561 = vlaneseq
      %v1562 = vshrl.u32 %v1561, 7
      %v1563 = vsub.s32 %v1560, %v1562
      %v1564 = vrot.slane %v1556, %v1563
      %v1566 = vunpack.c.l.s4 1983009808
      %v1567 = vunpack.c.0.s8 %v1566
      %v1568 = vlaneseq
      %v1569 = vshrl.u32 %v1568, 7
      %v1570 = vsub.s32 %v1567, %v1569
      %v1571 = vrot.slane %v1557, %v1570
      %v1572 = vcombine.low %v1548, %v1564
      %v1573 = vcombine.high %v1548, %v1564
      %v1575 = vunpack.c.l.s4 1934713408
      %v1576 = vunpack.c.0.s8 %v1575
      %v1577 = vlaneseq
      %v1578 = vshrl.u32 %v1577, 7
      %v1579 = vsub.s32 %v1576, %v1578
      %v1580 = vrot.slane %v1572, %v1579
      %v1582 = vunpack.c.l.s4 1934713408
      %v1583 = vunpack.c.0.s8 %v1582
      %v1584 = vlaneseq
      %v1585 = vshrl.u32 %v1584, 7
      %v1586 = vsub.s32 %v1583, %v1585
      %v1587 = vrot.slane %v1573, %v1586
      %v1588 = vcombine.low %v1555, %v1571
      %v1589 = vcombine.high %v1555, %v1571
      %v1591 = vunpack.c.l.s4 1934713408
      %v1592 = vunpack.c.0.s8 %v1591
      %v1593 = vlaneseq
      %v1594 = vshrl.u32 %v1593, 7
      %v1595 = vsub.s32 %v1592, %v1594
      %v1596 = vrot.slane %v1588, %v1595
      %v1598 = vunpack.c.l.s4 1934713408
      %v1599 = vunpack.c.0.s8 %v1598
      %v1600 = vlaneseq
      %v1601 = vshrl.u32 %v1600, 7
      %v1602 = vsub.s32 %v1599, %v1601
      %v1603 = vrot.slane %v1589, %v1602
      %v1604 = vcombine.high %v1580, 0.0
      %v1605 = vcombine.high %v1587, 0.0
      %v1606 = vcombine.high %v1596, 0.0
      %v1607 = vcombine.high %v1603, 0.0
      %v1608 = vcombine.low %v1580, %v1587
      %v1610 = vunpack.c.l.s4 1983009808
      %v1611 = vunpack.c.0.s8 %v1610
      %v1612 = vlaneseq
      %v1613 = vshrl.u32 %v1612, 7
      %v1614 = vsub.s32 %v1611, %v1613
      %v1615 = vrot.slane %v1608, %v1614
      %v1616 = vcombine.low %v1604, %v1605
      %v1618 = vunpack.c.l.s4 1983009808
      %v1619 = vunpack.c.0.s8 %v1618
      %v1620 = vlaneseq
      %v1621 = vshrl.u32 %v1620, 7
      %v1622 = vsub.s32 %v1619, %v1621
      %v1623 = vrot.slane %v1616, %v1622
      %v1624 = vcombine.low %v1596, %v1603
      %v1626 = vunpack.c.l.s4 1983009808
      %v1627 = vunpack.c.0.s8 %v1626
      %v1628 = vlaneseq
      %v1629 = vshrl.u32 %v1628, 7
      %v1630 = vsub.s32 %v1627, %v1629
      %v1631 = vrot.slane %v1624, %v1630
      %v1632 = vcombine.low %v1606, %v1607
      %v1634 = vunpack.c.l.s4 1983009808
      %v1635 = vunpack.c.0.s8 %v1634
      %v1636 = vlaneseq
      %v1637 = vshrl.u32 %v1636, 7
      %v1638 = vsub.s32 %v1635, %v1637
      %v1639 = vrot.slane %v1632, %v1638
      %v1640 = vcombine.low %v1615, %v1623
      %v1641 = vcombine.high %v1615, %v1623
      %v1643 = vunpack.c.l.s4 1934713408
      %v1644 = vunpack.c.0.s8 %v1643
      %v1645 = vlaneseq
      %v1646 = vshrl.u32 %v1645, 7
      %v1647 = vsub.s32 %v1644, %v1646
      %v1648 = vrot.slane %v1640, %v1647
      %v1650 = vunpack.c.l.s4 1934713408
      %v1651 = vunpack.c.0.s8 %v1650
      %v1652 = vlaneseq
      %v1653 = vshrl.u32 %v1652, 7
      %v1654 = vsub.s32 %v1651, %v1653
      %v1655 = vrot.slane %v1641, %v1654
      %v1656 = vcombine.low %v1631, %v1639
      %v1657 = vcombine.high %v1631, %v1639
      %v1659 = vunpack.c.l.s4 1934713408
      %v1660 = vunpack.c.0.s8 %v1659
      %v1661 = vlaneseq
      %v1662 = vshrl.u32 %v1661, 7
      %v1663 = vsub.s32 %v1660, %v1662
      %v1664 = vrot.slane %v1656, %v1663
      %v1666 = vunpack.c.l.s4 1934713408
      %v1667 = vunpack.c.0.s8 %v1666
      %v1668 = vlaneseq
      %v1669 = vshrl.u32 %v1668, 7
      %v1670 = vsub.s32 %v1667, %v1669
      %v1671 = vrot.slane %v1657, %v1670
      %v1672 = vcombine.low %v1648, %v1664
      %v1673 = vcombine.high %v1648, %v1664
      %v1674 = vcombine.low %v1655, %v1671
      %v1675 = vcombine.high %v1655, %v1671
      %1677 = vrot.lane.b32.xlu0 %v1673, 8
      %v1678 = vpop.permute.xlu0 %1677
      %1681 = vrot.lane.b32.xlu0 %v1674, 16
      %v1682 = vpop.permute.xlu0 %1681
      %1685 = vrot.lane.b32.xlu0 %v1675, 24
      %v1686 = vpop.permute.xlu0 %1685
      %v1688 = vsel %vm1122, %v1672, %v1678
      %vm1689 = vcmask 130048
      %v1690 = vsel %vm1689, %v1688, %v1682
      %vm1691 = vcmask 195584
      %v1692 = vsel %vm1691, %v1690, %v1686
      %v1693 = vpack.c.bf16 %v1692, %v1692
      %v1694 = vld [vmem:[%s6] sm:$0xf]
      %v1695 = vld [vmem:[%s6 + $0x4] sm:$0xf]
      %v1696 = vld [vmem:[%s6 + $0x8] sm:$0xf]
      %v1697 = vld [vmem:[%s6 + $0xc] sm:$0xf]
      %v1698 = vld [vmem:[%s7] sm:$0x1]
      %v1700 = vlaneseq
      %v1701 = vshrl.u32 %v1700, 7
      %v1702 = vsub.s32 0, %v1701
      %v1703 = vrot.slane %v1698, %v1702
      %v1709 = vunpack.c.l.b16 %v1694
      %v1710 = vunpack.c.l.b16 %v1695
      %v1711 = vunpack.c.l.b16 %v1696
      %v1712 = vunpack.c.l.b16 %v1697
      %v1713 = vpack.c.b16 %v1710, %v1709
      %v1714 = vpack.c.b16 %v1712, %v1711
      %v1718 = vsel %vm515, %v1693, 0
      %1720 = vmatprep.subr.bf16.mxu0 0
      %1721 = vmatpush1.bf16.msra.mxu0 %v1713
      %1722 = vmatprep.subr.bf16.mxu0 0
      %1723 = vmatpush1.bf16.msra.mxu0 %v1714
      %1724 = vmatprep.subr.bf16.mxu0 0
      %1725 = vmatpush1.bf16.msra.mxu0 0
      %1726 = vmatprep.subr.bf16.mxu0 0
      %1727 = vmatpush1.bf16.msra.mxu0 0
      %1728 = vmatprep.subr.bf16.mxu0 0
      %1729 = vmatpush1.bf16.msra.mxu0 0
      %1730 = vmatprep.subr.bf16.mxu0 0
      %1731 = vmatpush1.bf16.msra.mxu0 0
      %1732 = vmatprep.subr.bf16.mxu0 0
      %1733 = vmatpush1.bf16.msra.mxu0 0
      %1734 = vmatprep.subr.bf16.mxu0 0
      %1735 = vmatpush1.bf16.msra.mxu0 0
      %1736 = vmatprep.subr.bf16.mxu0 0
      %1737 = vmatpush1.bf16.msra.mxu0 0
      %1738 = vmatprep.subr.bf16.mxu0 0
      %1739 = vmatpush1.bf16.msra.mxu0 0
      %1740 = vmatprep.subr.bf16.mxu0 0
      %1741 = vmatpush1.bf16.msra.mxu0 0
      %1742 = vmatprep.subr.bf16.mxu0 0
      %1743 = vmatpush1.bf16.msra.mxu0 0
      %1744 = vmatprep.subr.bf16.mxu0 0
      %1745 = vmatpush1.bf16.msra.mxu0 0
      %1746 = vmatprep.subr.bf16.mxu0 0
      %1747 = vmatpush1.bf16.msra.mxu0 0
      %1748 = vmatprep.subr.bf16.mxu0 0
      %1749 = vmatpush1.bf16.msra.mxu0 0
      %1750 = vmatprep.subr.bf16.mxu0 0
      %1751 = vmatpush1.bf16.msra.mxu0 0
      %1752 = vmatprep.mubr.bf16.mxu0 0
      %1753 = vmatmul.mubr.bf16.gmra.mrb[0].mxu0 %v1718
      %v1754 = vpop.f32.mrb[0].mxu0
      %v1755 = vadd.f32 %v1703, %v1754
      %v1756 = vpop.f32.mrb[0].mxu0
      %v1757 = vpop.f32.mrb[0].mxu0
      %v1758 = vpop.f32.mrb[0].mxu0
      %1759 = vdwg.mxu0
      %v1760 = vadd.f32 %v512, %v1755
      %v1761 = vld [vmem:[%s8] sm:$0x1]
      %v1762 = vld [vmem:[%s9] sm:$0x1]
      %v1763 = vsel %vm515, %v1760, 0.0
      %1764 = vadd.xlane.f32.xlu0 %v1763
      %v1765 = vpop.xlane.xlu0 %1764
      %v1766 = vmul.f32 %v1765, %v519
      %v1767 = vsub.f32 %v1760, %v1766
      %v1768 = vmul.f32 %v1767, %v1767
      %v1769 = vsel %vm515, %v1768, 0.0
      %1770 = vadd.xlane.f32.xlu0 %v1769
      %v1771 = vpop.xlane.xlu0 %1770
      %v1772 = vmul.f32 %v1771, %v519
      %v1773 = vadd.f32 %v1772, 1e-05
      %v1774 = vrsqrt.pop %v1773
      %v1775 = vmul.f32 %v1767, %v1774
      %v1777 = vlaneseq
      %v1778 = vshrl.u32 %v1777, 7
      %v1779 = vsub.s32 0, %v1778
      %v1780 = vrot.slane %v1761, %v1779
      %v1782 = vmul.f32 %v1775, %v1780
      %v1784 = vlaneseq
      %v1785 = vshrl.u32 %v1784, 7
      %v1786 = vsub.s32 0, %v1785
      %v1787 = vrot.slane %v1762, %v1786
      %v1789 = vadd.f32 %v1782, %v1787
      %v1790 = vpack.c.bf16 %v1789, %v1789
      %v1791 = vld [vmem:[%s10] sm:$0xf]
      %v1792 = vld [vmem:[%s10 + $0x4] sm:$0xf]
      %v1793 = vld [vmem:[%s10 + $0x8] sm:$0xf]
      %v1794 = vld [vmem:[%s10 + $0xc] sm:$0xf]
      %v1795 = vld [vmem:[%s11] sm:$0x1]
      %v1797 = vlaneseq
      %v1798 = vshrl.u32 %v1797, 7
      %v1799 = vsub.s32 0, %v1798
      %v1800 = vrot.slane %v1795, %v1799
      %v1806 = vunpack.c.l.b16 %v1791
      %v1807 = vunpack.c.l.b16 %v1792
      %v1808 = vunpack.c.l.b16 %v1793
      %v1809 = vunpack.c.l.b16 %v1794
      %v1810 = vpack.c.b16 %v1807, %v1806
      %v1811 = vpack.c.b16 %v1809, %v1808
      %v1815 = vsel %vm515, %v1790, 0
      %1817 = vmatprep.subr.bf16.mxu0 0
      %1818 = vmatpush1.bf16.msra.mxu0 %v1810
      %1819 = vmatprep.subr.bf16.mxu0 0
      %1820 = vmatpush1.bf16.msra.mxu0 %v1811
      %1821 = vmatprep.subr.bf16.mxu0 0
      %1822 = vmatpush1.bf16.msra.mxu0 0
      %1823 = vmatprep.subr.bf16.mxu0 0
      %1824 = vmatpush1.bf16.msra.mxu0 0
      %1825 = vmatprep.subr.bf16.mxu0 0
      %1826 = vmatpush1.bf16.msra.mxu0 0
      %1827 = vmatprep.subr.bf16.mxu0 0
      %1828 = vmatpush1.bf16.msra.mxu0 0
      %1829 = vmatprep.subr.bf16.mxu0 0
      %1830 = vmatpush1.bf16.msra.mxu0 0
      %1831 = vmatprep.subr.bf16.mxu0 0
      %1832 = vmatpush1.bf16.msra.mxu0 0
      %1833 = vmatprep.subr.bf16.mxu0 0
      %1834 = vmatpush1.bf16.msra.mxu0 0
      %1835 = vmatprep.subr.bf16.mxu0 0
      %1836 = vmatpush1.bf16.msra.mxu0 0
      %1837 = vmatprep.subr.bf16.mxu0 0
      %1838 = vmatpush1.bf16.msra.mxu0 0
      %1839 = vmatprep.subr.bf16.mxu0 0
      %1840 = vmatpush1.bf16.msra.mxu0 0
      %1841 = vmatprep.subr.bf16.mxu0 0
      %1842 = vmatpush1.bf16.msra.mxu0 0
      %1843 = vmatprep.subr.bf16.mxu0 0
      %1844 = vmatpush1.bf16.msra.mxu0 0
      %1845 = vmatprep.subr.bf16.mxu0 0
      %1846 = vmatpush1.bf16.msra.mxu0 0
      %1847 = vmatprep.subr.bf16.mxu0 0
      %1848 = vmatpush1.bf16.msra.mxu0 0
      %1849 = vmatprep.mubr.bf16.mxu0 0
      %1850 = vmatmul.mubr.bf16.gmra.mrb[0].mxu0 %v1815
      %v1851 = vpop.f32.mrb[0].mxu0
      %v1852 = vadd.f32 %v1800, %v1851
      %v1853 = vpop.f32.mrb[0].mxu0
      %v1854 = vpop.f32.mrb[0].mxu0
      %v1855 = vpop.f32.mrb[0].mxu0
      %1856 = vdwg.mxu0
      %v1857 = vmul.f32 %v1852, 1.702
      %v1858 = vxor.u32 %v1857, 2147483648
      %v1859 = vmul.f32 %v1858, 1.442695
      %v1860 = vpow.pop %v1859
      %v1861 = vadd.f32 %v1860, 1.0
      %v1862 = vrcp.pop %v1861
      %v1863 = vmul.f32 1.0, %v1862
      %v1864 = vmul.f32 %v1852, %v1863
      %v1865 = vpack.c.bf16 %v1864, %v1864
      %v1866 = vld [vmem:[%s12] sm:$0xf]
      %v1867 = vld [vmem:[%s12 + $0x4] sm:$0xf]
      %v1868 = vld [vmem:[%s12 + $0x8] sm:$0xf]
      %v1869 = vld [vmem:[%s12 + $0xc] sm:$0xf]
      %v1870 = vld [vmem:[%s12 + $0x10] sm:$0xf]
      %v1871 = vld [vmem:[%s12 + $0x14] sm:$0xf]
      %v1872 = vld [vmem:[%s12 + $0x18] sm:$0xf]
      %v1873 = vld [vmem:[%s12 + $0x1c] sm:$0xf]
      %v1874 = vld [vmem:[%s12 + $0x20] sm:$0xf]
      %v1875 = vld [vmem:[%s12 + $0x24] sm:$0xf]
      %v1876 = vld [vmem:[%s12 + $0x28] sm:$0xf]
      %v1877 = vld [vmem:[%s12 + $0x2c] sm:$0xf]
      %v1878 = vld [vmem:[%s12 + $0x30] sm:$0xf]
      %v1879 = vld [vmem:[%s12 + $0x34] sm:$0xf]
      %v1880 = vld [vmem:[%s12 + $0x38] sm:$0xf]
      %v1881 = vld [vmem:[%s12 + $0x3c] sm:$0xf]
      %v1882 = vld [vmem:[%s13] sm:$0x1]
      %v1884 = vlaneseq
      %v1885 = vshrl.u32 %v1884, 7
      %v1886 = vsub.s32 0, %v1885
      %v1887 = vrot.slane %v1882, %v1886
      %v1905 = vunpack.c.l.b16 %v1866
      %v1906 = vunpack.c.l.b16 %v1867
      %v1907 = vunpack.c.l.b16 %v1868
      %v1908 = vunpack.c.l.b16 %v1869
      %v1909 = vunpack.c.l.b16 %v1870
      %v1910 = vunpack.c.l.b16 %v1871
      %v1911 = vunpack.c.l.b16 %v1872
      %v1912 = vunpack.c.l.b16 %v1873
      %v1913 = vunpack.c.l.b16 %v1874
      %v1914 = vunpack.c.l.b16 %v1875
      %v1915 = vunpack.c.l.b16 %v1876
      %v1916 = vunpack.c.l.b16 %v1877
      %v1917 = vunpack.c.l.b16 %v1878
      %v1918 = vunpack.c.l.b16 %v1879
      %v1919 = vunpack.c.l.b16 %v1880
      %v1920 = vunpack.c.l.b16 %v1881
      %v1921 = vpack.c.b16 %v1906, %v1905
      %v1922 = vpack.c.b16 %v1908, %v1907
      %v1923 = vpack.c.b16 %v1910, %v1909
      %v1924 = vpack.c.b16 %v1912, %v1911
      %v1925 = vpack.c.b16 %v1914, %v1913
      %v1926 = vpack.c.b16 %v1916, %v1915
      %v1927 = vpack.c.b16 %v1918, %v1917
      %v1928 = vpack.c.b16 %v1920, %v1919
      %1937 = vmatprep.subr.bf16.mxu0 0
      %1938 = vmatpush1.bf16.msra.mxu0 %v1921
      %1939 = vmatprep.subr.bf16.mxu0 0
      %1940 = vmatpush1.bf16.msra.mxu0 %v1922
      %1941 = vmatprep.subr.bf16.mxu0 0
      %1942 = vmatpush1.bf16.msra.mxu0 %v1923
      %1943 = vmatprep.subr.bf16.mxu0 0
      %1944 = vmatpush1.bf16.msra.mxu0 %v1924
      %1945 = vmatprep.subr.bf16.mxu0 0
      %1946 = vmatpush1.bf16.msra.mxu0 %v1925
      %1947 = vmatprep.subr.bf16.mxu0 0
      %1948 = vmatpush1.bf16.msra.mxu0 %v1926
      %1949 = vmatprep.subr.bf16.mxu0 0
      %1950 = vmatpush1.bf16.msra.mxu0 %v1927
      %1951 = vmatprep.subr.bf16.mxu0 0
      %1952 = vmatpush1.bf16.msra.mxu0 %v1928
      %1953 = vmatprep.subr.bf16.mxu0 0
      %1954 = vmatpush1.bf16.msra.mxu0 0
      %1955 = vmatprep.subr.bf16.mxu0 0
      %1956 = vmatpush1.bf16.msra.mxu0 0
      %1957 = vmatprep.subr.bf16.mxu0 0
      %1958 = vmatpush1.bf16.msra.mxu0 0
      %1959 = vmatprep.subr.bf16.mxu0 0
      %1960 = vmatpush1.bf16.msra.mxu0 0
      %1961 = vmatprep.subr.bf16.mxu0 0
      %1962 = vmatpush1.bf16.msra.mxu0 0
      %1963 = vmatprep.subr.bf16.mxu0 0
      %1964 = vmatpush1.bf16.msra.mxu0 0
      %1965 = vmatprep.subr.bf16.mxu0 0
      %1966 = vmatpush1.bf16.msra.mxu0 0
      %1967 = vmatprep.subr.bf16.mxu0 0
      %1968 = vmatpush1.bf16.msra.mxu0 0
      %1969 = vmatprep.mubr.bf16.mxu0 0
      %1970 = vmatmul.mubr.bf16.gmra.mrb[0].mxu0 %v1865
      %v1971 = vpop.f32.mrb[0].mxu0
      %v1972 = vadd.f32 %v1887, %v1971
      %v1973 = vpop.f32.mrb[0].mxu0
      %v1974 = vpop.f32.mrb[0].mxu0
      %v1975 = vpop.f32.mrb[0].mxu0
      %1976 = vdwg.mxu0
      %v1977 = vadd.f32 %v1760, %v1972
      %1978 = vst.msk [vmem:[%s510] sm:$0xff] %vm515, %v1977
      %p1979 = scmp.lt.s32.totalorder %s29, 1
      %s1980 = scalar_select %p1979, %s29, 1
      %p1981 = scmp.lt.s32.totalorder %s30, 0
      %s1982 = scalar_select %p1981, %s30, 0
      %s1983 = sadd.s32 %s1982, %s1980
      %s1984 = smul.addr %s1983, 8
      %s1985 = scalar_lea.vmem %s14, %s1984
      // Predicated region
      $region77: #{transformer_forward.2} parent=75 // pred_check
        %p1986 = pneg %p363
      $region78: #{transformer_forward.2} parent=75 // pred_check_branch
        %1988 = sbr.rel (%p1986) target = $region80
      $region79: #{transformer_forward.2} parent=75 // pred_region
        _
      $region80: #{transformer_forward.2} parent=75 // pred_fallthru
        _
    $region76: #{transformer_forward.2} parent=5 // pred_fallthru
      _
    %p1989 = scmp.le.s32.totalorder 2, %s20
    // Predicated region
    $region81: #{transformer_forward.2} parent=5 // pred_check
      %p1990 = pneg %p1989
    $region82: #{transformer_forward.2} parent=5 // pred_check_branch
      %1992 = sbr.rel (%p1990) target = $region84
    $region83: #{transformer_forward.2} parent=5 // pred_region
      %s1993 = ssub.s32 %s20, 2
      // Predicated region
      $region85: #{transformer_forward.2} parent=83 // pred_check
        %p1994 = pneg %p369
      $region86: #{transformer_forward.2} parent=83 // pred_check_branch
        %1996 = sbr.rel (%p1994) target = $region88
      $region87: #{transformer_forward.2} parent=83 // pred_region
        %p1997 = scmp.lt.s32.totalorder %s31, 1
        %s1998 = scalar_select %p1997, %s31, 1
        %p1999 = scmp.lt.s32.totalorder %s32, 0
        %s2000 = scalar_select %p1999, %s32, 0
        %s2001 = sadd.s32 %s2000, %s1998
        %s2002 = smul.addr %s2001, 8
        %s2003 = scalar_lea.vmem %s14, %s2002
      $region88: #{transformer_forward.2} parent=83 // pred_fallthru
        _
    $region84: #{transformer_forward.2} parent=5 // pred_fallthru
      _
  $region6: #{transformer_forward.2} parent=0 // loop_footer
    %s24 = sadd.s32 1, %s20
  $region7: #{transformer_forward.2} parent=0 // loop_footer_branch
    %19 = sbr.rel target = $region3
  $region8: #{transformer_forward.2} parent=0 // loop_exit
    _

</llo_original>
